<compile_context>
chip_gen: v7x
topology: tpu7x:2x2x1
jax: 0.10.0
libtpu: 0.0.40
codegen_flags: <defaults>
</compile_context>

<pallas_src>
import jax
import jax.numpy as jnp
from jax.experimental import pallas as pl
from jax.experimental.pallas import tpu as pltpu

EPS = 1e-5
MXU_DTYPE = jnp.bfloat16          # MXU operand dtype (f32 accumulation).
VMEM_LIMIT = 32 * 1024 * 1024


# ---------------------------------------------------------------------------
# In-kernel helpers
# ---------------------------------------------------------------------------
def _bn_scale_shift(total, total_sq, count, g_ref, b_ref):
    """One-pass batch stats (biased var, PyTorch training semantics) folded with the
    affine into a single per-channel scale/shift."""
    mean = total / count
    var = total_sq / count - mean * mean
    scale = g_ref[...].reshape(1, 1, 1, -1) * jax.lax.rsqrt(var + EPS)
    shift = b_ref[...].reshape(1, 1, 1, -1) - mean * scale
    return scale, shift


def _bn_relu(y, g_ref, b_ref):
    """Training-mode BatchNorm2d (stats over N,H,W) followed by ReLU."""
    n, h, w, _ = y.shape
    cnt = float(n * h * w)
    total = jnp.sum(y, axis=(0, 1, 2), keepdims=True)
    total_sq = jnp.sum(y * y, axis=(0, 1, 2), keepdims=True)
    scale, shift = _bn_scale_shift(total, total_sq, cnt, g_ref, b_ref)
    return jnp.maximum(y * scale + shift, 0.0)


def _convt_phases(pp, wp_ref):
    """Phase-decomposed ConvTranspose2d(k=4, s=2, p=1).

    pp:     (N, Hin+2, Win+2, Cin) f32 input, zero-padded by 1.
    wp_ref: (4, 4*Cin, Cout) per-phase 2x2 sub-kernels; phase p = 2*r + s,
            row = (2*dy + dx)*Cin + ic.
    Returns 4 f32 tensors (N, Hin, Win, Cout); output pixel (2a+r, 2b+s) of the
    transposed conv equals phases[2*r+s][a, b].  Each phase is one im2col matmul
    with a 4*Cin-wide MXU contraction (no zero-dilated MACs).
    """
    n, hp, wp_, c = pp.shape
    hin, win = hp - 2, wp_ - 2
    cout = wp_ref.shape[-1]
    m = n * hin * win
    outs = []
    for r in range(2):
        for s in range(2):
            patch = jnp.concatenate(
                [pp[:, r + dy:r + dy + hin, s + dx:s + dx + win, :]
                 for dy in range(2) for dx in range(2)],
                axis=-1)                                         # (N, Hin, Win, 4*Cin)
            y = jnp.dot(patch.reshape(m, 4 * c).astype(MXU_DTYPE),
                        wp_ref[2 * r + s],
                        preferred_element_type=jnp.float32)
            outs.append(y.reshape(n, hin, win, cout))
    return outs


# ---------------------------------------------------------------------------
# Pallas kernels
# ---------------------------------------------------------------------------
def res_convt1_kernel(xp_ref, w1_ref, w2_ref, wt1_ref,
                      g1_ref, b1_ref, g2_ref, b2_ref, g3_ref, b3_ref,
                      g4_ref, b4_ref, o_ref, zp_ref):
    """Fused: res_block (conv3x3->BN->ReLU->conv1x1->BN->ReLU), residual add,
    BN->ReLU, then ConvTranspose2d(4,2,1) via phase decomposition, BN->ReLU.
    The 4 parity phases are packed along the last dim (lane-dense 4*C store)."""
    n, hp, wp_, c = xp_ref.shape
    h, w = hp - 2, wp_ - 2
    m = n * h * w

    xp = xp_ref[...]                                             # f32 (N, H+2, W+2, C)

    # conv3x3 as a single im2col matmul: contraction width 9*C (fills MXU rows)
    patch3 = jnp.concatenate(
        [xp[:, dy:dy + h, dx:dx + w, :] for dy in range(3) for dx in range(3)],
        axis=-1)                                                 # (N, H, W, 9C)
    y1 = jnp.dot(patch3.reshape(m, 9 * c).astype(MXU_DTYPE), w1_ref[...],
                 preferred_element_type=jnp.float32).reshape(n, h, w, c)
    a1 = _bn_relu(y1, g1_ref, b1_ref)

    # conv1x1
    y2 = jnp.dot(a1.reshape(m, c).astype(MXU_DTYPE), w2_ref[...],
                 preferred_element_type=jnp.float32).reshape(n, h, w, c)
    a2 = _bn_relu(y2, g2_ref, b2_ref)

    # residual add (x is the interior of xp) + leading BN/ReLU of conv_block
    z = _bn_relu(xp[:, 1:h + 1, 1:w + 1, :] + a2, g3_ref, b3_ref)

    # zero-pad z by 1 inside a VMEM scratch (no XLA pad / HBM round trip)
    zp_ref[...] = jnp.zeros(zp_ref.shape, jnp.float32)
    zp_ref[:, 1:h + 1, 1:w + 1, :] = z

    # ConvTranspose2d(C, C, 4, 2, 1, bias=False) by phases; BatchNorm over the union
    # of the 4 phases (== the full (N, 2H, 2W) population) + ReLU.
    phases = _convt_phases(zp_ref[...], wt1_ref)
    cnt = float(4 * m)
    total = sum(jnp.sum(p, axis=(0, 1, 2), keepdims=True) for p in phases)
    total_sq = sum(jnp.sum(p * p, axis=(0, 1, 2), keepdims=True) for p in phases)
    scale, shift = _bn_scale_shift(total, total_sq, cnt, g4_ref, b4_ref)
    o_ref[...] = jnp.concatenate(
        [jnp.maximum(p * scale + shift, 0.0) for p in phases],
        axis=-1).astype(o_ref.dtype)                             # (N, H, W, 4C)


def convt2_bn_tanh_kernel(tp_ref, wt2_ref, g5_ref, b5_ref, o_ref):
    """ConvTranspose2d(C, ch, 4, 2, 1) by phase decomposition -> BatchNorm -> Tanh.
    The conv bias is folded away: training-mode BatchNorm's mean subtraction cancels
    a per-channel constant exactly.  Phases packed along the last dim."""
    n, hp, wp_, _ = tp_ref.shape
    h2, w2 = hp - 2, wp_ - 2
    phases = _convt_phases(tp_ref[...], wt2_ref)
    cnt = float(4 * n * h2 * w2)
    total = sum(jnp.sum(p, axis=(0, 1, 2), keepdims=True) for p in phases)
    total_sq = sum(jnp.sum(p * p, axis=(0, 1, 2), keepdims=True) for p in phases)
    scale, shift = _bn_scale_shift(total, total_sq, cnt, g5_ref, b5_ref)
    o_ref[...] = jnp.concatenate(
        [jnp.tanh(p * scale + shift) for p in phases],
        axis=-1).astype(o_ref.dtype)                             # (N, 2H, 2W, 4*ch)


# ---------------------------------------------------------------------------
# pallas_call wrappers + (cheap) XLA glue
# ---------------------------------------------------------------------------
def _vmem():
    return pl.BlockSpec(memory_space=pltpu.MemorySpace.VMEM)


def _deinterleave_phases(packed, c):
    """(N, H, W, 4*C) phase-packed [p00|p01|p10|p11] -> (N, 2H, 2W, C);
    pixel (2a+r, 2b+s) = phase(2r+s)[a, b]."""
    n, h, w, _ = packed.shape
    o = packed.reshape(n, h, w, 2, 2, c)                          # (n, a, b, r, s, c)
    return jnp.transpose(o, (0, 1, 3, 2, 4, 5)).reshape(n, 2 * h, 2 * w, c)


def decoder_forward(x_nchw, p):
    x = jnp.transpose(x_nchw, (0, 2, 3, 1)).astype(jnp.float32)   # NCHW -> NHWC
    n, h, w, c = x.shape
    ch = p["wT2p"].shape[-1]
    cparams = pltpu.CompilerParams(vmem_limit_bytes=VMEM_LIMIT)

    # Stage 1 (one fused kernel): res_block + residual + BN/ReLU + ConvT1(phases)+BN/ReLU
    xp = jnp.pad(x, ((0, 0), (1, 1), (1, 1), (0, 0)))
    packed1 = pl.pallas_call(
        res_convt1_kernel,
        out_shape=jax.ShapeDtypeStruct((n, h, w, 4 * c), jnp.float32),
        in_specs=[_vmem()] * 12,
        out_specs=_vmem(),
        scratch_shapes=[pltpu.VMEM((n, h + 2, w + 2, c), jnp.float32)],
        compiler_params=cparams,
    )(xp, p["w1f"], p["w2"], p["wT1p"],
      p["g1"], p["b1"], p["g2"], p["b2"], p["g3"], p["b3"], p["g4"], p["b4"])

    t1 = _deinterleave_phases(packed1, c)                         # (N, 2H, 2W, C)
    t1p = jnp.pad(t1, ((0, 0), (1, 1), (1, 1), (0, 0)))

    # Stage 2: ConvT2(phases) + BN + Tanh (bias folded into BN)
    packed2 = pl.pallas_call(
        convt2_bn_tanh_kernel,
        out_shape=jax.ShapeDtypeStruct((n, 2 * h, 2 * w, 4 * ch), jnp.float32),
        in_specs=[_vmem()] * 4,
        out_specs=_vmem(),
        compiler_params=cparams,
    )(t1p, p["wT2p"], p["g5"], p["b5"])

    y = _deinterleave_phases(packed2, ch)                         # (N, 4H, 4W, ch)
    return jnp.transpose(y, (0, 3, 1, 2))                         # back to NCHW


decoder_forward = jax.jit(decoder_forward)


# ---------------------------------------------------------------------------
# Weight-layout conversion (PyTorch layouts -> kernel layouts)
# ---------------------------------------------------------------------------
def _convt_phase_weights(wT):
    """ConvTranspose2d weight (I, O, 4, 4) -> per-phase 2x2 sub-kernels flattened for
    im2col: (4, 4*I, O).  Derived from
        out[2a+r, 2b+s] = sum_{dy,dx} xpad[a+r+dy, b+s+dx] . wT[:, :, ky, kx],
        ky = (3 if r == 0 else 2) - 2*dy,  kx = (3 if s == 0 else 2) - 2*dx.
    """
    w_hwio = jnp.transpose(wT, (2, 3, 0, 1))                      # (kH, kW, I, O)
    phases = []
    for r in range(2):
        for s in range(2):
            taps = [w_hwio[3 - 2 * dy - r, 3 - 2 * dx - s]
                    for dy in range(2) for dx in range(2)]
            phases.append(jnp.concatenate(taps, axis=0))          # (4I, O)
    return jnp.stack(phases, axis=0)                              # (4, 4I, O)


def prepare_params(tp):
    o, i, kh, kw = tp["w1"].shape
    p = dict(
        w1f=jnp.transpose(tp["w1"], (2, 3, 1, 0)).reshape(kh * kw * i, o).astype(MXU_DTYPE),
        w2=jnp.transpose(tp["w2"][:, :, 0, 0], (1, 0)).astype(MXU_DTYPE),
        wT1p=_convt_phase_weights(tp["wT1"]).astype(MXU_DTYPE),
        wT2p=_convt_phase_weights(tp["wT2"]).astype(MXU_DTYPE),
    )
    for k in ("g1", "b1", "g2", "b2", "g3", "b3", "g4", "b4", "g5", "b5"):
        p[k] = tp[k]
    return p


# ---------------------------------------------------------------------------
# Pure-JAX f32 reference (XLA convs, PyTorch semantics incl. the ConvT bias)
# ---------------------------------------------------------------------------
def decoder_reference(x_nchw, tp):
    x = jnp.transpose(x_nchw, (0, 2, 3, 1)).astype(jnp.float32)

    def conv(a, w_hwio, pad, dil=1):
        return jax.lax.conv_general_dilated(
            a, w_hwio, window_strides=(1, 1), padding=[(pad, pad), (pad, pad)],
            lhs_dilation=(dil, dil), dimension_numbers=("NHWC", "HWIO", "NHWC"))

    def bn(y, g, b):
        m = jnp.mean(y, axis=(0, 1, 2), keepdims=True)
        v = jnp.mean((y - m) ** 2, axis=(0, 1, 2), keepdims=True)
        return (y - m) * jax.lax.rsqrt(v + EPS) * g.reshape(1, 1, 1, -1) + b.reshape(1, 1, 1, -1)

    w1 = jnp.transpose(tp["w1"], (2, 3, 1, 0))
    w2 = jnp.transpose(tp["w2"], (2, 3, 1, 0))
    wt1 = jnp.transpose(tp["wT1"][:, :, ::-1, ::-1], (2, 3, 0, 1))  # ConvT == dilated conv, flipped kernel
    wt2 = jnp.transpose(tp["wT2"][:, :, ::-1, ::-1], (2, 3, 0, 1))

    h = jax.nn.relu(bn(conv(x, w1, 1), tp["g1"], tp["b1"]))
    h = jax.nn.relu(bn(conv(h, w2, 0), tp["g2"], tp["b2"]))
    x = x + h
    x = jax.nn.relu(bn(x, tp["g3"], tp["b3"]))
    x = jax.nn.relu(bn(conv(x, wt1, 2, dil=2), tp["g4"], tp["b4"]))
    x = conv(x, wt2, 2, dil=2) + tp["b_out"].reshape(1, 1, 1, -1)
    x = jnp.tanh(bn(x, tp["g5"], tp["b5"]))
    return jnp.transpose(x, (0, 3, 1, 2))


# ---------------------------------------------------------------------------
if __name__ == "__main__":
    hidden, channels = 32, 4
    batch, spatial = 2, 8

    key = jax.random.PRNGKey(0)
    ks = jax.random.split(key, 16)

    def nrm(k, shape, scale=0.1):
        return scale * jax.random.normal(k, shape, jnp.float32)

    # Deterministic synthetic parameters in PyTorch layouts.
    tp = dict(
        w1=nrm(ks[0], (hidden, hidden, 3, 3)),        # Conv2d (O,I,kH,kW)
        w2=nrm(ks[1], (hidden, hidden, 1, 1)),        # Conv2d 1x1
        wT1=nrm(ks[2], (hidden, hidden, 4, 4)),       # ConvTranspose2d (I,O,kH,kW)
        wT2=nrm(ks[3], (hidden, channels, 4, 4)),
        b_out=nrm(ks[4], (channels,)),
        g1=1.0 + nrm(ks[5], (1, hidden)),  b1=nrm(ks[6], (1, hidden)),
        g2=1.0 + nrm(ks[7], (1, hidden)),  b2=nrm(ks[8], (1, hidden)),
        g3=1.0 + nrm(ks[9], (1, hidden)),  b3=nrm(ks[10], (1, hidden)),
        g4=1.0 + nrm(ks[11], (1, hidden)), b4=nrm(ks[12], (1, hidden)),
        g5=1.0 + nrm(ks[13], (1, channels)), b5=nrm(ks[14], (1, channels)),
    )

    # PyTorch-style NCHW input: (N, hidden_dim, H, W)
    x = jax.random.normal(ks[15], (batch, hidden, spatial, spatial), jnp.float32)

    p = prepare_params(tp)
    out = jax.block_until_ready(decoder_forward(x, p))
    assert out.shape == (batch, channels, 4 * spatial, 4 * spatial), out.shape

    ref = jax.block_until_ready(decoder_reference(x, tp))
    # Tolerance reflects bf16 MXU operands (f32 accumulation) vs the f32 reference.
    tol = 3e-2 if MXU_DTYPE == jnp.bfloat16 else 2e-3
    max_err = float(jnp.max(jnp.abs(out - ref)))
    assert jnp.allclose(out, ref, atol=tol, rtol=tol), f"max_err={max_err}"

    print("KERNEL_OK")
</pallas_src>

<mosaic_0001>
module attributes {stable_mosaic.version = 11 : i64} {
  func.func @res_convt1_kernel(%arg0: memref<2x10x10x32xf32, #tpu.memory_space<vmem>>, %arg1: memref<288x32xbf16, #tpu.memory_space<vmem>>, %arg2: memref<32x32xbf16, #tpu.memory_space<vmem>>, %arg3: memref<4x128x32xbf16, #tpu.memory_space<vmem>>, %arg4: memref<1x32xf32, #tpu.memory_space<vmem>>, %arg5: memref<1x32xf32, #tpu.memory_space<vmem>>, %arg6: memref<1x32xf32, #tpu.memory_space<vmem>>, %arg7: memref<1x32xf32, #tpu.memory_space<vmem>>, %arg8: memref<1x32xf32, #tpu.memory_space<vmem>>, %arg9: memref<1x32xf32, #tpu.memory_space<vmem>>, %arg10: memref<1x32xf32, #tpu.memory_space<vmem>>, %arg11: memref<1x32xf32, #tpu.memory_space<vmem>>, %arg12: memref<2x8x8x128xf32, #tpu.memory_space<vmem>>, %arg13: memref<2x10x10x32xf32, #tpu.memory_space<vmem>>) attributes {dimension_semantics = [], scalar_prefetch = 0 : i64, scratch_operands = 1 : i64, tpu.core_type = #tpu.core_type<tc>} {
    %c0 = arith.constant 0 : index
    %c0_0 = arith.constant 0 : index
    %c0_1 = arith.constant 0 : index
    %c0_2 = arith.constant 0 : index
    %0 = vector.load %arg0[%c0, %c0_0, %c0_1, %c0_2] : memref<2x10x10x32xf32, #tpu.memory_space<vmem>>, vector<2x10x10x32xf32>
    %1 = vector.extract_strided_slice %0 {offsets = [0, 0, 0, 0], sizes = [2, 8, 8, 32], strides = [1, 1, 1, 1]} : vector<2x10x10x32xf32> to vector<2x8x8x32xf32>
    %2 = vector.extract_strided_slice %0 {offsets = [0, 0, 1, 0], sizes = [2, 8, 8, 32], strides = [1, 1, 1, 1]} : vector<2x10x10x32xf32> to vector<2x8x8x32xf32>
    %3 = vector.extract_strided_slice %0 {offsets = [0, 0, 2, 0], sizes = [2, 8, 8, 32], strides = [1, 1, 1, 1]} : vector<2x10x10x32xf32> to vector<2x8x8x32xf32>
    %4 = vector.extract_strided_slice %0 {offsets = [0, 1, 0, 0], sizes = [2, 8, 8, 32], strides = [1, 1, 1, 1]} : vector<2x10x10x32xf32> to vector<2x8x8x32xf32>
    %5 = vector.extract_strided_slice %0 {offsets = [0, 1, 1, 0], sizes = [2, 8, 8, 32], strides = [1, 1, 1, 1]} : vector<2x10x10x32xf32> to vector<2x8x8x32xf32>
    %6 = vector.extract_strided_slice %0 {offsets = [0, 1, 2, 0], sizes = [2, 8, 8, 32], strides = [1, 1, 1, 1]} : vector<2x10x10x32xf32> to vector<2x8x8x32xf32>
    %7 = vector.extract_strided_slice %0 {offsets = [0, 2, 0, 0], sizes = [2, 8, 8, 32], strides = [1, 1, 1, 1]} : vector<2x10x10x32xf32> to vector<2x8x8x32xf32>
    %8 = vector.extract_strided_slice %0 {offsets = [0, 2, 1, 0], sizes = [2, 8, 8, 32], strides = [1, 1, 1, 1]} : vector<2x10x10x32xf32> to vector<2x8x8x32xf32>
    %9 = vector.extract_strided_slice %0 {offsets = [0, 2, 2, 0], sizes = [2, 8, 8, 32], strides = [1, 1, 1, 1]} : vector<2x10x10x32xf32> to vector<2x8x8x32xf32>
    %10 = tpu.concatenate %1, %2, %3, %4, %5, %6, %7, %8, %9 in 3 : vector<2x8x8x32xf32>, vector<2x8x8x32xf32>, vector<2x8x8x32xf32>, vector<2x8x8x32xf32>, vector<2x8x8x32xf32>, vector<2x8x8x32xf32>, vector<2x8x8x32xf32>, vector<2x8x8x32xf32>, vector<2x8x8x32xf32> -> vector<2x8x8x288xf32>
    %11 = vector.shape_cast %10 : vector<2x8x8x288xf32> to vector<128x288xf32>
    %12 = arith.truncf %11 : vector<128x288xf32> to vector<128x288xbf16>
    %c0_3 = arith.constant 0 : index
    %c0_4 = arith.constant 0 : index
    %13 = vector.load %arg1[%c0_3, %c0_4] : memref<288x32xbf16, #tpu.memory_space<vmem>>, vector<288x32xbf16>
    %cst = arith.constant dense<0.000000e+00> : vector<128x32xf32>
    %14 = tpu.matmul %12, %13, %cst {dimension_numbers = #tpu.dot_dimension_numbers<[1], [0], [0], [1], [0, 0, 1, 1], [], []>} : vector<128x288xbf16>, vector<288x32xbf16>, vector<128x32xf32> -> vector<128x32xf32>
    %15 = vector.shape_cast %14 : vector<128x32xf32> to vector<2x8x8x32xf32>
    %cst_5 = arith.constant dense<0.000000e+00> : vector<32xf32>
    %16 = vector.multi_reduction <add>, %15, %cst_5 [0, 1, 2] : vector<2x8x8x32xf32> to vector<32xf32>
    %17 = vector.shape_cast %16 : vector<32xf32> to vector<1x1x1x32xf32>
    %18 = arith.mulf %15, %15 : vector<2x8x8x32xf32>
    %cst_6 = arith.constant dense<0.000000e+00> : vector<32xf32>
    %19 = vector.multi_reduction <add>, %18, %cst_6 [0, 1, 2] : vector<2x8x8x32xf32> to vector<32xf32>
    %20 = vector.shape_cast %19 : vector<32xf32> to vector<1x1x1x32xf32>
    %cst_7 = arith.constant 1.280000e+02 : f32
    %21 = vector.broadcast %cst_7 : f32 to vector<1x1x1x32xf32>
    %22 = arith.divf %17, %21 : vector<1x1x1x32xf32>
    %cst_8 = arith.constant 1.280000e+02 : f32
    %23 = vector.broadcast %cst_8 : f32 to vector<1x1x1x32xf32>
    %24 = arith.divf %20, %23 : vector<1x1x1x32xf32>
    %25 = arith.mulf %22, %22 : vector<1x1x1x32xf32>
    %26 = arith.subf %24, %25 : vector<1x1x1x32xf32>
    %c0_9 = arith.constant 0 : index
    %c0_10 = arith.constant 0 : index
    %27 = vector.load %arg4[%c0_9, %c0_10] : memref<1x32xf32, #tpu.memory_space<vmem>>, vector<1x32xf32>
    %28 = vector.shape_cast %27 : vector<1x32xf32> to vector<1x1x1x32xf32>
    %cst_11 = arith.constant 9.99999974E-6 : f32
    %29 = vector.broadcast %cst_11 : f32 to vector<1x1x1x32xf32>
    %30 = arith.addf %26, %29 : vector<1x1x1x32xf32>
    %31 = math.rsqrt %30 : vector<1x1x1x32xf32>
    %32 = arith.mulf %28, %31 : vector<1x1x1x32xf32>
    %c0_12 = arith.constant 0 : index
    %c0_13 = arith.constant 0 : index
    %33 = vector.load %arg5[%c0_12, %c0_13] : memref<1x32xf32, #tpu.memory_space<vmem>>, vector<1x32xf32>
    %34 = vector.shape_cast %33 : vector<1x32xf32> to vector<1x1x1x32xf32>
    %35 = arith.mulf %22, %32 : vector<1x1x1x32xf32>
    %36 = arith.subf %34, %35 : vector<1x1x1x32xf32>
    %37 = vector.broadcast %32 : vector<1x1x1x32xf32> to vector<2x8x8x32xf32>
    %38 = arith.mulf %15, %37 : vector<2x8x8x32xf32>
    %39 = vector.broadcast %36 : vector<1x1x1x32xf32> to vector<2x8x8x32xf32>
    %40 = arith.addf %38, %39 : vector<2x8x8x32xf32>
    %cst_14 = arith.constant 0.000000e+00 : f32
    %41 = vector.broadcast %cst_14 : f32 to vector<2x8x8x32xf32>
    %42 = arith.maximumf %40, %41 : vector<2x8x8x32xf32>
    %43 = vector.shape_cast %42 : vector<2x8x8x32xf32> to vector<128x32xf32>
    %44 = arith.truncf %43 : vector<128x32xf32> to vector<128x32xbf16>
    %c0_15 = arith.constant 0 : index
    %c0_16 = arith.constant 0 : index
    %45 = vector.load %arg2[%c0_15, %c0_16] : memref<32x32xbf16, #tpu.memory_space<vmem>>, vector<32x32xbf16>
    %cst_17 = arith.constant dense<0.000000e+00> : vector<128x32xf32>
    %46 = tpu.matmul %44, %45, %cst_17 {dimension_numbers = #tpu.dot_dimension_numbers<[1], [0], [0], [1], [0, 0, 1, 1], [], []>} : vector<128x32xbf16>, vector<32x32xbf16>, vector<128x32xf32> -> vector<128x32xf32>
    %47 = vector.shape_cast %46 : vector<128x32xf32> to vector<2x8x8x32xf32>
    %cst_18 = arith.constant dense<0.000000e+00> : vector<32xf32>
    %48 = vector.multi_reduction <add>, %47, %cst_18 [0, 1, 2] : vector<2x8x8x32xf32> to vector<32xf32>
    %49 = vector.shape_cast %48 : vector<32xf32> to vector<1x1x1x32xf32>
    %50 = arith.mulf %47, %47 : vector<2x8x8x32xf32>
    %cst_19 = arith.constant dense<0.000000e+00> : vector<32xf32>
    %51 = vector.multi_reduction <add>, %50, %cst_19 [0, 1, 2] : vector<2x8x8x32xf32> to vector<32xf32>
    %52 = vector.shape_cast %51 : vector<32xf32> to vector<1x1x1x32xf32>
    %cst_20 = arith.constant 1.280000e+02 : f32
    %53 = vector.broadcast %cst_20 : f32 to vector<1x1x1x32xf32>
    %54 = arith.divf %49, %53 : vector<1x1x1x32xf32>
    %cst_21 = arith.constant 1.280000e+02 : f32
    %55 = vector.broadcast %cst_21 : f32 to vector<1x1x1x32xf32>
    %56 = arith.divf %52, %55 : vector<1x1x1x32xf32>
    %57 = arith.mulf %54, %54 : vector<1x1x1x32xf32>
    %58 = arith.subf %56, %57 : vector<1x1x1x32xf32>
    %c0_22 = arith.constant 0 : index
    %c0_23 = arith.constant 0 : index
    %59 = vector.load %arg6[%c0_22, %c0_23] : memref<1x32xf32, #tpu.memory_space<vmem>>, vector<1x32xf32>
    %60 = vector.shape_cast %59 : vector<1x32xf32> to vector<1x1x1x32xf32>
    %cst_24 = arith.constant 9.99999974E-6 : f32
    %61 = vector.broadcast %cst_24 : f32 to vector<1x1x1x32xf32>
    %62 = arith.addf %58, %61 : vector<1x1x1x32xf32>
    %63 = math.rsqrt %62 : vector<1x1x1x32xf32>
    %64 = arith.mulf %60, %63 : vector<1x1x1x32xf32>
    %c0_25 = arith.constant 0 : index
    %c0_26 = arith.constant 0 : index
    %65 = vector.load %arg7[%c0_25, %c0_26] : memref<1x32xf32, #tpu.memory_space<vmem>>, vector<1x32xf32>
    %66 = vector.shape_cast %65 : vector<1x32xf32> to vector<1x1x1x32xf32>
    %67 = arith.mulf %54, %64 : vector<1x1x1x32xf32>
    %68 = arith.subf %66, %67 : vector<1x1x1x32xf32>
    %69 = vector.broadcast %64 : vector<1x1x1x32xf32> to vector<2x8x8x32xf32>
    %70 = arith.mulf %47, %69 : vector<2x8x8x32xf32>
    %71 = vector.broadcast %68 : vector<1x1x1x32xf32> to vector<2x8x8x32xf32>
    %72 = arith.addf %70, %71 : vector<2x8x8x32xf32>
    %cst_27 = arith.constant 0.000000e+00 : f32
    %73 = vector.broadcast %cst_27 : f32 to vector<2x8x8x32xf32>
    %74 = arith.maximumf %72, %73 : vector<2x8x8x32xf32>
    %75 = vector.extract_strided_slice %0 {offsets = [0, 1, 1, 0], sizes = [2, 8, 8, 32], strides = [1, 1, 1, 1]} : vector<2x10x10x32xf32> to vector<2x8x8x32xf32>
    %76 = arith.addf %75, %74 : vector<2x8x8x32xf32>
    %cst_28 = arith.constant dense<0.000000e+00> : vector<32xf32>
    %77 = vector.multi_reduction <add>, %76, %cst_28 [0, 1, 2] : vector<2x8x8x32xf32> to vector<32xf32>
    %78 = vector.shape_cast %77 : vector<32xf32> to vector<1x1x1x32xf32>
    %79 = arith.mulf %76, %76 : vector<2x8x8x32xf32>
    %cst_29 = arith.constant dense<0.000000e+00> : vector<32xf32>
    %80 = vector.multi_reduction <add>, %79, %cst_29 [0, 1, 2] : vector<2x8x8x32xf32> to vector<32xf32>
    %81 = vector.shape_cast %80 : vector<32xf32> to vector<1x1x1x32xf32>
    %cst_30 = arith.constant 1.280000e+02 : f32
    %82 = vector.broadcast %cst_30 : f32 to vector<1x1x1x32xf32>
    %83 = arith.divf %78, %82 : vector<1x1x1x32xf32>
    %cst_31 = arith.constant 1.280000e+02 : f32
    %84 = vector.broadcast %cst_31 : f32 to vector<1x1x1x32xf32>
    %85 = arith.divf %81, %84 : vector<1x1x1x32xf32>
    %86 = arith.mulf %83, %83 : vector<1x1x1x32xf32>
    %87 = arith.subf %85, %86 : vector<1x1x1x32xf32>
    %c0_32 = arith.constant 0 : index
    %c0_33 = arith.constant 0 : index
    %88 = vector.load %arg8[%c0_32, %c0_33] : memref<1x32xf32, #tpu.memory_space<vmem>>, vector<1x32xf32>
    %89 = vector.shape_cast %88 : vector<1x32xf32> to vector<1x1x1x32xf32>
    %cst_34 = arith.constant 9.99999974E-6 : f32
    %90 = vector.broadcast %cst_34 : f32 to vector<1x1x1x32xf32>
    %91 = arith.addf %87, %90 : vector<1x1x1x32xf32>
    %92 = math.rsqrt %91 : vector<1x1x1x32xf32>
    %93 = arith.mulf %89, %92 : vector<1x1x1x32xf32>
    %c0_35 = arith.constant 0 : index
    %c0_36 = arith.constant 0 : index
    %94 = vector.load %arg9[%c0_35, %c0_36] : memref<1x32xf32, #tpu.memory_space<vmem>>, vector<1x32xf32>
    %95 = vector.shape_cast %94 : vector<1x32xf32> to vector<1x1x1x32xf32>
    %96 = arith.mulf %83, %93 : vector<1x1x1x32xf32>
    %97 = arith.subf %95, %96 : vector<1x1x1x32xf32>
    %98 = vector.broadcast %93 : vector<1x1x1x32xf32> to vector<2x8x8x32xf32>
    %99 = arith.mulf %76, %98 : vector<2x8x8x32xf32>
    %100 = vector.broadcast %97 : vector<1x1x1x32xf32> to vector<2x8x8x32xf32>
    %101 = arith.addf %99, %100 : vector<2x8x8x32xf32>
    %cst_37 = arith.constant 0.000000e+00 : f32
    %102 = vector.broadcast %cst_37 : f32 to vector<2x8x8x32xf32>
    %103 = arith.maximumf %101, %102 : vector<2x8x8x32xf32>
    %cst_38 = arith.constant 0.000000e+00 : f32
    %104 = vector.broadcast %cst_38 : f32 to vector<2x10x10x32xf32>
    %c0_39 = arith.constant 0 : index
    %c0_40 = arith.constant 0 : index
    %c0_41 = arith.constant 0 : index
    %c0_42 = arith.constant 0 : index
    %105 = vector.load %arg13[%c0_39, %c0_40, %c0_41, %c0_42] : memref<2x10x10x32xf32, #tpu.memory_space<vmem>>, vector<2x10x10x32xf32>
    tpu.vector_store %arg13[%c0_39, %c0_40, %c0_41, %c0_42], %104 {strides = array<i32>} : memref<2x10x10x32xf32, #tpu.memory_space<vmem>>, vector<2x10x10x32xf32>,
    %c0_43 = arith.constant 0 : index
    %c1 = arith.constant 1 : index
    %c1_44 = arith.constant 1 : index
    %c0_45 = arith.constant 0 : index
    %106 = vector.load %arg13[%c0_43, %c1, %c1_44, %c0_45] : memref<2x10x10x32xf32, #tpu.memory_space<vmem>>, vector<2x8x8x32xf32>
    tpu.vector_store %arg13[%c0_43, %c1, %c1_44, %c0_45], %103 {strides = array<i32>} : memref<2x10x10x32xf32, #tpu.memory_space<vmem>>, vector<2x8x8x32xf32>,
    %c0_46 = arith.constant 0 : index
    %c0_47 = arith.constant 0 : index
    %c0_48 = arith.constant 0 : index
    %c0_49 = arith.constant 0 : index
    %107 = vector.load %arg13[%c0_46, %c0_47, %c0_48, %c0_49] : memref<2x10x10x32xf32, #tpu.memory_space<vmem>>, vector<2x10x10x32xf32>
    %108 = vector.extract_strided_slice %107 {offsets = [0, 0, 0, 0], sizes = [2, 8, 8, 32], strides = [1, 1, 1, 1]} : vector<2x10x10x32xf32> to vector<2x8x8x32xf32>
    %109 = vector.extract_strided_slice %107 {offsets = [0, 0, 1, 0], sizes = [2, 8, 8, 32], strides = [1, 1, 1, 1]} : vector<2x10x10x32xf32> to vector<2x8x8x32xf32>
    %110 = vector.extract_strided_slice %107 {offsets = [0, 1, 0, 0], sizes = [2, 8, 8, 32], strides = [1, 1, 1, 1]} : vector<2x10x10x32xf32> to vector<2x8x8x32xf32>
    %111 = vector.extract_strided_slice %107 {offsets = [0, 1, 1, 0], sizes = [2, 8, 8, 32], strides = [1, 1, 1, 1]} : vector<2x10x10x32xf32> to vector<2x8x8x32xf32>
    %112 = tpu.concatenate %108, %109, %110, %111 in 3 : vector<2x8x8x32xf32>, vector<2x8x8x32xf32>, vector<2x8x8x32xf32>, vector<2x8x8x32xf32> -> vector<2x8x8x128xf32>
    %113 = vector.shape_cast %112 : vector<2x8x8x128xf32> to vector<128x128xf32>
    %114 = arith.truncf %113 : vector<128x128xf32> to vector<128x128xbf16>
    %c0_50 = arith.constant 0 : index
    %c0_51 = arith.constant 0 : index
    %c0_52 = arith.constant 0 : index
    %115 = vector.load %arg3[%c0_50, %c0_51, %c0_52] : memref<4x128x32xbf16, #tpu.memory_space<vmem>>, vector<1x128x32xbf16>
    %116 = vector.shape_cast %115 : vector<1x128x32xbf16> to vector<128x32xbf16>
    %cst_53 = arith.constant dense<0.000000e+00> : vector<128x32xf32>
    %117 = tpu.matmul %114, %116, %cst_53 {dimension_numbers = #tpu.dot_dimension_numbers<[1], [0], [0], [1], [0, 0, 1, 1], [], []>} : vector<128x128xbf16>, vector<128x32xbf16>, vector<128x32xf32> -> vector<128x32xf32>
    %118 = vector.shape_cast %117 : vector<128x32xf32> to vector<2x8x8x32xf32>
    %119 = vector.extract_strided_slice %107 {offsets = [0, 0, 1, 0], sizes = [2, 8, 8, 32], strides = [1, 1, 1, 1]} : vector<2x10x10x32xf32> to vector<2x8x8x32xf32>
    %120 = vector.extract_strided_slice %107 {offsets = [0, 0, 2, 0], sizes = [2, 8, 8, 32], strides = [1, 1, 1, 1]} : vector<2x10x10x32xf32> to vector<2x8x8x32xf32>
    %121 = vector.extract_strided_slice %107 {offsets = [0, 1, 1, 0], sizes = [2, 8, 8, 32], strides = [1, 1, 1, 1]} : vector<2x10x10x32xf32> to vector<2x8x8x32xf32>
    %122 = vector.extract_strided_slice %107 {offsets = [0, 1, 2, 0], sizes = [2, 8, 8, 32], strides = [1, 1, 1, 1]} : vector<2x10x10x32xf32> to vector<2x8x8x32xf32>
    %123 = tpu.concatenate %119, %120, %121, %122 in 3 : vector<2x8x8x32xf32>, vector<2x8x8x32xf32>, vector<2x8x8x32xf32>, vector<2x8x8x32xf32> -> vector<2x8x8x128xf32>
    %124 = vector.shape_cast %123 : vector<2x8x8x128xf32> to vector<128x128xf32>
    %125 = arith.truncf %124 : vector<128x128xf32> to vector<128x128xbf16>
    %c1_54 = arith.constant 1 : index
    %c0_55 = arith.constant 0 : index
    %c0_56 = arith.constant 0 : index
    %126 = vector.load %arg3[%c1_54, %c0_55, %c0_56] : memref<4x128x32xbf16, #tpu.memory_space<vmem>>, vector<1x128x32xbf16>
    %127 = vector.shape_cast %126 : vector<1x128x32xbf16> to vector<128x32xbf16>
    %cst_57 = arith.constant dense<0.000000e+00> : vector<128x32xf32>
    %128 = tpu.matmul %125, %127, %cst_57 {dimension_numbers = #tpu.dot_dimension_numbers<[1], [0], [0], [1], [0, 0, 1, 1], [], []>} : vector<128x128xbf16>, vector<128x32xbf16>, vector<128x32xf32> -> vector<128x32xf32>
    %129 = vector.shape_cast %128 : vector<128x32xf32> to vector<2x8x8x32xf32>
    %130 = vector.extract_strided_slice %107 {offsets = [0, 1, 0, 0], sizes = [2, 8, 8, 32], strides = [1, 1, 1, 1]} : vector<2x10x10x32xf32> to vector<2x8x8x32xf32>
    %131 = vector.extract_strided_slice %107 {offsets = [0, 1, 1, 0], sizes = [2, 8, 8, 32], strides = [1, 1, 1, 1]} : vector<2x10x10x32xf32> to vector<2x8x8x32xf32>
    %132 = vector.extract_strided_slice %107 {offsets = [0, 2, 0, 0], sizes = [2, 8, 8, 32], strides = [1, 1, 1, 1]} : vector<2x10x10x32xf32> to vector<2x8x8x32xf32>
    %133 = vector.extract_strided_slice %107 {offsets = [0, 2, 1, 0], sizes = [2, 8, 8, 32], strides = [1, 1, 1, 1]} : vector<2x10x10x32xf32> to vector<2x8x8x32xf32>
    %134 = tpu.concatenate %130, %131, %132, %133 in 3 : vector<2x8x8x32xf32>, vector<2x8x8x32xf32>, vector<2x8x8x32xf32>, vector<2x8x8x32xf32> -> vector<2x8x8x128xf32>
    %135 = vector.shape_cast %134 : vector<2x8x8x128xf32> to vector<128x128xf32>
    %136 = arith.truncf %135 : vector<128x128xf32> to vector<128x128xbf16>
    %c2 = arith.constant 2 : index
    %c0_58 = arith.constant 0 : index
    %c0_59 = arith.constant 0 : index
    %137 = vector.load %arg3[%c2, %c0_58, %c0_59] : memref<4x128x32xbf16, #tpu.memory_space<vmem>>, vector<1x128x32xbf16>
    %138 = vector.shape_cast %137 : vector<1x128x32xbf16> to vector<128x32xbf16>
    %cst_60 = arith.constant dense<0.000000e+00> : vector<128x32xf32>
    %139 = tpu.matmul %136, %138, %cst_60 {dimension_numbers = #tpu.dot_dimension_numbers<[1], [0], [0], [1], [0, 0, 1, 1], [], []>} : vector<128x128xbf16>, vector<128x32xbf16>, vector<128x32xf32> -> vector<128x32xf32>
    %140 = vector.shape_cast %139 : vector<128x32xf32> to vector<2x8x8x32xf32>
    %141 = vector.extract_strided_slice %107 {offsets = [0, 1, 1, 0], sizes = [2, 8, 8, 32], strides = [1, 1, 1, 1]} : vector<2x10x10x32xf32> to vector<2x8x8x32xf32>
    %142 = vector.extract_strided_slice %107 {offsets = [0, 1, 2, 0], sizes = [2, 8, 8, 32], strides = [1, 1, 1, 1]} : vector<2x10x10x32xf32> to vector<2x8x8x32xf32>
    %143 = vector.extract_strided_slice %107 {offsets = [0, 2, 1, 0], sizes = [2, 8, 8, 32], strides = [1, 1, 1, 1]} : vector<2x10x10x32xf32> to vector<2x8x8x32xf32>
    %144 = vector.extract_strided_slice %107 {offsets = [0, 2, 2, 0], sizes = [2, 8, 8, 32], strides = [1, 1, 1, 1]} : vector<2x10x10x32xf32> to vector<2x8x8x32xf32>
    %145 = tpu.concatenate %141, %142, %143, %144 in 3 : vector<2x8x8x32xf32>, vector<2x8x8x32xf32>, vector<2x8x8x32xf32>, vector<2x8x8x32xf32> -> vector<2x8x8x128xf32>
    %146 = vector.shape_cast %145 : vector<2x8x8x128xf32> to vector<128x128xf32>
    %147 = arith.truncf %146 : vector<128x128xf32> to vector<128x128xbf16>
    %c3 = arith.constant 3 : index
    %c0_61 = arith.constant 0 : index
    %c0_62 = arith.constant 0 : index
    %148 = vector.load %arg3[%c3, %c0_61, %c0_62] : memref<4x128x32xbf16, #tpu.memory_space<vmem>>, vector<1x128x32xbf16>
    %149 = vector.shape_cast %148 : vector<1x128x32xbf16> to vector<128x32xbf16>
    %cst_63 = arith.constant dense<0.000000e+00> : vector<128x32xf32>
    %150 = tpu.matmul %147, %149, %cst_63 {dimension_numbers = #tpu.dot_dimension_numbers<[1], [0], [0], [1], [0, 0, 1, 1], [], []>} : vector<128x128xbf16>, vector<128x32xbf16>, vector<128x32xf32> -> vector<128x32xf32>
    %151 = vector.shape_cast %150 : vector<128x32xf32> to vector<2x8x8x32xf32>
    %cst_64 = arith.constant dense<0.000000e+00> : vector<32xf32>
    %152 = vector.multi_reduction <add>, %118, %cst_64 [0, 1, 2] : vector<2x8x8x32xf32> to vector<32xf32>
    %153 = vector.shape_cast %152 : vector<32xf32> to vector<1x1x1x32xf32>
    %cst_65 = arith.constant 0.000000e+00 : f32
    %154 = vector.broadcast %cst_65 : f32 to vector<1x1x1x32xf32>
    %155 = arith.addf %154, %153 : vector<1x1x1x32xf32>
    %cst_66 = arith.constant dense<0.000000e+00> : vector<32xf32>
    %156 = vector.multi_reduction <add>, %129, %cst_66 [0, 1, 2] : vector<2x8x8x32xf32> to vector<32xf32>
    %157 = vector.shape_cast %156 : vector<32xf32> to vector<1x1x1x32xf32>
    %158 = arith.addf %155, %157 : vector<1x1x1x32xf32>
    %cst_67 = arith.constant dense<0.000000e+00> : vector<32xf32>
    %159 = vector.multi_reduction <add>, %140, %cst_67 [0, 1, 2] : vector<2x8x8x32xf32> to vector<32xf32>
    %160 = vector.shape_cast %159 : vector<32xf32> to vector<1x1x1x32xf32>
    %161 = arith.addf %158, %160 : vector<1x1x1x32xf32>
    %cst_68 = arith.constant dense<0.000000e+00> : vector<32xf32>
    %162 = vector.multi_reduction <add>, %151, %cst_68 [0, 1, 2] : vector<2x8x8x32xf32> to vector<32xf32>
    %163 = vector.shape_cast %162 : vector<32xf32> to vector<1x1x1x32xf32>
    %164 = arith.addf %161, %163 : vector<1x1x1x32xf32>
    %165 = arith.mulf %118, %118 : vector<2x8x8x32xf32>
    %cst_69 = arith.constant dense<0.000000e+00> : vector<32xf32>
    %166 = vector.multi_reduction <add>, %165, %cst_69 [0, 1, 2] : vector<2x8x8x32xf32> to vector<32xf32>
    %167 = vector.shape_cast %166 : vector<32xf32> to vector<1x1x1x32xf32>
    %cst_70 = arith.constant 0.000000e+00 : f32
    %168 = vector.broadcast %cst_70 : f32 to vector<1x1x1x32xf32>
    %169 = arith.addf %168, %167 : vector<1x1x1x32xf32>
    %170 = arith.mulf %129, %129 : vector<2x8x8x32xf32>
    %cst_71 = arith.constant dense<0.000000e+00> : vector<32xf32>
    %171 = vector.multi_reduction <add>, %170, %cst_71 [0, 1, 2] : vector<2x8x8x32xf32> to vector<32xf32>
    %172 = vector.shape_cast %171 : vector<32xf32> to vector<1x1x1x32xf32>
    %173 = arith.addf %169, %172 : vector<1x1x1x32xf32>
    %174 = arith.mulf %140, %140 : vector<2x8x8x32xf32>
    %cst_72 = arith.constant dense<0.000000e+00> : vector<32xf32>
    %175 = vector.multi_reduction <add>, %174, %cst_72 [0, 1, 2] : vector<2x8x8x32xf32> to vector<32xf32>
    %176 = vector.shape_cast %175 : vector<32xf32> to vector<1x1x1x32xf32>
    %177 = arith.addf %173, %176 : vector<1x1x1x32xf32>
    %178 = arith.mulf %151, %151 : vector<2x8x8x32xf32>
    %cst_73 = arith.constant dense<0.000000e+00> : vector<32xf32>
    %179 = vector.multi_reduction <add>, %178, %cst_73 [0, 1, 2] : vector<2x8x8x32xf32> to vector<32xf32>
    %180 = vector.shape_cast %179 : vector<32xf32> to vector<1x1x1x32xf32>
    %181 = arith.addf %177, %180 : vector<1x1x1x32xf32>
    %cst_74 = arith.constant 5.120000e+02 : f32
    %182 = vector.broadcast %cst_74 : f32 to vector<1x1x1x32xf32>
    %183 = arith.divf %164, %182 : vector<1x1x1x32xf32>
    %cst_75 = arith.constant 5.120000e+02 : f32
    %184 = vector.broadcast %cst_75 : f32 to vector<1x1x1x32xf32>
    %185 = arith.divf %181, %184 : vector<1x1x1x32xf32>
    %186 = arith.mulf %183, %183 : vector<1x1x1x32xf32>
    %187 = arith.subf %185, %186 : vector<1x1x1x32xf32>
    %c0_76 = arith.constant 0 : index
    %c0_77 = arith.constant 0 : index
    %188 = vector.load %arg10[%c0_76, %c0_77] : memref<1x32xf32, #tpu.memory_space<vmem>>, vector<1x32xf32>
    %189 = vector.shape_cast %188 : vector<1x32xf32> to vector<1x1x1x32xf32>
    %cst_78 = arith.constant 9.99999974E-6 : f32
    %190 = vector.broadcast %cst_78 : f32 to vector<1x1x1x32xf32>
    %191 = arith.addf %187, %190 : vector<1x1x1x32xf32>
    %192 = math.rsqrt %191 : vector<1x1x1x32xf32>
    %193 = arith.mulf %189, %192 : vector<1x1x1x32xf32>
    %c0_79 = arith.constant 0 : index
    %c0_80 = arith.constant 0 : index
    %194 = vector.load %arg11[%c0_79, %c0_80] : memref<1x32xf32, #tpu.memory_space<vmem>>, vector<1x32xf32>
    %195 = vector.shape_cast %194 : vector<1x32xf32> to vector<1x1x1x32xf32>
    %196 = arith.mulf %183, %193 : vector<1x1x1x32xf32>
    %197 = arith.subf %195, %196 : vector<1x1x1x32xf32>
    %198 = vector.broadcast %193 : vector<1x1x1x32xf32> to vector<2x8x8x32xf32>
    %199 = arith.mulf %118, %198 : vector<2x8x8x32xf32>
    %200 = vector.broadcast %197 : vector<1x1x1x32xf32> to vector<2x8x8x32xf32>
    %201 = arith.addf %199, %200 : vector<2x8x8x32xf32>
    %cst_81 = arith.constant 0.000000e+00 : f32
    %202 = vector.broadcast %cst_81 : f32 to vector<2x8x8x32xf32>
    %203 = arith.maximumf %201, %202 : vector<2x8x8x32xf32>
    %204 = vector.broadcast %193 : vector<1x1x1x32xf32> to vector<2x8x8x32xf32>
    %205 = arith.mulf %129, %204 : vector<2x8x8x32xf32>
    %206 = vector.broadcast %197 : vector<1x1x1x32xf32> to vector<2x8x8x32xf32>
    %207 = arith.addf %205, %206 : vector<2x8x8x32xf32>
    %cst_82 = arith.constant 0.000000e+00 : f32
    %208 = vector.broadcast %cst_82 : f32 to vector<2x8x8x32xf32>
    %209 = arith.maximumf %207, %208 : vector<2x8x8x32xf32>
    %210 = vector.broadcast %193 : vector<1x1x1x32xf32> to vector<2x8x8x32xf32>
    %211 = arith.mulf %140, %210 : vector<2x8x8x32xf32>
    %212 = vector.broadcast %197 : vector<1x1x1x32xf32> to vector<2x8x8x32xf32>
    %213 = arith.addf %211, %212 : vector<2x8x8x32xf32>
    %cst_83 = arith.constant 0.000000e+00 : f32
    %214 = vector.broadcast %cst_83 : f32 to vector<2x8x8x32xf32>
    %215 = arith.maximumf %213, %214 : vector<2x8x8x32xf32>
    %216 = vector.broadcast %193 : vector<1x1x1x32xf32> to vector<2x8x8x32xf32>
    %217 = arith.mulf %151, %216 : vector<2x8x8x32xf32>
    %218 = vector.broadcast %197 : vector<1x1x1x32xf32> to vector<2x8x8x32xf32>
    %219 = arith.addf %217, %218 : vector<2x8x8x32xf32>
    %cst_84 = arith.constant 0.000000e+00 : f32
    %220 = vector.broadcast %cst_84 : f32 to vector<2x8x8x32xf32>
    %221 = arith.maximumf %219, %220 : vector<2x8x8x32xf32>
    %222 = tpu.concatenate %203, %209, %215, %221 in 3 : vector<2x8x8x32xf32>, vector<2x8x8x32xf32>, vector<2x8x8x32xf32>, vector<2x8x8x32xf32> -> vector<2x8x8x128xf32>
    %c0_85 = arith.constant 0 : index
    %c0_86 = arith.constant 0 : index
    %c0_87 = arith.constant 0 : index
    %c0_88 = arith.constant 0 : index
    %223 = vector.load %arg12[%c0_85, %c0_86, %c0_87, %c0_88] : memref<2x8x8x128xf32, #tpu.memory_space<vmem>>, vector<2x8x8x128xf32>
    tpu.vector_store %arg12[%c0_85, %c0_86, %c0_87, %c0_88], %222 {strides = array<i32>} : memref<2x8x8x128xf32, #tpu.memory_space<vmem>>, vector<2x8x8x128xf32>,
    return
  }
}

module attributes {stable_mosaic.version = 11 : i64} {
  func.func @convt2_bn_tanh_kernel(%arg0: memref<2x18x18x32xf32, #tpu.memory_space<vmem>>, %arg1: memref<4x128x4xbf16, #tpu.memory_space<vmem>>, %arg2: memref<1x4xf32, #tpu.memory_space<vmem>>, %arg3: memref<1x4xf32, #tpu.memory_space<vmem>>, %arg4: memref<2x16x16x16xf32, #tpu.memory_space<vmem>>) attributes {dimension_semantics = [], scalar_prefetch = 0 : i64, scratch_operands = 0 : i64, tpu.core_type = #tpu.core_type<tc>} {
    %c0 = arith.constant 0 : index
    %c0_0 = arith.constant 0 : index
    %c0_1 = arith.constant 0 : index
    %c0_2 = arith.constant 0 : index
    %0 = vector.load %arg0[%c0, %c0_0, %c0_1, %c0_2] : memref<2x18x18x32xf32, #tpu.memory_space<vmem>>, vector<2x18x18x32xf32>
    %1 = vector.extract_strided_slice %0 {offsets = [0, 0, 0, 0], sizes = [2, 16, 16, 32], strides = [1, 1, 1, 1]} : vector<2x18x18x32xf32> to vector<2x16x16x32xf32>
    %2 = vector.extract_strided_slice %0 {offsets = [0, 0, 1, 0], sizes = [2, 16, 16, 32], strides = [1, 1, 1, 1]} : vector<2x18x18x32xf32> to vector<2x16x16x32xf32>
    %3 = vector.extract_strided_slice %0 {offsets = [0, 1, 0, 0], sizes = [2, 16, 16, 32], strides = [1, 1, 1, 1]} : vector<2x18x18x32xf32> to vector<2x16x16x32xf32>
    %4 = vector.extract_strided_slice %0 {offsets = [0, 1, 1, 0], sizes = [2, 16, 16, 32], strides = [1, 1, 1, 1]} : vector<2x18x18x32xf32> to vector<2x16x16x32xf32>
    %5 = tpu.concatenate %1, %2, %3, %4 in 3 : vector<2x16x16x32xf32>, vector<2x16x16x32xf32>, vector<2x16x16x32xf32>, vector<2x16x16x32xf32> -> vector<2x16x16x128xf32>
    %6 = vector.shape_cast %5 : vector<2x16x16x128xf32> to vector<512x128xf32>
    %7 = arith.truncf %6 : vector<512x128xf32> to vector<512x128xbf16>
    %c0_3 = arith.constant 0 : index
    %c0_4 = arith.constant 0 : index
    %c0_5 = arith.constant 0 : index
    %8 = vector.load %arg1[%c0_3, %c0_4, %c0_5] : memref<4x128x4xbf16, #tpu.memory_space<vmem>>, vector<1x128x4xbf16>
    %9 = vector.shape_cast %8 : vector<1x128x4xbf16> to vector<128x4xbf16>
    %cst = arith.constant dense<0.000000e+00> : vector<512x4xf32>
    %10 = tpu.matmul %7, %9, %cst {dimension_numbers = #tpu.dot_dimension_numbers<[1], [0], [0], [1], [0, 0, 1, 1], [], []>} : vector<512x128xbf16>, vector<128x4xbf16>, vector<512x4xf32> -> vector<512x4xf32>
    %11 = vector.shape_cast %10 : vector<512x4xf32> to vector<2x16x16x4xf32>
    %12 = vector.extract_strided_slice %0 {offsets = [0, 0, 1, 0], sizes = [2, 16, 16, 32], strides = [1, 1, 1, 1]} : vector<2x18x18x32xf32> to vector<2x16x16x32xf32>
    %13 = vector.extract_strided_slice %0 {offsets = [0, 0, 2, 0], sizes = [2, 16, 16, 32], strides = [1, 1, 1, 1]} : vector<2x18x18x32xf32> to vector<2x16x16x32xf32>
    %14 = vector.extract_strided_slice %0 {offsets = [0, 1, 1, 0], sizes = [2, 16, 16, 32], strides = [1, 1, 1, 1]} : vector<2x18x18x32xf32> to vector<2x16x16x32xf32>
    %15 = vector.extract_strided_slice %0 {offsets = [0, 1, 2, 0], sizes = [2, 16, 16, 32], strides = [1, 1, 1, 1]} : vector<2x18x18x32xf32> to vector<2x16x16x32xf32>
    %16 = tpu.concatenate %12, %13, %14, %15 in 3 : vector<2x16x16x32xf32>, vector<2x16x16x32xf32>, vector<2x16x16x32xf32>, vector<2x16x16x32xf32> -> vector<2x16x16x128xf32>
    %17 = vector.shape_cast %16 : vector<2x16x16x128xf32> to vector<512x128xf32>
    %18 = arith.truncf %17 : vector<512x128xf32> to vector<512x128xbf16>
    %c1 = arith.constant 1 : index
    %c0_6 = arith.constant 0 : index
    %c0_7 = arith.constant 0 : index
    %19 = vector.load %arg1[%c1, %c0_6, %c0_7] : memref<4x128x4xbf16, #tpu.memory_space<vmem>>, vector<1x128x4xbf16>
    %20 = vector.shape_cast %19 : vector<1x128x4xbf16> to vector<128x4xbf16>
    %cst_8 = arith.constant dense<0.000000e+00> : vector<512x4xf32>
    %21 = tpu.matmul %18, %20, %cst_8 {dimension_numbers = #tpu.dot_dimension_numbers<[1], [0], [0], [1], [0, 0, 1, 1], [], []>} : vector<512x128xbf16>, vector<128x4xbf16>, vector<512x4xf32> -> vector<512x4xf32>
    %22 = vector.shape_cast %21 : vector<512x4xf32> to vector<2x16x16x4xf32>
    %23 = vector.extract_strided_slice %0 {offsets = [0, 1, 0, 0], sizes = [2, 16, 16, 32], strides = [1, 1, 1, 1]} : vector<2x18x18x32xf32> to vector<2x16x16x32xf32>
    %24 = vector.extract_strided_slice %0 {offsets = [0, 1, 1, 0], sizes = [2, 16, 16, 32], strides = [1, 1, 1, 1]} : vector<2x18x18x32xf32> to vector<2x16x16x32xf32>
    %25 = vector.extract_strided_slice %0 {offsets = [0, 2, 0, 0], sizes = [2, 16, 16, 32], strides = [1, 1, 1, 1]} : vector<2x18x18x32xf32> to vector<2x16x16x32xf32>
    %26 = vector.extract_strided_slice %0 {offsets = [0, 2, 1, 0], sizes = [2, 16, 16, 32], strides = [1, 1, 1, 1]} : vector<2x18x18x32xf32> to vector<2x16x16x32xf32>
    %27 = tpu.concatenate %23, %24, %25, %26 in 3 : vector<2x16x16x32xf32>, vector<2x16x16x32xf32>, vector<2x16x16x32xf32>, vector<2x16x16x32xf32> -> vector<2x16x16x128xf32>
    %28 = vector.shape_cast %27 : vector<2x16x16x128xf32> to vector<512x128xf32>
    %29 = arith.truncf %28 : vector<512x128xf32> to vector<512x128xbf16>
    %c2 = arith.constant 2 : index
    %c0_9 = arith.constant 0 : index
    %c0_10 = arith.constant 0 : index
    %30 = vector.load %arg1[%c2, %c0_9, %c0_10] : memref<4x128x4xbf16, #tpu.memory_space<vmem>>, vector<1x128x4xbf16>
    %31 = vector.shape_cast %30 : vector<1x128x4xbf16> to vector<128x4xbf16>
    %cst_11 = arith.constant dense<0.000000e+00> : vector<512x4xf32>
    %32 = tpu.matmul %29, %31, %cst_11 {dimension_numbers = #tpu.dot_dimension_numbers<[1], [0], [0], [1], [0, 0, 1, 1], [], []>} : vector<512x128xbf16>, vector<128x4xbf16>, vector<512x4xf32> -> vector<512x4xf32>
    %33 = vector.shape_cast %32 : vector<512x4xf32> to vector<2x16x16x4xf32>
    %34 = vector.extract_strided_slice %0 {offsets = [0, 1, 1, 0], sizes = [2, 16, 16, 32], strides = [1, 1, 1, 1]} : vector<2x18x18x32xf32> to vector<2x16x16x32xf32>
    %35 = vector.extract_strided_slice %0 {offsets = [0, 1, 2, 0], sizes = [2, 16, 16, 32], strides = [1, 1, 1, 1]} : vector<2x18x18x32xf32> to vector<2x16x16x32xf32>
    %36 = vector.extract_strided_slice %0 {offsets = [0, 2, 1, 0], sizes = [2, 16, 16, 32], strides = [1, 1, 1, 1]} : vector<2x18x18x32xf32> to vector<2x16x16x32xf32>
    %37 = vector.extract_strided_slice %0 {offsets = [0, 2, 2, 0], sizes = [2, 16, 16, 32], strides = [1, 1, 1, 1]} : vector<2x18x18x32xf32> to vector<2x16x16x32xf32>
    %38 = tpu.concatenate %34, %35, %36, %37 in 3 : vector<2x16x16x32xf32>, vector<2x16x16x32xf32>, vector<2x16x16x32xf32>, vector<2x16x16x32xf32> -> vector<2x16x16x128xf32>
    %39 = vector.shape_cast %38 : vector<2x16x16x128xf32> to vector<512x128xf32>
    %40 = arith.truncf %39 : vector<512x128xf32> to vector<512x128xbf16>
    %c3 = arith.constant 3 : index
    %c0_12 = arith.constant 0 : index
    %c0_13 = arith.constant 0 : index
    %41 = vector.load %arg1[%c3, %c0_12, %c0_13] : memref<4x128x4xbf16, #tpu.memory_space<vmem>>, vector<1x128x4xbf16>
    %42 = vector.shape_cast %41 : vector<1x128x4xbf16> to vector<128x4xbf16>
    %cst_14 = arith.constant dense<0.000000e+00> : vector<512x4xf32>
    %43 = tpu.matmul %40, %42, %cst_14 {dimension_numbers = #tpu.dot_dimension_numbers<[1], [0], [0], [1], [0, 0, 1, 1], [], []>} : vector<512x128xbf16>, vector<128x4xbf16>, vector<512x4xf32> -> vector<512x4xf32>
    %44 = vector.shape_cast %43 : vector<512x4xf32> to vector<2x16x16x4xf32>
    %cst_15 = arith.constant dense<0.000000e+00> : vector<4xf32>
    %45 = vector.multi_reduction <add>, %11, %cst_15 [0, 1, 2] : vector<2x16x16x4xf32> to vector<4xf32>
    %46 = vector.shape_cast %45 : vector<4xf32> to vector<1x1x1x4xf32>
    %cst_16 = arith.constant 0.000000e+00 : f32
    %47 = vector.broadcast %cst_16 : f32 to vector<1x1x1x4xf32>
    %48 = arith.addf %47, %46 : vector<1x1x1x4xf32>
    %cst_17 = arith.constant dense<0.000000e+00> : vector<4xf32>
    %49 = vector.multi_reduction <add>, %22, %cst_17 [0, 1, 2] : vector<2x16x16x4xf32> to vector<4xf32>
    %50 = vector.shape_cast %49 : vector<4xf32> to vector<1x1x1x4xf32>
    %51 = arith.addf %48, %50 : vector<1x1x1x4xf32>
    %cst_18 = arith.constant dense<0.000000e+00> : vector<4xf32>
    %52 = vector.multi_reduction <add>, %33, %cst_18 [0, 1, 2] : vector<2x16x16x4xf32> to vector<4xf32>
    %53 = vector.shape_cast %52 : vector<4xf32> to vector<1x1x1x4xf32>
    %54 = arith.addf %51, %53 : vector<1x1x1x4xf32>
    %cst_19 = arith.constant dense<0.000000e+00> : vector<4xf32>
    %55 = vector.multi_reduction <add>, %44, %cst_19 [0, 1, 2] : vector<2x16x16x4xf32> to vector<4xf32>
    %56 = vector.shape_cast %55 : vector<4xf32> to vector<1x1x1x4xf32>
    %57 = arith.addf %54, %56 : vector<1x1x1x4xf32>
    %58 = arith.mulf %11, %11 : vector<2x16x16x4xf32>
    %cst_20 = arith.constant dense<0.000000e+00> : vector<4xf32>
    %59 = vector.multi_reduction <add>, %58, %cst_20 [0, 1, 2] : vector<2x16x16x4xf32> to vector<4xf32>
    %60 = vector.shape_cast %59 : vector<4xf32> to vector<1x1x1x4xf32>
    %cst_21 = arith.constant 0.000000e+00 : f32
    %61 = vector.broadcast %cst_21 : f32 to vector<1x1x1x4xf32>
    %62 = arith.addf %61, %60 : vector<1x1x1x4xf32>
    %63 = arith.mulf %22, %22 : vector<2x16x16x4xf32>
    %cst_22 = arith.constant dense<0.000000e+00> : vector<4xf32>
    %64 = vector.multi_reduction <add>, %63, %cst_22 [0, 1, 2] : vector<2x16x16x4xf32> to vector<4xf32>
    %65 = vector.shape_cast %64 : vector<4xf32> to vector<1x1x1x4xf32>
    %66 = arith.addf %62, %65 : vector<1x1x1x4xf32>
    %67 = arith.mulf %33, %33 : vector<2x16x16x4xf32>
    %cst_23 = arith.constant dense<0.000000e+00> : vector<4xf32>
    %68 = vector.multi_reduction <add>, %67, %cst_23 [0, 1, 2] : vector<2x16x16x4xf32> to vector<4xf32>
    %69 = vector.shape_cast %68 : vector<4xf32> to vector<1x1x1x4xf32>
    %70 = arith.addf %66, %69 : vector<1x1x1x4xf32>
    %71 = arith.mulf %44, %44 : vector<2x16x16x4xf32>
    %cst_24 = arith.constant dense<0.000000e+00> : vector<4xf32>
    %72 = vector.multi_reduction <add>, %71, %cst_24 [0, 1, 2] : vector<2x16x16x4xf32> to vector<4xf32>
    %73 = vector.shape_cast %72 : vector<4xf32> to vector<1x1x1x4xf32>
    %74 = arith.addf %70, %73 : vector<1x1x1x4xf32>
    %cst_25 = arith.constant 2.048000e+03 : f32
    %75 = vector.broadcast %cst_25 : f32 to vector<1x1x1x4xf32>
    %76 = arith.divf %57, %75 : vector<1x1x1x4xf32>
    %cst_26 = arith.constant 2.048000e+03 : f32
    %77 = vector.broadcast %cst_26 : f32 to vector<1x1x1x4xf32>
    %78 = arith.divf %74, %77 : vector<1x1x1x4xf32>
    %79 = arith.mulf %76, %76 : vector<1x1x1x4xf32>
    %80 = arith.subf %78, %79 : vector<1x1x1x4xf32>
    %c0_27 = arith.constant 0 : index
    %c0_28 = arith.constant 0 : index
    %81 = vector.load %arg2[%c0_27, %c0_28] : memref<1x4xf32, #tpu.memory_space<vmem>>, vector<1x4xf32>
    %82 = vector.shape_cast %81 : vector<1x4xf32> to vector<1x1x1x4xf32>
    %cst_29 = arith.constant 9.99999974E-6 : f32
    %83 = vector.broadcast %cst_29 : f32 to vector<1x1x1x4xf32>
    %84 = arith.addf %80, %83 : vector<1x1x1x4xf32>
    %85 = math.rsqrt %84 : vector<1x1x1x4xf32>
    %86 = arith.mulf %82, %85 : vector<1x1x1x4xf32>
    %c0_30 = arith.constant 0 : index
    %c0_31 = arith.constant 0 : index
    %87 = vector.load %arg3[%c0_30, %c0_31] : memref<1x4xf32, #tpu.memory_space<vmem>>, vector<1x4xf32>
    %88 = vector.shape_cast %87 : vector<1x4xf32> to vector<1x1x1x4xf32>
    %89 = arith.mulf %76, %86 : vector<1x1x1x4xf32>
    %90 = arith.subf %88, %89 : vector<1x1x1x4xf32>
    %91 = vector.broadcast %86 : vector<1x1x1x4xf32> to vector<2x16x16x4xf32>
    %92 = arith.mulf %11, %91 : vector<2x16x16x4xf32>
    %93 = vector.broadcast %90 : vector<1x1x1x4xf32> to vector<2x16x16x4xf32>
    %94 = arith.addf %92, %93 : vector<2x16x16x4xf32>
    %95 = math.tanh %94 : vector<2x16x16x4xf32>
    %96 = vector.broadcast %86 : vector<1x1x1x4xf32> to vector<2x16x16x4xf32>
    %97 = arith.mulf %22, %96 : vector<2x16x16x4xf32>
    %98 = vector.broadcast %90 : vector<1x1x1x4xf32> to vector<2x16x16x4xf32>
    %99 = arith.addf %97, %98 : vector<2x16x16x4xf32>
    %100 = math.tanh %99 : vector<2x16x16x4xf32>
    %101 = vector.broadcast %86 : vector<1x1x1x4xf32> to vector<2x16x16x4xf32>
    %102 = arith.mulf %33, %101 : vector<2x16x16x4xf32>
    %103 = vector.broadcast %90 : vector<1x1x1x4xf32> to vector<2x16x16x4xf32>
    %104 = arith.addf %102, %103 : vector<2x16x16x4xf32>
    %105 = math.tanh %104 : vector<2x16x16x4xf32>
    %106 = vector.broadcast %86 : vector<1x1x1x4xf32> to vector<2x16x16x4xf32>
    %107 = arith.mulf %44, %106 : vector<2x16x16x4xf32>
    %108 = vector.broadcast %90 : vector<1x1x1x4xf32> to vector<2x16x16x4xf32>
    %109 = arith.addf %107, %108 : vector<2x16x16x4xf32>
    %110 = math.tanh %109 : vector<2x16x16x4xf32>
    %111 = tpu.concatenate %95, %100, %105, %110 in 3 : vector<2x16x16x4xf32>, vector<2x16x16x4xf32>, vector<2x16x16x4xf32>, vector<2x16x16x4xf32> -> vector<2x16x16x16xf32>
    %c0_32 = arith.constant 0 : index
    %c0_33 = arith.constant 0 : index
    %c0_34 = arith.constant 0 : index
    %c0_35 = arith.constant 0 : index
    %112 = vector.load %arg4[%c0_32, %c0_33, %c0_34, %c0_35] : memref<2x16x16x16xf32, #tpu.memory_space<vmem>>, vector<2x16x16x16xf32>
    tpu.vector_store %arg4[%c0_32, %c0_33, %c0_34, %c0_35], %111 {strides = array<i32>} : memref<2x16x16x16xf32, #tpu.memory_space<vmem>>, vector<2x16x16x16xf32>,
    return
  }
}

</mosaic_0001>

<llo_original>
// kernel: decoder_forward.2
$region0: #{decoder_forward.2}
  #allocation0 [shape = 'u32[]', space=smem, size = 0x4, offset = 0x4, fixed_abs, tag = 'smem constant byte address 0x4 - core index']
  #allocation1 [shape = 'u32[144,128]{1,0:T(1,128)}', space=vmem, size = 0x12000, scoped, tag = 'internal scratch']
  #allocation2 [shape = 'f32[2,10,10,32]{3,2,1,0:T(8,128)}', space=vmem, size = 0x28000, scoped, tag = 'scratch operand']
  %s0 = inlined_call_operand.vmem [shape: f32[2,10,10,32], index: 0, kind: input, shape index: {}]
  %s1 = inlined_call_operand.vmem [shape: bf16[288,32], index: 1, kind: input, shape index: {}]
  %s2 = inlined_call_operand.vmem [shape: bf16[32,32], index: 2, kind: input, shape index: {}]
  %s3 = inlined_call_operand.vmem [shape: bf16[4,128,32], index: 3, kind: input, shape index: {}]
  %s4 = inlined_call_operand.vmem [shape: f32[1,32], index: 4, kind: input, shape index: {}]
  %s5 = inlined_call_operand.vmem [shape: f32[1,32], index: 5, kind: input, shape index: {}]
  %s6 = inlined_call_operand.vmem [shape: f32[1,32], index: 6, kind: input, shape index: {}]
  %s7 = inlined_call_operand.vmem [shape: f32[1,32], index: 7, kind: input, shape index: {}]
  %s8 = inlined_call_operand.vmem [shape: f32[1,32], index: 8, kind: input, shape index: {}]
  %s9 = inlined_call_operand.vmem [shape: f32[1,32], index: 9, kind: input, shape index: {}]
  %s10 = inlined_call_operand.vmem [shape: f32[1,32], index: 10, kind: input, shape index: {}]
  %s11 = inlined_call_operand.vmem [shape: f32[1,32], index: 11, kind: input, shape index: {}]
  %s12 = inlined_call_operand.vmem [shape: f32[2,8,8,128], index: 12, kind: output, shape index: {}]
  %s13 = sld [smem:[#allocation0]]
  $region58: #{decoder_forward.2} parent=0
    _
  %s15 = ssub.s32 1, %s13
  %s16 = scalar_select 0, %s15, %s13
  // Predicated region
  $region2: #{decoder_forward.2} parent=0 // pred_check
    _
  $region3: #{decoder_forward.2} parent=0 // pred_check_branch
    %18 = sbr.rel (0) target = $region5
  $region4: #{decoder_forward.2} parent=0 // pred_region
    _
  $region5: #{decoder_forward.2} parent=0 // pred_fallthru
    _
  // Predicated region
  $region6: #{decoder_forward.2} parent=0 // pred_check
    _
  $region7: #{decoder_forward.2} parent=0 // pred_check_branch
    %20 = sbr.rel (0) target = $region9
  $region8: #{decoder_forward.2} parent=0 // pred_region
    _
  $region9: #{decoder_forward.2} parent=0 // pred_fallthru
    _
  // Predicated region
  $region10: #{decoder_forward.2} parent=0 // pred_check
    _
  $region11: #{decoder_forward.2} parent=0 // pred_check_branch
    %22 = sbr.rel (0) target = $region13
  $region12: #{decoder_forward.2} parent=0 // pred_region
    _
  $region13: #{decoder_forward.2} parent=0 // pred_fallthru
    _
  // Predicated region
  $region14: #{decoder_forward.2} parent=0 // pred_check
    _
  $region15: #{decoder_forward.2} parent=0 // pred_check_branch
    %24 = sbr.rel (0) target = $region17
  $region16: #{decoder_forward.2} parent=0 // pred_region
    _
  $region17: #{decoder_forward.2} parent=0 // pred_fallthru
    _
  // Predicated region
  $region18: #{decoder_forward.2} parent=0 // pred_check
    _
  $region19: #{decoder_forward.2} parent=0 // pred_check_branch
    %26 = sbr.rel (0) target = $region21
  $region20: #{decoder_forward.2} parent=0 // pred_region
    _
  $region21: #{decoder_forward.2} parent=0 // pred_fallthru
    _
  // Predicated region
  $region22: #{decoder_forward.2} parent=0 // pred_check
    _
  $region23: #{decoder_forward.2} parent=0 // pred_check_branch
    %28 = sbr.rel (0) target = $region25
  $region24: #{decoder_forward.2} parent=0 // pred_region
    _
  $region25: #{decoder_forward.2} parent=0 // pred_fallthru
    _
  // Predicated region
  $region26: #{decoder_forward.2} parent=0 // pred_check
    _
  $region27: #{decoder_forward.2} parent=0 // pred_check_branch
    %30 = sbr.rel (0) target = $region29
  $region28: #{decoder_forward.2} parent=0 // pred_region
    _
  $region29: #{decoder_forward.2} parent=0 // pred_fallthru
    _
  // Predicated region
  $region30: #{decoder_forward.2} parent=0 // pred_check
    _
  $region31: #{decoder_forward.2} parent=0 // pred_check_branch
    %32 = sbr.rel (0) target = $region33
  $region32: #{decoder_forward.2} parent=0 // pred_region
    _
  $region33: #{decoder_forward.2} parent=0 // pred_fallthru
    _
  // Predicated region
  $region34: #{decoder_forward.2} parent=0 // pred_check
    _
  $region35: #{decoder_forward.2} parent=0 // pred_check_branch
    %34 = sbr.rel (0) target = $region37
  $region36: #{decoder_forward.2} parent=0 // pred_region
    _
  $region37: #{decoder_forward.2} parent=0 // pred_fallthru
    _
  // Predicated region
  $region38: #{decoder_forward.2} parent=0 // pred_check
    _
  $region39: #{decoder_forward.2} parent=0 // pred_check_branch
    %36 = sbr.rel (0) target = $region41
  $region40: #{decoder_forward.2} parent=0 // pred_region
    _
  $region41: #{decoder_forward.2} parent=0 // pred_fallthru
    _
  // Predicated region
  $region42: #{decoder_forward.2} parent=0 // pred_check
    _
  $region43: #{decoder_forward.2} parent=0 // pred_check_branch
    %38 = sbr.rel (0) target = $region45
  $region44: #{decoder_forward.2} parent=0 // pred_region
    _
  $region45: #{decoder_forward.2} parent=0 // pred_fallthru
    _
  // Predicated region
  $region46: #{decoder_forward.2} parent=0 // pred_check
    _
  $region47: #{decoder_forward.2} parent=0 // pred_check_branch
    %40 = sbr.rel (0) target = $region49
  $region48: #{decoder_forward.2} parent=0 // pred_region
    _
  $region49: #{decoder_forward.2} parent=0 // pred_fallthru
    _
  %v42 = vld [vmem:[%s0] sm:$0xff]
  %v43 = vld [vmem:[%s0 + $0x8] sm:$0x3]
  %v44 = vld [vmem:[%s0 + $0x10] sm:$0xff]
  %v45 = vld [vmem:[%s0 + $0x18] sm:$0x3]
  %v46 = vld [vmem:[%s0 + $0x20] sm:$0xff]
  %v47 = vld [vmem:[%s0 + $0x28] sm:$0x3]
  %v48 = vld [vmem:[%s0 + $0x30] sm:$0xff]
  %v49 = vld [vmem:[%s0 + $0x38] sm:$0x3]
  %v50 = vld [vmem:[%s0 + $0x40] sm:$0xff]
  %v51 = vld [vmem:[%s0 + $0x48] sm:$0x3]
  %v52 = vld [vmem:[%s0 + $0x50] sm:$0xff]
  %v53 = vld [vmem:[%s0 + $0x58] sm:$0x3]
  %v54 = vld [vmem:[%s0 + $0x60] sm:$0xff]
  %v55 = vld [vmem:[%s0 + $0x68] sm:$0x3]
  %v56 = vld [vmem:[%s0 + $0x70] sm:$0xff]
  %v57 = vld [vmem:[%s0 + $0x78] sm:$0x3]
  %v58 = vld [vmem:[%s0 + $0x80] sm:$0xff]
  %v59 = vld [vmem:[%s0 + $0x88] sm:$0x3]
  %v60 = vld [vmem:[%s0 + $0x90] sm:$0xff]
  %v61 = vld [vmem:[%s0 + $0x98] sm:$0x3]
  %v62 = vld [vmem:[%s0 + $0xa0] sm:$0xff]
  %v63 = vld [vmem:[%s0 + $0xa8] sm:$0x3]
  %v64 = vld [vmem:[%s0 + $0xb0] sm:$0xff]
  %v65 = vld [vmem:[%s0 + $0xb8] sm:$0x3]
  %v66 = vld [vmem:[%s0 + $0xc0] sm:$0xff]
  %v67 = vld [vmem:[%s0 + $0xc8] sm:$0x3]
  %v68 = vld [vmem:[%s0 + $0xd0] sm:$0xff]
  %v69 = vld [vmem:[%s0 + $0xd8] sm:$0x3]
  %v70 = vld [vmem:[%s0 + $0xe0] sm:$0xff]
  %v71 = vld [vmem:[%s0 + $0xe8] sm:$0x3]
  %v72 = vld [vmem:[%s0 + $0xf0] sm:$0xff]
  %v73 = vld [vmem:[%s0 + $0xf8] sm:$0x3]
  %v74 = vld [vmem:[%s0 + $0x100] sm:$0xff]
  %v75 = vld [vmem:[%s0 + $0x108] sm:$0x3]
  %v76 = vld [vmem:[%s0 + $0x110] sm:$0xff]
  %v77 = vld [vmem:[%s0 + $0x118] sm:$0x3]
  %v78 = vld [vmem:[%s0 + $0x120] sm:$0xff]
  %v79 = vld [vmem:[%s0 + $0x128] sm:$0x3]
  %v80 = vld [vmem:[%s0 + $0x130] sm:$0xff]
  %v81 = vld [vmem:[%s0 + $0x138] sm:$0x3]
  %vm114 = vcmask 1046528
  %v115 = vrot.slane %v42, 1
  %v116 = vrot.slane %v43, 1
  %v117 = vsel %vm114, %v115, %v116
  %v118 = vrot.slane %v44, 1
  %v119 = vrot.slane %v45, 1
  %v120 = vsel %vm114, %v118, %v119
  %v121 = vrot.slane %v46, 1
  %v122 = vrot.slane %v47, 1
  %v123 = vsel %vm114, %v121, %v122
  %v124 = vrot.slane %v48, 1
  %v125 = vrot.slane %v49, 1
  %v126 = vsel %vm114, %v124, %v125
  %v127 = vrot.slane %v50, 1
  %v128 = vrot.slane %v51, 1
  %v129 = vsel %vm114, %v127, %v128
  %v130 = vrot.slane %v52, 1
  %v131 = vrot.slane %v53, 1
  %v132 = vsel %vm114, %v130, %v131
  %v133 = vrot.slane %v54, 1
  %v134 = vrot.slane %v55, 1
  %v135 = vsel %vm114, %v133, %v134
  %v136 = vrot.slane %v56, 1
  %v137 = vrot.slane %v57, 1
  %v138 = vsel %vm114, %v136, %v137
  %v139 = vrot.slane %v62, 1
  %v140 = vrot.slane %v63, 1
  %v141 = vsel %vm114, %v139, %v140
  %v142 = vrot.slane %v64, 1
  %v143 = vrot.slane %v65, 1
  %v144 = vsel %vm114, %v142, %v143
  %v145 = vrot.slane %v66, 1
  %v146 = vrot.slane %v67, 1
  %v147 = vsel %vm114, %v145, %v146
  %v148 = vrot.slane %v68, 1
  %v149 = vrot.slane %v69, 1
  %v150 = vsel %vm114, %v148, %v149
  %v151 = vrot.slane %v70, 1
  %v152 = vrot.slane %v71, 1
  %v153 = vsel %vm114, %v151, %v152
  %v154 = vrot.slane %v72, 1
  %v155 = vrot.slane %v73, 1
  %v156 = vsel %vm114, %v154, %v155
  %v157 = vrot.slane %v74, 1
  %v158 = vrot.slane %v75, 1
  %v159 = vsel %vm114, %v157, %v158
  %v160 = vrot.slane %v76, 1
  %v161 = vrot.slane %v77, 1
  %v162 = vsel %vm114, %v160, %v161
  %163 = vrot.lane.b32.xlu0 %v117, 32
  %v164 = vpop.permute.xlu0 %163
  %165 = vrot.lane.b32.xlu0 %v120, 32
  %v166 = vpop.permute.xlu0 %165
  %167 = vrot.lane.b32.xlu0 %v123, 32
  %v168 = vpop.permute.xlu0 %167
  %169 = vrot.lane.b32.xlu0 %v126, 32
  %v170 = vpop.permute.xlu0 %169
  %171 = vrot.lane.b32.xlu0 %v129, 32
  %v172 = vpop.permute.xlu0 %171
  %173 = vrot.lane.b32.xlu0 %v132, 32
  %v174 = vpop.permute.xlu0 %173
  %175 = vrot.lane.b32.xlu0 %v135, 32
  %v176 = vpop.permute.xlu0 %175
  %177 = vrot.lane.b32.xlu0 %v138, 32
  %v178 = vpop.permute.xlu0 %177
  %179 = vrot.lane.b32.xlu0 %v141, 32
  %v180 = vpop.permute.xlu0 %179
  %181 = vrot.lane.b32.xlu0 %v144, 32
  %v182 = vpop.permute.xlu0 %181
  %183 = vrot.lane.b32.xlu0 %v147, 32
  %v184 = vpop.permute.xlu0 %183
  %185 = vrot.lane.b32.xlu0 %v150, 32
  %v186 = vpop.permute.xlu0 %185
  %187 = vrot.lane.b32.xlu0 %v153, 32
  %v188 = vpop.permute.xlu0 %187
  %189 = vrot.lane.b32.xlu0 %v156, 32
  %v190 = vpop.permute.xlu0 %189
  %191 = vrot.lane.b32.xlu0 %v159, 32
  %v192 = vpop.permute.xlu0 %191
  %193 = vrot.lane.b32.xlu0 %v162, 32
  %v194 = vpop.permute.xlu0 %193
  %vm211 = vcmask 1045504
  %v212 = vrot.slane %v42, 2
  %v213 = vrot.slane %v43, 2
  %v214 = vsel %vm211, %v212, %v213
  %v215 = vrot.slane %v44, 2
  %v216 = vrot.slane %v45, 2
  %v217 = vsel %vm211, %v215, %v216
  %v218 = vrot.slane %v46, 2
  %v219 = vrot.slane %v47, 2
  %v220 = vsel %vm211, %v218, %v219
  %v221 = vrot.slane %v48, 2
  %v222 = vrot.slane %v49, 2
  %v223 = vsel %vm211, %v221, %v222
  %v224 = vrot.slane %v50, 2
  %v225 = vrot.slane %v51, 2
  %v226 = vsel %vm211, %v224, %v225
  %v227 = vrot.slane %v52, 2
  %v228 = vrot.slane %v53, 2
  %v229 = vsel %vm211, %v227, %v228
  %v230 = vrot.slane %v54, 2
  %v231 = vrot.slane %v55, 2
  %v232 = vsel %vm211, %v230, %v231
  %v233 = vrot.slane %v56, 2
  %v234 = vrot.slane %v57, 2
  %v235 = vsel %vm211, %v233, %v234
  %v236 = vrot.slane %v62, 2
  %v237 = vrot.slane %v63, 2
  %v238 = vsel %vm211, %v236, %v237
  %v239 = vrot.slane %v64, 2
  %v240 = vrot.slane %v65, 2
  %v241 = vsel %vm211, %v239, %v240
  %v242 = vrot.slane %v66, 2
  %v243 = vrot.slane %v67, 2
  %v244 = vsel %vm211, %v242, %v243
  %v245 = vrot.slane %v68, 2
  %v246 = vrot.slane %v69, 2
  %v247 = vsel %vm211, %v245, %v246
  %v248 = vrot.slane %v70, 2
  %v249 = vrot.slane %v71, 2
  %v250 = vsel %vm211, %v248, %v249
  %v251 = vrot.slane %v72, 2
  %v252 = vrot.slane %v73, 2
  %v253 = vsel %vm211, %v251, %v252
  %v254 = vrot.slane %v74, 2
  %v255 = vrot.slane %v75, 2
  %v256 = vsel %vm211, %v254, %v255
  %v257 = vrot.slane %v76, 2
  %v258 = vrot.slane %v77, 2
  %v259 = vsel %vm211, %v257, %v258
  %260 = vrot.lane.b32.xlu0 %v214, 64
  %v261 = vpop.permute.xlu0 %260
  %262 = vrot.lane.b32.xlu0 %v217, 64
  %v263 = vpop.permute.xlu0 %262
  %264 = vrot.lane.b32.xlu0 %v220, 64
  %v265 = vpop.permute.xlu0 %264
  %266 = vrot.lane.b32.xlu0 %v223, 64
  %v267 = vpop.permute.xlu0 %266
  %268 = vrot.lane.b32.xlu0 %v226, 64
  %v269 = vpop.permute.xlu0 %268
  %270 = vrot.lane.b32.xlu0 %v229, 64
  %v271 = vpop.permute.xlu0 %270
  %272 = vrot.lane.b32.xlu0 %v232, 64
  %v273 = vpop.permute.xlu0 %272
  %274 = vrot.lane.b32.xlu0 %v235, 64
  %v275 = vpop.permute.xlu0 %274
  %276 = vrot.lane.b32.xlu0 %v238, 64
  %v277 = vpop.permute.xlu0 %276
  %278 = vrot.lane.b32.xlu0 %v241, 64
  %v279 = vpop.permute.xlu0 %278
  %280 = vrot.lane.b32.xlu0 %v244, 64
  %v281 = vpop.permute.xlu0 %280
  %282 = vrot.lane.b32.xlu0 %v247, 64
  %v283 = vpop.permute.xlu0 %282
  %284 = vrot.lane.b32.xlu0 %v250, 64
  %v285 = vpop.permute.xlu0 %284
  %286 = vrot.lane.b32.xlu0 %v253, 64
  %v287 = vpop.permute.xlu0 %286
  %288 = vrot.lane.b32.xlu0 %v256, 64
  %v289 = vpop.permute.xlu0 %288
  %290 = vrot.lane.b32.xlu0 %v259, 64
  %v291 = vpop.permute.xlu0 %290
  %310 = vrot.lane.b32.xlu0 %v44, 96
  %v311 = vpop.permute.xlu0 %310
  %312 = vrot.lane.b32.xlu0 %v46, 96
  %v313 = vpop.permute.xlu0 %312
  %314 = vrot.lane.b32.xlu0 %v48, 96
  %v315 = vpop.permute.xlu0 %314
  %316 = vrot.lane.b32.xlu0 %v50, 96
  %v317 = vpop.permute.xlu0 %316
  %318 = vrot.lane.b32.xlu0 %v52, 96
  %v319 = vpop.permute.xlu0 %318
  %320 = vrot.lane.b32.xlu0 %v54, 96
  %v321 = vpop.permute.xlu0 %320
  %322 = vrot.lane.b32.xlu0 %v56, 96
  %v323 = vpop.permute.xlu0 %322
  %324 = vrot.lane.b32.xlu0 %v58, 96
  %v325 = vpop.permute.xlu0 %324
  %326 = vrot.lane.b32.xlu0 %v64, 96
  %v327 = vpop.permute.xlu0 %326
  %328 = vrot.lane.b32.xlu0 %v66, 96
  %v329 = vpop.permute.xlu0 %328
  %330 = vrot.lane.b32.xlu0 %v68, 96
  %v331 = vpop.permute.xlu0 %330
  %332 = vrot.lane.b32.xlu0 %v70, 96
  %v333 = vpop.permute.xlu0 %332
  %334 = vrot.lane.b32.xlu0 %v72, 96
  %v335 = vpop.permute.xlu0 %334
  %336 = vrot.lane.b32.xlu0 %v74, 96
  %v337 = vpop.permute.xlu0 %336
  %338 = vrot.lane.b32.xlu0 %v76, 96
  %v339 = vpop.permute.xlu0 %338
  %340 = vrot.lane.b32.xlu0 %v78, 96
  %v341 = vpop.permute.xlu0 %340
  %v360 = vrot.slane %v58, 1
  %v361 = vrot.slane %v59, 1
  %v362 = vsel %vm114, %v360, %v361
  %v363 = vrot.slane %v78, 1
  %v364 = vrot.slane %v79, 1
  %v365 = vsel %vm114, %v363, %v364
  %v382 = vrot.slane %v58, 2
  %v383 = vrot.slane %v59, 2
  %v384 = vsel %vm211, %v382, %v383
  %v385 = vrot.slane %v78, 2
  %v386 = vrot.slane %v79, 2
  %v387 = vsel %vm211, %v385, %v386
  %388 = vrot.lane.b32.xlu0 %v217, 32
  %v389 = vpop.permute.xlu0 %388
  %390 = vrot.lane.b32.xlu0 %v220, 32
  %v391 = vpop.permute.xlu0 %390
  %392 = vrot.lane.b32.xlu0 %v223, 32
  %v393 = vpop.permute.xlu0 %392
  %394 = vrot.lane.b32.xlu0 %v226, 32
  %v395 = vpop.permute.xlu0 %394
  %396 = vrot.lane.b32.xlu0 %v229, 32
  %v397 = vpop.permute.xlu0 %396
  %398 = vrot.lane.b32.xlu0 %v232, 32
  %v399 = vpop.permute.xlu0 %398
  %400 = vrot.lane.b32.xlu0 %v235, 32
  %v401 = vpop.permute.xlu0 %400
  %402 = vrot.lane.b32.xlu0 %v384, 32
  %v403 = vpop.permute.xlu0 %402
  %404 = vrot.lane.b32.xlu0 %v241, 32
  %v405 = vpop.permute.xlu0 %404
  %406 = vrot.lane.b32.xlu0 %v244, 32
  %v407 = vpop.permute.xlu0 %406
  %408 = vrot.lane.b32.xlu0 %v247, 32
  %v409 = vpop.permute.xlu0 %408
  %410 = vrot.lane.b32.xlu0 %v250, 32
  %v411 = vpop.permute.xlu0 %410
  %412 = vrot.lane.b32.xlu0 %v253, 32
  %v413 = vpop.permute.xlu0 %412
  %414 = vrot.lane.b32.xlu0 %v256, 32
  %v415 = vpop.permute.xlu0 %414
  %416 = vrot.lane.b32.xlu0 %v259, 32
  %v417 = vpop.permute.xlu0 %416
  %418 = vrot.lane.b32.xlu0 %v387, 32
  %v419 = vpop.permute.xlu0 %418
  %438 = vrot.lane.b32.xlu0 %v46, 64
  %v439 = vpop.permute.xlu0 %438
  %440 = vrot.lane.b32.xlu0 %v48, 64
  %v441 = vpop.permute.xlu0 %440
  %442 = vrot.lane.b32.xlu0 %v50, 64
  %v443 = vpop.permute.xlu0 %442
  %444 = vrot.lane.b32.xlu0 %v52, 64
  %v445 = vpop.permute.xlu0 %444
  %446 = vrot.lane.b32.xlu0 %v54, 64
  %v447 = vpop.permute.xlu0 %446
  %448 = vrot.lane.b32.xlu0 %v56, 64
  %v449 = vpop.permute.xlu0 %448
  %450 = vrot.lane.b32.xlu0 %v58, 64
  %v451 = vpop.permute.xlu0 %450
  %452 = vrot.lane.b32.xlu0 %v60, 64
  %v453 = vpop.permute.xlu0 %452
  %454 = vrot.lane.b32.xlu0 %v66, 64
  %v455 = vpop.permute.xlu0 %454
  %456 = vrot.lane.b32.xlu0 %v68, 64
  %v457 = vpop.permute.xlu0 %456
  %458 = vrot.lane.b32.xlu0 %v70, 64
  %v459 = vpop.permute.xlu0 %458
  %460 = vrot.lane.b32.xlu0 %v72, 64
  %v461 = vpop.permute.xlu0 %460
  %462 = vrot.lane.b32.xlu0 %v74, 64
  %v463 = vpop.permute.xlu0 %462
  %464 = vrot.lane.b32.xlu0 %v76, 64
  %v465 = vpop.permute.xlu0 %464
  %466 = vrot.lane.b32.xlu0 %v78, 64
  %v467 = vpop.permute.xlu0 %466
  %468 = vrot.lane.b32.xlu0 %v80, 64
  %v469 = vpop.permute.xlu0 %468
  %v488 = vrot.slane %v60, 1
  %v489 = vrot.slane %v61, 1
  %v490 = vsel %vm114, %v488, %v489
  %v491 = vrot.slane %v80, 1
  %v492 = vrot.slane %v81, 1
  %v493 = vsel %vm114, %v491, %v492
  %494 = vrot.lane.b32.xlu0 %v123, 96
  %v495 = vpop.permute.xlu0 %494
  %496 = vrot.lane.b32.xlu0 %v126, 96
  %v497 = vpop.permute.xlu0 %496
  %498 = vrot.lane.b32.xlu0 %v129, 96
  %v499 = vpop.permute.xlu0 %498
  %500 = vrot.lane.b32.xlu0 %v132, 96
  %v501 = vpop.permute.xlu0 %500
  %502 = vrot.lane.b32.xlu0 %v135, 96
  %v503 = vpop.permute.xlu0 %502
  %504 = vrot.lane.b32.xlu0 %v138, 96
  %v505 = vpop.permute.xlu0 %504
  %506 = vrot.lane.b32.xlu0 %v362, 96
  %v507 = vpop.permute.xlu0 %506
  %508 = vrot.lane.b32.xlu0 %v490, 96
  %v509 = vpop.permute.xlu0 %508
  %510 = vrot.lane.b32.xlu0 %v147, 96
  %v511 = vpop.permute.xlu0 %510
  %512 = vrot.lane.b32.xlu0 %v150, 96
  %v513 = vpop.permute.xlu0 %512
  %514 = vrot.lane.b32.xlu0 %v153, 96
  %v515 = vpop.permute.xlu0 %514
  %516 = vrot.lane.b32.xlu0 %v156, 96
  %v517 = vpop.permute.xlu0 %516
  %518 = vrot.lane.b32.xlu0 %v159, 96
  %v519 = vpop.permute.xlu0 %518
  %520 = vrot.lane.b32.xlu0 %v162, 96
  %v521 = vpop.permute.xlu0 %520
  %522 = vrot.lane.b32.xlu0 %v365, 96
  %v523 = vpop.permute.xlu0 %522
  %524 = vrot.lane.b32.xlu0 %v493, 96
  %v525 = vpop.permute.xlu0 %524
  %v542 = vrot.slane %v60, 2
  %v543 = vrot.slane %v61, 2
  %v544 = vsel %vm211, %v542, %v543
  %v545 = vrot.slane %v80, 2
  %v546 = vrot.slane %v81, 2
  %v547 = vsel %vm211, %v545, %v546
  %vm564 = vcmask 261120
  %v565 = vsel %vm564, %v42, %v164
  %v566 = vsel %vm564, %v44, %v166
  %v567 = vsel %vm564, %v46, %v168
  %v568 = vsel %vm564, %v48, %v170
  %v569 = vsel %vm564, %v50, %v172
  %v570 = vsel %vm564, %v52, %v174
  %v571 = vsel %vm564, %v54, %v176
  %v572 = vsel %vm564, %v56, %v178
  %v573 = vsel %vm564, %v62, %v180
  %v574 = vsel %vm564, %v64, %v182
  %v575 = vsel %vm564, %v66, %v184
  %v576 = vsel %vm564, %v68, %v186
  %v577 = vsel %vm564, %v70, %v188
  %v578 = vsel %vm564, %v72, %v190
  %v579 = vsel %vm564, %v74, %v192
  %v580 = vsel %vm564, %v76, %v194
  %vm581 = vcmask 523264
  %v582 = vsel %vm581, %v565, %v261
  %v583 = vsel %vm581, %v566, %v263
  %v584 = vsel %vm581, %v567, %v265
  %v585 = vsel %vm581, %v568, %v267
  %v586 = vsel %vm581, %v569, %v269
  %v587 = vsel %vm581, %v570, %v271
  %v588 = vsel %vm581, %v571, %v273
  %v589 = vsel %vm581, %v572, %v275
  %v590 = vsel %vm581, %v573, %v277
  %v591 = vsel %vm581, %v574, %v279
  %v592 = vsel %vm581, %v575, %v281
  %v593 = vsel %vm581, %v576, %v283
  %v594 = vsel %vm581, %v577, %v285
  %v595 = vsel %vm581, %v578, %v287
  %v596 = vsel %vm581, %v579, %v289
  %v597 = vsel %vm581, %v580, %v291
  %vm598 = vcmask 785408
  %v599 = vsel %vm598, %v582, %v311
  %v600 = vsel %vm598, %v583, %v313
  %v601 = vsel %vm598, %v584, %v315
  %v602 = vsel %vm598, %v585, %v317
  %v603 = vsel %vm598, %v586, %v319
  %v604 = vsel %vm598, %v587, %v321
  %v605 = vsel %vm598, %v588, %v323
  %v606 = vsel %vm598, %v589, %v325
  %v607 = vsel %vm598, %v590, %v327
  %v608 = vsel %vm598, %v591, %v329
  %v609 = vsel %vm598, %v592, %v331
  %v610 = vsel %vm598, %v593, %v333
  %v611 = vsel %vm598, %v594, %v335
  %v612 = vsel %vm598, %v595, %v337
  %v613 = vsel %vm598, %v596, %v339
  %v614 = vsel %vm598, %v597, %v341
  %v615 = vsel %vm564, %v120, %v389
  %v616 = vsel %vm564, %v123, %v391
  %v617 = vsel %vm564, %v126, %v393
  %v618 = vsel %vm564, %v129, %v395
  %v619 = vsel %vm564, %v132, %v397
  %v620 = vsel %vm564, %v135, %v399
  %v621 = vsel %vm564, %v138, %v401
  %v622 = vsel %vm564, %v362, %v403
  %v623 = vsel %vm564, %v144, %v405
  %v624 = vsel %vm564, %v147, %v407
  %v625 = vsel %vm564, %v150, %v409
  %v626 = vsel %vm564, %v153, %v411
  %v627 = vsel %vm564, %v156, %v413
  %v628 = vsel %vm564, %v159, %v415
  %v629 = vsel %vm564, %v162, %v417
  %v630 = vsel %vm564, %v365, %v419
  %v631 = vsel %vm581, %v615, %v439
  %v632 = vsel %vm581, %v616, %v441
  %v633 = vsel %vm581, %v617, %v443
  %v634 = vsel %vm581, %v618, %v445
  %v635 = vsel %vm581, %v619, %v447
  %v636 = vsel %vm581, %v620, %v449
  %v637 = vsel %vm581, %v621, %v451
  %v638 = vsel %vm581, %v622, %v453
  %v639 = vsel %vm581, %v623, %v455
  %v640 = vsel %vm581, %v624, %v457
  %v641 = vsel %vm581, %v625, %v459
  %v642 = vsel %vm581, %v626, %v461
  %v643 = vsel %vm581, %v627, %v463
  %v644 = vsel %vm581, %v628, %v465
  %v645 = vsel %vm581, %v629, %v467
  %v646 = vsel %vm581, %v630, %v469
  %v647 = vsel %vm598, %v631, %v495
  %v648 = vsel %vm598, %v632, %v497
  %v649 = vsel %vm598, %v633, %v499
  %v650 = vsel %vm598, %v634, %v501
  %v651 = vsel %vm598, %v635, %v503
  %v652 = vsel %vm598, %v636, %v505
  %v653 = vsel %vm598, %v637, %v507
  %v654 = vsel %vm598, %v638, %v509
  %v655 = vsel %vm598, %v639, %v511
  %v656 = vsel %vm598, %v640, %v513
  %v657 = vsel %vm598, %v641, %v515
  %v658 = vsel %vm598, %v642, %v517
  %v659 = vsel %vm598, %v643, %v519
  %v660 = vsel %vm598, %v644, %v521
  %v661 = vsel %vm598, %v645, %v523
  %v662 = vsel %vm598, %v646, %v525
  %v663 = vpack.c.bf16 %v600, %v599
  %v664 = vpack.c.bf16 %v648, %v647
  %v665 = vpack.c.bf16 %v223, %v220
  %v666 = vpack.c.bf16 %v602, %v601
  %v667 = vpack.c.bf16 %v650, %v649
  %v668 = vpack.c.bf16 %v229, %v226
  %v669 = vpack.c.bf16 %v604, %v603
  %v670 = vpack.c.bf16 %v652, %v651
  %v671 = vpack.c.bf16 %v235, %v232
  %v672 = vpack.c.bf16 %v606, %v605
  %v673 = vpack.c.bf16 %v654, %v653
  %v674 = vpack.c.bf16 %v544, %v384
  %v675 = vpack.c.bf16 %v608, %v607
  %v676 = vpack.c.bf16 %v656, %v655
  %v677 = vpack.c.bf16 %v247, %v244
  %v678 = vpack.c.bf16 %v610, %v609
  %v679 = vpack.c.bf16 %v658, %v657
  %v680 = vpack.c.bf16 %v253, %v250
  %v681 = vpack.c.bf16 %v612, %v611
  %v682 = vpack.c.bf16 %v660, %v659
  %v683 = vpack.c.bf16 %v259, %v256
  %v684 = vpack.c.bf16 %v614, %v613
  %v685 = vpack.c.bf16 %v662, %v661
  %v686 = vpack.c.bf16 %v547, %v387
  %v687 = vld [vmem:[%s1] sm:$0xf]
  %v688 = vld [vmem:[%s1 + $0x4] sm:$0xf]
  %v689 = vld [vmem:[%s1 + $0x8] sm:$0xf]
  %v690 = vld [vmem:[%s1 + $0xc] sm:$0xf]
  %v691 = vld [vmem:[%s1 + $0x10] sm:$0xf]
  %v692 = vld [vmem:[%s1 + $0x14] sm:$0xf]
  %v693 = vld [vmem:[%s1 + $0x18] sm:$0xf]
  %v694 = vld [vmem:[%s1 + $0x1c] sm:$0xf]
  %v695 = vld [vmem:[%s1 + $0x20] sm:$0xf]
  %v696 = vld [vmem:[%s1 + $0x24] sm:$0xf]
  %v697 = vld [vmem:[%s1 + $0x28] sm:$0xf]
  %v698 = vld [vmem:[%s1 + $0x2c] sm:$0xf]
  %v699 = vld [vmem:[%s1 + $0x30] sm:$0xf]
  %v700 = vld [vmem:[%s1 + $0x34] sm:$0xf]
  %v701 = vld [vmem:[%s1 + $0x38] sm:$0xf]
  %v702 = vld [vmem:[%s1 + $0x3c] sm:$0xf]
  %v703 = vld [vmem:[%s1 + $0x40] sm:$0xf]
  %v704 = vld [vmem:[%s1 + $0x44] sm:$0xf]
  %v705 = vld [vmem:[%s1 + $0x48] sm:$0xf]
  %v706 = vld [vmem:[%s1 + $0x4c] sm:$0xf]
  %v707 = vld [vmem:[%s1 + $0x50] sm:$0xf]
  %v708 = vld [vmem:[%s1 + $0x54] sm:$0xf]
  %v709 = vld [vmem:[%s1 + $0x58] sm:$0xf]
  %v710 = vld [vmem:[%s1 + $0x5c] sm:$0xf]
  %v711 = vld [vmem:[%s1 + $0x60] sm:$0xf]
  %v712 = vld [vmem:[%s1 + $0x64] sm:$0xf]
  %v713 = vld [vmem:[%s1 + $0x68] sm:$0xf]
  %v714 = vld [vmem:[%s1 + $0x6c] sm:$0xf]
  %v715 = vld [vmem:[%s1 + $0x70] sm:$0xf]
  %v716 = vld [vmem:[%s1 + $0x74] sm:$0xf]
  %v717 = vld [vmem:[%s1 + $0x78] sm:$0xf]
  %v718 = vld [vmem:[%s1 + $0x7c] sm:$0xf]
  %v719 = vld [vmem:[%s1 + $0x80] sm:$0xf]
  %v720 = vld [vmem:[%s1 + $0x84] sm:$0xf]
  %v721 = vld [vmem:[%s1 + $0x88] sm:$0xf]
  %v722 = vld [vmem:[%s1 + $0x8c] sm:$0xf]
  %v759 = vunpack.c.l.b16 %v687
  %v760 = vunpack.c.l.b16 %v688
  %v761 = vunpack.c.l.b16 %v689
  %v762 = vunpack.c.l.b16 %v690
  %v763 = vunpack.c.l.b16 %v691
  %v764 = vunpack.c.l.b16 %v692
  %v765 = vunpack.c.l.b16 %v693
  %v766 = vunpack.c.l.b16 %v694
  %v767 = vunpack.c.l.b16 %v695
  %v768 = vunpack.c.l.b16 %v696
  %v769 = vunpack.c.l.b16 %v697
  %v770 = vunpack.c.l.b16 %v698
  %v771 = vunpack.c.l.b16 %v699
  %v772 = vunpack.c.l.b16 %v700
  %v773 = vunpack.c.l.b16 %v701
  %v774 = vunpack.c.l.b16 %v702
  %v775 = vunpack.c.l.b16 %v703
  %v776 = vunpack.c.l.b16 %v704
  %v777 = vunpack.c.l.b16 %v705
  %v778 = vunpack.c.l.b16 %v706
  %v779 = vunpack.c.l.b16 %v707
  %v780 = vunpack.c.l.b16 %v708
  %v781 = vunpack.c.l.b16 %v709
  %v782 = vunpack.c.l.b16 %v710
  %v783 = vunpack.c.l.b16 %v711
  %v784 = vunpack.c.l.b16 %v712
  %v785 = vunpack.c.l.b16 %v713
  %v786 = vunpack.c.l.b16 %v714
  %v787 = vunpack.c.l.b16 %v715
  %v788 = vunpack.c.l.b16 %v716
  %v789 = vunpack.c.l.b16 %v717
  %v790 = vunpack.c.l.b16 %v718
  %v791 = vunpack.c.l.b16 %v719
  %v792 = vunpack.c.l.b16 %v720
  %v793 = vunpack.c.l.b16 %v721
  %v794 = vunpack.c.l.b16 %v722
  %v795 = vpack.c.b16 %v760, %v759
  %v796 = vpack.c.b16 %v762, %v761
  %v797 = vpack.c.b16 %v764, %v763
  %v798 = vpack.c.b16 %v766, %v765
  %v799 = vpack.c.b16 %v768, %v767
  %v800 = vpack.c.b16 %v770, %v769
  %v801 = vpack.c.b16 %v772, %v771
  %v802 = vpack.c.b16 %v774, %v773
  %v803 = vpack.c.b16 %v776, %v775
  %v804 = vpack.c.b16 %v778, %v777
  %v805 = vpack.c.b16 %v780, %v779
  %v806 = vpack.c.b16 %v782, %v781
  %v807 = vpack.c.b16 %v784, %v783
  %v808 = vpack.c.b16 %v786, %v785
  %v809 = vpack.c.b16 %v788, %v787
  %v810 = vpack.c.b16 %v790, %v789
  %v811 = vpack.c.b16 %v792, %v791
  %v812 = vpack.c.b16 %v794, %v793
  %v832 = vsel %vm564, %v665, 0
  %v835 = vsel %vm564, %v668, 0
  %v838 = vsel %vm564, %v671, 0
  %v841 = vsel %vm564, %v674, 0
  %v844 = vsel %vm564, %v677, 0
  %v847 = vsel %vm564, %v680, 0
  %v850 = vsel %vm564, %v683, 0
  %v853 = vsel %vm564, %v686, 0
  %855 = vmatprep.subr.bf16.mxu0 0
  %856 = vmatpush1.bf16.msra.mxu0 %v795
  %857 = vmatprep.subr.bf16.mxu0 0
  %858 = vmatpush1.bf16.msra.mxu0 %v796
  %859 = vmatprep.subr.bf16.mxu0 0
  %860 = vmatpush1.bf16.msra.mxu0 %v797
  %861 = vmatprep.subr.bf16.mxu0 0
  %862 = vmatpush1.bf16.msra.mxu0 %v798
  %863 = vmatprep.subr.bf16.mxu0 0
  %864 = vmatpush1.bf16.msra.mxu0 %v799
  %865 = vmatprep.subr.bf16.mxu0 0
  %866 = vmatpush1.bf16.msra.mxu0 %v800
  %867 = vmatprep.subr.bf16.mxu0 0
  %868 = vmatpush1.bf16.msra.mxu0 %v801
  %869 = vmatprep.subr.bf16.mxu0 0
  %870 = vmatpush1.bf16.msra.mxu0 %v802
  %871 = vmatprep.subr.bf16.mxu0 0
  %872 = vmatpush1.bf16.msra.mxu0 %v803
  %873 = vmatprep.subr.bf16.mxu0 0
  %874 = vmatpush1.bf16.msra.mxu0 %v804
  %875 = vmatprep.subr.bf16.mxu0 0
  %876 = vmatpush1.bf16.msra.mxu0 %v805
  %877 = vmatprep.subr.bf16.mxu0 0
  %878 = vmatpush1.bf16.msra.mxu0 %v806
  %879 = vmatprep.subr.bf16.mxu0 0
  %880 = vmatpush1.bf16.msra.mxu0 %v807
  %881 = vmatprep.subr.bf16.mxu0 0
  %882 = vmatpush1.bf16.msra.mxu0 %v808
  %883 = vmatprep.subr.bf16.mxu0 0
  %884 = vmatpush1.bf16.msra.mxu0 %v809
  %885 = vmatprep.subr.bf16.mxu0 0
  %886 = vmatpush1.bf16.msra.mxu0 %v810
  %887 = vmatprep.mubr.bf16.mxu0 %v664
  %888 = vmatmul.mubr.bf16.gmra.mrb[0].mxu0 %v663
  %v889 = vpop.f32.mrb[0].mxu0
  %v890 = vadd.f32 0.0, %v889
  %v891 = vpop.f32.mrb[0].mxu0
  %v892 = vpop.f32.mrb[0].mxu0
  %v893 = vadd.f32 0.0, %v892
  %v894 = vpop.f32.mrb[0].mxu0
  %895 = vmatprep.mubr.bf16.mxu0 %v667
  %896 = vmatmul.mubr.bf16.gmra.mrb[0].mxu0 %v666
  %v897 = vpop.f32.mrb[0].mxu0
  %v898 = vadd.f32 0.0, %v897
  %v899 = vpop.f32.mrb[0].mxu0
  %v900 = vpop.f32.mrb[0].mxu0
  %v901 = vadd.f32 0.0, %v900
  %v902 = vpop.f32.mrb[0].mxu0
  %903 = vmatprep.mubr.bf16.mxu0 %v670
  %904 = vmatmul.mubr.bf16.gmra.mrb[0].mxu0 %v669
  %v905 = vpop.f32.mrb[0].mxu0
  %v906 = vadd.f32 0.0, %v905
  %v907 = vpop.f32.mrb[0].mxu0
  %v908 = vpop.f32.mrb[0].mxu0
  %v909 = vadd.f32 0.0, %v908
  %v910 = vpop.f32.mrb[0].mxu0
  %911 = vmatprep.mubr.bf16.mxu0 %v673
  %912 = vmatmul.mubr.bf16.gmra.mrb[0].mxu0 %v672
  %v913 = vpop.f32.mrb[0].mxu0
  %v914 = vadd.f32 0.0, %v913
  %v915 = vpop.f32.mrb[0].mxu0
  %v916 = vpop.f32.mrb[0].mxu0
  %v917 = vadd.f32 0.0, %v916
  %v918 = vpop.f32.mrb[0].mxu0
  %919 = vmatprep.mubr.bf16.mxu0 %v676
  %920 = vmatmul.mubr.bf16.gmra.mrb[0].mxu0 %v675
  %v921 = vpop.f32.mrb[0].mxu0
  %v922 = vadd.f32 0.0, %v921
  %v923 = vpop.f32.mrb[0].mxu0
  %v924 = vpop.f32.mrb[0].mxu0
  %v925 = vadd.f32 0.0, %v924
  %v926 = vpop.f32.mrb[0].mxu0
  %927 = vmatprep.mubr.bf16.mxu0 %v679
  %928 = vmatmul.mubr.bf16.gmra.mrb[0].mxu0 %v678
  %v929 = vpop.f32.mrb[0].mxu0
  %v930 = vadd.f32 0.0, %v929
  %v931 = vpop.f32.mrb[0].mxu0
  %v932 = vpop.f32.mrb[0].mxu0
  %v933 = vadd.f32 0.0, %v932
  %v934 = vpop.f32.mrb[0].mxu0
  %935 = vmatprep.mubr.bf16.mxu0 %v682
  %936 = vmatmul.mubr.bf16.gmra.mrb[0].mxu0 %v681
  %v937 = vpop.f32.mrb[0].mxu0
  %v938 = vadd.f32 0.0, %v937
  %v939 = vpop.f32.mrb[0].mxu0
  %v940 = vpop.f32.mrb[0].mxu0
  %v941 = vadd.f32 0.0, %v940
  %v942 = vpop.f32.mrb[0].mxu0
  %943 = vmatprep.mubr.bf16.mxu0 %v685
  %944 = vmatmul.mubr.bf16.gmra.mrb[0].mxu0 %v684
  %v945 = vpop.f32.mrb[0].mxu0
  %v946 = vadd.f32 0.0, %v945
  %v947 = vpop.f32.mrb[0].mxu0
  %v948 = vpop.f32.mrb[0].mxu0
  %v949 = vadd.f32 0.0, %v948
  %v950 = vpop.f32.mrb[0].mxu0
  %951 = vdwg.mxu0
  %952 = vmatprep.subr.bf16.mxu0 0
  %953 = vmatpush1.bf16.msra.mxu0 %v811
  %954 = vmatprep.subr.bf16.mxu0 0
  %955 = vmatpush1.bf16.msra.mxu0 %v812
  %956 = vmatprep.subr.bf16.mxu0 0
  %957 = vmatpush1.bf16.msra.mxu0 0
  %958 = vmatprep.subr.bf16.mxu0 0
  %959 = vmatpush1.bf16.msra.mxu0 0
  %960 = vmatprep.subr.bf16.mxu0 0
  %961 = vmatpush1.bf16.msra.mxu0 0
  %962 = vmatprep.subr.bf16.mxu0 0
  %963 = vmatpush1.bf16.msra.mxu0 0
  %964 = vmatprep.subr.bf16.mxu0 0
  %965 = vmatpush1.bf16.msra.mxu0 0
  %966 = vmatprep.subr.bf16.mxu0 0
  %967 = vmatpush1.bf16.msra.mxu0 0
  %968 = vmatprep.subr.bf16.mxu0 0
  %969 = vmatpush1.bf16.msra.mxu0 0
  %970 = vmatprep.subr.bf16.mxu0 0
  %971 = vmatpush1.bf16.msra.mxu0 0
  %972 = vmatprep.subr.bf16.mxu0 0
  %973 = vmatpush1.bf16.msra.mxu0 0
  %974 = vmatprep.subr.bf16.mxu0 0
  %975 = vmatpush1.bf16.msra.mxu0 0
  %976 = vmatprep.subr.bf16.mxu0 0
  %977 = vmatpush1.bf16.msra.mxu0 0
  %978 = vmatprep.subr.bf16.mxu0 0
  %979 = vmatpush1.bf16.msra.mxu0 0
  %980 = vmatprep.subr.bf16.mxu0 0
  %981 = vmatpush1.bf16.msra.mxu0 0
  %982 = vmatprep.subr.bf16.mxu0 0
  %983 = vmatpush1.bf16.msra.mxu0 0
  %984 = vmatprep.mubr.bf16.mxu0 0
  %985 = vmatmul.mubr.bf16.gmra.mrb[0].mxu0 %v832
  %v986 = vpop.f32.mrb[0].mxu0
  %v987 = vadd.f32 %v890, %v986
  %v988 = vpop.f32.mrb[0].mxu0
  %v989 = vpop.f32.mrb[0].mxu0
  %v990 = vadd.f32 %v893, %v989
  %v991 = vpop.f32.mrb[0].mxu0
  %992 = vmatprep.mubr.bf16.mxu0 0
  %993 = vmatmul.mubr.bf16.gmra.mrb[0].mxu0 %v835
  %v994 = vpop.f32.mrb[0].mxu0
  %v995 = vadd.f32 %v898, %v994
  %v996 = vpop.f32.mrb[0].mxu0
  %v997 = vpop.f32.mrb[0].mxu0
  %v998 = vadd.f32 %v901, %v997
  %v999 = vpop.f32.mrb[0].mxu0
  %1000 = vmatprep.mubr.bf16.mxu0 0
  %1001 = vmatmul.mubr.bf16.gmra.mrb[0].mxu0 %v838
  %v1002 = vpop.f32.mrb[0].mxu0
  %v1003 = vadd.f32 %v906, %v1002
  %v1004 = vpop.f32.mrb[0].mxu0
  %v1005 = vpop.f32.mrb[0].mxu0
  %v1006 = vadd.f32 %v909, %v1005
  %v1007 = vpop.f32.mrb[0].mxu0
  %1008 = vmatprep.mubr.bf16.mxu0 0
  %1009 = vmatmul.mubr.bf16.gmra.mrb[0].mxu0 %v841
  %v1010 = vpop.f32.mrb[0].mxu0
  %v1011 = vadd.f32 %v914, %v1010
  %v1012 = vpop.f32.mrb[0].mxu0
  %v1013 = vpop.f32.mrb[0].mxu0
  %v1014 = vadd.f32 %v917, %v1013
  %v1015 = vpop.f32.mrb[0].mxu0
  %1016 = vmatprep.mubr.bf16.mxu0 0
  %1017 = vmatmul.mubr.bf16.gmra.mrb[0].mxu0 %v844
  %v1018 = vpop.f32.mrb[0].mxu0
  %v1019 = vadd.f32 %v922, %v1018
  %v1020 = vpop.f32.mrb[0].mxu0
  %v1021 = vpop.f32.mrb[0].mxu0
  %v1022 = vadd.f32 %v925, %v1021
  %v1023 = vpop.f32.mrb[0].mxu0
  %1024 = vmatprep.mubr.bf16.mxu0 0
  %1025 = vmatmul.mubr.bf16.gmra.mrb[0].mxu0 %v847
  %v1026 = vpop.f32.mrb[0].mxu0
  %v1027 = vadd.f32 %v930, %v1026
  %v1028 = vpop.f32.mrb[0].mxu0
  %v1029 = vpop.f32.mrb[0].mxu0
  %v1030 = vadd.f32 %v933, %v1029
  %v1031 = vpop.f32.mrb[0].mxu0
  %1032 = vmatprep.mubr.bf16.mxu0 0
  %1033 = vmatmul.mubr.bf16.gmra.mrb[0].mxu0 %v850
  %v1034 = vpop.f32.mrb[0].mxu0
  %v1035 = vadd.f32 %v938, %v1034
  %v1036 = vpop.f32.mrb[0].mxu0
  %v1037 = vpop.f32.mrb[0].mxu0
  %v1038 = vadd.f32 %v941, %v1037
  %v1039 = vpop.f32.mrb[0].mxu0
  %1040 = vmatprep.mubr.bf16.mxu0 0
  %1041 = vmatmul.mubr.bf16.gmra.mrb[0].mxu0 %v853
  %v1042 = vpop.f32.mrb[0].mxu0
  %v1043 = vadd.f32 %v946, %v1042
  %v1044 = vpop.f32.mrb[0].mxu0
  %v1045 = vpop.f32.mrb[0].mxu0
  %v1046 = vadd.f32 %v949, %v1045
  %v1047 = vpop.f32.mrb[0].mxu0
  %1048 = vdwg.mxu0
  %v1049 = vsel %vm564, %v987, 0.0
  %v1050 = vsel %vm564, %v990, 0.0
  %v1051 = vadd.f32 %v1049, %v1050
  %v1052 = vsel %vm564, %v995, 0.0
  %v1053 = vadd.f32 %v1051, %v1052
  %v1054 = vsel %vm564, %v998, 0.0
  %v1055 = vadd.f32 %v1053, %v1054
  %v1056 = vsel %vm564, %v1003, 0.0
  %v1057 = vadd.f32 %v1055, %v1056
  %v1058 = vsel %vm564, %v1006, 0.0
  %v1059 = vadd.f32 %v1057, %v1058
  %v1060 = vsel %vm564, %v1011, 0.0
  %v1061 = vadd.f32 %v1059, %v1060
  %v1062 = vsel %vm564, %v1014, 0.0
  %v1063 = vadd.f32 %v1061, %v1062
  %v1064 = vsel %vm564, %v1019, 0.0
  %v1065 = vadd.f32 %v1063, %v1064
  %v1066 = vsel %vm564, %v1022, 0.0
  %v1067 = vadd.f32 %v1065, %v1066
  %v1068 = vsel %vm564, %v1027, 0.0
  %v1069 = vadd.f32 %v1067, %v1068
  %v1070 = vsel %vm564, %v1030, 0.0
  %v1071 = vadd.f32 %v1069, %v1070
  %v1072 = vsel %vm564, %v1035, 0.0
  %v1073 = vadd.f32 %v1071, %v1072
  %v1074 = vsel %vm564, %v1038, 0.0
  %v1075 = vadd.f32 %v1073, %v1074
  %v1076 = vsel %vm564, %v1043, 0.0
  %v1077 = vadd.f32 %v1075, %v1076
  %v1078 = vsel %vm564, %v1046, 0.0
  %v1079 = vadd.f32 %v1077, %v1078
  %v1080 = vrot.slane %v1079, 4
  %v1081 = vadd.f32 %v1079, %v1080
  %v1082 = vrot.slane %v1081, 2
  %v1083 = vadd.f32 %v1081, %v1082
  %v1084 = vrot.slane %v1083, 1
  %v1085 = vadd.f32 %v1083, %v1084
  %v1086 = vmul.f32 %v987, %v987
  %v1087 = vmul.f32 %v990, %v990
  %v1088 = vmul.f32 %v995, %v995
  %v1089 = vmul.f32 %v998, %v998
  %v1090 = vmul.f32 %v1003, %v1003
  %v1091 = vmul.f32 %v1006, %v1006
  %v1092 = vmul.f32 %v1011, %v1011
  %v1093 = vmul.f32 %v1014, %v1014
  %v1094 = vmul.f32 %v1019, %v1019
  %v1095 = vmul.f32 %v1022, %v1022
  %v1096 = vmul.f32 %v1027, %v1027
  %v1097 = vmul.f32 %v1030, %v1030
  %v1098 = vmul.f32 %v1035, %v1035
  %v1099 = vmul.f32 %v1038, %v1038
  %v1100 = vmul.f32 %v1043, %v1043
  %v1101 = vmul.f32 %v1046, %v1046
  %v1102 = vsel %vm564, %v1086, 0.0
  %v1103 = vsel %vm564, %v1087, 0.0
  %v1104 = vadd.f32 %v1102, %v1103
  %v1105 = vsel %vm564, %v1088, 0.0
  %v1106 = vadd.f32 %v1104, %v1105
  %v1107 = vsel %vm564, %v1089, 0.0
  %v1108 = vadd.f32 %v1106, %v1107
  %v1109 = vsel %vm564, %v1090, 0.0
  %v1110 = vadd.f32 %v1108, %v1109
  %v1111 = vsel %vm564, %v1091, 0.0
  %v1112 = vadd.f32 %v1110, %v1111
  %v1113 = vsel %vm564, %v1092, 0.0
  %v1114 = vadd.f32 %v1112, %v1113
  %v1115 = vsel %vm564, %v1093, 0.0
  %v1116 = vadd.f32 %v1114, %v1115
  %v1117 = vsel %vm564, %v1094, 0.0
  %v1118 = vadd.f32 %v1116, %v1117
  %v1119 = vsel %vm564, %v1095, 0.0
  %v1120 = vadd.f32 %v1118, %v1119
  %v1121 = vsel %vm564, %v1096, 0.0
  %v1122 = vadd.f32 %v1120, %v1121
  %v1123 = vsel %vm564, %v1097, 0.0
  %v1124 = vadd.f32 %v1122, %v1123
  %v1125 = vsel %vm564, %v1098, 0.0
  %v1126 = vadd.f32 %v1124, %v1125
  %v1127 = vsel %vm564, %v1099, 0.0
  %v1128 = vadd.f32 %v1126, %v1127
  %v1129 = vsel %vm564, %v1100, 0.0
  %v1130 = vadd.f32 %v1128, %v1129
  %v1131 = vsel %vm564, %v1101, 0.0
  %v1132 = vadd.f32 %v1130, %v1131
  %v1133 = vrot.slane %v1132, 4
  %v1134 = vadd.f32 %v1132, %v1133
  %v1135 = vrot.slane %v1134, 2
  %v1136 = vadd.f32 %v1134, %v1135
  %v1137 = vrot.slane %v1136, 1
  %v1138 = vadd.f32 %v1136, %v1137
  %v1139 = vrcp.pop 128.0
  %v1140 = vmul.f32 %v1085, %v1139
  %v1141 = vmul.f32 %v1138, %v1139
  %v1142 = vmul.f32 %v1140, %v1140
  %v1143 = vsub.f32 %v1141, %v1142
  %v1144 = vld [vmem:[%s4] sm:$0x1]
  %v1145 = vadd.f32 %v1143, 1e-05
  %v1146 = vrsqrt.pop %v1145
  %v1147 = vmul.f32 %v1144, %v1146
  %v1148 = vld [vmem:[%s5] sm:$0x1]
  %v1149 = vmul.f32 %v1140, %v1147
  %v1150 = vsub.f32 %v1148, %v1149
  %v1152 = vlaneseq
  %v1153 = vshrl.u32 %v1152, 7
  %v1154 = vsub.s32 0, %v1153
  %v1155 = vrot.slane %v1147, %v1154
  %v1157 = vmul.f32 %v987, %v1155
  %v1158 = vmul.f32 %v990, %v1155
  %v1159 = vmul.f32 %v995, %v1155
  %v1160 = vmul.f32 %v998, %v1155
  %v1161 = vmul.f32 %v1003, %v1155
  %v1162 = vmul.f32 %v1006, %v1155
  %v1163 = vmul.f32 %v1011, %v1155
  %v1164 = vmul.f32 %v1014, %v1155
  %v1165 = vmul.f32 %v1019, %v1155
  %v1166 = vmul.f32 %v1022, %v1155
  %v1167 = vmul.f32 %v1027, %v1155
  %v1168 = vmul.f32 %v1030, %v1155
  %v1169 = vmul.f32 %v1035, %v1155
  %v1170 = vmul.f32 %v1038, %v1155
  %v1171 = vmul.f32 %v1043, %v1155
  %v1172 = vmul.f32 %v1046, %v1155
  %v1174 = vlaneseq
  %v1175 = vshrl.u32 %v1174, 7
  %v1176 = vsub.s32 0, %v1175
  %v1177 = vrot.slane %v1150, %v1176
  %v1179 = vadd.f32 %v1157, %v1177
  %v1180 = vadd.f32 %v1158, %v1177
  %v1181 = vadd.f32 %v1159, %v1177
  %v1182 = vadd.f32 %v1160, %v1177
  %v1183 = vadd.f32 %v1161, %v1177
  %v1184 = vadd.f32 %v1162, %v1177
  %v1185 = vadd.f32 %v1163, %v1177
  %v1186 = vadd.f32 %v1164, %v1177
  %v1187 = vadd.f32 %v1165, %v1177
  %v1188 = vadd.f32 %v1166, %v1177
  %v1189 = vadd.f32 %v1167, %v1177
  %v1190 = vadd.f32 %v1168, %v1177
  %v1191 = vadd.f32 %v1169, %v1177
  %v1192 = vadd.f32 %v1170, %v1177
  %v1193 = vadd.f32 %v1171, %v1177
  %v1194 = vadd.f32 %v1172, %v1177
  %v1195 = vmax.f32 %v1179, 0.0
  %v1196 = vmax.f32 %v1180, 0.0
  %v1197 = vmax.f32 %v1181, 0.0
  %v1198 = vmax.f32 %v1182, 0.0
  %v1199 = vmax.f32 %v1183, 0.0
  %v1200 = vmax.f32 %v1184, 0.0
  %v1201 = vmax.f32 %v1185, 0.0
  %v1202 = vmax.f32 %v1186, 0.0
  %v1203 = vmax.f32 %v1187, 0.0
  %v1204 = vmax.f32 %v1188, 0.0
  %v1205 = vmax.f32 %v1189, 0.0
  %v1206 = vmax.f32 %v1190, 0.0
  %v1207 = vmax.f32 %v1191, 0.0
  %v1208 = vmax.f32 %v1192, 0.0
  %v1209 = vmax.f32 %v1193, 0.0
  %v1210 = vmax.f32 %v1194, 0.0
  %v1211 = vpack.c.bf16 %v1196, %v1195
  %v1212 = vpack.c.bf16 %v1198, %v1197
  %v1213 = vpack.c.bf16 %v1200, %v1199
  %v1214 = vpack.c.bf16 %v1202, %v1201
  %v1215 = vpack.c.bf16 %v1204, %v1203
  %v1216 = vpack.c.bf16 %v1206, %v1205
  %v1217 = vpack.c.bf16 %v1208, %v1207
  %v1218 = vpack.c.bf16 %v1210, %v1209
  %v1219 = vld [vmem:[%s2] sm:$0xf]
  %v1220 = vld [vmem:[%s2 + $0x4] sm:$0xf]
  %v1221 = vld [vmem:[%s2 + $0x8] sm:$0xf]
  %v1222 = vld [vmem:[%s2 + $0xc] sm:$0xf]
  %v1227 = vunpack.c.l.b16 %v1219
  %v1228 = vunpack.c.l.b16 %v1220
  %v1229 = vunpack.c.l.b16 %v1221
  %v1230 = vunpack.c.l.b16 %v1222
  %v1231 = vpack.c.b16 %v1228, %v1227
  %v1232 = vpack.c.b16 %v1230, %v1229
  %v1236 = vsel %vm564, %v1211, 0
  %v1239 = vsel %vm564, %v1212, 0
  %v1242 = vsel %vm564, %v1213, 0
  %v1245 = vsel %vm564, %v1214, 0
  %v1248 = vsel %vm564, %v1215, 0
  %v1251 = vsel %vm564, %v1216, 0
  %v1254 = vsel %vm564, %v1217, 0
  %v1257 = vsel %vm564, %v1218, 0
  %1259 = vmatprep.subr.bf16.mxu0 0
  %1260 = vmatpush1.bf16.msra.mxu0 %v1231
  %1261 = vmatprep.subr.bf16.mxu0 0
  %1262 = vmatpush1.bf16.msra.mxu0 %v1232
  %1263 = vmatprep.subr.bf16.mxu0 0
  %1264 = vmatpush1.bf16.msra.mxu0 0
  %1265 = vmatprep.subr.bf16.mxu0 0
  %1266 = vmatpush1.bf16.msra.mxu0 0
  %1267 = vmatprep.subr.bf16.mxu0 0
  %1268 = vmatpush1.bf16.msra.mxu0 0
  %1269 = vmatprep.subr.bf16.mxu0 0
  %1270 = vmatpush1.bf16.msra.mxu0 0
  %1271 = vmatprep.subr.bf16.mxu0 0
  %1272 = vmatpush1.bf16.msra.mxu0 0
  %1273 = vmatprep.subr.bf16.mxu0 0
  %1274 = vmatpush1.bf16.msra.mxu0 0
  %1275 = vmatprep.subr.bf16.mxu0 0
  %1276 = vmatpush1.bf16.msra.mxu0 0
  %1277 = vmatprep.subr.bf16.mxu0 0
  %1278 = vmatpush1.bf16.msra.mxu0 0
  %1279 = vmatprep.subr.bf16.mxu0 0
  %1280 = vmatpush1.bf16.msra.mxu0 0
  %1281 = vmatprep.subr.bf16.mxu0 0
  %1282 = vmatpush1.bf16.msra.mxu0 0
  %1283 = vmatprep.subr.bf16.mxu0 0
  %1284 = vmatpush1.bf16.msra.mxu0 0
  %1285 = vmatprep.subr.bf16.mxu0 0
  %1286 = vmatpush1.bf16.msra.mxu0 0
  %1287 = vmatprep.subr.bf16.mxu0 0
  %1288 = vmatpush1.bf16.msra.mxu0 0
  %1289 = vmatprep.subr.bf16.mxu0 0
  %1290 = vmatpush1.bf16.msra.mxu0 0
  %1291 = vmatprep.mubr.bf16.mxu0 0
  %1292 = vmatmul.mubr.bf16.gmra.mrb[0].mxu0 %v1236
  %v1293 = vpop.f32.mrb[0].mxu0
  %v1294 = vadd.f32 0.0, %v1293
  %v1295 = vpop.f32.mrb[0].mxu0
  %v1296 = vpop.f32.mrb[0].mxu0
  %v1297 = vadd.f32 0.0, %v1296
  %v1298 = vpop.f32.mrb[0].mxu0
  %1299 = vmatprep.mubr.bf16.mxu0 0
  %1300 = vmatmul.mubr.bf16.gmra.mrb[0].mxu0 %v1239
  %v1301 = vpop.f32.mrb[0].mxu0
  %v1302 = vadd.f32 0.0, %v1301
  %v1303 = vpop.f32.mrb[0].mxu0
  %v1304 = vpop.f32.mrb[0].mxu0
  %v1305 = vadd.f32 0.0, %v1304
  %v1306 = vpop.f32.mrb[0].mxu0
  %1307 = vmatprep.mubr.bf16.mxu0 0
  %1308 = vmatmul.mubr.bf16.gmra.mrb[0].mxu0 %v1242
  %v1309 = vpop.f32.mrb[0].mxu0
  %v1310 = vadd.f32 0.0, %v1309
  %v1311 = vpop.f32.mrb[0].mxu0
  %v1312 = vpop.f32.mrb[0].mxu0
  %v1313 = vadd.f32 0.0, %v1312
  %v1314 = vpop.f32.mrb[0].mxu0
  %1315 = vmatprep.mubr.bf16.mxu0 0
  %1316 = vmatmul.mubr.bf16.gmra.mrb[0].mxu0 %v1245
  %v1317 = vpop.f32.mrb[0].mxu0
  %v1318 = vadd.f32 0.0, %v1317
  %v1319 = vpop.f32.mrb[0].mxu0
  %v1320 = vpop.f32.mrb[0].mxu0
  %v1321 = vadd.f32 0.0, %v1320
  %v1322 = vpop.f32.mrb[0].mxu0
  %1323 = vmatprep.mubr.bf16.mxu0 0
  %1324 = vmatmul.mubr.bf16.gmra.mrb[0].mxu0 %v1248
  %v1325 = vpop.f32.mrb[0].mxu0
  %v1326 = vadd.f32 0.0, %v1325
  %v1327 = vpop.f32.mrb[0].mxu0
  %v1328 = vpop.f32.mrb[0].mxu0
  %v1329 = vadd.f32 0.0, %v1328
  %v1330 = vpop.f32.mrb[0].mxu0
  %1331 = vmatprep.mubr.bf16.mxu0 0
  %1332 = vmatmul.mubr.bf16.gmra.mrb[0].mxu0 %v1251
  %v1333 = vpop.f32.mrb[0].mxu0
  %v1334 = vadd.f32 0.0, %v1333
  %v1335 = vpop.f32.mrb[0].mxu0
  %v1336 = vpop.f32.mrb[0].mxu0
  %v1337 = vadd.f32 0.0, %v1336
  %v1338 = vpop.f32.mrb[0].mxu0
  %1339 = vmatprep.mubr.bf16.mxu0 0
  %1340 = vmatmul.mubr.bf16.gmra.mrb[0].mxu0 %v1254
  %v1341 = vpop.f32.mrb[0].mxu0
  %v1342 = vadd.f32 0.0, %v1341
  %v1343 = vpop.f32.mrb[0].mxu0
  %v1344 = vpop.f32.mrb[0].mxu0
  %v1345 = vadd.f32 0.0, %v1344
  %v1346 = vpop.f32.mrb[0].mxu0
  %1347 = vmatprep.mubr.bf16.mxu0 0
  %1348 = vmatmul.mubr.bf16.gmra.mrb[0].mxu0 %v1257
  %v1349 = vpop.f32.mrb[0].mxu0
  %v1350 = vadd.f32 0.0, %v1349
  %v1351 = vpop.f32.mrb[0].mxu0
  %v1352 = vpop.f32.mrb[0].mxu0
  %v1353 = vadd.f32 0.0, %v1352
  %v1354 = vpop.f32.mrb[0].mxu0
  %1355 = vdwg.mxu0
  %v1356 = vsel %vm564, %v1294, 0.0
  %v1357 = vsel %vm564, %v1297, 0.0
  %v1358 = vadd.f32 %v1356, %v1357
  %v1359 = vsel %vm564, %v1302, 0.0
  %v1360 = vadd.f32 %v1358, %v1359
  %v1361 = vsel %vm564, %v1305, 0.0
  %v1362 = vadd.f32 %v1360, %v1361
  %v1363 = vsel %vm564, %v1310, 0.0
  %v1364 = vadd.f32 %v1362, %v1363
  %v1365 = vsel %vm564, %v1313, 0.0
  %v1366 = vadd.f32 %v1364, %v1365
  %v1367 = vsel %vm564, %v1318, 0.0
  %v1368 = vadd.f32 %v1366, %v1367
  %v1369 = vsel %vm564, %v1321, 0.0
  %v1370 = vadd.f32 %v1368, %v1369
  %v1371 = vsel %vm564, %v1326, 0.0
  %v1372 = vadd.f32 %v1370, %v1371
  %v1373 = vsel %vm564, %v1329, 0.0
  %v1374 = vadd.f32 %v1372, %v1373
  %v1375 = vsel %vm564, %v1334, 0.0
  %v1376 = vadd.f32 %v1374, %v1375
  %v1377 = vsel %vm564, %v1337, 0.0
  %v1378 = vadd.f32 %v1376, %v1377
  %v1379 = vsel %vm564, %v1342, 0.0
  %v1380 = vadd.f32 %v1378, %v1379
  %v1381 = vsel %vm564, %v1345, 0.0
  %v1382 = vadd.f32 %v1380, %v1381
  %v1383 = vsel %vm564, %v1350, 0.0
  %v1384 = vadd.f32 %v1382, %v1383
  %v1385 = vsel %vm564, %v1353, 0.0
  %v1386 = vadd.f32 %v1384, %v1385
  %v1387 = vrot.slane %v1386, 4
  %v1388 = vadd.f32 %v1386, %v1387
  %v1389 = vrot.slane %v1388, 2
  %v1390 = vadd.f32 %v1388, %v1389
  %v1391 = vrot.slane %v1390, 1
  %v1392 = vadd.f32 %v1390, %v1391
  %v1393 = vmul.f32 %v1294, %v1294
  %v1394 = vmul.f32 %v1297, %v1297
  %v1395 = vmul.f32 %v1302, %v1302
  %v1396 = vmul.f32 %v1305, %v1305
  %v1397 = vmul.f32 %v1310, %v1310
  %v1398 = vmul.f32 %v1313, %v1313
  %v1399 = vmul.f32 %v1318, %v1318
  %v1400 = vmul.f32 %v1321, %v1321
  %v1401 = vmul.f32 %v1326, %v1326
  %v1402 = vmul.f32 %v1329, %v1329
  %v1403 = vmul.f32 %v1334, %v1334
  %v1404 = vmul.f32 %v1337, %v1337
  %v1405 = vmul.f32 %v1342, %v1342
  %v1406 = vmul.f32 %v1345, %v1345
  %v1407 = vmul.f32 %v1350, %v1350
  %v1408 = vmul.f32 %v1353, %v1353
  %v1409 = vsel %vm564, %v1393, 0.0
  %v1410 = vsel %vm564, %v1394, 0.0
  %v1411 = vadd.f32 %v1409, %v1410
  %v1412 = vsel %vm564, %v1395, 0.0
  %v1413 = vadd.f32 %v1411, %v1412
  %v1414 = vsel %vm564, %v1396, 0.0
  %v1415 = vadd.f32 %v1413, %v1414
  %v1416 = vsel %vm564, %v1397, 0.0
  %v1417 = vadd.f32 %v1415, %v1416
  %v1418 = vsel %vm564, %v1398, 0.0
  %v1419 = vadd.f32 %v1417, %v1418
  %v1420 = vsel %vm564, %v1399, 0.0
  %v1421 = vadd.f32 %v1419, %v1420
  %v1422 = vsel %vm564, %v1400, 0.0
  %v1423 = vadd.f32 %v1421, %v1422
  %v1424 = vsel %vm564, %v1401, 0.0
  %v1425 = vadd.f32 %v1423, %v1424
  %v1426 = vsel %vm564, %v1402, 0.0
  %v1427 = vadd.f32 %v1425, %v1426
  %v1428 = vsel %vm564, %v1403, 0.0
  %v1429 = vadd.f32 %v1427, %v1428
  %v1430 = vsel %vm564, %v1404, 0.0
  %v1431 = vadd.f32 %v1429, %v1430
  %v1432 = vsel %vm564, %v1405, 0.0
  %v1433 = vadd.f32 %v1431, %v1432
  %v1434 = vsel %vm564, %v1406, 0.0
  %v1435 = vadd.f32 %v1433, %v1434
  %v1436 = vsel %vm564, %v1407, 0.0
  %v1437 = vadd.f32 %v1435, %v1436
  %v1438 = vsel %vm564, %v1408, 0.0
  %v1439 = vadd.f32 %v1437, %v1438
  %v1440 = vrot.slane %v1439, 4
  %v1441 = vadd.f32 %v1439, %v1440
  %v1442 = vrot.slane %v1441, 2
  %v1443 = vadd.f32 %v1441, %v1442
  %v1444 = vrot.slane %v1443, 1
  %v1445 = vadd.f32 %v1443, %v1444
  %v1446 = vmul.f32 %v1392, %v1139
  %v1447 = vmul.f32 %v1445, %v1139
  %v1448 = vmul.f32 %v1446, %v1446
  %v1449 = vsub.f32 %v1447, %v1448
  %v1450 = vld [vmem:[%s6] sm:$0x1]
  %v1451 = vadd.f32 %v1449, 1e-05
  %v1452 = vrsqrt.pop %v1451
  %v1453 = vmul.f32 %v1450, %v1452
  %v1454 = vld [vmem:[%s7] sm:$0x1]
  %v1455 = vmul.f32 %v1446, %v1453
  %v1456 = vsub.f32 %v1454, %v1455
  %v1458 = vlaneseq
  %v1459 = vshrl.u32 %v1458, 7
  %v1460 = vsub.s32 0, %v1459
  %v1461 = vrot.slane %v1453, %v1460
  %v1463 = vmul.f32 %v1294, %v1461
  %v1464 = vmul.f32 %v1297, %v1461
  %v1465 = vmul.f32 %v1302, %v1461
  %v1466 = vmul.f32 %v1305, %v1461
  %v1467 = vmul.f32 %v1310, %v1461
  %v1468 = vmul.f32 %v1313, %v1461
  %v1469 = vmul.f32 %v1318, %v1461
  %v1470 = vmul.f32 %v1321, %v1461
  %v1471 = vmul.f32 %v1326, %v1461
  %v1472 = vmul.f32 %v1329, %v1461
  %v1473 = vmul.f32 %v1334, %v1461
  %v1474 = vmul.f32 %v1337, %v1461
  %v1475 = vmul.f32 %v1342, %v1461
  %v1476 = vmul.f32 %v1345, %v1461
  %v1477 = vmul.f32 %v1350, %v1461
  %v1478 = vmul.f32 %v1353, %v1461
  %v1480 = vlaneseq
  %v1481 = vshrl.u32 %v1480, 7
  %v1482 = vsub.s32 0, %v1481
  %v1483 = vrot.slane %v1456, %v1482
  %v1485 = vadd.f32 %v1463, %v1483
  %v1486 = vadd.f32 %v1464, %v1483
  %v1487 = vadd.f32 %v1465, %v1483
  %v1488 = vadd.f32 %v1466, %v1483
  %v1489 = vadd.f32 %v1467, %v1483
  %v1490 = vadd.f32 %v1468, %v1483
  %v1491 = vadd.f32 %v1469, %v1483
  %v1492 = vadd.f32 %v1470, %v1483
  %v1493 = vadd.f32 %v1471, %v1483
  %v1494 = vadd.f32 %v1472, %v1483
  %v1495 = vadd.f32 %v1473, %v1483
  %v1496 = vadd.f32 %v1474, %v1483
  %v1497 = vadd.f32 %v1475, %v1483
  %v1498 = vadd.f32 %v1476, %v1483
  %v1499 = vadd.f32 %v1477, %v1483
  %v1500 = vadd.f32 %v1478, %v1483
  %v1501 = vmax.f32 %v1485, 0.0
  %v1502 = vmax.f32 %v1486, 0.0
  %v1503 = vmax.f32 %v1487, 0.0
  %v1504 = vmax.f32 %v1488, 0.0
  %v1505 = vmax.f32 %v1489, 0.0
  %v1506 = vmax.f32 %v1490, 0.0
  %v1507 = vmax.f32 %v1491, 0.0
  %v1508 = vmax.f32 %v1492, 0.0
  %v1509 = vmax.f32 %v1493, 0.0
  %v1510 = vmax.f32 %v1494, 0.0
  %v1511 = vmax.f32 %v1495, 0.0
  %v1512 = vmax.f32 %v1496, 0.0
  %v1513 = vmax.f32 %v1497, 0.0
  %v1514 = vmax.f32 %v1498, 0.0
  %v1515 = vmax.f32 %v1499, 0.0
  %v1516 = vmax.f32 %v1500, 0.0
  %v1533 = vrot.slane %v1501, 7
  %v1534 = vrot.slane %v1502, 7
  %v1535 = vrot.slane %v1503, 7
  %v1536 = vrot.slane %v1504, 7
  %v1537 = vrot.slane %v1505, 7
  %v1538 = vrot.slane %v1506, 7
  %v1539 = vrot.slane %v1507, 7
  %v1540 = vrot.slane %v1508, 7
  %v1541 = vrot.slane %v1509, 7
  %v1542 = vrot.slane %v1510, 7
  %v1543 = vrot.slane %v1511, 7
  %v1544 = vrot.slane %v1512, 7
  %v1545 = vrot.slane %v1513, 7
  %v1546 = vrot.slane %v1514, 7
  %v1547 = vrot.slane %v1515, 7
  %v1548 = vrot.slane %v1516, 7
  %v1565 = vadd.f32 %v44, %v1533
  %v1566 = vadd.f32 %v45, %v1533
  %v1567 = vadd.f32 %v46, %v1534
  %v1568 = vadd.f32 %v47, %v1534
  %v1569 = vadd.f32 %v48, %v1535
  %v1570 = vadd.f32 %v49, %v1535
  %v1571 = vadd.f32 %v50, %v1536
  %v1572 = vadd.f32 %v51, %v1536
  %v1573 = vadd.f32 %v52, %v1537
  %v1574 = vadd.f32 %v53, %v1537
  %v1575 = vadd.f32 %v54, %v1538
  %v1576 = vadd.f32 %v55, %v1538
  %v1577 = vadd.f32 %v56, %v1539
  %v1578 = vadd.f32 %v57, %v1539
  %v1579 = vadd.f32 %v58, %v1540
  %v1580 = vadd.f32 %v59, %v1540
  %v1581 = vadd.f32 %v64, %v1541
  %v1582 = vadd.f32 %v65, %v1541
  %v1583 = vadd.f32 %v66, %v1542
  %v1584 = vadd.f32 %v67, %v1542
  %v1585 = vadd.f32 %v68, %v1543
  %v1586 = vadd.f32 %v69, %v1543
  %v1587 = vadd.f32 %v70, %v1544
  %v1588 = vadd.f32 %v71, %v1544
  %v1589 = vadd.f32 %v72, %v1545
  %v1590 = vadd.f32 %v73, %v1545
  %v1591 = vadd.f32 %v74, %v1546
  %v1592 = vadd.f32 %v75, %v1546
  %v1593 = vadd.f32 %v76, %v1547
  %v1594 = vadd.f32 %v77, %v1547
  %v1595 = vadd.f32 %v78, %v1548
  %v1596 = vadd.f32 %v79, %v1548
  %v1629 = vrot.slane %v1565, 1
  %v1630 = vrot.slane %v1566, 1
  %v1631 = vsel %vm114, %v1629, %v1630
  %v1632 = vrot.slane %v1567, 1
  %v1633 = vrot.slane %v1568, 1
  %v1634 = vsel %vm114, %v1632, %v1633
  %v1635 = vrot.slane %v1569, 1
  %v1636 = vrot.slane %v1570, 1
  %v1637 = vsel %vm114, %v1635, %v1636
  %v1638 = vrot.slane %v1571, 1
  %v1639 = vrot.slane %v1572, 1
  %v1640 = vsel %vm114, %v1638, %v1639
  %v1641 = vrot.slane %v1573, 1
  %v1642 = vrot.slane %v1574, 1
  %v1643 = vsel %vm114, %v1641, %v1642
  %v1644 = vrot.slane %v1575, 1
  %v1645 = vrot.slane %v1576, 1
  %v1646 = vsel %vm114, %v1644, %v1645
  %v1647 = vrot.slane %v1577, 1
  %v1648 = vrot.slane %v1578, 1
  %v1649 = vsel %vm114, %v1647, %v1648
  %v1650 = vrot.slane %v1579, 1
  %v1651 = vrot.slane %v1580, 1
  %v1652 = vsel %vm114, %v1650, %v1651
  %v1653 = vrot.slane %v1581, 1
  %v1654 = vrot.slane %v1582, 1
  %v1655 = vsel %vm114, %v1653, %v1654
  %v1656 = vrot.slane %v1583, 1
  %v1657 = vrot.slane %v1584, 1
  %v1658 = vsel %vm114, %v1656, %v1657
  %v1659 = vrot.slane %v1585, 1
  %v1660 = vrot.slane %v1586, 1
  %v1661 = vsel %vm114, %v1659, %v1660
  %v1662 = vrot.slane %v1587, 1
  %v1663 = vrot.slane %v1588, 1
  %v1664 = vsel %vm114, %v1662, %v1663
  %v1665 = vrot.slane %v1589, 1
  %v1666 = vrot.slane %v1590, 1
  %v1667 = vsel %vm114, %v1665, %v1666
  %v1668 = vrot.slane %v1591, 1
  %v1669 = vrot.slane %v1592, 1
  %v1670 = vsel %vm114, %v1668, %v1669
  %v1671 = vrot.slane %v1593, 1
  %v1672 = vrot.slane %v1594, 1
  %v1673 = vsel %vm114, %v1671, %v1672
  %v1674 = vrot.slane %v1595, 1
  %v1675 = vrot.slane %v1596, 1
  %v1676 = vsel %vm114, %v1674, %v1675
  %v1693 = vsel %vm564, %v1631, 0.0
  %v1694 = vsel %vm564, %v1634, 0.0
  %v1695 = vadd.f32 %v1693, %v1694
  %v1696 = vsel %vm564, %v1637, 0.0
  %v1697 = vadd.f32 %v1695, %v1696
  %v1698 = vsel %vm564, %v1640, 0.0
  %v1699 = vadd.f32 %v1697, %v1698
  %v1700 = vsel %vm564, %v1643, 0.0
  %v1701 = vadd.f32 %v1699, %v1700
  %v1702 = vsel %vm564, %v1646, 0.0
  %v1703 = vadd.f32 %v1701, %v1702
  %v1704 = vsel %vm564, %v1649, 0.0
  %v1705 = vadd.f32 %v1703, %v1704
  %v1706 = vsel %vm564, %v1652, 0.0
  %v1707 = vadd.f32 %v1705, %v1706
  %v1708 = vsel %vm564, %v1655, 0.0
  %v1709 = vadd.f32 %v1707, %v1708
  %v1710 = vsel %vm564, %v1658, 0.0
  %v1711 = vadd.f32 %v1709, %v1710
  %v1712 = vsel %vm564, %v1661, 0.0
  %v1713 = vadd.f32 %v1711, %v1712
  %v1714 = vsel %vm564, %v1664, 0.0
  %v1715 = vadd.f32 %v1713, %v1714
  %v1716 = vsel %vm564, %v1667, 0.0
  %v1717 = vadd.f32 %v1715, %v1716
  %v1718 = vsel %vm564, %v1670, 0.0
  %v1719 = vadd.f32 %v1717, %v1718
  %v1720 = vsel %vm564, %v1673, 0.0
  %v1721 = vadd.f32 %v1719, %v1720
  %v1722 = vsel %vm564, %v1676, 0.0
  %v1723 = vadd.f32 %v1721, %v1722
  %v1724 = vrot.slane %v1723, 4
  %v1725 = vadd.f32 %v1723, %v1724
  %v1726 = vrot.slane %v1725, 2
  %v1727 = vadd.f32 %v1725, %v1726
  %v1728 = vrot.slane %v1727, 1
  %v1729 = vadd.f32 %v1727, %v1728
  %v1730 = vmul.f32 %v1565, %v1565
  %v1731 = vmul.f32 %v1566, %v1566
  %v1732 = vmul.f32 %v1567, %v1567
  %v1733 = vmul.f32 %v1568, %v1568
  %v1734 = vmul.f32 %v1569, %v1569
  %v1735 = vmul.f32 %v1570, %v1570
  %v1736 = vmul.f32 %v1571, %v1571
  %v1737 = vmul.f32 %v1572, %v1572
  %v1738 = vmul.f32 %v1573, %v1573
  %v1739 = vmul.f32 %v1574, %v1574
  %v1740 = vmul.f32 %v1575, %v1575
  %v1741 = vmul.f32 %v1576, %v1576
  %v1742 = vmul.f32 %v1577, %v1577
  %v1743 = vmul.f32 %v1578, %v1578
  %v1744 = vmul.f32 %v1579, %v1579
  %v1745 = vmul.f32 %v1580, %v1580
  %v1746 = vmul.f32 %v1581, %v1581
  %v1747 = vmul.f32 %v1582, %v1582
  %v1748 = vmul.f32 %v1583, %v1583
  %v1749 = vmul.f32 %v1584, %v1584
  %v1750 = vmul.f32 %v1585, %v1585
  %v1751 = vmul.f32 %v1586, %v1586
  %v1752 = vmul.f32 %v1587, %v1587
  %v1753 = vmul.f32 %v1588, %v1588
  %v1754 = vmul.f32 %v1589, %v1589
  %v1755 = vmul.f32 %v1590, %v1590
  %v1756 = vmul.f32 %v1591, %v1591
  %v1757 = vmul.f32 %v1592, %v1592
  %v1758 = vmul.f32 %v1593, %v1593
  %v1759 = vmul.f32 %v1594, %v1594
  %v1760 = vmul.f32 %v1595, %v1595
  %v1761 = vmul.f32 %v1596, %v1596
  %v1794 = vrot.slane %v1730, 1
  %v1795 = vrot.slane %v1731, 1
  %v1796 = vsel %vm114, %v1794, %v1795
  %v1797 = vrot.slane %v1732, 1
  %v1798 = vrot.slane %v1733, 1
  %v1799 = vsel %vm114, %v1797, %v1798
  %v1800 = vrot.slane %v1734, 1
  %v1801 = vrot.slane %v1735, 1
  %v1802 = vsel %vm114, %v1800, %v1801
  %v1803 = vrot.slane %v1736, 1
  %v1804 = vrot.slane %v1737, 1
  %v1805 = vsel %vm114, %v1803, %v1804
  %v1806 = vrot.slane %v1738, 1
  %v1807 = vrot.slane %v1739, 1
  %v1808 = vsel %vm114, %v1806, %v1807
  %v1809 = vrot.slane %v1740, 1
  %v1810 = vrot.slane %v1741, 1
  %v1811 = vsel %vm114, %v1809, %v1810
  %v1812 = vrot.slane %v1742, 1
  %v1813 = vrot.slane %v1743, 1
  %v1814 = vsel %vm114, %v1812, %v1813
  %v1815 = vrot.slane %v1744, 1
  %v1816 = vrot.slane %v1745, 1
  %v1817 = vsel %vm114, %v1815, %v1816
  %v1818 = vrot.slane %v1746, 1
  %v1819 = vrot.slane %v1747, 1
  %v1820 = vsel %vm114, %v1818, %v1819
  %v1821 = vrot.slane %v1748, 1
  %v1822 = vrot.slane %v1749, 1
  %v1823 = vsel %vm114, %v1821, %v1822
  %v1824 = vrot.slane %v1750, 1
  %v1825 = vrot.slane %v1751, 1
  %v1826 = vsel %vm114, %v1824, %v1825
  %v1827 = vrot.slane %v1752, 1
  %v1828 = vrot.slane %v1753, 1
  %v1829 = vsel %vm114, %v1827, %v1828
  %v1830 = vrot.slane %v1754, 1
  %v1831 = vrot.slane %v1755, 1
  %v1832 = vsel %vm114, %v1830, %v1831
  %v1833 = vrot.slane %v1756, 1
  %v1834 = vrot.slane %v1757, 1
  %v1835 = vsel %vm114, %v1833, %v1834
  %v1836 = vrot.slane %v1758, 1
  %v1837 = vrot.slane %v1759, 1
  %v1838 = vsel %vm114, %v1836, %v1837
  %v1839 = vrot.slane %v1760, 1
  %v1840 = vrot.slane %v1761, 1
  %v1841 = vsel %vm114, %v1839, %v1840
  %v1858 = vsel %vm564, %v1796, 0.0
  %v1859 = vsel %vm564, %v1799, 0.0
  %v1860 = vadd.f32 %v1858, %v1859
  %v1861 = vsel %vm564, %v1802, 0.0
  %v1862 = vadd.f32 %v1860, %v1861
  %v1863 = vsel %vm564, %v1805, 0.0
  %v1864 = vadd.f32 %v1862, %v1863
  %v1865 = vsel %vm564, %v1808, 0.0
  %v1866 = vadd.f32 %v1864, %v1865
  %v1867 = vsel %vm564, %v1811, 0.0
  %v1868 = vadd.f32 %v1866, %v1867
  %v1869 = vsel %vm564, %v1814, 0.0
  %v1870 = vadd.f32 %v1868, %v1869
  %v1871 = vsel %vm564, %v1817, 0.0
  %v1872 = vadd.f32 %v1870, %v1871
  %v1873 = vsel %vm564, %v1820, 0.0
  %v1874 = vadd.f32 %v1872, %v1873
  %v1875 = vsel %vm564, %v1823, 0.0
  %v1876 = vadd.f32 %v1874, %v1875
  %v1877 = vsel %vm564, %v1826, 0.0
  %v1878 = vadd.f32 %v1876, %v1877
  %v1879 = vsel %vm564, %v1829, 0.0
  %v1880 = vadd.f32 %v1878, %v1879
  %v1881 = vsel %vm564, %v1832, 0.0
  %v1882 = vadd.f32 %v1880, %v1881
  %v1883 = vsel %vm564, %v1835, 0.0
  %v1884 = vadd.f32 %v1882, %v1883
  %v1885 = vsel %vm564, %v1838, 0.0
  %v1886 = vadd.f32 %v1884, %v1885
  %v1887 = vsel %vm564, %v1841, 0.0
  %v1888 = vadd.f32 %v1886, %v1887
  %v1889 = vrot.slane %v1888, 4
  %v1890 = vadd.f32 %v1888, %v1889
  %v1891 = vrot.slane %v1890, 2
  %v1892 = vadd.f32 %v1890, %v1891
  %v1893 = vrot.slane %v1892, 1
  %v1894 = vadd.f32 %v1892, %v1893
  %v1895 = vmul.f32 %v1729, %v1139
  %v1896 = vmul.f32 %v1894, %v1139
  %v1897 = vmul.f32 %v1895, %v1895
  %v1898 = vsub.f32 %v1896, %v1897
  %v1899 = vld [vmem:[%s8] sm:$0x1]
  %v1900 = vadd.f32 %v1898, 1e-05
  %v1901 = vrsqrt.pop %v1900
  %v1902 = vmul.f32 %v1899, %v1901
  %v1903 = vld [vmem:[%s9] sm:$0x1]
  %v1904 = vmul.f32 %v1895, %v1902
  %v1905 = vsub.f32 %v1903, %v1904
  %v1907 = vlaneseq
  %v1908 = vshrl.u32 %v1907, 7
  %v1909 = vsub.s32 0, %v1908
  %v1910 = vrot.slane %v1902, %v1909
  %v1912 = vmul.f32 %v1565, %v1910
  %v1913 = vmul.f32 %v1566, %v1910
  %v1914 = vmul.f32 %v1567, %v1910
  %v1915 = vmul.f32 %v1568, %v1910
  %v1916 = vmul.f32 %v1569, %v1910
  %v1917 = vmul.f32 %v1570, %v1910
  %v1918 = vmul.f32 %v1571, %v1910
  %v1919 = vmul.f32 %v1572, %v1910
  %v1920 = vmul.f32 %v1573, %v1910
  %v1921 = vmul.f32 %v1574, %v1910
  %v1922 = vmul.f32 %v1575, %v1910
  %v1923 = vmul.f32 %v1576, %v1910
  %v1924 = vmul.f32 %v1577, %v1910
  %v1925 = vmul.f32 %v1578, %v1910
  %v1926 = vmul.f32 %v1579, %v1910
  %v1927 = vmul.f32 %v1580, %v1910
  %v1928 = vmul.f32 %v1581, %v1910
  %v1929 = vmul.f32 %v1582, %v1910
  %v1930 = vmul.f32 %v1583, %v1910
  %v1931 = vmul.f32 %v1584, %v1910
  %v1932 = vmul.f32 %v1585, %v1910
  %v1933 = vmul.f32 %v1586, %v1910
  %v1934 = vmul.f32 %v1587, %v1910
  %v1935 = vmul.f32 %v1588, %v1910
  %v1936 = vmul.f32 %v1589, %v1910
  %v1937 = vmul.f32 %v1590, %v1910
  %v1938 = vmul.f32 %v1591, %v1910
  %v1939 = vmul.f32 %v1592, %v1910
  %v1940 = vmul.f32 %v1593, %v1910
  %v1941 = vmul.f32 %v1594, %v1910
  %v1942 = vmul.f32 %v1595, %v1910
  %v1943 = vmul.f32 %v1596, %v1910
  %v1945 = vlaneseq
  %v1946 = vshrl.u32 %v1945, 7
  %v1947 = vsub.s32 0, %v1946
  %v1948 = vrot.slane %v1905, %v1947
  %v1950 = vadd.f32 %v1912, %v1948
  %v1951 = vadd.f32 %v1913, %v1948
  %v1952 = vadd.f32 %v1914, %v1948
  %v1953 = vadd.f32 %v1915, %v1948
  %v1954 = vadd.f32 %v1916, %v1948
  %v1955 = vadd.f32 %v1917, %v1948
  %v1956 = vadd.f32 %v1918, %v1948
  %v1957 = vadd.f32 %v1919, %v1948
  %v1958 = vadd.f32 %v1920, %v1948
  %v1959 = vadd.f32 %v1921, %v1948
  %v1960 = vadd.f32 %v1922, %v1948
  %v1961 = vadd.f32 %v1923, %v1948
  %v1962 = vadd.f32 %v1924, %v1948
  %v1963 = vadd.f32 %v1925, %v1948
  %v1964 = vadd.f32 %v1926, %v1948
  %v1965 = vadd.f32 %v1927, %v1948
  %v1966 = vadd.f32 %v1928, %v1948
  %v1967 = vadd.f32 %v1929, %v1948
  %v1968 = vadd.f32 %v1930, %v1948
  %v1969 = vadd.f32 %v1931, %v1948
  %v1970 = vadd.f32 %v1932, %v1948
  %v1971 = vadd.f32 %v1933, %v1948
  %v1972 = vadd.f32 %v1934, %v1948
  %v1973 = vadd.f32 %v1935, %v1948
  %v1974 = vadd.f32 %v1936, %v1948
  %v1975 = vadd.f32 %v1937, %v1948
  %v1976 = vadd.f32 %v1938, %v1948
  %v1977 = vadd.f32 %v1939, %v1948
  %v1978 = vadd.f32 %v1940, %v1948
  %v1979 = vadd.f32 %v1941, %v1948
  %v1980 = vadd.f32 %v1942, %v1948
  %v1981 = vadd.f32 %v1943, %v1948
  %v1982 = vmax.f32 %v1950, 0.0
  %v1983 = vmax.f32 %v1951, 0.0
  %v1984 = vmax.f32 %v1952, 0.0
  %v1985 = vmax.f32 %v1953, 0.0
  %v1986 = vmax.f32 %v1954, 0.0
  %v1987 = vmax.f32 %v1955, 0.0
  %v1988 = vmax.f32 %v1956, 0.0
  %v1989 = vmax.f32 %v1957, 0.0
  %v1990 = vmax.f32 %v1958, 0.0
  %v1991 = vmax.f32 %v1959, 0.0
  %v1992 = vmax.f32 %v1960, 0.0
  %v1993 = vmax.f32 %v1961, 0.0
  %v1994 = vmax.f32 %v1962, 0.0
  %v1995 = vmax.f32 %v1963, 0.0
  %v1996 = vmax.f32 %v1964, 0.0
  %v1997 = vmax.f32 %v1965, 0.0
  %v1998 = vmax.f32 %v1966, 0.0
  %v1999 = vmax.f32 %v1967, 0.0
  %v2000 = vmax.f32 %v1968, 0.0
  %v2001 = vmax.f32 %v1969, 0.0
  %v2002 = vmax.f32 %v1970, 0.0
  %v2003 = vmax.f32 %v1971, 0.0
  %v2004 = vmax.f32 %v1972, 0.0
  %v2005 = vmax.f32 %v1973, 0.0
  %v2006 = vmax.f32 %v1974, 0.0
  %v2007 = vmax.f32 %v1975, 0.0
  %v2008 = vmax.f32 %v1976, 0.0
  %v2009 = vmax.f32 %v1977, 0.0
  %v2010 = vmax.f32 %v1978, 0.0
  %v2011 = vmax.f32 %v1979, 0.0
  %v2012 = vmax.f32 %v1980, 0.0
  %v2013 = vmax.f32 %v1981, 0.0
  %2014 = vst.msk [vmem:[#allocation2] sm:$0xff] %vm564, 0.0
  %vm2015 = vcmask 254976
  %2016 = vst.msk [vmem:[#allocation2 + $0x8] sm:$0x3] %vm2015, 0.0
  %2017 = vst.msk [vmem:[#allocation2 + $0x10] sm:$0xff] %vm564, 0.0
  %2018 = vst.msk [vmem:[#allocation2 + $0x18] sm:$0x3] %vm2015, 0.0
  %2019 = vst.msk [vmem:[#allocation2 + $0x20] sm:$0xff] %vm564, 0.0
  %2020 = vst.msk [vmem:[#allocation2 + $0x28] sm:$0x3] %vm2015, 0.0
  %2021 = vst.msk [vmem:[#allocation2 + $0x30] sm:$0xff] %vm564, 0.0
  %2022 = vst.msk [vmem:[#allocation2 + $0x38] sm:$0x3] %vm2015, 0.0
  %2023 = vst.msk [vmem:[#allocation2 + $0x40] sm:$0xff] %vm564, 0.0
  %2024 = vst.msk [vmem:[#allocation2 + $0x48] sm:$0x3] %vm2015, 0.0
  %2025 = vst.msk [vmem:[#allocation2 + $0x50] sm:$0xff] %vm564, 0.0
  %2026 = vst.msk [vmem:[#allocation2 + $0x58] sm:$0x3] %vm2015, 0.0
  %2027 = vst.msk [vmem:[#allocation2 + $0x60] sm:$0xff] %vm564, 0.0
  %2028 = vst.msk [vmem:[#allocation2 + $0x68] sm:$0x3] %vm2015, 0.0
  %2029 = vst.msk [vmem:[#allocation2 + $0x70] sm:$0xff] %vm564, 0.0
  %2030 = vst.msk [vmem:[#allocation2 + $0x78] sm:$0x3] %vm2015, 0.0
  %2031 = vst.msk [vmem:[#allocation2 + $0x80] sm:$0xff] %vm564, 0.0
  %2032 = vst.msk [vmem:[#allocation2 + $0x88] sm:$0x3] %vm2015, 0.0
  %2033 = vst.msk [vmem:[#allocation2 + $0x90] sm:$0xff] %vm564, 0.0
  %2034 = vst.msk [vmem:[#allocation2 + $0x98] sm:$0x3] %vm2015, 0.0
  %2035 = vst.msk [vmem:[#allocation2 + $0xa0] sm:$0xff] %vm564, 0.0
  %2036 = vst.msk [vmem:[#allocation2 + $0xa8] sm:$0x3] %vm2015, 0.0
  %2037 = vst.msk [vmem:[#allocation2 + $0xb0] sm:$0xff] %vm564, 0.0
  %2038 = vst.msk [vmem:[#allocation2 + $0xb8] sm:$0x3] %vm2015, 0.0
  %2039 = vst.msk [vmem:[#allocation2 + $0xc0] sm:$0xff] %vm564, 0.0
  %2040 = vst.msk [vmem:[#allocation2 + $0xc8] sm:$0x3] %vm2015, 0.0
  %2041 = vst.msk [vmem:[#allocation2 + $0xd0] sm:$0xff] %vm564, 0.0
  %2042 = vst.msk [vmem:[#allocation2 + $0xd8] sm:$0x3] %vm2015, 0.0
  %2043 = vst.msk [vmem:[#allocation2 + $0xe0] sm:$0xff] %vm564, 0.0
  %2044 = vst.msk [vmem:[#allocation2 + $0xe8] sm:$0x3] %vm2015, 0.0
  %2045 = vst.msk [vmem:[#allocation2 + $0xf0] sm:$0xff] %vm564, 0.0
  %2046 = vst.msk [vmem:[#allocation2 + $0xf8] sm:$0x3] %vm2015, 0.0
  %2047 = vst.msk [vmem:[#allocation2 + $0x100] sm:$0xff] %vm564, 0.0
  %2048 = vst.msk [vmem:[#allocation2 + $0x108] sm:$0x3] %vm2015, 0.0
  %2049 = vst.msk [vmem:[#allocation2 + $0x110] sm:$0xff] %vm564, 0.0
  %2050 = vst.msk [vmem:[#allocation2 + $0x118] sm:$0x3] %vm2015, 0.0
  %2051 = vst.msk [vmem:[#allocation2 + $0x120] sm:$0xff] %vm564, 0.0
  %2052 = vst.msk [vmem:[#allocation2 + $0x128] sm:$0x3] %vm2015, 0.0
  %2053 = vst.msk [vmem:[#allocation2 + $0x130] sm:$0xff] %vm564, 0.0
  %2054 = vst.msk [vmem:[#allocation2 + $0x138] sm:$0x3] %vm2015, 0.0
  %s2055 = scalar_lea.vmem [#allocation2], 16
  %vm2056 = vcmask 261121
  %2057 = vst.msk [vmem:[%s2055] sm:$0xfe] %vm2056, %v1982
  %vm2058 = vcmask 253952
  %2059 = vst.msk [vmem:[%s2055 + $0x8] sm:$0x1] %vm2058, %v1983
  %2060 = vst.msk [vmem:[%s2055 + $0x10] sm:$0xfe] %vm2056, %v1984
  %2061 = vst.msk [vmem:[%s2055 + $0x18] sm:$0x1] %vm2058, %v1985
  %2062 = vst.msk [vmem:[%s2055 + $0x20] sm:$0xfe] %vm2056, %v1986
  %2063 = vst.msk [vmem:[%s2055 + $0x28] sm:$0x1] %vm2058, %v1987
  %2064 = vst.msk [vmem:[%s2055 + $0x30] sm:$0xfe] %vm2056, %v1988
  %2065 = vst.msk [vmem:[%s2055 + $0x38] sm:$0x1] %vm2058, %v1989
  %2066 = vst.msk [vmem:[%s2055 + $0x40] sm:$0xfe] %vm2056, %v1990
  %2067 = vst.msk [vmem:[%s2055 + $0x48] sm:$0x1] %vm2058, %v1991
  %2068 = vst.msk [vmem:[%s2055 + $0x50] sm:$0xfe] %vm2056, %v1992
  %2069 = vst.msk [vmem:[%s2055 + $0x58] sm:$0x1] %vm2058, %v1993
  %2070 = vst.msk [vmem:[%s2055 + $0x60] sm:$0xfe] %vm2056, %v1994
  %2071 = vst.msk [vmem:[%s2055 + $0x68] sm:$0x1] %vm2058, %v1995
  %2072 = vst.msk [vmem:[%s2055 + $0x70] sm:$0xfe] %vm2056, %v1996
  %2073 = vst.msk [vmem:[%s2055 + $0x78] sm:$0x1] %vm2058, %v1997
  %2074 = vst.msk [vmem:[%s2055 + $0xa0] sm:$0xfe] %vm2056, %v1998
  %2075 = vst.msk [vmem:[%s2055 + $0xa8] sm:$0x1] %vm2058, %v1999
  %2076 = vst.msk [vmem:[%s2055 + $0xb0] sm:$0xfe] %vm2056, %v2000
  %2077 = vst.msk [vmem:[%s2055 + $0xb8] sm:$0x1] %vm2058, %v2001
  %2078 = vst.msk [vmem:[%s2055 + $0xc0] sm:$0xfe] %vm2056, %v2002
  %2079 = vst.msk [vmem:[%s2055 + $0xc8] sm:$0x1] %vm2058, %v2003
  %2080 = vst.msk [vmem:[%s2055 + $0xd0] sm:$0xfe] %vm2056, %v2004
  %2081 = vst.msk [vmem:[%s2055 + $0xd8] sm:$0x1] %vm2058, %v2005
  %2082 = vst.msk [vmem:[%s2055 + $0xe0] sm:$0xfe] %vm2056, %v2006
  %2083 = vst.msk [vmem:[%s2055 + $0xe8] sm:$0x1] %vm2058, %v2007
  %2084 = vst.msk [vmem:[%s2055 + $0xf0] sm:$0xfe] %vm2056, %v2008
  %2085 = vst.msk [vmem:[%s2055 + $0xf8] sm:$0x1] %vm2058, %v2009
  %2086 = vst.msk [vmem:[%s2055 + $0x100] sm:$0xfe] %vm2056, %v2010
  %2087 = vst.msk [vmem:[%s2055 + $0x108] sm:$0x1] %vm2058, %v2011
  %2088 = vst.msk [vmem:[%s2055 + $0x110] sm:$0xfe] %vm2056, %v2012
  %2089 = vst.msk [vmem:[%s2055 + $0x118] sm:$0x1] %vm2058, %v2013
  %v2090 = vld [vmem:[#allocation2] sm:$0xff]
  %v2091 = vld [vmem:[#allocation2 + $0x8] sm:$0x3]
  %v2092 = vld [vmem:[#allocation2 + $0x10] sm:$0xff]
  %v2093 = vld [vmem:[#allocation2 + $0x18] sm:$0x3]
  %v2094 = vld [vmem:[#allocation2 + $0x20] sm:$0xff]
  %v2095 = vld [vmem:[#allocation2 + $0x28] sm:$0x3]
  %v2096 = vld [vmem:[#allocation2 + $0x30] sm:$0xff]
  %v2097 = vld [vmem:[#allocation2 + $0x38] sm:$0x3]
  %v2098 = vld [vmem:[#allocation2 + $0x40] sm:$0xff]
  %v2099 = vld [vmem:[#allocation2 + $0x48] sm:$0x3]
  %v2100 = vld [vmem:[#allocation2 + $0x50] sm:$0xff]
  %v2101 = vld [vmem:[#allocation2 + $0x58] sm:$0x3]
  %v2102 = vld [vmem:[#allocation2 + $0x60] sm:$0xff]
  %v2103 = vld [vmem:[#allocation2 + $0x68] sm:$0x3]
  %v2104 = vld [vmem:[#allocation2 + $0x70] sm:$0xff]
  %v2105 = vld [vmem:[#allocation2 + $0x78] sm:$0x3]
  %v2106 = vld [vmem:[#allocation2 + $0x80] sm:$0xff]
  %v2107 = vld [vmem:[#allocation2 + $0x88] sm:$0x3]
  %v2108 = vld [vmem:[#allocation2 + $0x90] sm:$0xff]
  %v2109 = vld [vmem:[#allocation2 + $0x98] sm:$0x3]
  %v2110 = vld [vmem:[#allocation2 + $0xa0] sm:$0xff]
  %v2111 = vld [vmem:[#allocation2 + $0xa8] sm:$0x3]
  %v2112 = vld [vmem:[#allocation2 + $0xb0] sm:$0xff]
  %v2113 = vld [vmem:[#allocation2 + $0xb8] sm:$0x3]
  %v2114 = vld [vmem:[#allocation2 + $0xc0] sm:$0xff]
  %v2115 = vld [vmem:[#allocation2 + $0xc8] sm:$0x3]
  %v2116 = vld [vmem:[#allocation2 + $0xd0] sm:$0xff]
  %v2117 = vld [vmem:[#allocation2 + $0xd8] sm:$0x3]
  %v2118 = vld [vmem:[#allocation2 + $0xe0] sm:$0xff]
  %v2119 = vld [vmem:[#allocation2 + $0xe8] sm:$0x3]
  %v2120 = vld [vmem:[#allocation2 + $0xf0] sm:$0xff]
  %v2121 = vld [vmem:[#allocation2 + $0xf8] sm:$0x3]
  %v2122 = vld [vmem:[#allocation2 + $0x100] sm:$0xff]
  %v2123 = vld [vmem:[#allocation2 + $0x108] sm:$0x3]
  %v2124 = vld [vmem:[#allocation2 + $0x110] sm:$0xff]
  %v2125 = vld [vmem:[#allocation2 + $0x118] sm:$0x3]
  %v2126 = vld [vmem:[#allocation2 + $0x120] sm:$0xff]
  %v2127 = vld [vmem:[#allocation2 + $0x128] sm:$0x3]
  %v2128 = vld [vmem:[#allocation2 + $0x130] sm:$0xff]
  %v2129 = vld [vmem:[#allocation2 + $0x138] sm:$0x3]
  %v2162 = vrot.slane %v2090, 1
  %v2163 = vrot.slane %v2091, 1
  %v2164 = vsel %vm114, %v2162, %v2163
  %v2165 = vrot.slane %v2092, 1
  %v2166 = vrot.slane %v2093, 1
  %v2167 = vsel %vm114, %v2165, %v2166
  %v2168 = vrot.slane %v2094, 1
  %v2169 = vrot.slane %v2095, 1
  %v2170 = vsel %vm114, %v2168, %v2169
  %v2171 = vrot.slane %v2096, 1
  %v2172 = vrot.slane %v2097, 1
  %v2173 = vsel %vm114, %v2171, %v2172
  %v2174 = vrot.slane %v2098, 1
  %v2175 = vrot.slane %v2099, 1
  %v2176 = vsel %vm114, %v2174, %v2175
  %v2177 = vrot.slane %v2100, 1
  %v2178 = vrot.slane %v2101, 1
  %v2179 = vsel %vm114, %v2177, %v2178
  %v2180 = vrot.slane %v2102, 1
  %v2181 = vrot.slane %v2103, 1
  %v2182 = vsel %vm114, %v2180, %v2181
  %v2183 = vrot.slane %v2104, 1
  %v2184 = vrot.slane %v2105, 1
  %v2185 = vsel %vm114, %v2183, %v2184
  %v2186 = vrot.slane %v2110, 1
  %v2187 = vrot.slane %v2111, 1
  %v2188 = vsel %vm114, %v2186, %v2187
  %v2189 = vrot.slane %v2112, 1
  %v2190 = vrot.slane %v2113, 1
  %v2191 = vsel %vm114, %v2189, %v2190
  %v2192 = vrot.slane %v2114, 1
  %v2193 = vrot.slane %v2115, 1
  %v2194 = vsel %vm114, %v2192, %v2193
  %v2195 = vrot.slane %v2116, 1
  %v2196 = vrot.slane %v2117, 1
  %v2197 = vsel %vm114, %v2195, %v2196
  %v2198 = vrot.slane %v2118, 1
  %v2199 = vrot.slane %v2119, 1
  %v2200 = vsel %vm114, %v2198, %v2199
  %v2201 = vrot.slane %v2120, 1
  %v2202 = vrot.slane %v2121, 1
  %v2203 = vsel %vm114, %v2201, %v2202
  %v2204 = vrot.slane %v2122, 1
  %v2205 = vrot.slane %v2123, 1
  %v2206 = vsel %vm114, %v2204, %v2205
  %v2207 = vrot.slane %v2124, 1
  %v2208 = vrot.slane %v2125, 1
  %v2209 = vsel %vm114, %v2207, %v2208
  %2210 = vrot.lane.b32.xlu0 %v2164, 32
  %v2211 = vpop.permute.xlu0 %2210
  %2212 = vrot.lane.b32.xlu0 %v2167, 32
  %v2213 = vpop.permute.xlu0 %2212
  %2214 = vrot.lane.b32.xlu0 %v2170, 32
  %v2215 = vpop.permute.xlu0 %2214
  %2216 = vrot.lane.b32.xlu0 %v2173, 32
  %v2217 = vpop.permute.xlu0 %2216
  %2218 = vrot.lane.b32.xlu0 %v2176, 32
  %v2219 = vpop.permute.xlu0 %2218
  %2220 = vrot.lane.b32.xlu0 %v2179, 32
  %v2221 = vpop.permute.xlu0 %2220
  %2222 = vrot.lane.b32.xlu0 %v2182, 32
  %v2223 = vpop.permute.xlu0 %2222
  %2224 = vrot.lane.b32.xlu0 %v2185, 32
  %v2225 = vpop.permute.xlu0 %2224
  %2226 = vrot.lane.b32.xlu0 %v2188, 32
  %v2227 = vpop.permute.xlu0 %2226
  %2228 = vrot.lane.b32.xlu0 %v2191, 32
  %v2229 = vpop.permute.xlu0 %2228
  %2230 = vrot.lane.b32.xlu0 %v2194, 32
  %v2231 = vpop.permute.xlu0 %2230
  %2232 = vrot.lane.b32.xlu0 %v2197, 32
  %v2233 = vpop.permute.xlu0 %2232
  %2234 = vrot.lane.b32.xlu0 %v2200, 32
  %v2235 = vpop.permute.xlu0 %2234
  %2236 = vrot.lane.b32.xlu0 %v2203, 32
  %v2237 = vpop.permute.xlu0 %2236
  %2238 = vrot.lane.b32.xlu0 %v2206, 32
  %v2239 = vpop.permute.xlu0 %2238
  %2240 = vrot.lane.b32.xlu0 %v2209, 32
  %v2241 = vpop.permute.xlu0 %2240
  %2260 = vrot.lane.b32.xlu0 %v2092, 64
  %v2261 = vpop.permute.xlu0 %2260
  %2262 = vrot.lane.b32.xlu0 %v2094, 64
  %v2263 = vpop.permute.xlu0 %2262
  %2264 = vrot.lane.b32.xlu0 %v2096, 64
  %v2265 = vpop.permute.xlu0 %2264
  %2266 = vrot.lane.b32.xlu0 %v2098, 64
  %v2267 = vpop.permute.xlu0 %2266
  %2268 = vrot.lane.b32.xlu0 %v2100, 64
  %v2269 = vpop.permute.xlu0 %2268
  %2270 = vrot.lane.b32.xlu0 %v2102, 64
  %v2271 = vpop.permute.xlu0 %2270
  %2272 = vrot.lane.b32.xlu0 %v2104, 64
  %v2273 = vpop.permute.xlu0 %2272
  %2274 = vrot.lane.b32.xlu0 %v2106, 64
  %v2275 = vpop.permute.xlu0 %2274
  %2276 = vrot.lane.b32.xlu0 %v2112, 64
  %v2277 = vpop.permute.xlu0 %2276
  %2278 = vrot.lane.b32.xlu0 %v2114, 64
  %v2279 = vpop.permute.xlu0 %2278
  %2280 = vrot.lane.b32.xlu0 %v2116, 64
  %v2281 = vpop.permute.xlu0 %2280
  %2282 = vrot.lane.b32.xlu0 %v2118, 64
  %v2283 = vpop.permute.xlu0 %2282
  %2284 = vrot.lane.b32.xlu0 %v2120, 64
  %v2285 = vpop.permute.xlu0 %2284
  %2286 = vrot.lane.b32.xlu0 %v2122, 64
  %v2287 = vpop.permute.xlu0 %2286
  %2288 = vrot.lane.b32.xlu0 %v2124, 64
  %v2289 = vpop.permute.xlu0 %2288
  %2290 = vrot.lane.b32.xlu0 %v2126, 64
  %v2291 = vpop.permute.xlu0 %2290
  %v2310 = vrot.slane %v2106, 1
  %v2311 = vrot.slane %v2107, 1
  %v2312 = vsel %vm114, %v2310, %v2311
  %v2313 = vrot.slane %v2126, 1
  %v2314 = vrot.slane %v2127, 1
  %v2315 = vsel %vm114, %v2313, %v2314
  %2316 = vrot.lane.b32.xlu0 %v2167, 96
  %v2317 = vpop.permute.xlu0 %2316
  %2318 = vrot.lane.b32.xlu0 %v2170, 96
  %v2319 = vpop.permute.xlu0 %2318
  %2320 = vrot.lane.b32.xlu0 %v2173, 96
  %v2321 = vpop.permute.xlu0 %2320
  %2322 = vrot.lane.b32.xlu0 %v2176, 96
  %v2323 = vpop.permute.xlu0 %2322
  %2324 = vrot.lane.b32.xlu0 %v2179, 96
  %v2325 = vpop.permute.xlu0 %2324
  %2326 = vrot.lane.b32.xlu0 %v2182, 96
  %v2327 = vpop.permute.xlu0 %2326
  %2328 = vrot.lane.b32.xlu0 %v2185, 96
  %v2329 = vpop.permute.xlu0 %2328
  %2330 = vrot.lane.b32.xlu0 %v2312, 96
  %v2331 = vpop.permute.xlu0 %2330
  %2332 = vrot.lane.b32.xlu0 %v2191, 96
  %v2333 = vpop.permute.xlu0 %2332
  %2334 = vrot.lane.b32.xlu0 %v2194, 96
  %v2335 = vpop.permute.xlu0 %2334
  %2336 = vrot.lane.b32.xlu0 %v2197, 96
  %v2337 = vpop.permute.xlu0 %2336
  %2338 = vrot.lane.b32.xlu0 %v2200, 96
  %v2339 = vpop.permute.xlu0 %2338
  %2340 = vrot.lane.b32.xlu0 %v2203, 96
  %v2341 = vpop.permute.xlu0 %2340
  %2342 = vrot.lane.b32.xlu0 %v2206, 96
  %v2343 = vpop.permute.xlu0 %2342
  %2344 = vrot.lane.b32.xlu0 %v2209, 96
  %v2345 = vpop.permute.xlu0 %2344
  %2346 = vrot.lane.b32.xlu0 %v2315, 96
  %v2347 = vpop.permute.xlu0 %2346
  %v2364 = vsel %vm564, %v2090, %v2211
  %v2365 = vsel %vm564, %v2092, %v2213
  %v2366 = vsel %vm564, %v2094, %v2215
  %v2367 = vsel %vm564, %v2096, %v2217
  %v2368 = vsel %vm564, %v2098, %v2219
  %v2369 = vsel %vm564, %v2100, %v2221
  %v2370 = vsel %vm564, %v2102, %v2223
  %v2371 = vsel %vm564, %v2104, %v2225
  %v2372 = vsel %vm564, %v2110, %v2227
  %v2373 = vsel %vm564, %v2112, %v2229
  %v2374 = vsel %vm564, %v2114, %v2231
  %v2375 = vsel %vm564, %v2116, %v2233
  %v2376 = vsel %vm564, %v2118, %v2235
  %v2377 = vsel %vm564, %v2120, %v2237
  %v2378 = vsel %vm564, %v2122, %v2239
  %v2379 = vsel %vm564, %v2124, %v2241
  %v2380 = vsel %vm581, %v2364, %v2261
  %v2381 = vsel %vm581, %v2365, %v2263
  %v2382 = vsel %vm581, %v2366, %v2265
  %v2383 = vsel %vm581, %v2367, %v2267
  %v2384 = vsel %vm581, %v2368, %v2269
  %v2385 = vsel %vm581, %v2369, %v2271
  %v2386 = vsel %vm581, %v2370, %v2273
  %v2387 = vsel %vm581, %v2371, %v2275
  %v2388 = vsel %vm581, %v2372, %v2277
  %v2389 = vsel %vm581, %v2373, %v2279
  %v2390 = vsel %vm581, %v2374, %v2281
  %v2391 = vsel %vm581, %v2375, %v2283
  %v2392 = vsel %vm581, %v2376, %v2285
  %v2393 = vsel %vm581, %v2377, %v2287
  %v2394 = vsel %vm581, %v2378, %v2289
  %v2395 = vsel %vm581, %v2379, %v2291
  %v2396 = vsel %vm598, %v2380, %v2317
  %v2397 = vsel %vm598, %v2381, %v2319
  %v2398 = vsel %vm598, %v2382, %v2321
  %v2399 = vsel %vm598, %v2383, %v2323
  %v2400 = vsel %vm598, %v2384, %v2325
  %v2401 = vsel %vm598, %v2385, %v2327
  %v2402 = vsel %vm598, %v2386, %v2329
  %v2403 = vsel %vm598, %v2387, %v2331
  %v2404 = vsel %vm598, %v2388, %v2333
  %v2405 = vsel %vm598, %v2389, %v2335
  %v2406 = vsel %vm598, %v2390, %v2337
  %v2407 = vsel %vm598, %v2391, %v2339
  %v2408 = vsel %vm598, %v2392, %v2341
  %v2409 = vsel %vm598, %v2393, %v2343
  %v2410 = vsel %vm598, %v2394, %v2345
  %v2411 = vsel %vm598, %v2395, %v2347
  %v2412 = vpack.c.bf16 %v2397, %v2396
  %v2413 = vpack.c.bf16 %v2399, %v2398
  %v2414 = vpack.c.bf16 %v2401, %v2400
  %v2415 = vpack.c.bf16 %v2403, %v2402
  %v2416 = vpack.c.bf16 %v2405, %v2404
  %v2417 = vpack.c.bf16 %v2407, %v2406
  %v2418 = vpack.c.bf16 %v2409, %v2408
  %v2419 = vpack.c.bf16 %v2411, %v2410
  %v2420 = vld [vmem:[%s3] sm:$0xf]
  %v2421 = vld [vmem:[%s3 + $0x4] sm:$0xf]
  %v2422 = vld [vmem:[%s3 + $0x8] sm:$0xf]
  %v2423 = vld [vmem:[%s3 + $0xc] sm:$0xf]
  %v2424 = vld [vmem:[%s3 + $0x10] sm:$0xf]
  %v2425 = vld [vmem:[%s3 + $0x14] sm:$0xf]
  %v2426 = vld [vmem:[%s3 + $0x18] sm:$0xf]
  %v2427 = vld [vmem:[%s3 + $0x1c] sm:$0xf]
  %v2428 = vld [vmem:[%s3 + $0x20] sm:$0xf]
  %v2429 = vld [vmem:[%s3 + $0x24] sm:$0xf]
  %v2430 = vld [vmem:[%s3 + $0x28] sm:$0xf]
  %v2431 = vld [vmem:[%s3 + $0x2c] sm:$0xf]
  %v2432 = vld [vmem:[%s3 + $0x30] sm:$0xf]
  %v2433 = vld [vmem:[%s3 + $0x34] sm:$0xf]
  %v2434 = vld [vmem:[%s3 + $0x38] sm:$0xf]
  %v2435 = vld [vmem:[%s3 + $0x3c] sm:$0xf]
  %v2452 = vunpack.c.l.b16 %v2420
  %v2453 = vunpack.c.l.b16 %v2421
  %v2454 = vunpack.c.l.b16 %v2422
  %v2455 = vunpack.c.l.b16 %v2423
  %v2456 = vunpack.c.l.b16 %v2424
  %v2457 = vunpack.c.l.b16 %v2425
  %v2458 = vunpack.c.l.b16 %v2426
  %v2459 = vunpack.c.l.b16 %v2427
  %v2460 = vunpack.c.l.b16 %v2428
  %v2461 = vunpack.c.l.b16 %v2429
  %v2462 = vunpack.c.l.b16 %v2430
  %v2463 = vunpack.c.l.b16 %v2431
  %v2464 = vunpack.c.l.b16 %v2432
  %v2465 = vunpack.c.l.b16 %v2433
  %v2466 = vunpack.c.l.b16 %v2434
  %v2467 = vunpack.c.l.b16 %v2435
  %v2468 = vpack.c.b16 %v2453, %v2452
  %v2469 = vpack.c.b16 %v2455, %v2454
  %v2470 = vpack.c.b16 %v2457, %v2456
  %v2471 = vpack.c.b16 %v2459, %v2458
  %v2472 = vpack.c.b16 %v2461, %v2460
  %v2473 = vpack.c.b16 %v2463, %v2462
  %v2474 = vpack.c.b16 %v2465, %v2464
  %v2475 = vpack.c.b16 %v2467, %v2466
  %2484 = vmatprep.subr.bf16.mxu0 0
  %2485 = vmatpush1.bf16.msra.mxu0 %v2468
  %2486 = vmatprep.subr.bf16.mxu0 0
  %2487 = vmatpush1.bf16.msra.mxu0 %v2469
  %2488 = vmatprep.subr.bf16.mxu0 0
  %2489 = vmatpush1.bf16.msra.mxu0 %v2470
  %2490 = vmatprep.subr.bf16.mxu0 0
  %2491 = vmatpush1.bf16.msra.mxu0 %v2471
  %2492 = vmatprep.subr.bf16.mxu0 0
  %2493 = vmatpush1.bf16.msra.mxu0 %v2472
  %2494 = vmatprep.subr.bf16.mxu0 0
  %2495 = vmatpush1.bf16.msra.mxu0 %v2473
  %2496 = vmatprep.subr.bf16.mxu0 0
  %2497 = vmatpush1.bf16.msra.mxu0 %v2474
  %2498 = vmatprep.subr.bf16.mxu0 0
  %2499 = vmatpush1.bf16.msra.mxu0 %v2475
  %2500 = vmatprep.subr.bf16.mxu0 0
  %2501 = vmatpush1.bf16.msra.mxu0 0
  %2502 = vmatprep.subr.bf16.mxu0 0
  %2503 = vmatpush1.bf16.msra.mxu0 0
  %2504 = vmatprep.subr.bf16.mxu0 0
  %2505 = vmatpush1.bf16.msra.mxu0 0
  %2506 = vmatprep.subr.bf16.mxu0 0
  %2507 = vmatpush1.bf16.msra.mxu0 0
  %2508 = vmatprep.subr.bf16.mxu0 0
  %2509 = vmatpush1.bf16.msra.mxu0 0
  %2510 = vmatprep.subr.bf16.mxu0 0
  %2511 = vmatpush1.bf16.msra.mxu0 0
  %2512 = vmatprep.subr.bf16.mxu0 0
  %2513 = vmatpush1.bf16.msra.mxu0 0
  %2514 = vmatprep.subr.bf16.mxu0 0
  %2515 = vmatpush1.bf16.msra.mxu0 0
  %2516 = vmatprep.mubr.bf16.mxu0 0
  %2517 = vmatmul.mubr.bf16.gmra.mrb[0].mxu0 %v2412
  %v2518 = vpop.f32.mrb[0].mxu0
  %v2519 = vadd.f32 0.0, %v2518
  %v2520 = vpop.f32.mrb[0].mxu0
  %v2521 = vpop.f32.mrb[0].mxu0
  %v2522 = vadd.f32 0.0, %v2521
  %v2523 = vpop.f32.mrb[0].mxu0
  %2524 = vmatprep.mubr.bf16.mxu0 0
  %2525 = vmatmul.mubr.bf16.gmra.mrb[0].mxu0 %v2413
  %v2526 = vpop.f32.mrb[0].mxu0
  %v2527 = vadd.f32 0.0, %v2526
  %v2528 = vpop.f32.mrb[0].mxu0
  %v2529 = vpop.f32.mrb[0].mxu0
  %v2530 = vadd.f32 0.0, %v2529
  %v2531 = vpop.f32.mrb[0].mxu0
  %2532 = vmatprep.mubr.bf16.mxu0 0
  %2533 = vmatmul.mubr.bf16.gmra.mrb[0].mxu0 %v2414
  %v2534 = vpop.f32.mrb[0].mxu0
  %v2535 = vadd.f32 0.0, %v2534
  %v2536 = vpop.f32.mrb[0].mxu0
  %v2537 = vpop.f32.mrb[0].mxu0
  %v2538 = vadd.f32 0.0, %v2537
  %v2539 = vpop.f32.mrb[0].mxu0
  %2540 = vmatprep.mubr.bf16.mxu0 0
  %2541 = vmatmul.mubr.bf16.gmra.mrb[0].mxu0 %v2415
  %v2542 = vpop.f32.mrb[0].mxu0
  %v2543 = vadd.f32 0.0, %v2542
  %v2544 = vpop.f32.mrb[0].mxu0
  %v2545 = vpop.f32.mrb[0].mxu0
  %v2546 = vadd.f32 0.0, %v2545
  %v2547 = vpop.f32.mrb[0].mxu0
  %2548 = vmatprep.mubr.bf16.mxu0 0
  %2549 = vmatmul.mubr.bf16.gmra.mrb[0].mxu0 %v2416
  %v2550 = vpop.f32.mrb[0].mxu0
  %v2551 = vadd.f32 0.0, %v2550
  %v2552 = vpop.f32.mrb[0].mxu0
  %v2553 = vpop.f32.mrb[0].mxu0
  %v2554 = vadd.f32 0.0, %v2553
  %v2555 = vpop.f32.mrb[0].mxu0
  %2556 = vmatprep.mubr.bf16.mxu0 0
  %2557 = vmatmul.mubr.bf16.gmra.mrb[0].mxu0 %v2417
  %v2558 = vpop.f32.mrb[0].mxu0
  %v2559 = vadd.f32 0.0, %v2558
  %v2560 = vpop.f32.mrb[0].mxu0
  %v2561 = vpop.f32.mrb[0].mxu0
  %v2562 = vadd.f32 0.0, %v2561
  %v2563 = vpop.f32.mrb[0].mxu0
  %2564 = vmatprep.mubr.bf16.mxu0 0
  %2565 = vmatmul.mubr.bf16.gmra.mrb[0].mxu0 %v2418
  %v2566 = vpop.f32.mrb[0].mxu0
  %v2567 = vadd.f32 0.0, %v2566
  %v2568 = vpop.f32.mrb[0].mxu0
  %v2569 = vpop.f32.mrb[0].mxu0
  %v2570 = vadd.f32 0.0, %v2569
  %v2571 = vpop.f32.mrb[0].mxu0
  %2572 = vmatprep.mubr.bf16.mxu0 0
  %2573 = vmatmul.mubr.bf16.gmra.mrb[0].mxu0 %v2419
  %v2574 = vpop.f32.mrb[0].mxu0
  %v2575 = vadd.f32 0.0, %v2574
  %v2576 = vpop.f32.mrb[0].mxu0
  %v2577 = vpop.f32.mrb[0].mxu0
  %v2578 = vadd.f32 0.0, %v2577
  %v2579 = vpop.f32.mrb[0].mxu0
  %2580 = vdwg.mxu0
  %2581 = vrot.lane.b32.xlu0 %v2163, 32
  %v2582 = vpop.permute.xlu0 %2581
  %2583 = vrot.lane.b32.xlu0 %v2166, 32
  %v2584 = vpop.permute.xlu0 %2583
  %2585 = vrot.lane.b32.xlu0 %v2169, 32
  %v2586 = vpop.permute.xlu0 %2585
  %2587 = vrot.lane.b32.xlu0 %v2172, 32
  %v2588 = vpop.permute.xlu0 %2587
  %2589 = vrot.lane.b32.xlu0 %v2175, 32
  %v2590 = vpop.permute.xlu0 %2589
  %2591 = vrot.lane.b32.xlu0 %v2178, 32
  %v2592 = vpop.permute.xlu0 %2591
  %2593 = vrot.lane.b32.xlu0 %v2181, 32
  %v2594 = vpop.permute.xlu0 %2593
  %2595 = vrot.lane.b32.xlu0 %v2184, 32
  %v2596 = vpop.permute.xlu0 %2595
  %2597 = vrot.lane.b32.xlu0 %v2187, 32
  %v2598 = vpop.permute.xlu0 %2597
  %2599 = vrot.lane.b32.xlu0 %v2190, 32
  %v2600 = vpop.permute.xlu0 %2599
  %2601 = vrot.lane.b32.xlu0 %v2193, 32
  %v2602 = vpop.permute.xlu0 %2601
  %2603 = vrot.lane.b32.xlu0 %v2196, 32
  %v2604 = vpop.permute.xlu0 %2603
  %2605 = vrot.lane.b32.xlu0 %v2199, 32
  %v2606 = vpop.permute.xlu0 %2605
  %2607 = vrot.lane.b32.xlu0 %v2202, 32
  %v2608 = vpop.permute.xlu0 %2607
  %2609 = vrot.lane.b32.xlu0 %v2205, 32
  %v2610 = vpop.permute.xlu0 %2609
  %2611 = vrot.lane.b32.xlu0 %v2208, 32
  %v2612 = vpop.permute.xlu0 %2611
  %2629 = vrot.lane.b32.xlu0 %v2093, 64
  %v2630 = vpop.permute.xlu0 %2629
  %2631 = vrot.lane.b32.xlu0 %v2095, 64
  %v2632 = vpop.permute.xlu0 %2631
  %2633 = vrot.lane.b32.xlu0 %v2097, 64
  %v2634 = vpop.permute.xlu0 %2633
  %2635 = vrot.lane.b32.xlu0 %v2099, 64
  %v2636 = vpop.permute.xlu0 %2635
  %2637 = vrot.lane.b32.xlu0 %v2101, 64
  %v2638 = vpop.permute.xlu0 %2637
  %2639 = vrot.lane.b32.xlu0 %v2103, 64
  %v2640 = vpop.permute.xlu0 %2639
  %2641 = vrot.lane.b32.xlu0 %v2105, 64
  %v2642 = vpop.permute.xlu0 %2641
  %2643 = vrot.lane.b32.xlu0 %v2107, 64
  %v2644 = vpop.permute.xlu0 %2643
  %2645 = vrot.lane.b32.xlu0 %v2113, 64
  %v2646 = vpop.permute.xlu0 %2645
  %2647 = vrot.lane.b32.xlu0 %v2115, 64
  %v2648 = vpop.permute.xlu0 %2647
  %2649 = vrot.lane.b32.xlu0 %v2117, 64
  %v2650 = vpop.permute.xlu0 %2649
  %2651 = vrot.lane.b32.xlu0 %v2119, 64
  %v2652 = vpop.permute.xlu0 %2651
  %2653 = vrot.lane.b32.xlu0 %v2121, 64
  %v2654 = vpop.permute.xlu0 %2653
  %2655 = vrot.lane.b32.xlu0 %v2123, 64
  %v2656 = vpop.permute.xlu0 %2655
  %2657 = vrot.lane.b32.xlu0 %v2125, 64
  %v2658 = vpop.permute.xlu0 %2657
  %2659 = vrot.lane.b32.xlu0 %v2127, 64
  %v2660 = vpop.permute.xlu0 %2659
  %2677 = vrot.lane.b32.xlu0 %v2166, 96
  %v2678 = vpop.permute.xlu0 %2677
  %2679 = vrot.lane.b32.xlu0 %v2169, 96
  %v2680 = vpop.permute.xlu0 %2679
  %2681 = vrot.lane.b32.xlu0 %v2172, 96
  %v2682 = vpop.permute.xlu0 %2681
  %2683 = vrot.lane.b32.xlu0 %v2175, 96
  %v2684 = vpop.permute.xlu0 %2683
  %2685 = vrot.lane.b32.xlu0 %v2178, 96
  %v2686 = vpop.permute.xlu0 %2685
  %2687 = vrot.lane.b32.xlu0 %v2181, 96
  %v2688 = vpop.permute.xlu0 %2687
  %2689 = vrot.lane.b32.xlu0 %v2184, 96
  %v2690 = vpop.permute.xlu0 %2689
  %2691 = vrot.lane.b32.xlu0 %v2311, 96
  %v2692 = vpop.permute.xlu0 %2691
  %2693 = vrot.lane.b32.xlu0 %v2190, 96
  %v2694 = vpop.permute.xlu0 %2693
  %2695 = vrot.lane.b32.xlu0 %v2193, 96
  %v2696 = vpop.permute.xlu0 %2695
  %2697 = vrot.lane.b32.xlu0 %v2196, 96
  %v2698 = vpop.permute.xlu0 %2697
  %2699 = vrot.lane.b32.xlu0 %v2199, 96
  %v2700 = vpop.permute.xlu0 %2699
  %2701 = vrot.lane.b32.xlu0 %v2202, 96
  %v2702 = vpop.permute.xlu0 %2701
  %2703 = vrot.lane.b32.xlu0 %v2205, 96
  %v2704 = vpop.permute.xlu0 %2703
  %2705 = vrot.lane.b32.xlu0 %v2208, 96
  %v2706 = vpop.permute.xlu0 %2705
  %2707 = vrot.lane.b32.xlu0 %v2314, 96
  %v2708 = vpop.permute.xlu0 %2707
  %v2725 = vsel %vm564, %v2091, %v2582
  %v2726 = vsel %vm564, %v2093, %v2584
  %v2727 = vsel %vm564, %v2095, %v2586
  %v2728 = vsel %vm564, %v2097, %v2588
  %v2729 = vsel %vm564, %v2099, %v2590
  %v2730 = vsel %vm564, %v2101, %v2592
  %v2731 = vsel %vm564, %v2103, %v2594
  %v2732 = vsel %vm564, %v2105, %v2596
  %v2733 = vsel %vm564, %v2111, %v2598
  %v2734 = vsel %vm564, %v2113, %v2600
  %v2735 = vsel %vm564, %v2115, %v2602
  %v2736 = vsel %vm564, %v2117, %v2604
  %v2737 = vsel %vm564, %v2119, %v2606
  %v2738 = vsel %vm564, %v2121, %v2608
  %v2739 = vsel %vm564, %v2123, %v2610
  %v2740 = vsel %vm564, %v2125, %v2612
  %v2741 = vsel %vm581, %v2725, %v2630
  %v2742 = vsel %vm581, %v2726, %v2632
  %v2743 = vsel %vm581, %v2727, %v2634
  %v2744 = vsel %vm581, %v2728, %v2636
  %v2745 = vsel %vm581, %v2729, %v2638
  %v2746 = vsel %vm581, %v2730, %v2640
  %v2747 = vsel %vm581, %v2731, %v2642
  %v2748 = vsel %vm581, %v2732, %v2644
  %v2749 = vsel %vm581, %v2733, %v2646
  %v2750 = vsel %vm581, %v2734, %v2648
  %v2751 = vsel %vm581, %v2735, %v2650
  %v2752 = vsel %vm581, %v2736, %v2652
  %v2753 = vsel %vm581, %v2737, %v2654
  %v2754 = vsel %vm581, %v2738, %v2656
  %v2755 = vsel %vm581, %v2739, %v2658
  %v2756 = vsel %vm581, %v2740, %v2660
  %v2757 = vsel %vm598, %v2741, %v2678
  %v2758 = vsel %vm598, %v2742, %v2680
  %v2759 = vsel %vm598, %v2743, %v2682
  %v2760 = vsel %vm598, %v2744, %v2684
  %v2761 = vsel %vm598, %v2745, %v2686
  %v2762 = vsel %vm598, %v2746, %v2688
  %v2763 = vsel %vm598, %v2747, %v2690
  %v2764 = vsel %vm598, %v2748, %v2692
  %v2765 = vsel %vm598, %v2749, %v2694
  %v2766 = vsel %vm598, %v2750, %v2696
  %v2767 = vsel %vm598, %v2751, %v2698
  %v2768 = vsel %vm598, %v2752, %v2700
  %v2769 = vsel %vm598, %v2753, %v2702
  %v2770 = vsel %vm598, %v2754, %v2704
  %v2771 = vsel %vm598, %v2755, %v2706
  %v2772 = vsel %vm598, %v2756, %v2708
  %v2805 = vrot.slane %v2396, 1
  %v2806 = vrot.slane %v2757, 1
  %v2807 = vsel %vm114, %v2805, %v2806
  %v2808 = vrot.slane %v2397, 1
  %v2809 = vrot.slane %v2758, 1
  %v2810 = vsel %vm114, %v2808, %v2809
  %v2811 = vrot.slane %v2398, 1
  %v2812 = vrot.slane %v2759, 1
  %v2813 = vsel %vm114, %v2811, %v2812
  %v2814 = vrot.slane %v2399, 1
  %v2815 = vrot.slane %v2760, 1
  %v2816 = vsel %vm114, %v2814, %v2815
  %v2817 = vrot.slane %v2400, 1
  %v2818 = vrot.slane %v2761, 1
  %v2819 = vsel %vm114, %v2817, %v2818
  %v2820 = vrot.slane %v2401, 1
  %v2821 = vrot.slane %v2762, 1
  %v2822 = vsel %vm114, %v2820, %v2821
  %v2823 = vrot.slane %v2402, 1
  %v2824 = vrot.slane %v2763, 1
  %v2825 = vsel %vm114, %v2823, %v2824
  %v2826 = vrot.slane %v2403, 1
  %v2827 = vrot.slane %v2764, 1
  %v2828 = vsel %vm114, %v2826, %v2827
  %v2829 = vrot.slane %v2404, 1
  %v2830 = vrot.slane %v2765, 1
  %v2831 = vsel %vm114, %v2829, %v2830
  %v2832 = vrot.slane %v2405, 1
  %v2833 = vrot.slane %v2766, 1
  %v2834 = vsel %vm114, %v2832, %v2833
  %v2835 = vrot.slane %v2406, 1
  %v2836 = vrot.slane %v2767, 1
  %v2837 = vsel %vm114, %v2835, %v2836
  %v2838 = vrot.slane %v2407, 1
  %v2839 = vrot.slane %v2768, 1
  %v2840 = vsel %vm114, %v2838, %v2839
  %v2841 = vrot.slane %v2408, 1
  %v2842 = vrot.slane %v2769, 1
  %v2843 = vsel %vm114, %v2841, %v2842
  %v2844 = vrot.slane %v2409, 1
  %v2845 = vrot.slane %v2770, 1
  %v2846 = vsel %vm114, %v2844, %v2845
  %v2847 = vrot.slane %v2410, 1
  %v2848 = vrot.slane %v2771, 1
  %v2849 = vsel %vm114, %v2847, %v2848
  %v2850 = vrot.slane %v2411, 1
  %v2851 = vrot.slane %v2772, 1
  %v2852 = vsel %vm114, %v2850, %v2851
  %v2869 = vpack.c.bf16 %v2810, %v2807
  %v2870 = vpack.c.bf16 %v2816, %v2813
  %v2871 = vpack.c.bf16 %v2822, %v2819
  %v2872 = vpack.c.bf16 %v2828, %v2825
  %v2873 = vpack.c.bf16 %v2834, %v2831
  %v2874 = vpack.c.bf16 %v2840, %v2837
  %v2875 = vpack.c.bf16 %v2846, %v2843
  %v2876 = vpack.c.bf16 %v2852, %v2849
  %s2877 = scalar_lea.vmem %s3, 64
  %v2878 = vld [vmem:[%s2877] sm:$0xf]
  %v2879 = vld [vmem:[%s2877 + $0x4] sm:$0xf]
  %v2880 = vld [vmem:[%s2877 + $0x8] sm:$0xf]
  %v2881 = vld [vmem:[%s2877 + $0xc] sm:$0xf]
  %v2882 = vld [vmem:[%s2877 + $0x10] sm:$0xf]
  %v2883 = vld [vmem:[%s2877 + $0x14] sm:$0xf]
  %v2884 = vld [vmem:[%s2877 + $0x18] sm:$0xf]
  %v2885 = vld [vmem:[%s2877 + $0x1c] sm:$0xf]
  %v2886 = vld [vmem:[%s2877 + $0x20] sm:$0xf]
  %v2887 = vld [vmem:[%s2877 + $0x24] sm:$0xf]
  %v2888 = vld [vmem:[%s2877 + $0x28] sm:$0xf]
  %v2889 = vld [vmem:[%s2877 + $0x2c] sm:$0xf]
  %v2890 = vld [vmem:[%s2877 + $0x30] sm:$0xf]
  %v2891 = vld [vmem:[%s2877 + $0x34] sm:$0xf]
  %v2892 = vld [vmem:[%s2877 + $0x38] sm:$0xf]
  %v2893 = vld [vmem:[%s2877 + $0x3c] sm:$0xf]
  %v2910 = vunpack.c.l.b16 %v2878
  %v2911 = vunpack.c.l.b16 %v2879
  %v2912 = vunpack.c.l.b16 %v2880
  %v2913 = vunpack.c.l.b16 %v2881
  %v2914 = vunpack.c.l.b16 %v2882
  %v2915 = vunpack.c.l.b16 %v2883
  %v2916 = vunpack.c.l.b16 %v2884
  %v2917 = vunpack.c.l.b16 %v2885
  %v2918 = vunpack.c.l.b16 %v2886
  %v2919 = vunpack.c.l.b16 %v2887
  %v2920 = vunpack.c.l.b16 %v2888
  %v2921 = vunpack.c.l.b16 %v2889
  %v2922 = vunpack.c.l.b16 %v2890
  %v2923 = vunpack.c.l.b16 %v2891
  %v2924 = vunpack.c.l.b16 %v2892
  %v2925 = vunpack.c.l.b16 %v2893
  %v2926 = vpack.c.b16 %v2911, %v2910
  %v2927 = vpack.c.b16 %v2913, %v2912
  %v2928 = vpack.c.b16 %v2915, %v2914
  %v2929 = vpack.c.b16 %v2917, %v2916
  %v2930 = vpack.c.b16 %v2919, %v2918
  %v2931 = vpack.c.b16 %v2921, %v2920
  %v2932 = vpack.c.b16 %v2923, %v2922
  %v2933 = vpack.c.b16 %v2925, %v2924
  %2942 = vmatprep.subr.bf16.mxu0 0
  %2943 = vmatpush1.bf16.msra.mxu0 %v2926
  %2944 = vmatprep.subr.bf16.mxu0 0
  %2945 = vmatpush1.bf16.msra.mxu0 %v2927
  %2946 = vmatprep.subr.bf16.mxu0 0
  %2947 = vmatpush1.bf16.msra.mxu0 %v2928
  %2948 = vmatprep.subr.bf16.mxu0 0
  %2949 = vmatpush1.bf16.msra.mxu0 %v2929
  %2950 = vmatprep.subr.bf16.mxu0 0
  %2951 = vmatpush1.bf16.msra.mxu0 %v2930
  %2952 = vmatprep.subr.bf16.mxu0 0
  %2953 = vmatpush1.bf16.msra.mxu0 %v2931
  %2954 = vmatprep.subr.bf16.mxu0 0
  %2955 = vmatpush1.bf16.msra.mxu0 %v2932
  %2956 = vmatprep.subr.bf16.mxu0 0
  %2957 = vmatpush1.bf16.msra.mxu0 %v2933
  %2958 = vmatprep.subr.bf16.mxu0 0
  %2959 = vmatpush1.bf16.msra.mxu0 0
  %2960 = vmatprep.subr.bf16.mxu0 0
  %2961 = vmatpush1.bf16.msra.mxu0 0
  %2962 = vmatprep.subr.bf16.mxu0 0
  %2963 = vmatpush1.bf16.msra.mxu0 0
  %2964 = vmatprep.subr.bf16.mxu0 0
  %2965 = vmatpush1.bf16.msra.mxu0 0
  %2966 = vmatprep.subr.bf16.mxu0 0
  %2967 = vmatpush1.bf16.msra.mxu0 0
  %2968 = vmatprep.subr.bf16.mxu0 0
  %2969 = vmatpush1.bf16.msra.mxu0 0
  %2970 = vmatprep.subr.bf16.mxu0 0
  %2971 = vmatpush1.bf16.msra.mxu0 0
  %2972 = vmatprep.subr.bf16.mxu0 0
  %2973 = vmatpush1.bf16.msra.mxu0 0
  %2974 = vmatprep.mubr.bf16.mxu0 0
  %2975 = vmatmul.mubr.bf16.gmra.mrb[0].mxu0 %v2869
  %v2976 = vpop.f32.mrb[0].mxu0
  %v2977 = vadd.f32 0.0, %v2976
  %v2978 = vpop.f32.mrb[0].mxu0
  %v2979 = vpop.f32.mrb[0].mxu0
  %v2980 = vadd.f32 0.0, %v2979
  %v2981 = vpop.f32.mrb[0].mxu0
  %2982 = vmatprep.mubr.bf16.mxu0 0
  %2983 = vmatmul.mubr.bf16.gmra.mrb[0].mxu0 %v2870
  %v2984 = vpop.f32.mrb[0].mxu0
  %v2985 = vadd.f32 0.0, %v2984
  %v2986 = vpop.f32.mrb[0].mxu0
  %v2987 = vpop.f32.mrb[0].mxu0
  %v2988 = vadd.f32 0.0, %v2987
  %v2989 = vpop.f32.mrb[0].mxu0
  %2990 = vmatprep.mubr.bf16.mxu0 0
  %2991 = vmatmul.mubr.bf16.gmra.mrb[0].mxu0 %v2871
  %v2992 = vpop.f32.mrb[0].mxu0
  %v2993 = vadd.f32 0.0, %v2992
  %v2994 = vpop.f32.mrb[0].mxu0
  %v2995 = vpop.f32.mrb[0].mxu0
  %v2996 = vadd.f32 0.0, %v2995
  %v2997 = vpop.f32.mrb[0].mxu0
  %2998 = vmatprep.mubr.bf16.mxu0 0
  %2999 = vmatmul.mubr.bf16.gmra.mrb[0].mxu0 %v2872
  %v3000 = vpop.f32.mrb[0].mxu0
  %v3001 = vadd.f32 0.0, %v3000
  %v3002 = vpop.f32.mrb[0].mxu0
  %v3003 = vpop.f32.mrb[0].mxu0
  %v3004 = vadd.f32 0.0, %v3003
  %v3005 = vpop.f32.mrb[0].mxu0
  %3006 = vmatprep.mubr.bf16.mxu0 0
  %3007 = vmatmul.mubr.bf16.gmra.mrb[0].mxu0 %v2873
  %v3008 = vpop.f32.mrb[0].mxu0
  %v3009 = vadd.f32 0.0, %v3008
  %v3010 = vpop.f32.mrb[0].mxu0
  %v3011 = vpop.f32.mrb[0].mxu0
  %v3012 = vadd.f32 0.0, %v3011
  %v3013 = vpop.f32.mrb[0].mxu0
  %3014 = vmatprep.mubr.bf16.mxu0 0
  %3015 = vmatmul.mubr.bf16.gmra.mrb[0].mxu0 %v2874
  %v3016 = vpop.f32.mrb[0].mxu0
  %v3017 = vadd.f32 0.0, %v3016
  %v3018 = vpop.f32.mrb[0].mxu0
  %v3019 = vpop.f32.mrb[0].mxu0
  %v3020 = vadd.f32 0.0, %v3019
  %v3021 = vpop.f32.mrb[0].mxu0
  %3022 = vmatprep.mubr.bf16.mxu0 0
  %3023 = vmatmul.mubr.bf16.gmra.mrb[0].mxu0 %v2875
  %v3024 = vpop.f32.mrb[0].mxu0
  %v3025 = vadd.f32 0.0, %v3024
  %v3026 = vpop.f32.mrb[0].mxu0
  %v3027 = vpop.f32.mrb[0].mxu0
  %v3028 = vadd.f32 0.0, %v3027
  %v3029 = vpop.f32.mrb[0].mxu0
  %3030 = vmatprep.mubr.bf16.mxu0 0
  %3031 = vmatmul.mubr.bf16.gmra.mrb[0].mxu0 %v2876
  %v3032 = vpop.f32.mrb[0].mxu0
  %v3033 = vadd.f32 0.0, %v3032
  %v3034 = vpop.f32.mrb[0].mxu0
  %v3035 = vpop.f32.mrb[0].mxu0
  %v3036 = vadd.f32 0.0, %v3035
  %v3037 = vpop.f32.mrb[0].mxu0
  %3038 = vdwg.mxu0
  %3039 = vrot.lane.b32.xlu0 %v2312, 32
  %v3040 = vpop.permute.xlu0 %3039
  %3041 = vrot.lane.b32.xlu0 %v2315, 32
  %v3042 = vpop.permute.xlu0 %3041
  %3047 = vrot.lane.b32.xlu0 %v2108, 64
  %v3048 = vpop.permute.xlu0 %3047
  %3049 = vrot.lane.b32.xlu0 %v2128, 64
  %v3050 = vpop.permute.xlu0 %3049
  %v3055 = vrot.slane %v2108, 1
  %v3056 = vrot.slane %v2109, 1
  %v3057 = vsel %vm114, %v3055, %v3056
  %v3058 = vrot.slane %v2128, 1
  %v3059 = vrot.slane %v2129, 1
  %v3060 = vsel %vm114, %v3058, %v3059
  %3061 = vrot.lane.b32.xlu0 %v3057, 96
  %v3062 = vpop.permute.xlu0 %3061
  %3063 = vrot.lane.b32.xlu0 %v3060, 96
  %v3064 = vpop.permute.xlu0 %3063
  %v3067 = vsel %vm564, %v2106, %v3040
  %v3068 = vsel %vm564, %v2126, %v3042
  %v3069 = vsel %vm581, %v3067, %v3048
  %v3070 = vsel %vm581, %v3068, %v3050
  %v3071 = vsel %vm598, %v3069, %v3062
  %v3072 = vsel %vm598, %v3070, %v3064
  %v3073 = vpack.c.bf16 %v2398, %v2397
  %v3074 = vpack.c.bf16 %v2400, %v2399
  %v3075 = vpack.c.bf16 %v2402, %v2401
  %v3076 = vpack.c.bf16 %v3071, %v2403
  %v3077 = vpack.c.bf16 %v2406, %v2405
  %v3078 = vpack.c.bf16 %v2408, %v2407
  %v3079 = vpack.c.bf16 %v2410, %v2409
  %v3080 = vpack.c.bf16 %v3072, %v2411
  %s3081 = scalar_lea.vmem %s3, 128
  %v3082 = vld [vmem:[%s3081] sm:$0xf]
  %v3083 = vld [vmem:[%s3081 + $0x4] sm:$0xf]
  %v3084 = vld [vmem:[%s3081 + $0x8] sm:$0xf]
  %v3085 = vld [vmem:[%s3081 + $0xc] sm:$0xf]
  %v3086 = vld [vmem:[%s3081 + $0x10] sm:$0xf]
  %v3087 = vld [vmem:[%s3081 + $0x14] sm:$0xf]
  %v3088 = vld [vmem:[%s3081 + $0x18] sm:$0xf]
  %v3089 = vld [vmem:[%s3081 + $0x1c] sm:$0xf]
  %v3090 = vld [vmem:[%s3081 + $0x20] sm:$0xf]
  %v3091 = vld [vmem:[%s3081 + $0x24] sm:$0xf]
  %v3092 = vld [vmem:[%s3081 + $0x28] sm:$0xf]
  %v3093 = vld [vmem:[%s3081 + $0x2c] sm:$0xf]
  %v3094 = vld [vmem:[%s3081 + $0x30] sm:$0xf]
  %v3095 = vld [vmem:[%s3081 + $0x34] sm:$0xf]
  %v3096 = vld [vmem:[%s3081 + $0x38] sm:$0xf]
  %v3097 = vld [vmem:[%s3081 + $0x3c] sm:$0xf]
  %v3114 = vunpack.c.l.b16 %v3082
  %v3115 = vunpack.c.l.b16 %v3083
  %v3116 = vunpack.c.l.b16 %v3084
  %v3117 = vunpack.c.l.b16 %v3085
  %v3118 = vunpack.c.l.b16 %v3086
  %v3119 = vunpack.c.l.b16 %v3087
  %v3120 = vunpack.c.l.b16 %v3088
  %v3121 = vunpack.c.l.b16 %v3089
  %v3122 = vunpack.c.l.b16 %v3090
  %v3123 = vunpack.c.l.b16 %v3091
  %v3124 = vunpack.c.l.b16 %v3092
  %v3125 = vunpack.c.l.b16 %v3093
  %v3126 = vunpack.c.l.b16 %v3094
  %v3127 = vunpack.c.l.b16 %v3095
  %v3128 = vunpack.c.l.b16 %v3096
  %v3129 = vunpack.c.l.b16 %v3097
  %v3130 = vpack.c.b16 %v3115, %v3114
  %v3131 = vpack.c.b16 %v3117, %v3116
  %v3132 = vpack.c.b16 %v3119, %v3118
  %v3133 = vpack.c.b16 %v3121, %v3120
  %v3134 = vpack.c.b16 %v3123, %v3122
  %v3135 = vpack.c.b16 %v3125, %v3124
  %v3136 = vpack.c.b16 %v3127, %v3126
  %v3137 = vpack.c.b16 %v3129, %v3128
  %3146 = vmatprep.subr.bf16.mxu0 0
  %3147 = vmatpush1.bf16.msra.mxu0 %v3130
  %3148 = vmatprep.subr.bf16.mxu0 0
  %3149 = vmatpush1.bf16.msra.mxu0 %v3131
  %3150 = vmatprep.subr.bf16.mxu0 0
  %3151 = vmatpush1.bf16.msra.mxu0 %v3132
  %3152 = vmatprep.subr.bf16.mxu0 0
  %3153 = vmatpush1.bf16.msra.mxu0 %v3133
  %3154 = vmatprep.subr.bf16.mxu0 0
  %3155 = vmatpush1.bf16.msra.mxu0 %v3134
  %3156 = vmatprep.subr.bf16.mxu0 0
  %3157 = vmatpush1.bf16.msra.mxu0 %v3135
  %3158 = vmatprep.subr.bf16.mxu0 0
  %3159 = vmatpush1.bf16.msra.mxu0 %v3136
  %3160 = vmatprep.subr.bf16.mxu0 0
  %3161 = vmatpush1.bf16.msra.mxu0 %v3137
  %3162 = vmatprep.subr.bf16.mxu0 0
  %3163 = vmatpush1.bf16.msra.mxu0 0
  %3164 = vmatprep.subr.bf16.mxu0 0
  %3165 = vmatpush1.bf16.msra.mxu0 0
  %3166 = vmatprep.subr.bf16.mxu0 0
  %3167 = vmatpush1.bf16.msra.mxu0 0
  %3168 = vmatprep.subr.bf16.mxu0 0
  %3169 = vmatpush1.bf16.msra.mxu0 0
  %3170 = vmatprep.subr.bf16.mxu0 0
  %3171 = vmatpush1.bf16.msra.mxu0 0
  %3172 = vmatprep.subr.bf16.mxu0 0
  %3173 = vmatpush1.bf16.msra.mxu0 0
  %3174 = vmatprep.subr.bf16.mxu0 0
  %3175 = vmatpush1.bf16.msra.mxu0 0
  %3176 = vmatprep.subr.bf16.mxu0 0
  %3177 = vmatpush1.bf16.msra.mxu0 0
  %3178 = vmatprep.mubr.bf16.mxu0 0
  %3179 = vmatmul.mubr.bf16.gmra.mrb[0].mxu0 %v3073
  %v3180 = vpop.f32.mrb[0].mxu0
  %v3181 = vadd.f32 0.0, %v3180
  %v3182 = vpop.f32.mrb[0].mxu0
  %v3183 = vpop.f32.mrb[0].mxu0
  %v3184 = vadd.f32 0.0, %v3183
  %v3185 = vpop.f32.mrb[0].mxu0
  %3186 = vmatprep.mubr.bf16.mxu0 0
  %3187 = vmatmul.mubr.bf16.gmra.mrb[0].mxu0 %v3074
  %v3188 = vpop.f32.mrb[0].mxu0
  %v3189 = vadd.f32 0.0, %v3188
  %v3190 = vpop.f32.mrb[0].mxu0
  %v3191 = vpop.f32.mrb[0].mxu0
  %v3192 = vadd.f32 0.0, %v3191
  %v3193 = vpop.f32.mrb[0].mxu0
  %3194 = vmatprep.mubr.bf16.mxu0 0
  %3195 = vmatmul.mubr.bf16.gmra.mrb[0].mxu0 %v3075
  %v3196 = vpop.f32.mrb[0].mxu0
  %v3197 = vadd.f32 0.0, %v3196
  %v3198 = vpop.f32.mrb[0].mxu0
  %v3199 = vpop.f32.mrb[0].mxu0
  %v3200 = vadd.f32 0.0, %v3199
  %v3201 = vpop.f32.mrb[0].mxu0
  %3202 = vmatprep.mubr.bf16.mxu0 0
  %3203 = vmatmul.mubr.bf16.gmra.mrb[0].mxu0 %v3076
  %v3204 = vpop.f32.mrb[0].mxu0
  %v3205 = vadd.f32 0.0, %v3204
  %v3206 = vpop.f32.mrb[0].mxu0
  %v3207 = vpop.f32.mrb[0].mxu0
  %v3208 = vadd.f32 0.0, %v3207
  %v3209 = vpop.f32.mrb[0].mxu0
  %3210 = vmatprep.mubr.bf16.mxu0 0
  %3211 = vmatmul.mubr.bf16.gmra.mrb[0].mxu0 %v3077
  %v3212 = vpop.f32.mrb[0].mxu0
  %v3213 = vadd.f32 0.0, %v3212
  %v3214 = vpop.f32.mrb[0].mxu0
  %v3215 = vpop.f32.mrb[0].mxu0
  %v3216 = vadd.f32 0.0, %v3215
  %v3217 = vpop.f32.mrb[0].mxu0
  %3218 = vmatprep.mubr.bf16.mxu0 0
  %3219 = vmatmul.mubr.bf16.gmra.mrb[0].mxu0 %v3078
  %v3220 = vpop.f32.mrb[0].mxu0
  %v3221 = vadd.f32 0.0, %v3220
  %v3222 = vpop.f32.mrb[0].mxu0
  %v3223 = vpop.f32.mrb[0].mxu0
  %v3224 = vadd.f32 0.0, %v3223
  %v3225 = vpop.f32.mrb[0].mxu0
  %3226 = vmatprep.mubr.bf16.mxu0 0
  %3227 = vmatmul.mubr.bf16.gmra.mrb[0].mxu0 %v3079
  %v3228 = vpop.f32.mrb[0].mxu0
  %v3229 = vadd.f32 0.0, %v3228
  %v3230 = vpop.f32.mrb[0].mxu0
  %v3231 = vpop.f32.mrb[0].mxu0
  %v3232 = vadd.f32 0.0, %v3231
  %v3233 = vpop.f32.mrb[0].mxu0
  %3234 = vmatprep.mubr.bf16.mxu0 0
  %3235 = vmatmul.mubr.bf16.gmra.mrb[0].mxu0 %v3080
  %v3236 = vpop.f32.mrb[0].mxu0
  %v3237 = vadd.f32 0.0, %v3236
  %v3238 = vpop.f32.mrb[0].mxu0
  %v3239 = vpop.f32.mrb[0].mxu0
  %v3240 = vadd.f32 0.0, %v3239
  %v3241 = vpop.f32.mrb[0].mxu0
  %3242 = vdwg.mxu0
  %3243 = vrot.lane.b32.xlu0 %v2311, 32
  %v3244 = vpop.permute.xlu0 %3243
  %3245 = vrot.lane.b32.xlu0 %v2314, 32
  %v3246 = vpop.permute.xlu0 %3245
  %3249 = vrot.lane.b32.xlu0 %v2109, 64
  %v3250 = vpop.permute.xlu0 %3249
  %3251 = vrot.lane.b32.xlu0 %v2129, 64
  %v3252 = vpop.permute.xlu0 %3251
  %3255 = vrot.lane.b32.xlu0 %v3056, 96
  %v3256 = vpop.permute.xlu0 %3255
  %3257 = vrot.lane.b32.xlu0 %v3059, 96
  %v3258 = vpop.permute.xlu0 %3257
  %v3261 = vsel %vm564, %v2107, %v3244
  %v3262 = vsel %vm564, %v2127, %v3246
  %v3263 = vsel %vm581, %v3261, %v3250
  %v3264 = vsel %vm581, %v3262, %v3252
  %v3265 = vsel %vm598, %v3263, %v3256
  %v3266 = vsel %vm598, %v3264, %v3258
  %v3271 = vrot.slane %v3071, 1
  %v3272 = vrot.slane %v3265, 1
  %v3273 = vsel %vm114, %v3271, %v3272
  %v3274 = vrot.slane %v3072, 1
  %v3275 = vrot.slane %v3266, 1
  %v3276 = vsel %vm114, %v3274, %v3275
  %v3279 = vpack.c.bf16 %v2813, %v2810
  %v3280 = vpack.c.bf16 %v2819, %v2816
  %v3281 = vpack.c.bf16 %v2825, %v2822
  %v3282 = vpack.c.bf16 %v3273, %v2828
  %v3283 = vpack.c.bf16 %v2837, %v2834
  %v3284 = vpack.c.bf16 %v2843, %v2840
  %v3285 = vpack.c.bf16 %v2849, %v2846
  %v3286 = vpack.c.bf16 %v3276, %v2852
  %s3287 = scalar_lea.vmem %s3, 192
  %v3288 = vld [vmem:[%s3287] sm:$0xf]
  %v3289 = vld [vmem:[%s3287 + $0x4] sm:$0xf]
  %v3290 = vld [vmem:[%s3287 + $0x8] sm:$0xf]
  %v3291 = vld [vmem:[%s3287 + $0xc] sm:$0xf]
  %v3292 = vld [vmem:[%s3287 + $0x10] sm:$0xf]
  %v3293 = vld [vmem:[%s3287 + $0x14] sm:$0xf]
  %v3294 = vld [vmem:[%s3287 + $0x18] sm:$0xf]
  %v3295 = vld [vmem:[%s3287 + $0x1c] sm:$0xf]
  %v3296 = vld [vmem:[%s3287 + $0x20] sm:$0xf]
  %v3297 = vld [vmem:[%s3287 + $0x24] sm:$0xf]
  %v3298 = vld [vmem:[%s3287 + $0x28] sm:$0xf]
  %v3299 = vld [vmem:[%s3287 + $0x2c] sm:$0xf]
  %v3300 = vld [vmem:[%s3287 + $0x30] sm:$0xf]
  %v3301 = vld [vmem:[%s3287 + $0x34] sm:$0xf]
  %v3302 = vld [vmem:[%s3287 + $0x38] sm:$0xf]
  %v3303 = vld [vmem:[%s3287 + $0x3c] sm:$0xf]
  %v3320 = vunpack.c.l.b16 %v3288
  %v3321 = vunpack.c.l.b16 %v3289
  %v3322 = vunpack.c.l.b16 %v3290
  %v3323 = vunpack.c.l.b16 %v3291
  %v3324 = vunpack.c.l.b16 %v3292
  %v3325 = vunpack.c.l.b16 %v3293
  %v3326 = vunpack.c.l.b16 %v3294
  %v3327 = vunpack.c.l.b16 %v3295
  %v3328 = vunpack.c.l.b16 %v3296
  %v3329 = vunpack.c.l.b16 %v3297
  %v3330 = vunpack.c.l.b16 %v3298
  %v3331 = vunpack.c.l.b16 %v3299
  %v3332 = vunpack.c.l.b16 %v3300
  %v3333 = vunpack.c.l.b16 %v3301
  %v3334 = vunpack.c.l.b16 %v3302
  %v3335 = vunpack.c.l.b16 %v3303
  %v3336 = vpack.c.b16 %v3321, %v3320
  %v3337 = vpack.c.b16 %v3323, %v3322
  %v3338 = vpack.c.b16 %v3325, %v3324
  %v3339 = vpack.c.b16 %v3327, %v3326
  %v3340 = vpack.c.b16 %v3329, %v3328
  %v3341 = vpack.c.b16 %v3331, %v3330
  %v3342 = vpack.c.b16 %v3333, %v3332
  %v3343 = vpack.c.b16 %v3335, %v3334
  %3352 = vmatprep.subr.bf16.mxu0 0
  %3353 = vmatpush1.bf16.msra.mxu0 %v3336
  %3354 = vmatprep.subr.bf16.mxu0 0
  %3355 = vmatpush1.bf16.msra.mxu0 %v3337
  %3356 = vmatprep.subr.bf16.mxu0 0
  %3357 = vmatpush1.bf16.msra.mxu0 %v3338
  %3358 = vmatprep.subr.bf16.mxu0 0
  %3359 = vmatpush1.bf16.msra.mxu0 %v3339
  %3360 = vmatprep.subr.bf16.mxu0 0
  %3361 = vmatpush1.bf16.msra.mxu0 %v3340
  %3362 = vmatprep.subr.bf16.mxu0 0
  %3363 = vmatpush1.bf16.msra.mxu0 %v3341
  %3364 = vmatprep.subr.bf16.mxu0 0
  %3365 = vmatpush1.bf16.msra.mxu0 %v3342
  %3366 = vmatprep.subr.bf16.mxu0 0
  %3367 = vmatpush1.bf16.msra.mxu0 %v3343
  %3368 = vmatprep.subr.bf16.mxu0 0
  %3369 = vmatpush1.bf16.msra.mxu0 0
  %3370 = vmatprep.subr.bf16.mxu0 0
  %3371 = vmatpush1.bf16.msra.mxu0 0
  %3372 = vmatprep.subr.bf16.mxu0 0
  %3373 = vmatpush1.bf16.msra.mxu0 0
  %3374 = vmatprep.subr.bf16.mxu0 0
  %3375 = vmatpush1.bf16.msra.mxu0 0
  %3376 = vmatprep.subr.bf16.mxu0 0
  %3377 = vmatpush1.bf16.msra.mxu0 0
  %3378 = vmatprep.subr.bf16.mxu0 0
  %3379 = vmatpush1.bf16.msra.mxu0 0
  %3380 = vmatprep.subr.bf16.mxu0 0
  %3381 = vmatpush1.bf16.msra.mxu0 0
  %3382 = vmatprep.subr.bf16.mxu0 0
  %3383 = vmatpush1.bf16.msra.mxu0 0
  %3384 = vmatprep.mubr.bf16.mxu0 0
  %3385 = vmatmul.mubr.bf16.gmra.mrb[0].mxu0 %v3279
  %v3386 = vpop.f32.mrb[0].mxu0
  %v3387 = vadd.f32 0.0, %v3386
  %v3388 = vpop.f32.mrb[0].mxu0
  %v3389 = vpop.f32.mrb[0].mxu0
  %v3390 = vadd.f32 0.0, %v3389
  %v3391 = vpop.f32.mrb[0].mxu0
  %3392 = vmatprep.mubr.bf16.mxu0 0
  %3393 = vmatmul.mubr.bf16.gmra.mrb[0].mxu0 %v3280
  %v3394 = vpop.f32.mrb[0].mxu0
  %v3395 = vadd.f32 0.0, %v3394
  %v3396 = vpop.f32.mrb[0].mxu0
  %v3397 = vpop.f32.mrb[0].mxu0
  %v3398 = vadd.f32 0.0, %v3397
  %v3399 = vpop.f32.mrb[0].mxu0
  %3400 = vmatprep.mubr.bf16.mxu0 0
  %3401 = vmatmul.mubr.bf16.gmra.mrb[0].mxu0 %v3281
  %v3402 = vpop.f32.mrb[0].mxu0
  %v3403 = vadd.f32 0.0, %v3402
  %v3404 = vpop.f32.mrb[0].mxu0
  %v3405 = vpop.f32.mrb[0].mxu0
  %v3406 = vadd.f32 0.0, %v3405
  %v3407 = vpop.f32.mrb[0].mxu0
  %3408 = vmatprep.mubr.bf16.mxu0 0
  %3409 = vmatmul.mubr.bf16.gmra.mrb[0].mxu0 %v3282
  %v3410 = vpop.f32.mrb[0].mxu0
  %v3411 = vadd.f32 0.0, %v3410
  %v3412 = vpop.f32.mrb[0].mxu0
  %v3413 = vpop.f32.mrb[0].mxu0
  %v3414 = vadd.f32 0.0, %v3413
  %v3415 = vpop.f32.mrb[0].mxu0
  %3416 = vmatprep.mubr.bf16.mxu0 0
  %3417 = vmatmul.mubr.bf16.gmra.mrb[0].mxu0 %v3283
  %v3418 = vpop.f32.mrb[0].mxu0
  %v3419 = vadd.f32 0.0, %v3418
  %v3420 = vpop.f32.mrb[0].mxu0
  %v3421 = vpop.f32.mrb[0].mxu0
  %v3422 = vadd.f32 0.0, %v3421
  %v3423 = vpop.f32.mrb[0].mxu0
  %3424 = vmatprep.mubr.bf16.mxu0 0
  %3425 = vmatmul.mubr.bf16.gmra.mrb[0].mxu0 %v3284
  %v3426 = vpop.f32.mrb[0].mxu0
  %v3427 = vadd.f32 0.0, %v3426
  %v3428 = vpop.f32.mrb[0].mxu0
  %v3429 = vpop.f32.mrb[0].mxu0
  %v3430 = vadd.f32 0.0, %v3429
  %v3431 = vpop.f32.mrb[0].mxu0
  %3432 = vmatprep.mubr.bf16.mxu0 0
  %3433 = vmatmul.mubr.bf16.gmra.mrb[0].mxu0 %v3285
  %v3434 = vpop.f32.mrb[0].mxu0
  %v3435 = vadd.f32 0.0, %v3434
  %v3436 = vpop.f32.mrb[0].mxu0
  %v3437 = vpop.f32.mrb[0].mxu0
  %v3438 = vadd.f32 0.0, %v3437
  %v3439 = vpop.f32.mrb[0].mxu0
  %3440 = vmatprep.mubr.bf16.mxu0 0
  %3441 = vmatmul.mubr.bf16.gmra.mrb[0].mxu0 %v3286
  %v3442 = vpop.f32.mrb[0].mxu0
  %v3443 = vadd.f32 0.0, %v3442
  %v3444 = vpop.f32.mrb[0].mxu0
  %v3445 = vpop.f32.mrb[0].mxu0
  %v3446 = vadd.f32 0.0, %v3445
  %v3447 = vpop.f32.mrb[0].mxu0
  %3448 = vdwg.mxu0
  %v3449 = vsel %vm564, %v2519, 0.0
  %v3450 = vsel %vm564, %v2522, 0.0
  %v3451 = vadd.f32 %v3449, %v3450
  %v3452 = vsel %vm564, %v2527, 0.0
  %v3453 = vadd.f32 %v3451, %v3452
  %v3454 = vsel %vm564, %v2530, 0.0
  %v3455 = vadd.f32 %v3453, %v3454
  %v3456 = vsel %vm564, %v2535, 0.0
  %v3457 = vadd.f32 %v3455, %v3456
  %v3458 = vsel %vm564, %v2538, 0.0
  %v3459 = vadd.f32 %v3457, %v3458
  %v3460 = vsel %vm564, %v2543, 0.0
  %v3461 = vadd.f32 %v3459, %v3460
  %v3462 = vsel %vm564, %v2546, 0.0
  %v3463 = vadd.f32 %v3461, %v3462
  %v3464 = vsel %vm564, %v2551, 0.0
  %v3465 = vadd.f32 %v3463, %v3464
  %v3466 = vsel %vm564, %v2554, 0.0
  %v3467 = vadd.f32 %v3465, %v3466
  %v3468 = vsel %vm564, %v2559, 0.0
  %v3469 = vadd.f32 %v3467, %v3468
  %v3470 = vsel %vm564, %v2562, 0.0
  %v3471 = vadd.f32 %v3469, %v3470
  %v3472 = vsel %vm564, %v2567, 0.0
  %v3473 = vadd.f32 %v3471, %v3472
  %v3474 = vsel %vm564, %v2570, 0.0
  %v3475 = vadd.f32 %v3473, %v3474
  %v3476 = vsel %vm564, %v2575, 0.0
  %v3477 = vadd.f32 %v3475, %v3476
  %v3478 = vsel %vm564, %v2578, 0.0
  %v3479 = vadd.f32 %v3477, %v3478
  %v3480 = vrot.slane %v3479, 4
  %v3481 = vadd.f32 %v3479, %v3480
  %v3482 = vrot.slane %v3481, 2
  %v3483 = vadd.f32 %v3481, %v3482
  %v3484 = vrot.slane %v3483, 1
  %v3485 = vadd.f32 %v3483, %v3484
  %v3486 = vadd.f32 %v3485, 0.0
  %v3487 = vsel %vm564, %v2977, 0.0
  %v3488 = vsel %vm564, %v2980, 0.0
  %v3489 = vadd.f32 %v3487, %v3488
  %v3490 = vsel %vm564, %v2985, 0.0
  %v3491 = vadd.f32 %v3489, %v3490
  %v3492 = vsel %vm564, %v2988, 0.0
  %v3493 = vadd.f32 %v3491, %v3492
  %v3494 = vsel %vm564, %v2993, 0.0
  %v3495 = vadd.f32 %v3493, %v3494
  %v3496 = vsel %vm564, %v2996, 0.0
  %v3497 = vadd.f32 %v3495, %v3496
  %v3498 = vsel %vm564, %v3001, 0.0
  %v3499 = vadd.f32 %v3497, %v3498
  %v3500 = vsel %vm564, %v3004, 0.0
  %v3501 = vadd.f32 %v3499, %v3500
  %v3502 = vsel %vm564, %v3009, 0.0
  %v3503 = vadd.f32 %v3501, %v3502
  %v3504 = vsel %vm564, %v3012, 0.0
  %v3505 = vadd.f32 %v3503, %v3504
  %v3506 = vsel %vm564, %v3017, 0.0
  %v3507 = vadd.f32 %v3505, %v3506
  %v3508 = vsel %vm564, %v3020, 0.0
  %v3509 = vadd.f32 %v3507, %v3508
  %v3510 = vsel %vm564, %v3025, 0.0
  %v3511 = vadd.f32 %v3509, %v3510
  %v3512 = vsel %vm564, %v3028, 0.0
  %v3513 = vadd.f32 %v3511, %v3512
  %v3514 = vsel %vm564, %v3033, 0.0
  %v3515 = vadd.f32 %v3513, %v3514
  %v3516 = vsel %vm564, %v3036, 0.0
  %v3517 = vadd.f32 %v3515, %v3516
  %v3518 = vrot.slane %v3517, 4
  %v3519 = vadd.f32 %v3517, %v3518
  %v3520 = vrot.slane %v3519, 2
  %v3521 = vadd.f32 %v3519, %v3520
  %v3522 = vrot.slane %v3521, 1
  %v3523 = vadd.f32 %v3521, %v3522
  %v3524 = vadd.f32 %v3486, %v3523
  %v3525 = vsel %vm564, %v3181, 0.0
  %v3526 = vsel %vm564, %v3184, 0.0
  %v3527 = vadd.f32 %v3525, %v3526
  %v3528 = vsel %vm564, %v3189, 0.0
  %v3529 = vadd.f32 %v3527, %v3528
  %v3530 = vsel %vm564, %v3192, 0.0
  %v3531 = vadd.f32 %v3529, %v3530
  %v3532 = vsel %vm564, %v3197, 0.0
  %v3533 = vadd.f32 %v3531, %v3532
  %v3534 = vsel %vm564, %v3200, 0.0
  %v3535 = vadd.f32 %v3533, %v3534
  %v3536 = vsel %vm564, %v3205, 0.0
  %v3537 = vadd.f32 %v3535, %v3536
  %v3538 = vsel %vm564, %v3208, 0.0
  %v3539 = vadd.f32 %v3537, %v3538
  %v3540 = vsel %vm564, %v3213, 0.0
  %v3541 = vadd.f32 %v3539, %v3540
  %v3542 = vsel %vm564, %v3216, 0.0
  %v3543 = vadd.f32 %v3541, %v3542
  %v3544 = vsel %vm564, %v3221, 0.0
  %v3545 = vadd.f32 %v3543, %v3544
  %v3546 = vsel %vm564, %v3224, 0.0
  %v3547 = vadd.f32 %v3545, %v3546
  %v3548 = vsel %vm564, %v3229, 0.0
  %v3549 = vadd.f32 %v3547, %v3548
  %v3550 = vsel %vm564, %v3232, 0.0
  %v3551 = vadd.f32 %v3549, %v3550
  %v3552 = vsel %vm564, %v3237, 0.0
  %v3553 = vadd.f32 %v3551, %v3552
  %v3554 = vsel %vm564, %v3240, 0.0
  %v3555 = vadd.f32 %v3553, %v3554
  %v3556 = vrot.slane %v3555, 4
  %v3557 = vadd.f32 %v3555, %v3556
  %v3558 = vrot.slane %v3557, 2
  %v3559 = vadd.f32 %v3557, %v3558
  %v3560 = vrot.slane %v3559, 1
  %v3561 = vadd.f32 %v3559, %v3560
  %v3562 = vadd.f32 %v3524, %v3561
  %v3563 = vsel %vm564, %v3387, 0.0
  %v3564 = vsel %vm564, %v3390, 0.0
  %v3565 = vadd.f32 %v3563, %v3564
  %v3566 = vsel %vm564, %v3395, 0.0
  %v3567 = vadd.f32 %v3565, %v3566
  %v3568 = vsel %vm564, %v3398, 0.0
  %v3569 = vadd.f32 %v3567, %v3568
  %v3570 = vsel %vm564, %v3403, 0.0
  %v3571 = vadd.f32 %v3569, %v3570
  %v3572 = vsel %vm564, %v3406, 0.0
  %v3573 = vadd.f32 %v3571, %v3572
  %v3574 = vsel %vm564, %v3411, 0.0
  %v3575 = vadd.f32 %v3573, %v3574
  %v3576 = vsel %vm564, %v3414, 0.0
  %v3577 = vadd.f32 %v3575, %v3576
  %v3578 = vsel %vm564, %v3419, 0.0
  %v3579 = vadd.f32 %v3577, %v3578
  %v3580 = vsel %vm564, %v3422, 0.0
  %v3581 = vadd.f32 %v3579, %v3580
  %v3582 = vsel %vm564, %v3427, 0.0
  %v3583 = vadd.f32 %v3581, %v3582
  %v3584 = vsel %vm564, %v3430, 0.0
  %v3585 = vadd.f32 %v3583, %v3584
  %v3586 = vsel %vm564, %v3435, 0.0
  %v3587 = vadd.f32 %v3585, %v3586
  %v3588 = vsel %vm564, %v3438, 0.0
  %v3589 = vadd.f32 %v3587, %v3588
  %v3590 = vsel %vm564, %v3443, 0.0
  %v3591 = vadd.f32 %v3589, %v3590
  %v3592 = vsel %vm564, %v3446, 0.0
  %v3593 = vadd.f32 %v3591, %v3592
  %v3594 = vrot.slane %v3593, 4
  %v3595 = vadd.f32 %v3593, %v3594
  %v3596 = vrot.slane %v3595, 2
  %v3597 = vadd.f32 %v3595, %v3596
  %v3598 = vrot.slane %v3597, 1
  %v3599 = vadd.f32 %v3597, %v3598
  %v3600 = vadd.f32 %v3562, %v3599
  %v3601 = vmul.f32 %v2519, %v2519
  %v3602 = vmul.f32 %v2522, %v2522
  %v3603 = vmul.f32 %v2527, %v2527
  %v3604 = vmul.f32 %v2530, %v2530
  %v3605 = vmul.f32 %v2535, %v2535
  %v3606 = vmul.f32 %v2538, %v2538
  %v3607 = vmul.f32 %v2543, %v2543
  %v3608 = vmul.f32 %v2546, %v2546
  %v3609 = vmul.f32 %v2551, %v2551
  %v3610 = vmul.f32 %v2554, %v2554
  %v3611 = vmul.f32 %v2559, %v2559
  %v3612 = vmul.f32 %v2562, %v2562
  %v3613 = vmul.f32 %v2567, %v2567
  %v3614 = vmul.f32 %v2570, %v2570
  %v3615 = vmul.f32 %v2575, %v2575
  %v3616 = vmul.f32 %v2578, %v2578
  %v3617 = vsel %vm564, %v3601, 0.0
  %v3618 = vsel %vm564, %v3602, 0.0
  %v3619 = vadd.f32 %v3617, %v3618
  %v3620 = vsel %vm564, %v3603, 0.0
  %v3621 = vadd.f32 %v3619, %v3620
  %v3622 = vsel %vm564, %v3604, 0.0
  %v3623 = vadd.f32 %v3621, %v3622
  %v3624 = vsel %vm564, %v3605, 0.0
  %v3625 = vadd.f32 %v3623, %v3624
  %v3626 = vsel %vm564, %v3606, 0.0
  %v3627 = vadd.f32 %v3625, %v3626
  %v3628 = vsel %vm564, %v3607, 0.0
  %v3629 = vadd.f32 %v3627, %v3628
  %v3630 = vsel %vm564, %v3608, 0.0
  %v3631 = vadd.f32 %v3629, %v3630
  %v3632 = vsel %vm564, %v3609, 0.0
  %v3633 = vadd.f32 %v3631, %v3632
  %v3634 = vsel %vm564, %v3610, 0.0
  %v3635 = vadd.f32 %v3633, %v3634
  %v3636 = vsel %vm564, %v3611, 0.0
  %v3637 = vadd.f32 %v3635, %v3636
  %v3638 = vsel %vm564, %v3612, 0.0
  %v3639 = vadd.f32 %v3637, %v3638
  %v3640 = vsel %vm564, %v3613, 0.0
  %v3641 = vadd.f32 %v3639, %v3640
  %v3642 = vsel %vm564, %v3614, 0.0
  %v3643 = vadd.f32 %v3641, %v3642
  %v3644 = vsel %vm564, %v3615, 0.0
  %v3645 = vadd.f32 %v3643, %v3644
  %v3646 = vsel %vm564, %v3616, 0.0
  %v3647 = vadd.f32 %v3645, %v3646
  %v3648 = vrot.slane %v3647, 4
  %v3649 = vadd.f32 %v3647, %v3648
  %v3650 = vrot.slane %v3649, 2
  %v3651 = vadd.f32 %v3649, %v3650
  %v3652 = vrot.slane %v3651, 1
  %v3653 = vadd.f32 %v3651, %v3652
  %v3654 = vadd.f32 %v3653, 0.0
  %v3655 = vmul.f32 %v2977, %v2977
  %v3656 = vmul.f32 %v2980, %v2980
  %v3657 = vmul.f32 %v2985, %v2985
  %v3658 = vmul.f32 %v2988, %v2988
  %v3659 = vmul.f32 %v2993, %v2993
  %v3660 = vmul.f32 %v2996, %v2996
  %v3661 = vmul.f32 %v3001, %v3001
  %v3662 = vmul.f32 %v3004, %v3004
  %v3663 = vmul.f32 %v3009, %v3009
  %v3664 = vmul.f32 %v3012, %v3012
  %v3665 = vmul.f32 %v3017, %v3017
  %v3666 = vmul.f32 %v3020, %v3020
  %v3667 = vmul.f32 %v3025, %v3025
  %v3668 = vmul.f32 %v3028, %v3028
  %v3669 = vmul.f32 %v3033, %v3033
  %v3670 = vmul.f32 %v3036, %v3036
  %v3671 = vsel %vm564, %v3655, 0.0
  %v3672 = vsel %vm564, %v3656, 0.0
  %v3673 = vadd.f32 %v3671, %v3672
  %v3674 = vsel %vm564, %v3657, 0.0
  %v3675 = vadd.f32 %v3673, %v3674
  %v3676 = vsel %vm564, %v3658, 0.0
  %v3677 = vadd.f32 %v3675, %v3676
  %v3678 = vsel %vm564, %v3659, 0.0
  %v3679 = vadd.f32 %v3677, %v3678
  %v3680 = vsel %vm564, %v3660, 0.0
  %v3681 = vadd.f32 %v3679, %v3680
  %v3682 = vsel %vm564, %v3661, 0.0
  %v3683 = vadd.f32 %v3681, %v3682
  %v3684 = vsel %vm564, %v3662, 0.0
  %v3685 = vadd.f32 %v3683, %v3684
  %v3686 = vsel %vm564, %v3663, 0.0
  %v3687 = vadd.f32 %v3685, %v3686
  %v3688 = vsel %vm564, %v3664, 0.0
  %v3689 = vadd.f32 %v3687, %v3688
  %v3690 = vsel %vm564, %v3665, 0.0
  %v3691 = vadd.f32 %v3689, %v3690
  %v3692 = vsel %vm564, %v3666, 0.0
  %v3693 = vadd.f32 %v3691, %v3692
  %v3694 = vsel %vm564, %v3667, 0.0
  %v3695 = vadd.f32 %v3693, %v3694
  %v3696 = vsel %vm564, %v3668, 0.0
  %v3697 = vadd.f32 %v3695, %v3696
  %v3698 = vsel %vm564, %v3669, 0.0
  %v3699 = vadd.f32 %v3697, %v3698
  %v3700 = vsel %vm564, %v3670, 0.0
  %v3701 = vadd.f32 %v3699, %v3700
  %v3702 = vrot.slane %v3701, 4
  %v3703 = vadd.f32 %v3701, %v3702
  %v3704 = vrot.slane %v3703, 2
  %v3705 = vadd.f32 %v3703, %v3704
  %v3706 = vrot.slane %v3705, 1
  %v3707 = vadd.f32 %v3705, %v3706
  %v3708 = vadd.f32 %v3654, %v3707
  %v3709 = vmul.f32 %v3181, %v3181
  %v3710 = vmul.f32 %v3184, %v3184
  %v3711 = vmul.f32 %v3189, %v3189
  %v3712 = vmul.f32 %v3192, %v3192
  %v3713 = vmul.f32 %v3197, %v3197
  %v3714 = vmul.f32 %v3200, %v3200
  %v3715 = vmul.f32 %v3205, %v3205
  %v3716 = vmul.f32 %v3208, %v3208
  %v3717 = vmul.f32 %v3213, %v3213
  %v3718 = vmul.f32 %v3216, %v3216
  %v3719 = vmul.f32 %v3221, %v3221
  %v3720 = vmul.f32 %v3224, %v3224
  %v3721 = vmul.f32 %v3229, %v3229
  %v3722 = vmul.f32 %v3232, %v3232
  %v3723 = vmul.f32 %v3237, %v3237
  %v3724 = vmul.f32 %v3240, %v3240
  %v3725 = vsel %vm564, %v3709, 0.0
  %v3726 = vsel %vm564, %v3710, 0.0
  %v3727 = vadd.f32 %v3725, %v3726
  %v3728 = vsel %vm564, %v3711, 0.0
  %v3729 = vadd.f32 %v3727, %v3728
  %v3730 = vsel %vm564, %v3712, 0.0
  %v3731 = vadd.f32 %v3729, %v3730
  %v3732 = vsel %vm564, %v3713, 0.0
  %v3733 = vadd.f32 %v3731, %v3732
  %v3734 = vsel %vm564, %v3714, 0.0
  %v3735 = vadd.f32 %v3733, %v3734
  %v3736 = vsel %vm564, %v3715, 0.0
  %v3737 = vadd.f32 %v3735, %v3736
  %v3738 = vsel %vm564, %v3716, 0.0
  %v3739 = vadd.f32 %v3737, %v3738
  %v3740 = vsel %vm564, %v3717, 0.0
  %v3741 = vadd.f32 %v3739, %v3740
  %v3742 = vsel %vm564, %v3718, 0.0
  %v3743 = vadd.f32 %v3741, %v3742
  %v3744 = vsel %vm564, %v3719, 0.0
  %v3745 = vadd.f32 %v3743, %v3744
  %v3746 = vsel %vm564, %v3720, 0.0
  %v3747 = vadd.f32 %v3745, %v3746
  %v3748 = vsel %vm564, %v3721, 0.0
  %v3749 = vadd.f32 %v3747, %v3748
  %v3750 = vsel %vm564, %v3722, 0.0
  %v3751 = vadd.f32 %v3749, %v3750
  %v3752 = vsel %vm564, %v3723, 0.0
  %v3753 = vadd.f32 %v3751, %v3752
  %v3754 = vsel %vm564, %v3724, 0.0
  %v3755 = vadd.f32 %v3753, %v3754
  %v3756 = vrot.slane %v3755, 4
  %v3757 = vadd.f32 %v3755, %v3756
  %v3758 = vrot.slane %v3757, 2
  %v3759 = vadd.f32 %v3757, %v3758
  %v3760 = vrot.slane %v3759, 1
  %v3761 = vadd.f32 %v3759, %v3760
  %v3762 = vadd.f32 %v3708, %v3761
  %v3763 = vmul.f32 %v3387, %v3387
  %v3764 = vmul.f32 %v3390, %v3390
  %v3765 = vmul.f32 %v3395, %v3395
  %v3766 = vmul.f32 %v3398, %v3398
  %v3767 = vmul.f32 %v3403, %v3403
  %v3768 = vmul.f32 %v3406, %v3406
  %v3769 = vmul.f32 %v3411, %v3411
  %v3770 = vmul.f32 %v3414, %v3414
  %v3771 = vmul.f32 %v3419, %v3419
  %v3772 = vmul.f32 %v3422, %v3422
  %v3773 = vmul.f32 %v3427, %v3427
  %v3774 = vmul.f32 %v3430, %v3430
  %v3775 = vmul.f32 %v3435, %v3435
  %v3776 = vmul.f32 %v3438, %v3438
  %v3777 = vmul.f32 %v3443, %v3443
  %v3778 = vmul.f32 %v3446, %v3446
  %v3779 = vsel %vm564, %v3763, 0.0
  %v3780 = vsel %vm564, %v3764, 0.0
  %v3781 = vadd.f32 %v3779, %v3780
  %v3782 = vsel %vm564, %v3765, 0.0
  %v3783 = vadd.f32 %v3781, %v3782
  %v3784 = vsel %vm564, %v3766, 0.0
  %v3785 = vadd.f32 %v3783, %v3784
  %v3786 = vsel %vm564, %v3767, 0.0
  %v3787 = vadd.f32 %v3785, %v3786
  %v3788 = vsel %vm564, %v3768, 0.0
  %v3789 = vadd.f32 %v3787, %v3788
  %v3790 = vsel %vm564, %v3769, 0.0
  %v3791 = vadd.f32 %v3789, %v3790
  %v3792 = vsel %vm564, %v3770, 0.0
  %v3793 = vadd.f32 %v3791, %v3792
  %v3794 = vsel %vm564, %v3771, 0.0
  %v3795 = vadd.f32 %v3793, %v3794
  %v3796 = vsel %vm564, %v3772, 0.0
  %v3797 = vadd.f32 %v3795, %v3796
  %v3798 = vsel %vm564, %v3773, 0.0
  %v3799 = vadd.f32 %v3797, %v3798
  %v3800 = vsel %vm564, %v3774, 0.0
  %v3801 = vadd.f32 %v3799, %v3800
  %v3802 = vsel %vm564, %v3775, 0.0
  %v3803 = vadd.f32 %v3801, %v3802
  %v3804 = vsel %vm564, %v3776, 0.0
  %v3805 = vadd.f32 %v3803, %v3804
  %v3806 = vsel %vm564, %v3777, 0.0
  %v3807 = vadd.f32 %v3805, %v3806
  %v3808 = vsel %vm564, %v3778, 0.0
  %v3809 = vadd.f32 %v3807, %v3808
  %v3810 = vrot.slane %v3809, 4
  %v3811 = vadd.f32 %v3809, %v3810
  %v3812 = vrot.slane %v3811, 2
  %v3813 = vadd.f32 %v3811, %v3812
  %v3814 = vrot.slane %v3813, 1
  %v3815 = vadd.f32 %v3813, %v3814
  %v3816 = vadd.f32 %v3762, %v3815
  %v3817 = vrcp.pop 512.0
  %v3818 = vmul.f32 %v3600, %v3817
  %v3819 = vmul.f32 %v3816, %v3817
  %v3820 = vmul.f32 %v3818, %v3818
  %v3821 = vsub.f32 %v3819, %v3820
  %v3822 = vld [vmem:[%s10] sm:$0x1]
  %v3823 = vadd.f32 %v3821, 1e-05
  %v3824 = vrsqrt.pop %v3823
  %v3825 = vmul.f32 %v3822, %v3824
  %v3826 = vld [vmem:[%s11] sm:$0x1]
  %v3827 = vmul.f32 %v3818, %v3825
  %v3828 = vsub.f32 %v3826, %v3827
  %v3830 = vlaneseq
  %v3831 = vshrl.u32 %v3830, 7
  %v3832 = vsub.s32 0, %v3831
  %v3833 = vrot.slane %v3825, %v3832
  %v3835 = vmul.f32 %v2519, %v3833
  %v3836 = vmul.f32 %v2522, %v3833
  %v3837 = vmul.f32 %v2527, %v3833
  %v3838 = vmul.f32 %v2530, %v3833
  %v3839 = vmul.f32 %v2535, %v3833
  %v3840 = vmul.f32 %v2538, %v3833
  %v3841 = vmul.f32 %v2543, %v3833
  %v3842 = vmul.f32 %v2546, %v3833
  %v3843 = vmul.f32 %v2551, %v3833
  %v3844 = vmul.f32 %v2554, %v3833
  %v3845 = vmul.f32 %v2559, %v3833
  %v3846 = vmul.f32 %v2562, %v3833
  %v3847 = vmul.f32 %v2567, %v3833
  %v3848 = vmul.f32 %v2570, %v3833
  %v3849 = vmul.f32 %v2575, %v3833
  %v3850 = vmul.f32 %v2578, %v3833
  %v3852 = vlaneseq
  %v3853 = vshrl.u32 %v3852, 7
  %v3854 = vsub.s32 0, %v3853
  %v3855 = vrot.slane %v3828, %v3854
  %v3857 = vadd.f32 %v3835, %v3855
  %v3858 = vadd.f32 %v3836, %v3855
  %v3859 = vadd.f32 %v3837, %v3855
  %v3860 = vadd.f32 %v3838, %v3855
  %v3861 = vadd.f32 %v3839, %v3855
  %v3862 = vadd.f32 %v3840, %v3855
  %v3863 = vadd.f32 %v3841, %v3855
  %v3864 = vadd.f32 %v3842, %v3855
  %v3865 = vadd.f32 %v3843, %v3855
  %v3866 = vadd.f32 %v3844, %v3855
  %v3867 = vadd.f32 %v3845, %v3855
  %v3868 = vadd.f32 %v3846, %v3855
  %v3869 = vadd.f32 %v3847, %v3855
  %v3870 = vadd.f32 %v3848, %v3855
  %v3871 = vadd.f32 %v3849, %v3855
  %v3872 = vadd.f32 %v3850, %v3855
  %v3873 = vmax.f32 %v3857, 0.0
  %v3874 = vmax.f32 %v3858, 0.0
  %v3875 = vmax.f32 %v3859, 0.0
  %v3876 = vmax.f32 %v3860, 0.0
  %v3877 = vmax.f32 %v3861, 0.0
  %v3878 = vmax.f32 %v3862, 0.0
  %v3879 = vmax.f32 %v3863, 0.0
  %v3880 = vmax.f32 %v3864, 0.0
  %v3881 = vmax.f32 %v3865, 0.0
  %v3882 = vmax.f32 %v3866, 0.0
  %v3883 = vmax.f32 %v3867, 0.0
  %v3884 = vmax.f32 %v3868, 0.0
  %v3885 = vmax.f32 %v3869, 0.0
  %v3886 = vmax.f32 %v3870, 0.0
  %v3887 = vmax.f32 %v3871, 0.0
  %v3888 = vmax.f32 %v3872, 0.0
  %v3889 = vmul.f32 %v2977, %v3833
  %v3890 = vmul.f32 %v2980, %v3833
  %v3891 = vmul.f32 %v2985, %v3833
  %v3892 = vmul.f32 %v2988, %v3833
  %v3893 = vmul.f32 %v2993, %v3833
  %v3894 = vmul.f32 %v2996, %v3833
  %v3895 = vmul.f32 %v3001, %v3833
  %v3896 = vmul.f32 %v3004, %v3833
  %v3897 = vmul.f32 %v3009, %v3833
  %v3898 = vmul.f32 %v3012, %v3833
  %v3899 = vmul.f32 %v3017, %v3833
  %v3900 = vmul.f32 %v3020, %v3833
  %v3901 = vmul.f32 %v3025, %v3833
  %v3902 = vmul.f32 %v3028, %v3833
  %v3903 = vmul.f32 %v3033, %v3833
  %v3904 = vmul.f32 %v3036, %v3833
  %v3905 = vadd.f32 %v3889, %v3855
  %v3906 = vadd.f32 %v3890, %v3855
  %v3907 = vadd.f32 %v3891, %v3855
  %v3908 = vadd.f32 %v3892, %v3855
  %v3909 = vadd.f32 %v3893, %v3855
  %v3910 = vadd.f32 %v3894, %v3855
  %v3911 = vadd.f32 %v3895, %v3855
  %v3912 = vadd.f32 %v3896, %v3855
  %v3913 = vadd.f32 %v3897, %v3855
  %v3914 = vadd.f32 %v3898, %v3855
  %v3915 = vadd.f32 %v3899, %v3855
  %v3916 = vadd.f32 %v3900, %v3855
  %v3917 = vadd.f32 %v3901, %v3855
  %v3918 = vadd.f32 %v3902, %v3855
  %v3919 = vadd.f32 %v3903, %v3855
  %v3920 = vadd.f32 %v3904, %v3855
  %v3921 = vmax.f32 %v3905, 0.0
  %v3922 = vmax.f32 %v3906, 0.0
  %v3923 = vmax.f32 %v3907, 0.0
  %v3924 = vmax.f32 %v3908, 0.0
  %v3925 = vmax.f32 %v3909, 0.0
  %v3926 = vmax.f32 %v3910, 0.0
  %v3927 = vmax.f32 %v3911, 0.0
  %v3928 = vmax.f32 %v3912, 0.0
  %v3929 = vmax.f32 %v3913, 0.0
  %v3930 = vmax.f32 %v3914, 0.0
  %v3931 = vmax.f32 %v3915, 0.0
  %v3932 = vmax.f32 %v3916, 0.0
  %v3933 = vmax.f32 %v3917, 0.0
  %v3934 = vmax.f32 %v3918, 0.0
  %v3935 = vmax.f32 %v3919, 0.0
  %v3936 = vmax.f32 %v3920, 0.0
  %v3937 = vmul.f32 %v3181, %v3833
  %v3938 = vmul.f32 %v3184, %v3833
  %v3939 = vmul.f32 %v3189, %v3833
  %v3940 = vmul.f32 %v3192, %v3833
  %v3941 = vmul.f32 %v3197, %v3833
  %v3942 = vmul.f32 %v3200, %v3833
  %v3943 = vmul.f32 %v3205, %v3833
  %v3944 = vmul.f32 %v3208, %v3833
  %v3945 = vmul.f32 %v3213, %v3833
  %v3946 = vmul.f32 %v3216, %v3833
  %v3947 = vmul.f32 %v3221, %v3833
  %v3948 = vmul.f32 %v3224, %v3833
  %v3949 = vmul.f32 %v3229, %v3833
  %v3950 = vmul.f32 %v3232, %v3833
  %v3951 = vmul.f32 %v3237, %v3833
  %v3952 = vmul.f32 %v3240, %v3833
  %v3953 = vadd.f32 %v3937, %v3855
  %v3954 = vadd.f32 %v3938, %v3855
  %v3955 = vadd.f32 %v3939, %v3855
  %v3956 = vadd.f32 %v3940, %v3855
  %v3957 = vadd.f32 %v3941, %v3855
  %v3958 = vadd.f32 %v3942, %v3855
  %v3959 = vadd.f32 %v3943, %v3855
  %v3960 = vadd.f32 %v3944, %v3855
  %v3961 = vadd.f32 %v3945, %v3855
  %v3962 = vadd.f32 %v3946, %v3855
  %v3963 = vadd.f32 %v3947, %v3855
  %v3964 = vadd.f32 %v3948, %v3855
  %v3965 = vadd.f32 %v3949, %v3855
  %v3966 = vadd.f32 %v3950, %v3855
  %v3967 = vadd.f32 %v3951, %v3855
  %v3968 = vadd.f32 %v3952, %v3855
  %v3969 = vmax.f32 %v3953, 0.0
  %v3970 = vmax.f32 %v3954, 0.0
  %v3971 = vmax.f32 %v3955, 0.0
  %v3972 = vmax.f32 %v3956, 0.0
  %v3973 = vmax.f32 %v3957, 0.0
  %v3974 = vmax.f32 %v3958, 0.0
  %v3975 = vmax.f32 %v3959, 0.0
  %v3976 = vmax.f32 %v3960, 0.0
  %v3977 = vmax.f32 %v3961, 0.0
  %v3978 = vmax.f32 %v3962, 0.0
  %v3979 = vmax.f32 %v3963, 0.0
  %v3980 = vmax.f32 %v3964, 0.0
  %v3981 = vmax.f32 %v3965, 0.0
  %v3982 = vmax.f32 %v3966, 0.0
  %v3983 = vmax.f32 %v3967, 0.0
  %v3984 = vmax.f32 %v3968, 0.0
  %v3985 = vmul.f32 %v3387, %v3833
  %v3986 = vmul.f32 %v3390, %v3833
  %v3987 = vmul.f32 %v3395, %v3833
  %v3988 = vmul.f32 %v3398, %v3833
  %v3989 = vmul.f32 %v3403, %v3833
  %v3990 = vmul.f32 %v3406, %v3833
  %v3991 = vmul.f32 %v3411, %v3833
  %v3992 = vmul.f32 %v3414, %v3833
  %v3993 = vmul.f32 %v3419, %v3833
  %v3994 = vmul.f32 %v3422, %v3833
  %v3995 = vmul.f32 %v3427, %v3833
  %v3996 = vmul.f32 %v3430, %v3833
  %v3997 = vmul.f32 %v3435, %v3833
  %v3998 = vmul.f32 %v3438, %v3833
  %v3999 = vmul.f32 %v3443, %v3833
  %v4000 = vmul.f32 %v3446, %v3833
  %v4001 = vadd.f32 %v3985, %v3855
  %v4002 = vadd.f32 %v3986, %v3855
  %v4003 = vadd.f32 %v3987, %v3855
  %v4004 = vadd.f32 %v3988, %v3855
  %v4005 = vadd.f32 %v3989, %v3855
  %v4006 = vadd.f32 %v3990, %v3855
  %v4007 = vadd.f32 %v3991, %v3855
  %v4008 = vadd.f32 %v3992, %v3855
  %v4009 = vadd.f32 %v3993, %v3855
  %v4010 = vadd.f32 %v3994, %v3855
  %v4011 = vadd.f32 %v3995, %v3855
  %v4012 = vadd.f32 %v3996, %v3855
  %v4013 = vadd.f32 %v3997, %v3855
  %v4014 = vadd.f32 %v3998, %v3855
  %v4015 = vadd.f32 %v3999, %v3855
  %v4016 = vadd.f32 %v4000, %v3855
  %v4017 = vmax.f32 %v4001, 0.0
  %v4018 = vmax.f32 %v4002, 0.0
  %v4019 = vmax.f32 %v4003, 0.0
  %v4020 = vmax.f32 %v4004, 0.0
  %v4021 = vmax.f32 %v4005, 0.0
  %v4022 = vmax.f32 %v4006, 0.0
  %v4023 = vmax.f32 %v4007, 0.0
  %v4024 = vmax.f32 %v4008, 0.0
  %v4025 = vmax.f32 %v4009, 0.0
  %v4026 = vmax.f32 %v4010, 0.0
  %v4027 = vmax.f32 %v4011, 0.0
  %v4028 = vmax.f32 %v4012, 0.0
  %v4029 = vmax.f32 %v4013, 0.0
  %v4030 = vmax.f32 %v4014, 0.0
  %v4031 = vmax.f32 %v4015, 0.0
  %v4032 = vmax.f32 %v4016, 0.0
  %4049 = vrot.lane.b32.xlu0 %v3921, 32
  %v4050 = vpop.permute.xlu0 %4049
  %4051 = vrot.lane.b32.xlu0 %v3922, 32
  %v4052 = vpop.permute.xlu0 %4051
  %4053 = vrot.lane.b32.xlu0 %v3923, 32
  %v4054 = vpop.permute.xlu0 %4053
  %4055 = vrot.lane.b32.xlu0 %v3924, 32
  %v4056 = vpop.permute.xlu0 %4055
  %4057 = vrot.lane.b32.xlu0 %v3925, 32
  %v4058 = vpop.permute.xlu0 %4057
  %4059 = vrot.lane.b32.xlu0 %v3926, 32
  %v4060 = vpop.permute.xlu0 %4059
  %4061 = vrot.lane.b32.xlu0 %v3927, 32
  %v4062 = vpop.permute.xlu0 %4061
  %4063 = vrot.lane.b32.xlu0 %v3928, 32
  %v4064 = vpop.permute.xlu0 %4063
  %4065 = vrot.lane.b32.xlu0 %v3929, 32
  %v4066 = vpop.permute.xlu0 %4065
  %4067 = vrot.lane.b32.xlu0 %v3930, 32
  %v4068 = vpop.permute.xlu0 %4067
  %4069 = vrot.lane.b32.xlu0 %v3931, 32
  %v4070 = vpop.permute.xlu0 %4069
  %4071 = vrot.lane.b32.xlu0 %v3932, 32
  %v4072 = vpop.permute.xlu0 %4071
  %4073 = vrot.lane.b32.xlu0 %v3933, 32
  %v4074 = vpop.permute.xlu0 %4073
  %4075 = vrot.lane.b32.xlu0 %v3934, 32
  %v4076 = vpop.permute.xlu0 %4075
  %4077 = vrot.lane.b32.xlu0 %v3935, 32
  %v4078 = vpop.permute.xlu0 %4077
  %4079 = vrot.lane.b32.xlu0 %v3936, 32
  %v4080 = vpop.permute.xlu0 %4079
  %4113 = vrot.lane.b32.xlu0 %v3969, 64
  %v4114 = vpop.permute.xlu0 %4113
  %4115 = vrot.lane.b32.xlu0 %v3970, 64
  %v4116 = vpop.permute.xlu0 %4115
  %4117 = vrot.lane.b32.xlu0 %v3971, 64
  %v4118 = vpop.permute.xlu0 %4117
  %4119 = vrot.lane.b32.xlu0 %v3972, 64
  %v4120 = vpop.permute.xlu0 %4119
  %4121 = vrot.lane.b32.xlu0 %v3973, 64
  %v4122 = vpop.permute.xlu0 %4121
  %4123 = vrot.lane.b32.xlu0 %v3974, 64
  %v4124 = vpop.permute.xlu0 %4123
  %4125 = vrot.lane.b32.xlu0 %v3975, 64
  %v4126 = vpop.permute.xlu0 %4125
  %4127 = vrot.lane.b32.xlu0 %v3976, 64
  %v4128 = vpop.permute.xlu0 %4127
  %4129 = vrot.lane.b32.xlu0 %v3977, 64
  %v4130 = vpop.permute.xlu0 %4129
  %4131 = vrot.lane.b32.xlu0 %v3978, 64
  %v4132 = vpop.permute.xlu0 %4131
  %4133 = vrot.lane.b32.xlu0 %v3979, 64
  %v4134 = vpop.permute.xlu0 %4133
  %4135 = vrot.lane.b32.xlu0 %v3980, 64
  %v4136 = vpop.permute.xlu0 %4135
  %4137 = vrot.lane.b32.xlu0 %v3981, 64
  %v4138 = vpop.permute.xlu0 %4137
  %4139 = vrot.lane.b32.xlu0 %v3982, 64
  %v4140 = vpop.permute.xlu0 %4139
  %4141 = vrot.lane.b32.xlu0 %v3983, 64
  %v4142 = vpop.permute.xlu0 %4141
  %4143 = vrot.lane.b32.xlu0 %v3984, 64
  %v4144 = vpop.permute.xlu0 %4143
  %4177 = vrot.lane.b32.xlu0 %v4017, 96
  %v4178 = vpop.permute.xlu0 %4177
  %4179 = vrot.lane.b32.xlu0 %v4018, 96
  %v4180 = vpop.permute.xlu0 %4179
  %4181 = vrot.lane.b32.xlu0 %v4019, 96
  %v4182 = vpop.permute.xlu0 %4181
  %4183 = vrot.lane.b32.xlu0 %v4020, 96
  %v4184 = vpop.permute.xlu0 %4183
  %4185 = vrot.lane.b32.xlu0 %v4021, 96
  %v4186 = vpop.permute.xlu0 %4185
  %4187 = vrot.lane.b32.xlu0 %v4022, 96
  %v4188 = vpop.permute.xlu0 %4187
  %4189 = vrot.lane.b32.xlu0 %v4023, 96
  %v4190 = vpop.permute.xlu0 %4189
  %4191 = vrot.lane.b32.xlu0 %v4024, 96
  %v4192 = vpop.permute.xlu0 %4191
  %4193 = vrot.lane.b32.xlu0 %v4025, 96
  %v4194 = vpop.permute.xlu0 %4193
  %4195 = vrot.lane.b32.xlu0 %v4026, 96
  %v4196 = vpop.permute.xlu0 %4195
  %4197 = vrot.lane.b32.xlu0 %v4027, 96
  %v4198 = vpop.permute.xlu0 %4197
  %4199 = vrot.lane.b32.xlu0 %v4028, 96
  %v4200 = vpop.permute.xlu0 %4199
  %4201 = vrot.lane.b32.xlu0 %v4029, 96
  %v4202 = vpop.permute.xlu0 %4201
  %4203 = vrot.lane.b32.xlu0 %v4030, 96
  %v4204 = vpop.permute.xlu0 %4203
  %4205 = vrot.lane.b32.xlu0 %v4031, 96
  %v4206 = vpop.permute.xlu0 %4205
  %4207 = vrot.lane.b32.xlu0 %v4032, 96
  %v4208 = vpop.permute.xlu0 %4207
  %v4225 = vsel %vm564, %v3873, %v4050
  %v4226 = vsel %vm564, %v3874, %v4052
  %v4227 = vsel %vm564, %v3875, %v4054
  %v4228 = vsel %vm564, %v3876, %v4056
  %v4229 = vsel %vm564, %v3877, %v4058
  %v4230 = vsel %vm564, %v3878, %v4060
  %v4231 = vsel %vm564, %v3879, %v4062
  %v4232 = vsel %vm564, %v3880, %v4064
  %v4233 = vsel %vm564, %v3881, %v4066
  %v4234 = vsel %vm564, %v3882, %v4068
  %v4235 = vsel %vm564, %v3883, %v4070
  %v4236 = vsel %vm564, %v3884, %v4072
  %v4237 = vsel %vm564, %v3885, %v4074
  %v4238 = vsel %vm564, %v3886, %v4076
  %v4239 = vsel %vm564, %v3887, %v4078
  %v4240 = vsel %vm564, %v3888, %v4080
  %v4241 = vsel %vm581, %v4225, %v4114
  %v4242 = vsel %vm581, %v4226, %v4116
  %v4243 = vsel %vm581, %v4227, %v4118
  %v4244 = vsel %vm581, %v4228, %v4120
  %v4245 = vsel %vm581, %v4229, %v4122
  %v4246 = vsel %vm581, %v4230, %v4124
  %v4247 = vsel %vm581, %v4231, %v4126
  %v4248 = vsel %vm581, %v4232, %v4128
  %v4249 = vsel %vm581, %v4233, %v4130
  %v4250 = vsel %vm581, %v4234, %v4132
  %v4251 = vsel %vm581, %v4235, %v4134
  %v4252 = vsel %vm581, %v4236, %v4136
  %v4253 = vsel %vm581, %v4237, %v4138
  %v4254 = vsel %vm581, %v4238, %v4140
  %v4255 = vsel %vm581, %v4239, %v4142
  %v4256 = vsel %vm581, %v4240, %v4144
  %v4257 = vsel %vm598, %v4241, %v4178
  %v4258 = vsel %vm598, %v4242, %v4180
  %v4259 = vsel %vm598, %v4243, %v4182
  %v4260 = vsel %vm598, %v4244, %v4184
  %v4261 = vsel %vm598, %v4245, %v4186
  %v4262 = vsel %vm598, %v4246, %v4188
  %v4263 = vsel %vm598, %v4247, %v4190
  %v4264 = vsel %vm598, %v4248, %v4192
  %v4265 = vsel %vm598, %v4249, %v4194
  %v4266 = vsel %vm598, %v4250, %v4196
  %v4267 = vsel %vm598, %v4251, %v4198
  %v4268 = vsel %vm598, %v4252, %v4200
  %v4269 = vsel %vm598, %v4253, %v4202
  %v4270 = vsel %vm598, %v4254, %v4204
  %v4271 = vsel %vm598, %v4255, %v4206
  %v4272 = vsel %vm598, %v4256, %v4208
  %4273 = vst [vmem:[%s12] sm:$0xff] %v4257
  %4274 = vst [vmem:[%s12 + $0x8] sm:$0xff] %v4258
  %4275 = vst [vmem:[%s12 + $0x10] sm:$0xff] %v4259
  %4276 = vst [vmem:[%s12 + $0x18] sm:$0xff] %v4260
  %4277 = vst [vmem:[%s12 + $0x20] sm:$0xff] %v4261
  %4278 = vst [vmem:[%s12 + $0x28] sm:$0xff] %v4262
  %4279 = vst [vmem:[%s12 + $0x30] sm:$0xff] %v4263
  %4280 = vst [vmem:[%s12 + $0x38] sm:$0xff] %v4264
  %4281 = vst [vmem:[%s12 + $0x40] sm:$0xff] %v4265
  %4282 = vst [vmem:[%s12 + $0x48] sm:$0xff] %v4266
  %4283 = vst [vmem:[%s12 + $0x50] sm:$0xff] %v4267
  %4284 = vst [vmem:[%s12 + $0x58] sm:$0xff] %v4268
  %4285 = vst [vmem:[%s12 + $0x60] sm:$0xff] %v4269
  %4286 = vst [vmem:[%s12 + $0x68] sm:$0xff] %v4270
  %4287 = vst [vmem:[%s12 + $0x70] sm:$0xff] %v4271
  %4288 = vst [vmem:[%s12 + $0x78] sm:$0xff] %v4272
  // Predicated region
  $region50: #{decoder_forward.2} parent=0 // pred_check
    _
  $region51: #{decoder_forward.2} parent=0 // pred_check_branch
    %4290 = sbr.rel (0) target = $region53
  $region52: #{decoder_forward.2} parent=0 // pred_region
    _
  $region53: #{decoder_forward.2} parent=0 // pred_fallthru
    _
  // Predicated region
  $region54: #{decoder_forward.2} parent=0 // pred_check
    _
  $region55: #{decoder_forward.2} parent=0 // pred_check_branch
    %4292 = sbr.rel (0) target = $region57
  $region56: #{decoder_forward.2} parent=0 // pred_region
    _
  $region57: #{decoder_forward.2} parent=0 // pred_fallthru
    _

// kernel: decoder_forward.3
$region0: #{decoder_forward.3}
  #allocation0 [shape = 'u32[]', space=smem, size = 0x4, offset = 0x4, fixed_abs, tag = 'smem constant byte address 0x4 - core index']
  #allocation1 [shape = 'u32[144,128]{1,0:T(1,128)}', space=vmem, size = 0x12000, scoped, tag = 'internal scratch']
  %s0 = inlined_call_operand.vmem [shape: f32[2,18,18,32], index: 0, kind: input, shape index: {}]
  %s1 = inlined_call_operand.vmem [shape: bf16[4,128,4], index: 1, kind: input, shape index: {}]
  %s2 = inlined_call_operand.vmem [shape: f32[1,4], index: 2, kind: input, shape index: {}]
  %s3 = inlined_call_operand.vmem [shape: f32[1,4], index: 3, kind: input, shape index: {}]
  %s4 = inlined_call_operand.vmem [shape: f32[2,16,16,16], index: 4, kind: output, shape index: {}]
  %s5 = sld [smem:[#allocation0]]
  $region26: #{decoder_forward.3} parent=0
    _
  %s7 = ssub.s32 1, %s5
  %s8 = scalar_select 0, %s7, %s5
  // Predicated region
  $region2: #{decoder_forward.3} parent=0 // pred_check
    _
  $region3: #{decoder_forward.3} parent=0 // pred_check_branch
    %10 = sbr.rel (0) target = $region5
  $region4: #{decoder_forward.3} parent=0 // pred_region
    _
  $region5: #{decoder_forward.3} parent=0 // pred_fallthru
    _
  // Predicated region
  $region6: #{decoder_forward.3} parent=0 // pred_check
    _
  $region7: #{decoder_forward.3} parent=0 // pred_check_branch
    %12 = sbr.rel (0) target = $region9
  $region8: #{decoder_forward.3} parent=0 // pred_region
    _
  $region9: #{decoder_forward.3} parent=0 // pred_fallthru
    _
  // Predicated region
  $region10: #{decoder_forward.3} parent=0 // pred_check
    _
  $region11: #{decoder_forward.3} parent=0 // pred_check_branch
    %14 = sbr.rel (0) target = $region13
  $region12: #{decoder_forward.3} parent=0 // pred_region
    _
  $region13: #{decoder_forward.3} parent=0 // pred_fallthru
    _
  // Predicated region
  $region14: #{decoder_forward.3} parent=0 // pred_check
    _
  $region15: #{decoder_forward.3} parent=0 // pred_check_branch
    %16 = sbr.rel (0) target = $region17
  $region16: #{decoder_forward.3} parent=0 // pred_region
    _
  $region17: #{decoder_forward.3} parent=0 // pred_fallthru
    _
  %v18 = vld [vmem:[%s0] sm:$0xff]
  %v19 = vld [vmem:[%s0 + $0x8] sm:$0xff]
  %v20 = vld [vmem:[%s0 + $0x10] sm:$0x3]
  %v21 = vld [vmem:[%s0 + $0x18] sm:$0xff]
  %v22 = vld [vmem:[%s0 + $0x20] sm:$0xff]
  %v23 = vld [vmem:[%s0 + $0x28] sm:$0x3]
  %v24 = vld [vmem:[%s0 + $0x30] sm:$0xff]
  %v25 = vld [vmem:[%s0 + $0x38] sm:$0xff]
  %v26 = vld [vmem:[%s0 + $0x40] sm:$0x3]
  %v27 = vld [vmem:[%s0 + $0x48] sm:$0xff]
  %v28 = vld [vmem:[%s0 + $0x50] sm:$0xff]
  %v29 = vld [vmem:[%s0 + $0x58] sm:$0x3]
  %v30 = vld [vmem:[%s0 + $0x60] sm:$0xff]
  %v31 = vld [vmem:[%s0 + $0x68] sm:$0xff]
  %v32 = vld [vmem:[%s0 + $0x70] sm:$0x3]
  %v33 = vld [vmem:[%s0 + $0x78] sm:$0xff]
  %v34 = vld [vmem:[%s0 + $0x80] sm:$0xff]
  %v35 = vld [vmem:[%s0 + $0x88] sm:$0x3]
  %v36 = vld [vmem:[%s0 + $0x90] sm:$0xff]
  %v37 = vld [vmem:[%s0 + $0x98] sm:$0xff]
  %v38 = vld [vmem:[%s0 + $0xa0] sm:$0x3]
  %v39 = vld [vmem:[%s0 + $0xa8] sm:$0xff]
  %v40 = vld [vmem:[%s0 + $0xb0] sm:$0xff]
  %v41 = vld [vmem:[%s0 + $0xb8] sm:$0x3]
  %v42 = vld [vmem:[%s0 + $0xc0] sm:$0xff]
  %v43 = vld [vmem:[%s0 + $0xc8] sm:$0xff]
  %v44 = vld [vmem:[%s0 + $0xd0] sm:$0x3]
  %v45 = vld [vmem:[%s0 + $0xd8] sm:$0xff]
  %v46 = vld [vmem:[%s0 + $0xe0] sm:$0xff]
  %v47 = vld [vmem:[%s0 + $0xe8] sm:$0x3]
  %v48 = vld [vmem:[%s0 + $0xf0] sm:$0xff]
  %v49 = vld [vmem:[%s0 + $0xf8] sm:$0xff]
  %v50 = vld [vmem:[%s0 + $0x100] sm:$0x3]
  %v51 = vld [vmem:[%s0 + $0x108] sm:$0xff]
  %v52 = vld [vmem:[%s0 + $0x110] sm:$0xff]
  %v53 = vld [vmem:[%s0 + $0x118] sm:$0x3]
  %v54 = vld [vmem:[%s0 + $0x120] sm:$0xff]
  %v55 = vld [vmem:[%s0 + $0x128] sm:$0xff]
  %v56 = vld [vmem:[%s0 + $0x130] sm:$0x3]
  %v57 = vld [vmem:[%s0 + $0x138] sm:$0xff]
  %v58 = vld [vmem:[%s0 + $0x140] sm:$0xff]
  %v59 = vld [vmem:[%s0 + $0x148] sm:$0x3]
  %v60 = vld [vmem:[%s0 + $0x150] sm:$0xff]
  %v61 = vld [vmem:[%s0 + $0x158] sm:$0xff]
  %v62 = vld [vmem:[%s0 + $0x160] sm:$0x3]
  %v63 = vld [vmem:[%s0 + $0x168] sm:$0xff]
  %v64 = vld [vmem:[%s0 + $0x170] sm:$0xff]
  %v65 = vld [vmem:[%s0 + $0x178] sm:$0x3]
  %v66 = vld [vmem:[%s0 + $0x180] sm:$0xff]
  %v67 = vld [vmem:[%s0 + $0x188] sm:$0xff]
  %v68 = vld [vmem:[%s0 + $0x190] sm:$0x3]
  %v69 = vld [vmem:[%s0 + $0x198] sm:$0xff]
  %v70 = vld [vmem:[%s0 + $0x1a0] sm:$0xff]
  %v71 = vld [vmem:[%s0 + $0x1a8] sm:$0x3]
  %v72 = vld [vmem:[%s0 + $0x1b0] sm:$0xff]
  %v73 = vld [vmem:[%s0 + $0x1b8] sm:$0xff]
  %v74 = vld [vmem:[%s0 + $0x1c0] sm:$0x3]
  %v75 = vld [vmem:[%s0 + $0x1c8] sm:$0xff]
  %v76 = vld [vmem:[%s0 + $0x1d0] sm:$0xff]
  %v77 = vld [vmem:[%s0 + $0x1d8] sm:$0x3]
  %v78 = vld [vmem:[%s0 + $0x1e0] sm:$0xff]
  %v79 = vld [vmem:[%s0 + $0x1e8] sm:$0xff]
  %v80 = vld [vmem:[%s0 + $0x1f0] sm:$0x3]
  %v81 = vld [vmem:[%s0 + $0x1f8] sm:$0xff]
  %v82 = vld [vmem:[%s0 + $0x200] sm:$0xff]
  %v83 = vld [vmem:[%s0 + $0x208] sm:$0x3]
  %v84 = vld [vmem:[%s0 + $0x210] sm:$0xff]
  %v85 = vld [vmem:[%s0 + $0x218] sm:$0xff]
  %v86 = vld [vmem:[%s0 + $0x220] sm:$0x3]
  %v87 = vld [vmem:[%s0 + $0x228] sm:$0xff]
  %v88 = vld [vmem:[%s0 + $0x230] sm:$0xff]
  %v89 = vld [vmem:[%s0 + $0x238] sm:$0x3]
  %v90 = vld [vmem:[%s0 + $0x240] sm:$0xff]
  %v91 = vld [vmem:[%s0 + $0x248] sm:$0xff]
  %v92 = vld [vmem:[%s0 + $0x250] sm:$0x3]
  %v93 = vld [vmem:[%s0 + $0x258] sm:$0xff]
  %v94 = vld [vmem:[%s0 + $0x260] sm:$0xff]
  %v95 = vld [vmem:[%s0 + $0x268] sm:$0x3]
  %v96 = vld [vmem:[%s0 + $0x270] sm:$0xff]
  %v97 = vld [vmem:[%s0 + $0x278] sm:$0xff]
  %v98 = vld [vmem:[%s0 + $0x280] sm:$0x3]
  %v99 = vld [vmem:[%s0 + $0x288] sm:$0xff]
  %v100 = vld [vmem:[%s0 + $0x290] sm:$0xff]
  %v101 = vld [vmem:[%s0 + $0x298] sm:$0x3]
  %v102 = vld [vmem:[%s0 + $0x2a0] sm:$0xff]
  %v103 = vld [vmem:[%s0 + $0x2a8] sm:$0xff]
  %v104 = vld [vmem:[%s0 + $0x2b0] sm:$0x3]
  %v105 = vld [vmem:[%s0 + $0x2b8] sm:$0xff]
  %v106 = vld [vmem:[%s0 + $0x2c0] sm:$0xff]
  %v107 = vld [vmem:[%s0 + $0x2c8] sm:$0x3]
  %v108 = vld [vmem:[%s0 + $0x2d0] sm:$0xff]
  %v109 = vld [vmem:[%s0 + $0x2d8] sm:$0xff]
  %v110 = vld [vmem:[%s0 + $0x2e0] sm:$0x3]
  %v111 = vld [vmem:[%s0 + $0x2e8] sm:$0xff]
  %v112 = vld [vmem:[%s0 + $0x2f0] sm:$0xff]
  %v113 = vld [vmem:[%s0 + $0x2f8] sm:$0x3]
  %v114 = vld [vmem:[%s0 + $0x300] sm:$0xff]
  %v115 = vld [vmem:[%s0 + $0x308] sm:$0xff]
  %v116 = vld [vmem:[%s0 + $0x310] sm:$0x3]
  %v117 = vld [vmem:[%s0 + $0x318] sm:$0xff]
  %v118 = vld [vmem:[%s0 + $0x320] sm:$0xff]
  %v119 = vld [vmem:[%s0 + $0x328] sm:$0x3]
  %v120 = vld [vmem:[%s0 + $0x330] sm:$0xff]
  %v121 = vld [vmem:[%s0 + $0x338] sm:$0xff]
  %v122 = vld [vmem:[%s0 + $0x340] sm:$0x3]
  %v123 = vld [vmem:[%s0 + $0x348] sm:$0xff]
  %v124 = vld [vmem:[%s0 + $0x350] sm:$0xff]
  %v125 = vld [vmem:[%s0 + $0x358] sm:$0x3]
  %vm222 = vcmask 1046528
  %v223 = vrot.slane %v18, 1
  %v224 = vrot.slane %v19, 1
  %v225 = vsel %vm222, %v223, %v224
  %v226 = vrot.slane %v20, 1
  %v227 = vsel %vm222, %v224, %v226
  %v228 = vrot.slane %v21, 1
  %v229 = vrot.slane %v22, 1
  %v230 = vsel %vm222, %v228, %v229
  %v231 = vrot.slane %v23, 1
  %v232 = vsel %vm222, %v229, %v231
  %v233 = vrot.slane %v24, 1
  %v234 = vrot.slane %v25, 1
  %v235 = vsel %vm222, %v233, %v234
  %v236 = vrot.slane %v26, 1
  %v237 = vsel %vm222, %v234, %v236
  %v238 = vrot.slane %v27, 1
  %v239 = vrot.slane %v28, 1
  %v240 = vsel %vm222, %v238, %v239
  %v241 = vrot.slane %v29, 1
  %v242 = vsel %vm222, %v239, %v241
  %v243 = vrot.slane %v30, 1
  %v244 = vrot.slane %v31, 1
  %v245 = vsel %vm222, %v243, %v244
  %v246 = vrot.slane %v32, 1
  %v247 = vsel %vm222, %v244, %v246
  %v248 = vrot.slane %v33, 1
  %v249 = vrot.slane %v34, 1
  %v250 = vsel %vm222, %v248, %v249
  %v251 = vrot.slane %v35, 1
  %v252 = vsel %vm222, %v249, %v251
  %v253 = vrot.slane %v36, 1
  %v254 = vrot.slane %v37, 1
  %v255 = vsel %vm222, %v253, %v254
  %v256 = vrot.slane %v38, 1
  %v257 = vsel %vm222, %v254, %v256
  %v258 = vrot.slane %v39, 1
  %v259 = vrot.slane %v40, 1
  %v260 = vsel %vm222, %v258, %v259
  %v261 = vrot.slane %v41, 1
  %v262 = vsel %vm222, %v259, %v261
  %v263 = vrot.slane %v42, 1
  %v264 = vrot.slane %v43, 1
  %v265 = vsel %vm222, %v263, %v264
  %v266 = vrot.slane %v44, 1
  %v267 = vsel %vm222, %v264, %v266
  %v268 = vrot.slane %v45, 1
  %v269 = vrot.slane %v46, 1
  %v270 = vsel %vm222, %v268, %v269
  %v271 = vrot.slane %v47, 1
  %v272 = vsel %vm222, %v269, %v271
  %v273 = vrot.slane %v48, 1
  %v274 = vrot.slane %v49, 1
  %v275 = vsel %vm222, %v273, %v274
  %v276 = vrot.slane %v50, 1
  %v277 = vsel %vm222, %v274, %v276
  %v278 = vrot.slane %v51, 1
  %v279 = vrot.slane %v52, 1
  %v280 = vsel %vm222, %v278, %v279
  %v281 = vrot.slane %v53, 1
  %v282 = vsel %vm222, %v279, %v281
  %v283 = vrot.slane %v54, 1
  %v284 = vrot.slane %v55, 1
  %v285 = vsel %vm222, %v283, %v284
  %v286 = vrot.slane %v56, 1
  %v287 = vsel %vm222, %v284, %v286
  %v288 = vrot.slane %v57, 1
  %v289 = vrot.slane %v58, 1
  %v290 = vsel %vm222, %v288, %v289
  %v291 = vrot.slane %v59, 1
  %v292 = vsel %vm222, %v289, %v291
  %v293 = vrot.slane %v60, 1
  %v294 = vrot.slane %v61, 1
  %v295 = vsel %vm222, %v293, %v294
  %v296 = vrot.slane %v62, 1
  %v297 = vsel %vm222, %v294, %v296
  %v298 = vrot.slane %v63, 1
  %v299 = vrot.slane %v64, 1
  %v300 = vsel %vm222, %v298, %v299
  %v301 = vrot.slane %v65, 1
  %v302 = vsel %vm222, %v299, %v301
  %v303 = vrot.slane %v72, 1
  %v304 = vrot.slane %v73, 1
  %v305 = vsel %vm222, %v303, %v304
  %v306 = vrot.slane %v74, 1
  %v307 = vsel %vm222, %v304, %v306
  %v308 = vrot.slane %v75, 1
  %v309 = vrot.slane %v76, 1
  %v310 = vsel %vm222, %v308, %v309
  %v311 = vrot.slane %v77, 1
  %v312 = vsel %vm222, %v309, %v311
  %v313 = vrot.slane %v78, 1
  %v314 = vrot.slane %v79, 1
  %v315 = vsel %vm222, %v313, %v314
  %v316 = vrot.slane %v80, 1
  %v317 = vsel %vm222, %v314, %v316
  %v318 = vrot.slane %v81, 1
  %v319 = vrot.slane %v82, 1
  %v320 = vsel %vm222, %v318, %v319
  %v321 = vrot.slane %v83, 1
  %v322 = vsel %vm222, %v319, %v321
  %v323 = vrot.slane %v84, 1
  %v324 = vrot.slane %v85, 1
  %v325 = vsel %vm222, %v323, %v324
  %v326 = vrot.slane %v86, 1
  %v327 = vsel %vm222, %v324, %v326
  %v328 = vrot.slane %v87, 1
  %v329 = vrot.slane %v88, 1
  %v330 = vsel %vm222, %v328, %v329
  %v331 = vrot.slane %v89, 1
  %v332 = vsel %vm222, %v329, %v331
  %v333 = vrot.slane %v90, 1
  %v334 = vrot.slane %v91, 1
  %v335 = vsel %vm222, %v333, %v334
  %v336 = vrot.slane %v92, 1
  %v337 = vsel %vm222, %v334, %v336
  %v338 = vrot.slane %v93, 1
  %v339 = vrot.slane %v94, 1
  %v340 = vsel %vm222, %v338, %v339
  %v341 = vrot.slane %v95, 1
  %v342 = vsel %vm222, %v339, %v341
  %v343 = vrot.slane %v96, 1
  %v344 = vrot.slane %v97, 1
  %v345 = vsel %vm222, %v343, %v344
  %v346 = vrot.slane %v98, 1
  %v347 = vsel %vm222, %v344, %v346
  %v348 = vrot.slane %v99, 1
  %v349 = vrot.slane %v100, 1
  %v350 = vsel %vm222, %v348, %v349
  %v351 = vrot.slane %v101, 1
  %v352 = vsel %vm222, %v349, %v351
  %v353 = vrot.slane %v102, 1
  %v354 = vrot.slane %v103, 1
  %v355 = vsel %vm222, %v353, %v354
  %v356 = vrot.slane %v104, 1
  %v357 = vsel %vm222, %v354, %v356
  %v358 = vrot.slane %v105, 1
  %v359 = vrot.slane %v106, 1
  %v360 = vsel %vm222, %v358, %v359
  %v361 = vrot.slane %v107, 1
  %v362 = vsel %vm222, %v359, %v361
  %v363 = vrot.slane %v108, 1
  %v364 = vrot.slane %v109, 1
  %v365 = vsel %vm222, %v363, %v364
  %v366 = vrot.slane %v110, 1
  %v367 = vsel %vm222, %v364, %v366
  %v368 = vrot.slane %v111, 1
  %v369 = vrot.slane %v112, 1
  %v370 = vsel %vm222, %v368, %v369
  %v371 = vrot.slane %v113, 1
  %v372 = vsel %vm222, %v369, %v371
  %v373 = vrot.slane %v114, 1
  %v374 = vrot.slane %v115, 1
  %v375 = vsel %vm222, %v373, %v374
  %v376 = vrot.slane %v116, 1
  %v377 = vsel %vm222, %v374, %v376
  %v378 = vrot.slane %v117, 1
  %v379 = vrot.slane %v118, 1
  %v380 = vsel %vm222, %v378, %v379
  %v381 = vrot.slane %v119, 1
  %v382 = vsel %vm222, %v379, %v381
  %383 = vrot.lane.b32.xlu0 %v225, 32
  %v384 = vpop.permute.xlu0 %383
  %385 = vrot.lane.b32.xlu0 %v227, 32
  %v386 = vpop.permute.xlu0 %385
  %387 = vrot.lane.b32.xlu0 %v230, 32
  %v388 = vpop.permute.xlu0 %387
  %389 = vrot.lane.b32.xlu0 %v232, 32
  %v390 = vpop.permute.xlu0 %389
  %391 = vrot.lane.b32.xlu0 %v235, 32
  %v392 = vpop.permute.xlu0 %391
  %393 = vrot.lane.b32.xlu0 %v237, 32
  %v394 = vpop.permute.xlu0 %393
  %395 = vrot.lane.b32.xlu0 %v240, 32
  %v396 = vpop.permute.xlu0 %395
  %397 = vrot.lane.b32.xlu0 %v242, 32
  %v398 = vpop.permute.xlu0 %397
  %399 = vrot.lane.b32.xlu0 %v245, 32
  %v400 = vpop.permute.xlu0 %399
  %401 = vrot.lane.b32.xlu0 %v247, 32
  %v402 = vpop.permute.xlu0 %401
  %403 = vrot.lane.b32.xlu0 %v250, 32
  %v404 = vpop.permute.xlu0 %403
  %405 = vrot.lane.b32.xlu0 %v252, 32
  %v406 = vpop.permute.xlu0 %405
  %407 = vrot.lane.b32.xlu0 %v255, 32
  %v408 = vpop.permute.xlu0 %407
  %409 = vrot.lane.b32.xlu0 %v257, 32
  %v410 = vpop.permute.xlu0 %409
  %411 = vrot.lane.b32.xlu0 %v260, 32
  %v412 = vpop.permute.xlu0 %411
  %413 = vrot.lane.b32.xlu0 %v262, 32
  %v414 = vpop.permute.xlu0 %413
  %415 = vrot.lane.b32.xlu0 %v265, 32
  %v416 = vpop.permute.xlu0 %415
  %417 = vrot.lane.b32.xlu0 %v267, 32
  %v418 = vpop.permute.xlu0 %417
  %419 = vrot.lane.b32.xlu0 %v270, 32
  %v420 = vpop.permute.xlu0 %419
  %421 = vrot.lane.b32.xlu0 %v272, 32
  %v422 = vpop.permute.xlu0 %421
  %423 = vrot.lane.b32.xlu0 %v275, 32
  %v424 = vpop.permute.xlu0 %423
  %425 = vrot.lane.b32.xlu0 %v277, 32
  %v426 = vpop.permute.xlu0 %425
  %427 = vrot.lane.b32.xlu0 %v280, 32
  %v428 = vpop.permute.xlu0 %427
  %429 = vrot.lane.b32.xlu0 %v282, 32
  %v430 = vpop.permute.xlu0 %429
  %431 = vrot.lane.b32.xlu0 %v285, 32
  %v432 = vpop.permute.xlu0 %431
  %433 = vrot.lane.b32.xlu0 %v287, 32
  %v434 = vpop.permute.xlu0 %433
  %435 = vrot.lane.b32.xlu0 %v290, 32
  %v436 = vpop.permute.xlu0 %435
  %437 = vrot.lane.b32.xlu0 %v292, 32
  %v438 = vpop.permute.xlu0 %437
  %439 = vrot.lane.b32.xlu0 %v295, 32
  %v440 = vpop.permute.xlu0 %439
  %441 = vrot.lane.b32.xlu0 %v297, 32
  %v442 = vpop.permute.xlu0 %441
  %443 = vrot.lane.b32.xlu0 %v300, 32
  %v444 = vpop.permute.xlu0 %443
  %445 = vrot.lane.b32.xlu0 %v302, 32
  %v446 = vpop.permute.xlu0 %445
  %447 = vrot.lane.b32.xlu0 %v305, 32
  %v448 = vpop.permute.xlu0 %447
  %449 = vrot.lane.b32.xlu0 %v307, 32
  %v450 = vpop.permute.xlu0 %449
  %451 = vrot.lane.b32.xlu0 %v310, 32
  %v452 = vpop.permute.xlu0 %451
  %453 = vrot.lane.b32.xlu0 %v312, 32
  %v454 = vpop.permute.xlu0 %453
  %455 = vrot.lane.b32.xlu0 %v315, 32
  %v456 = vpop.permute.xlu0 %455
  %457 = vrot.lane.b32.xlu0 %v317, 32
  %v458 = vpop.permute.xlu0 %457
  %459 = vrot.lane.b32.xlu0 %v320, 32
  %v460 = vpop.permute.xlu0 %459
  %461 = vrot.lane.b32.xlu0 %v322, 32
  %v462 = vpop.permute.xlu0 %461
  %463 = vrot.lane.b32.xlu0 %v325, 32
  %v464 = vpop.permute.xlu0 %463
  %465 = vrot.lane.b32.xlu0 %v327, 32
  %v466 = vpop.permute.xlu0 %465
  %467 = vrot.lane.b32.xlu0 %v330, 32
  %v468 = vpop.permute.xlu0 %467
  %469 = vrot.lane.b32.xlu0 %v332, 32
  %v470 = vpop.permute.xlu0 %469
  %471 = vrot.lane.b32.xlu0 %v335, 32
  %v472 = vpop.permute.xlu0 %471
  %473 = vrot.lane.b32.xlu0 %v337, 32
  %v474 = vpop.permute.xlu0 %473
  %475 = vrot.lane.b32.xlu0 %v340, 32
  %v476 = vpop.permute.xlu0 %475
  %477 = vrot.lane.b32.xlu0 %v342, 32
  %v478 = vpop.permute.xlu0 %477
  %479 = vrot.lane.b32.xlu0 %v345, 32
  %v480 = vpop.permute.xlu0 %479
  %481 = vrot.lane.b32.xlu0 %v347, 32
  %v482 = vpop.permute.xlu0 %481
  %483 = vrot.lane.b32.xlu0 %v350, 32
  %v484 = vpop.permute.xlu0 %483
  %485 = vrot.lane.b32.xlu0 %v352, 32
  %v486 = vpop.permute.xlu0 %485
  %487 = vrot.lane.b32.xlu0 %v355, 32
  %v488 = vpop.permute.xlu0 %487
  %489 = vrot.lane.b32.xlu0 %v357, 32
  %v490 = vpop.permute.xlu0 %489
  %491 = vrot.lane.b32.xlu0 %v360, 32
  %v492 = vpop.permute.xlu0 %491
  %493 = vrot.lane.b32.xlu0 %v362, 32
  %v494 = vpop.permute.xlu0 %493
  %495 = vrot.lane.b32.xlu0 %v365, 32
  %v496 = vpop.permute.xlu0 %495
  %497 = vrot.lane.b32.xlu0 %v367, 32
  %v498 = vpop.permute.xlu0 %497
  %499 = vrot.lane.b32.xlu0 %v370, 32
  %v500 = vpop.permute.xlu0 %499
  %501 = vrot.lane.b32.xlu0 %v372, 32
  %v502 = vpop.permute.xlu0 %501
  %503 = vrot.lane.b32.xlu0 %v375, 32
  %v504 = vpop.permute.xlu0 %503
  %505 = vrot.lane.b32.xlu0 %v377, 32
  %v506 = vpop.permute.xlu0 %505
  %507 = vrot.lane.b32.xlu0 %v380, 32
  %v508 = vpop.permute.xlu0 %507
  %509 = vrot.lane.b32.xlu0 %v382, 32
  %v510 = vpop.permute.xlu0 %509
  %579 = vrot.lane.b32.xlu0 %v21, 64
  %v580 = vpop.permute.xlu0 %579
  %581 = vrot.lane.b32.xlu0 %v22, 64
  %v582 = vpop.permute.xlu0 %581
  %583 = vrot.lane.b32.xlu0 %v24, 64
  %v584 = vpop.permute.xlu0 %583
  %585 = vrot.lane.b32.xlu0 %v25, 64
  %v586 = vpop.permute.xlu0 %585
  %587 = vrot.lane.b32.xlu0 %v27, 64
  %v588 = vpop.permute.xlu0 %587
  %589 = vrot.lane.b32.xlu0 %v28, 64
  %v590 = vpop.permute.xlu0 %589
  %591 = vrot.lane.b32.xlu0 %v30, 64
  %v592 = vpop.permute.xlu0 %591
  %593 = vrot.lane.b32.xlu0 %v31, 64
  %v594 = vpop.permute.xlu0 %593
  %595 = vrot.lane.b32.xlu0 %v33, 64
  %v596 = vpop.permute.xlu0 %595
  %597 = vrot.lane.b32.xlu0 %v34, 64
  %v598 = vpop.permute.xlu0 %597
  %599 = vrot.lane.b32.xlu0 %v36, 64
  %v600 = vpop.permute.xlu0 %599
  %601 = vrot.lane.b32.xlu0 %v37, 64
  %v602 = vpop.permute.xlu0 %601
  %603 = vrot.lane.b32.xlu0 %v39, 64
  %v604 = vpop.permute.xlu0 %603
  %605 = vrot.lane.b32.xlu0 %v40, 64
  %v606 = vpop.permute.xlu0 %605
  %607 = vrot.lane.b32.xlu0 %v42, 64
  %v608 = vpop.permute.xlu0 %607
  %609 = vrot.lane.b32.xlu0 %v43, 64
  %v610 = vpop.permute.xlu0 %609
  %611 = vrot.lane.b32.xlu0 %v45, 64
  %v612 = vpop.permute.xlu0 %611
  %613 = vrot.lane.b32.xlu0 %v46, 64
  %v614 = vpop.permute.xlu0 %613
  %615 = vrot.lane.b32.xlu0 %v48, 64
  %v616 = vpop.permute.xlu0 %615
  %617 = vrot.lane.b32.xlu0 %v49, 64
  %v618 = vpop.permute.xlu0 %617
  %619 = vrot.lane.b32.xlu0 %v51, 64
  %v620 = vpop.permute.xlu0 %619
  %621 = vrot.lane.b32.xlu0 %v52, 64
  %v622 = vpop.permute.xlu0 %621
  %623 = vrot.lane.b32.xlu0 %v54, 64
  %v624 = vpop.permute.xlu0 %623
  %625 = vrot.lane.b32.xlu0 %v55, 64
  %v626 = vpop.permute.xlu0 %625
  %627 = vrot.lane.b32.xlu0 %v57, 64
  %v628 = vpop.permute.xlu0 %627
  %629 = vrot.lane.b32.xlu0 %v58, 64
  %v630 = vpop.permute.xlu0 %629
  %631 = vrot.lane.b32.xlu0 %v60, 64
  %v632 = vpop.permute.xlu0 %631
  %633 = vrot.lane.b32.xlu0 %v61, 64
  %v634 = vpop.permute.xlu0 %633
  %635 = vrot.lane.b32.xlu0 %v63, 64
  %v636 = vpop.permute.xlu0 %635
  %637 = vrot.lane.b32.xlu0 %v64, 64
  %v638 = vpop.permute.xlu0 %637
  %639 = vrot.lane.b32.xlu0 %v66, 64
  %v640 = vpop.permute.xlu0 %639
  %641 = vrot.lane.b32.xlu0 %v67, 64
  %v642 = vpop.permute.xlu0 %641
  %643 = vrot.lane.b32.xlu0 %v75, 64
  %v644 = vpop.permute.xlu0 %643
  %645 = vrot.lane.b32.xlu0 %v76, 64
  %v646 = vpop.permute.xlu0 %645
  %647 = vrot.lane.b32.xlu0 %v78, 64
  %v648 = vpop.permute.xlu0 %647
  %649 = vrot.lane.b32.xlu0 %v79, 64
  %v650 = vpop.permute.xlu0 %649
  %651 = vrot.lane.b32.xlu0 %v81, 64
  %v652 = vpop.permute.xlu0 %651
  %653 = vrot.lane.b32.xlu0 %v82, 64
  %v654 = vpop.permute.xlu0 %653
  %655 = vrot.lane.b32.xlu0 %v84, 64
  %v656 = vpop.permute.xlu0 %655
  %657 = vrot.lane.b32.xlu0 %v85, 64
  %v658 = vpop.permute.xlu0 %657
  %659 = vrot.lane.b32.xlu0 %v87, 64
  %v660 = vpop.permute.xlu0 %659
  %661 = vrot.lane.b32.xlu0 %v88, 64
  %v662 = vpop.permute.xlu0 %661
  %663 = vrot.lane.b32.xlu0 %v90, 64
  %v664 = vpop.permute.xlu0 %663
  %665 = vrot.lane.b32.xlu0 %v91, 64
  %v666 = vpop.permute.xlu0 %665
  %667 = vrot.lane.b32.xlu0 %v93, 64
  %v668 = vpop.permute.xlu0 %667
  %669 = vrot.lane.b32.xlu0 %v94, 64
  %v670 = vpop.permute.xlu0 %669
  %671 = vrot.lane.b32.xlu0 %v96, 64
  %v672 = vpop.permute.xlu0 %671
  %673 = vrot.lane.b32.xlu0 %v97, 64
  %v674 = vpop.permute.xlu0 %673
  %675 = vrot.lane.b32.xlu0 %v99, 64
  %v676 = vpop.permute.xlu0 %675
  %677 = vrot.lane.b32.xlu0 %v100, 64
  %v678 = vpop.permute.xlu0 %677
  %679 = vrot.lane.b32.xlu0 %v102, 64
  %v680 = vpop.permute.xlu0 %679
  %681 = vrot.lane.b32.xlu0 %v103, 64
  %v682 = vpop.permute.xlu0 %681
  %683 = vrot.lane.b32.xlu0 %v105, 64
  %v684 = vpop.permute.xlu0 %683
  %685 = vrot.lane.b32.xlu0 %v106, 64
  %v686 = vpop.permute.xlu0 %685
  %687 = vrot.lane.b32.xlu0 %v108, 64
  %v688 = vpop.permute.xlu0 %687
  %689 = vrot.lane.b32.xlu0 %v109, 64
  %v690 = vpop.permute.xlu0 %689
  %691 = vrot.lane.b32.xlu0 %v111, 64
  %v692 = vpop.permute.xlu0 %691
  %693 = vrot.lane.b32.xlu0 %v112, 64
  %v694 = vpop.permute.xlu0 %693
  %695 = vrot.lane.b32.xlu0 %v114, 64
  %v696 = vpop.permute.xlu0 %695
  %697 = vrot.lane.b32.xlu0 %v115, 64
  %v698 = vpop.permute.xlu0 %697
  %699 = vrot.lane.b32.xlu0 %v117, 64
  %v700 = vpop.permute.xlu0 %699
  %701 = vrot.lane.b32.xlu0 %v118, 64
  %v702 = vpop.permute.xlu0 %701
  %703 = vrot.lane.b32.xlu0 %v120, 64
  %v704 = vpop.permute.xlu0 %703
  %705 = vrot.lane.b32.xlu0 %v121, 64
  %v706 = vpop.permute.xlu0 %705
  %v773 = vrot.slane %v66, 1
  %v774 = vrot.slane %v67, 1
  %v775 = vsel %vm222, %v773, %v774
  %v776 = vrot.slane %v68, 1
  %v777 = vsel %vm222, %v774, %v776
  %v778 = vrot.slane %v120, 1
  %v779 = vrot.slane %v121, 1
  %v780 = vsel %vm222, %v778, %v779
  %v781 = vrot.slane %v122, 1
  %v782 = vsel %vm222, %v779, %v781
  %783 = vrot.lane.b32.xlu0 %v230, 96
  %v784 = vpop.permute.xlu0 %783
  %785 = vrot.lane.b32.xlu0 %v232, 96
  %v786 = vpop.permute.xlu0 %785
  %787 = vrot.lane.b32.xlu0 %v235, 96
  %v788 = vpop.permute.xlu0 %787
  %789 = vrot.lane.b32.xlu0 %v237, 96
  %v790 = vpop.permute.xlu0 %789
  %791 = vrot.lane.b32.xlu0 %v240, 96
  %v792 = vpop.permute.xlu0 %791
  %793 = vrot.lane.b32.xlu0 %v242, 96
  %v794 = vpop.permute.xlu0 %793
  %795 = vrot.lane.b32.xlu0 %v245, 96
  %v796 = vpop.permute.xlu0 %795
  %797 = vrot.lane.b32.xlu0 %v247, 96
  %v798 = vpop.permute.xlu0 %797
  %799 = vrot.lane.b32.xlu0 %v250, 96
  %v800 = vpop.permute.xlu0 %799
  %801 = vrot.lane.b32.xlu0 %v252, 96
  %v802 = vpop.permute.xlu0 %801
  %803 = vrot.lane.b32.xlu0 %v255, 96
  %v804 = vpop.permute.xlu0 %803
  %805 = vrot.lane.b32.xlu0 %v257, 96
  %v806 = vpop.permute.xlu0 %805
  %807 = vrot.lane.b32.xlu0 %v260, 96
  %v808 = vpop.permute.xlu0 %807
  %809 = vrot.lane.b32.xlu0 %v262, 96
  %v810 = vpop.permute.xlu0 %809
  %811 = vrot.lane.b32.xlu0 %v265, 96
  %v812 = vpop.permute.xlu0 %811
  %813 = vrot.lane.b32.xlu0 %v267, 96
  %v814 = vpop.permute.xlu0 %813
  %815 = vrot.lane.b32.xlu0 %v270, 96
  %v816 = vpop.permute.xlu0 %815
  %817 = vrot.lane.b32.xlu0 %v272, 96
  %v818 = vpop.permute.xlu0 %817
  %819 = vrot.lane.b32.xlu0 %v275, 96
  %v820 = vpop.permute.xlu0 %819
  %821 = vrot.lane.b32.xlu0 %v277, 96
  %v822 = vpop.permute.xlu0 %821
  %823 = vrot.lane.b32.xlu0 %v280, 96
  %v824 = vpop.permute.xlu0 %823
  %825 = vrot.lane.b32.xlu0 %v282, 96
  %v826 = vpop.permute.xlu0 %825
  %827 = vrot.lane.b32.xlu0 %v285, 96
  %v828 = vpop.permute.xlu0 %827
  %829 = vrot.lane.b32.xlu0 %v287, 96
  %v830 = vpop.permute.xlu0 %829
  %831 = vrot.lane.b32.xlu0 %v290, 96
  %v832 = vpop.permute.xlu0 %831
  %833 = vrot.lane.b32.xlu0 %v292, 96
  %v834 = vpop.permute.xlu0 %833
  %835 = vrot.lane.b32.xlu0 %v295, 96
  %v836 = vpop.permute.xlu0 %835
  %837 = vrot.lane.b32.xlu0 %v297, 96
  %v838 = vpop.permute.xlu0 %837
  %839 = vrot.lane.b32.xlu0 %v300, 96
  %v840 = vpop.permute.xlu0 %839
  %841 = vrot.lane.b32.xlu0 %v302, 96
  %v842 = vpop.permute.xlu0 %841
  %843 = vrot.lane.b32.xlu0 %v775, 96
  %v844 = vpop.permute.xlu0 %843
  %845 = vrot.lane.b32.xlu0 %v777, 96
  %v846 = vpop.permute.xlu0 %845
  %847 = vrot.lane.b32.xlu0 %v310, 96
  %v848 = vpop.permute.xlu0 %847
  %849 = vrot.lane.b32.xlu0 %v312, 96
  %v850 = vpop.permute.xlu0 %849
  %851 = vrot.lane.b32.xlu0 %v315, 96
  %v852 = vpop.permute.xlu0 %851
  %853 = vrot.lane.b32.xlu0 %v317, 96
  %v854 = vpop.permute.xlu0 %853
  %855 = vrot.lane.b32.xlu0 %v320, 96
  %v856 = vpop.permute.xlu0 %855
  %857 = vrot.lane.b32.xlu0 %v322, 96
  %v858 = vpop.permute.xlu0 %857
  %859 = vrot.lane.b32.xlu0 %v325, 96
  %v860 = vpop.permute.xlu0 %859
  %861 = vrot.lane.b32.xlu0 %v327, 96
  %v862 = vpop.permute.xlu0 %861
  %863 = vrot.lane.b32.xlu0 %v330, 96
  %v864 = vpop.permute.xlu0 %863
  %865 = vrot.lane.b32.xlu0 %v332, 96
  %v866 = vpop.permute.xlu0 %865
  %867 = vrot.lane.b32.xlu0 %v335, 96
  %v868 = vpop.permute.xlu0 %867
  %869 = vrot.lane.b32.xlu0 %v337, 96
  %v870 = vpop.permute.xlu0 %869
  %871 = vrot.lane.b32.xlu0 %v340, 96
  %v872 = vpop.permute.xlu0 %871
  %873 = vrot.lane.b32.xlu0 %v342, 96
  %v874 = vpop.permute.xlu0 %873
  %875 = vrot.lane.b32.xlu0 %v345, 96
  %v876 = vpop.permute.xlu0 %875
  %877 = vrot.lane.b32.xlu0 %v347, 96
  %v878 = vpop.permute.xlu0 %877
  %879 = vrot.lane.b32.xlu0 %v350, 96
  %v880 = vpop.permute.xlu0 %879
  %881 = vrot.lane.b32.xlu0 %v352, 96
  %v882 = vpop.permute.xlu0 %881
  %883 = vrot.lane.b32.xlu0 %v355, 96
  %v884 = vpop.permute.xlu0 %883
  %885 = vrot.lane.b32.xlu0 %v357, 96
  %v886 = vpop.permute.xlu0 %885
  %887 = vrot.lane.b32.xlu0 %v360, 96
  %v888 = vpop.permute.xlu0 %887
  %889 = vrot.lane.b32.xlu0 %v362, 96
  %v890 = vpop.permute.xlu0 %889
  %891 = vrot.lane.b32.xlu0 %v365, 96
  %v892 = vpop.permute.xlu0 %891
  %893 = vrot.lane.b32.xlu0 %v367, 96
  %v894 = vpop.permute.xlu0 %893
  %895 = vrot.lane.b32.xlu0 %v370, 96
  %v896 = vpop.permute.xlu0 %895
  %897 = vrot.lane.b32.xlu0 %v372, 96
  %v898 = vpop.permute.xlu0 %897
  %899 = vrot.lane.b32.xlu0 %v375, 96
  %v900 = vpop.permute.xlu0 %899
  %901 = vrot.lane.b32.xlu0 %v377, 96
  %v902 = vpop.permute.xlu0 %901
  %903 = vrot.lane.b32.xlu0 %v380, 96
  %v904 = vpop.permute.xlu0 %903
  %905 = vrot.lane.b32.xlu0 %v382, 96
  %v906 = vpop.permute.xlu0 %905
  %907 = vrot.lane.b32.xlu0 %v780, 96
  %v908 = vpop.permute.xlu0 %907
  %909 = vrot.lane.b32.xlu0 %v782, 96
  %v910 = vpop.permute.xlu0 %909
  %vm975 = vcmask 261120
  %v976 = vsel %vm975, %v18, %v384
  %v977 = vsel %vm975, %v19, %v386
  %v978 = vsel %vm975, %v21, %v388
  %v979 = vsel %vm975, %v22, %v390
  %v980 = vsel %vm975, %v24, %v392
  %v981 = vsel %vm975, %v25, %v394
  %v982 = vsel %vm975, %v27, %v396
  %v983 = vsel %vm975, %v28, %v398
  %v984 = vsel %vm975, %v30, %v400
  %v985 = vsel %vm975, %v31, %v402
  %v986 = vsel %vm975, %v33, %v404
  %v987 = vsel %vm975, %v34, %v406
  %v988 = vsel %vm975, %v36, %v408
  %v989 = vsel %vm975, %v37, %v410
  %v990 = vsel %vm975, %v39, %v412
  %v991 = vsel %vm975, %v40, %v414
  %v992 = vsel %vm975, %v42, %v416
  %v993 = vsel %vm975, %v43, %v418
  %v994 = vsel %vm975, %v45, %v420
  %v995 = vsel %vm975, %v46, %v422
  %v996 = vsel %vm975, %v48, %v424
  %v997 = vsel %vm975, %v49, %v426
  %v998 = vsel %vm975, %v51, %v428
  %v999 = vsel %vm975, %v52, %v430
  %v1000 = vsel %vm975, %v54, %v432
  %v1001 = vsel %vm975, %v55, %v434
  %v1002 = vsel %vm975, %v57, %v436
  %v1003 = vsel %vm975, %v58, %v438
  %v1004 = vsel %vm975, %v60, %v440
  %v1005 = vsel %vm975, %v61, %v442
  %v1006 = vsel %vm975, %v63, %v444
  %v1007 = vsel %vm975, %v64, %v446
  %v1008 = vsel %vm975, %v72, %v448
  %v1009 = vsel %vm975, %v73, %v450
  %v1010 = vsel %vm975, %v75, %v452
  %v1011 = vsel %vm975, %v76, %v454
  %v1012 = vsel %vm975, %v78, %v456
  %v1013 = vsel %vm975, %v79, %v458
  %v1014 = vsel %vm975, %v81, %v460
  %v1015 = vsel %vm975, %v82, %v462
  %v1016 = vsel %vm975, %v84, %v464
  %v1017 = vsel %vm975, %v85, %v466
  %v1018 = vsel %vm975, %v87, %v468
  %v1019 = vsel %vm975, %v88, %v470
  %v1020 = vsel %vm975, %v90, %v472
  %v1021 = vsel %vm975, %v91, %v474
  %v1022 = vsel %vm975, %v93, %v476
  %v1023 = vsel %vm975, %v94, %v478
  %v1024 = vsel %vm975, %v96, %v480
  %v1025 = vsel %vm975, %v97, %v482
  %v1026 = vsel %vm975, %v99, %v484
  %v1027 = vsel %vm975, %v100, %v486
  %v1028 = vsel %vm975, %v102, %v488
  %v1029 = vsel %vm975, %v103, %v490
  %v1030 = vsel %vm975, %v105, %v492
  %v1031 = vsel %vm975, %v106, %v494
  %v1032 = vsel %vm975, %v108, %v496
  %v1033 = vsel %vm975, %v109, %v498
  %v1034 = vsel %vm975, %v111, %v500
  %v1035 = vsel %vm975, %v112, %v502
  %v1036 = vsel %vm975, %v114, %v504
  %v1037 = vsel %vm975, %v115, %v506
  %v1038 = vsel %vm975, %v117, %v508
  %v1039 = vsel %vm975, %v118, %v510
  %vm1040 = vcmask 523264
  %v1041 = vsel %vm1040, %v976, %v580
  %v1042 = vsel %vm1040, %v977, %v582
  %v1043 = vsel %vm1040, %v978, %v584
  %v1044 = vsel %vm1040, %v979, %v586
  %v1045 = vsel %vm1040, %v980, %v588
  %v1046 = vsel %vm1040, %v981, %v590
  %v1047 = vsel %vm1040, %v982, %v592
  %v1048 = vsel %vm1040, %v983, %v594
  %v1049 = vsel %vm1040, %v984, %v596
  %v1050 = vsel %vm1040, %v985, %v598
  %v1051 = vsel %vm1040, %v986, %v600
  %v1052 = vsel %vm1040, %v987, %v602
  %v1053 = vsel %vm1040, %v988, %v604
  %v1054 = vsel %vm1040, %v989, %v606
  %v1055 = vsel %vm1040, %v990, %v608
  %v1056 = vsel %vm1040, %v991, %v610
  %v1057 = vsel %vm1040, %v992, %v612
  %v1058 = vsel %vm1040, %v993, %v614
  %v1059 = vsel %vm1040, %v994, %v616
  %v1060 = vsel %vm1040, %v995, %v618
  %v1061 = vsel %vm1040, %v996, %v620
  %v1062 = vsel %vm1040, %v997, %v622
  %v1063 = vsel %vm1040, %v998, %v624
  %v1064 = vsel %vm1040, %v999, %v626
  %v1065 = vsel %vm1040, %v1000, %v628
  %v1066 = vsel %vm1040, %v1001, %v630
  %v1067 = vsel %vm1040, %v1002, %v632
  %v1068 = vsel %vm1040, %v1003, %v634
  %v1069 = vsel %vm1040, %v1004, %v636
  %v1070 = vsel %vm1040, %v1005, %v638
  %v1071 = vsel %vm1040, %v1006, %v640
  %v1072 = vsel %vm1040, %v1007, %v642
  %v1073 = vsel %vm1040, %v1008, %v644
  %v1074 = vsel %vm1040, %v1009, %v646
  %v1075 = vsel %vm1040, %v1010, %v648
  %v1076 = vsel %vm1040, %v1011, %v650
  %v1077 = vsel %vm1040, %v1012, %v652
  %v1078 = vsel %vm1040, %v1013, %v654
  %v1079 = vsel %vm1040, %v1014, %v656
  %v1080 = vsel %vm1040, %v1015, %v658
  %v1081 = vsel %vm1040, %v1016, %v660
  %v1082 = vsel %vm1040, %v1017, %v662
  %v1083 = vsel %vm1040, %v1018, %v664
  %v1084 = vsel %vm1040, %v1019, %v666
  %v1085 = vsel %vm1040, %v1020, %v668
  %v1086 = vsel %vm1040, %v1021, %v670
  %v1087 = vsel %vm1040, %v1022, %v672
  %v1088 = vsel %vm1040, %v1023, %v674
  %v1089 = vsel %vm1040, %v1024, %v676
  %v1090 = vsel %vm1040, %v1025, %v678
  %v1091 = vsel %vm1040, %v1026, %v680
  %v1092 = vsel %vm1040, %v1027, %v682
  %v1093 = vsel %vm1040, %v1028, %v684
  %v1094 = vsel %vm1040, %v1029, %v686
  %v1095 = vsel %vm1040, %v1030, %v688
  %v1096 = vsel %vm1040, %v1031, %v690
  %v1097 = vsel %vm1040, %v1032, %v692
  %v1098 = vsel %vm1040, %v1033, %v694
  %v1099 = vsel %vm1040, %v1034, %v696
  %v1100 = vsel %vm1040, %v1035, %v698
  %v1101 = vsel %vm1040, %v1036, %v700
  %v1102 = vsel %vm1040, %v1037, %v702
  %v1103 = vsel %vm1040, %v1038, %v704
  %v1104 = vsel %vm1040, %v1039, %v706
  %vm1105 = vcmask 785408
  %v1106 = vsel %vm1105, %v1041, %v784
  %v1107 = vsel %vm1105, %v1042, %v786
  %v1108 = vsel %vm1105, %v1043, %v788
  %v1109 = vsel %vm1105, %v1044, %v790
  %v1110 = vsel %vm1105, %v1045, %v792
  %v1111 = vsel %vm1105, %v1046, %v794
  %v1112 = vsel %vm1105, %v1047, %v796
  %v1113 = vsel %vm1105, %v1048, %v798
  %v1114 = vsel %vm1105, %v1049, %v800
  %v1115 = vsel %vm1105, %v1050, %v802
  %v1116 = vsel %vm1105, %v1051, %v804
  %v1117 = vsel %vm1105, %v1052, %v806
  %v1118 = vsel %vm1105, %v1053, %v808
  %v1119 = vsel %vm1105, %v1054, %v810
  %v1120 = vsel %vm1105, %v1055, %v812
  %v1121 = vsel %vm1105, %v1056, %v814
  %v1122 = vsel %vm1105, %v1057, %v816
  %v1123 = vsel %vm1105, %v1058, %v818
  %v1124 = vsel %vm1105, %v1059, %v820
  %v1125 = vsel %vm1105, %v1060, %v822
  %v1126 = vsel %vm1105, %v1061, %v824
  %v1127 = vsel %vm1105, %v1062, %v826
  %v1128 = vsel %vm1105, %v1063, %v828
  %v1129 = vsel %vm1105, %v1064, %v830
  %v1130 = vsel %vm1105, %v1065, %v832
  %v1131 = vsel %vm1105, %v1066, %v834
  %v1132 = vsel %vm1105, %v1067, %v836
  %v1133 = vsel %vm1105, %v1068, %v838
  %v1134 = vsel %vm1105, %v1069, %v840
  %v1135 = vsel %vm1105, %v1070, %v842
  %v1136 = vsel %vm1105, %v1071, %v844
  %v1137 = vsel %vm1105, %v1072, %v846
  %v1138 = vsel %vm1105, %v1073, %v848
  %v1139 = vsel %vm1105, %v1074, %v850
  %v1140 = vsel %vm1105, %v1075, %v852
  %v1141 = vsel %vm1105, %v1076, %v854
  %v1142 = vsel %vm1105, %v1077, %v856
  %v1143 = vsel %vm1105, %v1078, %v858
  %v1144 = vsel %vm1105, %v1079, %v860
  %v1145 = vsel %vm1105, %v1080, %v862
  %v1146 = vsel %vm1105, %v1081, %v864
  %v1147 = vsel %vm1105, %v1082, %v866
  %v1148 = vsel %vm1105, %v1083, %v868
  %v1149 = vsel %vm1105, %v1084, %v870
  %v1150 = vsel %vm1105, %v1085, %v872
  %v1151 = vsel %vm1105, %v1086, %v874
  %v1152 = vsel %vm1105, %v1087, %v876
  %v1153 = vsel %vm1105, %v1088, %v878
  %v1154 = vsel %vm1105, %v1089, %v880
  %v1155 = vsel %vm1105, %v1090, %v882
  %v1156 = vsel %vm1105, %v1091, %v884
  %v1157 = vsel %vm1105, %v1092, %v886
  %v1158 = vsel %vm1105, %v1093, %v888
  %v1159 = vsel %vm1105, %v1094, %v890
  %v1160 = vsel %vm1105, %v1095, %v892
  %v1161 = vsel %vm1105, %v1096, %v894
  %v1162 = vsel %vm1105, %v1097, %v896
  %v1163 = vsel %vm1105, %v1098, %v898
  %v1164 = vsel %vm1105, %v1099, %v900
  %v1165 = vsel %vm1105, %v1100, %v902
  %v1166 = vsel %vm1105, %v1101, %v904
  %v1167 = vsel %vm1105, %v1102, %v906
  %v1168 = vsel %vm1105, %v1103, %v908
  %v1169 = vsel %vm1105, %v1104, %v910
  %v1170 = vpack.c.bf16 %v1107, %v1106
  %v1171 = vpack.c.bf16 %v1109, %v1108
  %v1172 = vpack.c.bf16 %v1111, %v1110
  %v1173 = vpack.c.bf16 %v1113, %v1112
  %v1174 = vpack.c.bf16 %v1115, %v1114
  %v1175 = vpack.c.bf16 %v1117, %v1116
  %v1176 = vpack.c.bf16 %v1119, %v1118
  %v1177 = vpack.c.bf16 %v1121, %v1120
  %v1178 = vpack.c.bf16 %v1123, %v1122
  %v1179 = vpack.c.bf16 %v1125, %v1124
  %v1180 = vpack.c.bf16 %v1127, %v1126
  %v1181 = vpack.c.bf16 %v1129, %v1128
  %v1182 = vpack.c.bf16 %v1131, %v1130
  %v1183 = vpack.c.bf16 %v1133, %v1132
  %v1184 = vpack.c.bf16 %v1135, %v1134
  %v1185 = vpack.c.bf16 %v1137, %v1136
  %v1186 = vpack.c.bf16 %v1139, %v1138
  %v1187 = vpack.c.bf16 %v1141, %v1140
  %v1188 = vpack.c.bf16 %v1143, %v1142
  %v1189 = vpack.c.bf16 %v1145, %v1144
  %v1190 = vpack.c.bf16 %v1147, %v1146
  %v1191 = vpack.c.bf16 %v1149, %v1148
  %v1192 = vpack.c.bf16 %v1151, %v1150
  %v1193 = vpack.c.bf16 %v1153, %v1152
  %v1194 = vpack.c.bf16 %v1155, %v1154
  %v1195 = vpack.c.bf16 %v1157, %v1156
  %v1196 = vpack.c.bf16 %v1159, %v1158
  %v1197 = vpack.c.bf16 %v1161, %v1160
  %v1198 = vpack.c.bf16 %v1163, %v1162
  %v1199 = vpack.c.bf16 %v1165, %v1164
  %v1200 = vpack.c.bf16 %v1167, %v1166
  %v1201 = vpack.c.bf16 %v1169, %v1168
  %v1202 = vld [vmem:[%s1] sm:$0xf]
  %v1203 = vld [vmem:[%s1 + $0x4] sm:$0xf]
  %v1204 = vld [vmem:[%s1 + $0x8] sm:$0xf]
  %v1205 = vld [vmem:[%s1 + $0xc] sm:$0xf]
  %v1206 = vld [vmem:[%s1 + $0x10] sm:$0xf]
  %v1207 = vld [vmem:[%s1 + $0x14] sm:$0xf]
  %v1208 = vld [vmem:[%s1 + $0x18] sm:$0xf]
  %v1209 = vld [vmem:[%s1 + $0x1c] sm:$0xf]
  %v1210 = vld [vmem:[%s1 + $0x20] sm:$0xf]
  %v1211 = vld [vmem:[%s1 + $0x24] sm:$0xf]
  %v1212 = vld [vmem:[%s1 + $0x28] sm:$0xf]
  %v1213 = vld [vmem:[%s1 + $0x2c] sm:$0xf]
  %v1214 = vld [vmem:[%s1 + $0x30] sm:$0xf]
  %v1215 = vld [vmem:[%s1 + $0x34] sm:$0xf]
  %v1216 = vld [vmem:[%s1 + $0x38] sm:$0xf]
  %v1217 = vld [vmem:[%s1 + $0x3c] sm:$0xf]
  %v1234 = vunpack.c.l.b16 %v1202
  %v1235 = vunpack.c.l.b16 %v1203
  %v1236 = vunpack.c.l.b16 %v1204
  %v1237 = vunpack.c.l.b16 %v1205
  %v1238 = vunpack.c.l.b16 %v1206
  %v1239 = vunpack.c.l.b16 %v1207
  %v1240 = vunpack.c.l.b16 %v1208
  %v1241 = vunpack.c.l.b16 %v1209
  %v1242 = vunpack.c.l.b16 %v1210
  %v1243 = vunpack.c.l.b16 %v1211
  %v1244 = vunpack.c.l.b16 %v1212
  %v1245 = vunpack.c.l.b16 %v1213
  %v1246 = vunpack.c.l.b16 %v1214
  %v1247 = vunpack.c.l.b16 %v1215
  %v1248 = vunpack.c.l.b16 %v1216
  %v1249 = vunpack.c.l.b16 %v1217
  %v1250 = vpack.c.b16 %v1235, %v1234
  %v1251 = vpack.c.b16 %v1237, %v1236
  %v1252 = vpack.c.b16 %v1239, %v1238
  %v1253 = vpack.c.b16 %v1241, %v1240
  %v1254 = vpack.c.b16 %v1243, %v1242
  %v1255 = vpack.c.b16 %v1245, %v1244
  %v1256 = vpack.c.b16 %v1247, %v1246
  %v1257 = vpack.c.b16 %v1249, %v1248
  %1266 = vmatprep.subr.bf16.mxu0 0
  %1267 = vmatpush1.bf16.msra.mxu0 %v1250
  %1268 = vmatprep.subr.bf16.mxu0 0
  %1269 = vmatpush1.bf16.msra.mxu0 %v1251
  %1270 = vmatprep.subr.bf16.mxu0 0
  %1271 = vmatpush1.bf16.msra.mxu0 %v1252
  %1272 = vmatprep.subr.bf16.mxu0 0
  %1273 = vmatpush1.bf16.msra.mxu0 %v1253
  %1274 = vmatprep.subr.bf16.mxu0 0
  %1275 = vmatpush1.bf16.msra.mxu0 %v1254
  %1276 = vmatprep.subr.bf16.mxu0 0
  %1277 = vmatpush1.bf16.msra.mxu0 %v1255
  %1278 = vmatprep.subr.bf16.mxu0 0
  %1279 = vmatpush1.bf16.msra.mxu0 %v1256
  %1280 = vmatprep.subr.bf16.mxu0 0
  %1281 = vmatpush1.bf16.msra.mxu0 %v1257
  %1282 = vmatprep.subr.bf16.mxu0 0
  %1283 = vmatpush1.bf16.msra.mxu0 0
  %1284 = vmatprep.subr.bf16.mxu0 0
  %1285 = vmatpush1.bf16.msra.mxu0 0
  %1286 = vmatprep.subr.bf16.mxu0 0
  %1287 = vmatpush1.bf16.msra.mxu0 0
  %1288 = vmatprep.subr.bf16.mxu0 0
  %1289 = vmatpush1.bf16.msra.mxu0 0
  %1290 = vmatprep.subr.bf16.mxu0 0
  %1291 = vmatpush1.bf16.msra.mxu0 0
  %1292 = vmatprep.subr.bf16.mxu0 0
  %1293 = vmatpush1.bf16.msra.mxu0 0
  %1294 = vmatprep.subr.bf16.mxu0 0
  %1295 = vmatpush1.bf16.msra.mxu0 0
  %1296 = vmatprep.subr.bf16.mxu0 0
  %1297 = vmatpush1.bf16.msra.mxu0 0
  %1298 = vmatprep.mubr.bf16.mxu0 0
  %1299 = vmatmul.mubr.bf16.gmra.mrb[0].mxu0 %v1170
  %v1300 = vpop.f32.mrb[0].mxu0
  %v1301 = vadd.f32 0.0, %v1300
  %v1302 = vpop.f32.mrb[0].mxu0
  %v1303 = vpop.f32.mrb[0].mxu0
  %v1304 = vadd.f32 0.0, %v1303
  %v1305 = vpop.f32.mrb[0].mxu0
  %1306 = vmatprep.mubr.bf16.mxu0 0
  %1307 = vmatmul.mubr.bf16.gmra.mrb[0].mxu0 %v1171
  %v1308 = vpop.f32.mrb[0].mxu0
  %v1309 = vadd.f32 0.0, %v1308
  %v1310 = vpop.f32.mrb[0].mxu0
  %v1311 = vpop.f32.mrb[0].mxu0
  %v1312 = vadd.f32 0.0, %v1311
  %v1313 = vpop.f32.mrb[0].mxu0
  %1314 = vmatprep.mubr.bf16.mxu0 0
  %1315 = vmatmul.mubr.bf16.gmra.mrb[0].mxu0 %v1172
  %v1316 = vpop.f32.mrb[0].mxu0
  %v1317 = vadd.f32 0.0, %v1316
  %v1318 = vpop.f32.mrb[0].mxu0
  %v1319 = vpop.f32.mrb[0].mxu0
  %v1320 = vadd.f32 0.0, %v1319
  %v1321 = vpop.f32.mrb[0].mxu0
  %1322 = vmatprep.mubr.bf16.mxu0 0
  %1323 = vmatmul.mubr.bf16.gmra.mrb[0].mxu0 %v1173
  %v1324 = vpop.f32.mrb[0].mxu0
  %v1325 = vadd.f32 0.0, %v1324
  %v1326 = vpop.f32.mrb[0].mxu0
  %v1327 = vpop.f32.mrb[0].mxu0
  %v1328 = vadd.f32 0.0, %v1327
  %v1329 = vpop.f32.mrb[0].mxu0
  %1330 = vmatprep.mubr.bf16.mxu0 0
  %1331 = vmatmul.mubr.bf16.gmra.mrb[0].mxu0 %v1174
  %v1332 = vpop.f32.mrb[0].mxu0
  %v1333 = vadd.f32 0.0, %v1332
  %v1334 = vpop.f32.mrb[0].mxu0
  %v1335 = vpop.f32.mrb[0].mxu0
  %v1336 = vadd.f32 0.0, %v1335
  %v1337 = vpop.f32.mrb[0].mxu0
  %1338 = vmatprep.mubr.bf16.mxu0 0
  %1339 = vmatmul.mubr.bf16.gmra.mrb[0].mxu0 %v1175
  %v1340 = vpop.f32.mrb[0].mxu0
  %v1341 = vadd.f32 0.0, %v1340
  %v1342 = vpop.f32.mrb[0].mxu0
  %v1343 = vpop.f32.mrb[0].mxu0
  %v1344 = vadd.f32 0.0, %v1343
  %v1345 = vpop.f32.mrb[0].mxu0
  %1346 = vmatprep.mubr.bf16.mxu0 0
  %1347 = vmatmul.mubr.bf16.gmra.mrb[0].mxu0 %v1176
  %v1348 = vpop.f32.mrb[0].mxu0
  %v1349 = vadd.f32 0.0, %v1348
  %v1350 = vpop.f32.mrb[0].mxu0
  %v1351 = vpop.f32.mrb[0].mxu0
  %v1352 = vadd.f32 0.0, %v1351
  %v1353 = vpop.f32.mrb[0].mxu0
  %1354 = vmatprep.mubr.bf16.mxu0 0
  %1355 = vmatmul.mubr.bf16.gmra.mrb[0].mxu0 %v1177
  %v1356 = vpop.f32.mrb[0].mxu0
  %v1357 = vadd.f32 0.0, %v1356
  %v1358 = vpop.f32.mrb[0].mxu0
  %v1359 = vpop.f32.mrb[0].mxu0
  %v1360 = vadd.f32 0.0, %v1359
  %v1361 = vpop.f32.mrb[0].mxu0
  %1362 = vmatprep.mubr.bf16.mxu0 0
  %1363 = vmatmul.mubr.bf16.gmra.mrb[0].mxu0 %v1178
  %v1364 = vpop.f32.mrb[0].mxu0
  %v1365 = vadd.f32 0.0, %v1364
  %v1366 = vpop.f32.mrb[0].mxu0
  %v1367 = vpop.f32.mrb[0].mxu0
  %v1368 = vadd.f32 0.0, %v1367
  %v1369 = vpop.f32.mrb[0].mxu0
  %1370 = vmatprep.mubr.bf16.mxu0 0
  %1371 = vmatmul.mubr.bf16.gmra.mrb[0].mxu0 %v1179
  %v1372 = vpop.f32.mrb[0].mxu0
  %v1373 = vadd.f32 0.0, %v1372
  %v1374 = vpop.f32.mrb[0].mxu0
  %v1375 = vpop.f32.mrb[0].mxu0
  %v1376 = vadd.f32 0.0, %v1375
  %v1377 = vpop.f32.mrb[0].mxu0
  %1378 = vmatprep.mubr.bf16.mxu0 0
  %1379 = vmatmul.mubr.bf16.gmra.mrb[0].mxu0 %v1180
  %v1380 = vpop.f32.mrb[0].mxu0
  %v1381 = vadd.f32 0.0, %v1380
  %v1382 = vpop.f32.mrb[0].mxu0
  %v1383 = vpop.f32.mrb[0].mxu0
  %v1384 = vadd.f32 0.0, %v1383
  %v1385 = vpop.f32.mrb[0].mxu0
  %1386 = vmatprep.mubr.bf16.mxu0 0
  %1387 = vmatmul.mubr.bf16.gmra.mrb[0].mxu0 %v1181
  %v1388 = vpop.f32.mrb[0].mxu0
  %v1389 = vadd.f32 0.0, %v1388
  %v1390 = vpop.f32.mrb[0].mxu0
  %v1391 = vpop.f32.mrb[0].mxu0
  %v1392 = vadd.f32 0.0, %v1391
  %v1393 = vpop.f32.mrb[0].mxu0
  %1394 = vmatprep.mubr.bf16.mxu0 0
  %1395 = vmatmul.mubr.bf16.gmra.mrb[0].mxu0 %v1182
  %v1396 = vpop.f32.mrb[0].mxu0
  %v1397 = vadd.f32 0.0, %v1396
  %v1398 = vpop.f32.mrb[0].mxu0
  %v1399 = vpop.f32.mrb[0].mxu0
  %v1400 = vadd.f32 0.0, %v1399
  %v1401 = vpop.f32.mrb[0].mxu0
  %1402 = vmatprep.mubr.bf16.mxu0 0
  %1403 = vmatmul.mubr.bf16.gmra.mrb[0].mxu0 %v1183
  %v1404 = vpop.f32.mrb[0].mxu0
  %v1405 = vadd.f32 0.0, %v1404
  %v1406 = vpop.f32.mrb[0].mxu0
  %v1407 = vpop.f32.mrb[0].mxu0
  %v1408 = vadd.f32 0.0, %v1407
  %v1409 = vpop.f32.mrb[0].mxu0
  %1410 = vmatprep.mubr.bf16.mxu0 0
  %1411 = vmatmul.mubr.bf16.gmra.mrb[0].mxu0 %v1184
  %v1412 = vpop.f32.mrb[0].mxu0
  %v1413 = vadd.f32 0.0, %v1412
  %v1414 = vpop.f32.mrb[0].mxu0
  %v1415 = vpop.f32.mrb[0].mxu0
  %v1416 = vadd.f32 0.0, %v1415
  %v1417 = vpop.f32.mrb[0].mxu0
  %1418 = vmatprep.mubr.bf16.mxu0 0
  %1419 = vmatmul.mubr.bf16.gmra.mrb[0].mxu0 %v1185
  %v1420 = vpop.f32.mrb[0].mxu0
  %v1421 = vadd.f32 0.0, %v1420
  %v1422 = vpop.f32.mrb[0].mxu0
  %v1423 = vpop.f32.mrb[0].mxu0
  %v1424 = vadd.f32 0.0, %v1423
  %v1425 = vpop.f32.mrb[0].mxu0
  %1426 = vmatprep.mubr.bf16.mxu0 0
  %1427 = vmatmul.mubr.bf16.gmra.mrb[0].mxu0 %v1186
  %v1428 = vpop.f32.mrb[0].mxu0
  %v1429 = vadd.f32 0.0, %v1428
  %v1430 = vpop.f32.mrb[0].mxu0
  %v1431 = vpop.f32.mrb[0].mxu0
  %v1432 = vadd.f32 0.0, %v1431
  %v1433 = vpop.f32.mrb[0].mxu0
  %1434 = vmatprep.mubr.bf16.mxu0 0
  %1435 = vmatmul.mubr.bf16.gmra.mrb[0].mxu0 %v1187
  %v1436 = vpop.f32.mrb[0].mxu0
  %v1437 = vadd.f32 0.0, %v1436
  %v1438 = vpop.f32.mrb[0].mxu0
  %v1439 = vpop.f32.mrb[0].mxu0
  %v1440 = vadd.f32 0.0, %v1439
  %v1441 = vpop.f32.mrb[0].mxu0
  %1442 = vmatprep.mubr.bf16.mxu0 0
  %1443 = vmatmul.mubr.bf16.gmra.mrb[0].mxu0 %v1188
  %v1444 = vpop.f32.mrb[0].mxu0
  %v1445 = vadd.f32 0.0, %v1444
  %v1446 = vpop.f32.mrb[0].mxu0
  %v1447 = vpop.f32.mrb[0].mxu0
  %v1448 = vadd.f32 0.0, %v1447
  %v1449 = vpop.f32.mrb[0].mxu0
  %1450 = vmatprep.mubr.bf16.mxu0 0
  %1451 = vmatmul.mubr.bf16.gmra.mrb[0].mxu0 %v1189
  %v1452 = vpop.f32.mrb[0].mxu0
  %v1453 = vadd.f32 0.0, %v1452
  %v1454 = vpop.f32.mrb[0].mxu0
  %v1455 = vpop.f32.mrb[0].mxu0
  %v1456 = vadd.f32 0.0, %v1455
  %v1457 = vpop.f32.mrb[0].mxu0
  %1458 = vmatprep.mubr.bf16.mxu0 0
  %1459 = vmatmul.mubr.bf16.gmra.mrb[0].mxu0 %v1190
  %v1460 = vpop.f32.mrb[0].mxu0
  %v1461 = vadd.f32 0.0, %v1460
  %v1462 = vpop.f32.mrb[0].mxu0
  %v1463 = vpop.f32.mrb[0].mxu0
  %v1464 = vadd.f32 0.0, %v1463
  %v1465 = vpop.f32.mrb[0].mxu0
  %1466 = vmatprep.mubr.bf16.mxu0 0
  %1467 = vmatmul.mubr.bf16.gmra.mrb[0].mxu0 %v1191
  %v1468 = vpop.f32.mrb[0].mxu0
  %v1469 = vadd.f32 0.0, %v1468
  %v1470 = vpop.f32.mrb[0].mxu0
  %v1471 = vpop.f32.mrb[0].mxu0
  %v1472 = vadd.f32 0.0, %v1471
  %v1473 = vpop.f32.mrb[0].mxu0
  %1474 = vmatprep.mubr.bf16.mxu0 0
  %1475 = vmatmul.mubr.bf16.gmra.mrb[0].mxu0 %v1192
  %v1476 = vpop.f32.mrb[0].mxu0
  %v1477 = vadd.f32 0.0, %v1476
  %v1478 = vpop.f32.mrb[0].mxu0
  %v1479 = vpop.f32.mrb[0].mxu0
  %v1480 = vadd.f32 0.0, %v1479
  %v1481 = vpop.f32.mrb[0].mxu0
  %1482 = vmatprep.mubr.bf16.mxu0 0
  %1483 = vmatmul.mubr.bf16.gmra.mrb[0].mxu0 %v1193
  %v1484 = vpop.f32.mrb[0].mxu0
  %v1485 = vadd.f32 0.0, %v1484
  %v1486 = vpop.f32.mrb[0].mxu0
  %v1487 = vpop.f32.mrb[0].mxu0
  %v1488 = vadd.f32 0.0, %v1487
  %v1489 = vpop.f32.mrb[0].mxu0
  %1490 = vmatprep.mubr.bf16.mxu0 0
  %1491 = vmatmul.mubr.bf16.gmra.mrb[0].mxu0 %v1194
  %v1492 = vpop.f32.mrb[0].mxu0
  %v1493 = vadd.f32 0.0, %v1492
  %v1494 = vpop.f32.mrb[0].mxu0
  %v1495 = vpop.f32.mrb[0].mxu0
  %v1496 = vadd.f32 0.0, %v1495
  %v1497 = vpop.f32.mrb[0].mxu0
  %1498 = vmatprep.mubr.bf16.mxu0 0
  %1499 = vmatmul.mubr.bf16.gmra.mrb[0].mxu0 %v1195
  %v1500 = vpop.f32.mrb[0].mxu0
  %v1501 = vadd.f32 0.0, %v1500
  %v1502 = vpop.f32.mrb[0].mxu0
  %v1503 = vpop.f32.mrb[0].mxu0
  %v1504 = vadd.f32 0.0, %v1503
  %v1505 = vpop.f32.mrb[0].mxu0
  %1506 = vmatprep.mubr.bf16.mxu0 0
  %1507 = vmatmul.mubr.bf16.gmra.mrb[0].mxu0 %v1196
  %v1508 = vpop.f32.mrb[0].mxu0
  %v1509 = vadd.f32 0.0, %v1508
  %v1510 = vpop.f32.mrb[0].mxu0
  %v1511 = vpop.f32.mrb[0].mxu0
  %v1512 = vadd.f32 0.0, %v1511
  %v1513 = vpop.f32.mrb[0].mxu0
  %1514 = vmatprep.mubr.bf16.mxu0 0
  %1515 = vmatmul.mubr.bf16.gmra.mrb[0].mxu0 %v1197
  %v1516 = vpop.f32.mrb[0].mxu0
  %v1517 = vadd.f32 0.0, %v1516
  %v1518 = vpop.f32.mrb[0].mxu0
  %v1519 = vpop.f32.mrb[0].mxu0
  %v1520 = vadd.f32 0.0, %v1519
  %v1521 = vpop.f32.mrb[0].mxu0
  %1522 = vmatprep.mubr.bf16.mxu0 0
  %1523 = vmatmul.mubr.bf16.gmra.mrb[0].mxu0 %v1198
  %v1524 = vpop.f32.mrb[0].mxu0
  %v1525 = vadd.f32 0.0, %v1524
  %v1526 = vpop.f32.mrb[0].mxu0
  %v1527 = vpop.f32.mrb[0].mxu0
  %v1528 = vadd.f32 0.0, %v1527
  %v1529 = vpop.f32.mrb[0].mxu0
  %1530 = vmatprep.mubr.bf16.mxu0 0
  %1531 = vmatmul.mubr.bf16.gmra.mrb[0].mxu0 %v1199
  %v1532 = vpop.f32.mrb[0].mxu0
  %v1533 = vadd.f32 0.0, %v1532
  %v1534 = vpop.f32.mrb[0].mxu0
  %v1535 = vpop.f32.mrb[0].mxu0
  %v1536 = vadd.f32 0.0, %v1535
  %v1537 = vpop.f32.mrb[0].mxu0
  %1538 = vmatprep.mubr.bf16.mxu0 0
  %1539 = vmatmul.mubr.bf16.gmra.mrb[0].mxu0 %v1200
  %v1540 = vpop.f32.mrb[0].mxu0
  %v1541 = vadd.f32 0.0, %v1540
  %v1542 = vpop.f32.mrb[0].mxu0
  %v1543 = vpop.f32.mrb[0].mxu0
  %v1544 = vadd.f32 0.0, %v1543
  %v1545 = vpop.f32.mrb[0].mxu0
  %1546 = vmatprep.mubr.bf16.mxu0 0
  %1547 = vmatmul.mubr.bf16.gmra.mrb[0].mxu0 %v1201
  %v1548 = vpop.f32.mrb[0].mxu0
  %v1549 = vadd.f32 0.0, %v1548
  %v1550 = vpop.f32.mrb[0].mxu0
  %v1551 = vpop.f32.mrb[0].mxu0
  %v1552 = vadd.f32 0.0, %v1551
  %v1553 = vpop.f32.mrb[0].mxu0
  %1554 = vdwg.mxu0
  %1555 = vrot.lane.b32.xlu0 %v226, 32
  %v1556 = vpop.permute.xlu0 %1555
  %1557 = vrot.lane.b32.xlu0 %v231, 32
  %v1558 = vpop.permute.xlu0 %1557
  %1559 = vrot.lane.b32.xlu0 %v236, 32
  %v1560 = vpop.permute.xlu0 %1559
  %1561 = vrot.lane.b32.xlu0 %v241, 32
  %v1562 = vpop.permute.xlu0 %1561
  %1563 = vrot.lane.b32.xlu0 %v246, 32
  %v1564 = vpop.permute.xlu0 %1563
  %1565 = vrot.lane.b32.xlu0 %v251, 32
  %v1566 = vpop.permute.xlu0 %1565
  %1567 = vrot.lane.b32.xlu0 %v256, 32
  %v1568 = vpop.permute.xlu0 %1567
  %1569 = vrot.lane.b32.xlu0 %v261, 32
  %v1570 = vpop.permute.xlu0 %1569
  %1571 = vrot.lane.b32.xlu0 %v266, 32
  %v1572 = vpop.permute.xlu0 %1571
  %1573 = vrot.lane.b32.xlu0 %v271, 32
  %v1574 = vpop.permute.xlu0 %1573
  %1575 = vrot.lane.b32.xlu0 %v276, 32
  %v1576 = vpop.permute.xlu0 %1575
  %1577 = vrot.lane.b32.xlu0 %v281, 32
  %v1578 = vpop.permute.xlu0 %1577
  %1579 = vrot.lane.b32.xlu0 %v286, 32
  %v1580 = vpop.permute.xlu0 %1579
  %1581 = vrot.lane.b32.xlu0 %v291, 32
  %v1582 = vpop.permute.xlu0 %1581
  %1583 = vrot.lane.b32.xlu0 %v296, 32
  %v1584 = vpop.permute.xlu0 %1583
  %1585 = vrot.lane.b32.xlu0 %v301, 32
  %v1586 = vpop.permute.xlu0 %1585
  %1587 = vrot.lane.b32.xlu0 %v306, 32
  %v1588 = vpop.permute.xlu0 %1587
  %1589 = vrot.lane.b32.xlu0 %v311, 32
  %v1590 = vpop.permute.xlu0 %1589
  %1591 = vrot.lane.b32.xlu0 %v316, 32
  %v1592 = vpop.permute.xlu0 %1591
  %1593 = vrot.lane.b32.xlu0 %v321, 32
  %v1594 = vpop.permute.xlu0 %1593
  %1595 = vrot.lane.b32.xlu0 %v326, 32
  %v1596 = vpop.permute.xlu0 %1595
  %1597 = vrot.lane.b32.xlu0 %v331, 32
  %v1598 = vpop.permute.xlu0 %1597
  %1599 = vrot.lane.b32.xlu0 %v336, 32
  %v1600 = vpop.permute.xlu0 %1599
  %1601 = vrot.lane.b32.xlu0 %v341, 32
  %v1602 = vpop.permute.xlu0 %1601
  %1603 = vrot.lane.b32.xlu0 %v346, 32
  %v1604 = vpop.permute.xlu0 %1603
  %1605 = vrot.lane.b32.xlu0 %v351, 32
  %v1606 = vpop.permute.xlu0 %1605
  %1607 = vrot.lane.b32.xlu0 %v356, 32
  %v1608 = vpop.permute.xlu0 %1607
  %1609 = vrot.lane.b32.xlu0 %v361, 32
  %v1610 = vpop.permute.xlu0 %1609
  %1611 = vrot.lane.b32.xlu0 %v366, 32
  %v1612 = vpop.permute.xlu0 %1611
  %1613 = vrot.lane.b32.xlu0 %v371, 32
  %v1614 = vpop.permute.xlu0 %1613
  %1615 = vrot.lane.b32.xlu0 %v376, 32
  %v1616 = vpop.permute.xlu0 %1615
  %1617 = vrot.lane.b32.xlu0 %v381, 32
  %v1618 = vpop.permute.xlu0 %1617
  %1651 = vrot.lane.b32.xlu0 %v23, 64
  %v1652 = vpop.permute.xlu0 %1651
  %1653 = vrot.lane.b32.xlu0 %v26, 64
  %v1654 = vpop.permute.xlu0 %1653
  %1655 = vrot.lane.b32.xlu0 %v29, 64
  %v1656 = vpop.permute.xlu0 %1655
  %1657 = vrot.lane.b32.xlu0 %v32, 64
  %v1658 = vpop.permute.xlu0 %1657
  %1659 = vrot.lane.b32.xlu0 %v35, 64
  %v1660 = vpop.permute.xlu0 %1659
  %1661 = vrot.lane.b32.xlu0 %v38, 64
  %v1662 = vpop.permute.xlu0 %1661
  %1663 = vrot.lane.b32.xlu0 %v41, 64
  %v1664 = vpop.permute.xlu0 %1663
  %1665 = vrot.lane.b32.xlu0 %v44, 64
  %v1666 = vpop.permute.xlu0 %1665
  %1667 = vrot.lane.b32.xlu0 %v47, 64
  %v1668 = vpop.permute.xlu0 %1667
  %1669 = vrot.lane.b32.xlu0 %v50, 64
  %v1670 = vpop.permute.xlu0 %1669
  %1671 = vrot.lane.b32.xlu0 %v53, 64
  %v1672 = vpop.permute.xlu0 %1671
  %1673 = vrot.lane.b32.xlu0 %v56, 64
  %v1674 = vpop.permute.xlu0 %1673
  %1675 = vrot.lane.b32.xlu0 %v59, 64
  %v1676 = vpop.permute.xlu0 %1675
  %1677 = vrot.lane.b32.xlu0 %v62, 64
  %v1678 = vpop.permute.xlu0 %1677
  %1679 = vrot.lane.b32.xlu0 %v65, 64
  %v1680 = vpop.permute.xlu0 %1679
  %1681 = vrot.lane.b32.xlu0 %v68, 64
  %v1682 = vpop.permute.xlu0 %1681
  %1683 = vrot.lane.b32.xlu0 %v77, 64
  %v1684 = vpop.permute.xlu0 %1683
  %1685 = vrot.lane.b32.xlu0 %v80, 64
  %v1686 = vpop.permute.xlu0 %1685
  %1687 = vrot.lane.b32.xlu0 %v83, 64
  %v1688 = vpop.permute.xlu0 %1687
  %1689 = vrot.lane.b32.xlu0 %v86, 64
  %v1690 = vpop.permute.xlu0 %1689
  %1691 = vrot.lane.b32.xlu0 %v89, 64
  %v1692 = vpop.permute.xlu0 %1691
  %1693 = vrot.lane.b32.xlu0 %v92, 64
  %v1694 = vpop.permute.xlu0 %1693
  %1695 = vrot.lane.b32.xlu0 %v95, 64
  %v1696 = vpop.permute.xlu0 %1695
  %1697 = vrot.lane.b32.xlu0 %v98, 64
  %v1698 = vpop.permute.xlu0 %1697
  %1699 = vrot.lane.b32.xlu0 %v101, 64
  %v1700 = vpop.permute.xlu0 %1699
  %1701 = vrot.lane.b32.xlu0 %v104, 64
  %v1702 = vpop.permute.xlu0 %1701
  %1703 = vrot.lane.b32.xlu0 %v107, 64
  %v1704 = vpop.permute.xlu0 %1703
  %1705 = vrot.lane.b32.xlu0 %v110, 64
  %v1706 = vpop.permute.xlu0 %1705
  %1707 = vrot.lane.b32.xlu0 %v113, 64
  %v1708 = vpop.permute.xlu0 %1707
  %1709 = vrot.lane.b32.xlu0 %v116, 64
  %v1710 = vpop.permute.xlu0 %1709
  %1711 = vrot.lane.b32.xlu0 %v119, 64
  %v1712 = vpop.permute.xlu0 %1711
  %1713 = vrot.lane.b32.xlu0 %v122, 64
  %v1714 = vpop.permute.xlu0 %1713
  %1747 = vrot.lane.b32.xlu0 %v231, 96
  %v1748 = vpop.permute.xlu0 %1747
  %1749 = vrot.lane.b32.xlu0 %v236, 96
  %v1750 = vpop.permute.xlu0 %1749
  %1751 = vrot.lane.b32.xlu0 %v241, 96
  %v1752 = vpop.permute.xlu0 %1751
  %1753 = vrot.lane.b32.xlu0 %v246, 96
  %v1754 = vpop.permute.xlu0 %1753
  %1755 = vrot.lane.b32.xlu0 %v251, 96
  %v1756 = vpop.permute.xlu0 %1755
  %1757 = vrot.lane.b32.xlu0 %v256, 96
  %v1758 = vpop.permute.xlu0 %1757
  %1759 = vrot.lane.b32.xlu0 %v261, 96
  %v1760 = vpop.permute.xlu0 %1759
  %1761 = vrot.lane.b32.xlu0 %v266, 96
  %v1762 = vpop.permute.xlu0 %1761
  %1763 = vrot.lane.b32.xlu0 %v271, 96
  %v1764 = vpop.permute.xlu0 %1763
  %1765 = vrot.lane.b32.xlu0 %v276, 96
  %v1766 = vpop.permute.xlu0 %1765
  %1767 = vrot.lane.b32.xlu0 %v281, 96
  %v1768 = vpop.permute.xlu0 %1767
  %1769 = vrot.lane.b32.xlu0 %v286, 96
  %v1770 = vpop.permute.xlu0 %1769
  %1771 = vrot.lane.b32.xlu0 %v291, 96
  %v1772 = vpop.permute.xlu0 %1771
  %1773 = vrot.lane.b32.xlu0 %v296, 96
  %v1774 = vpop.permute.xlu0 %1773
  %1775 = vrot.lane.b32.xlu0 %v301, 96
  %v1776 = vpop.permute.xlu0 %1775
  %1777 = vrot.lane.b32.xlu0 %v776, 96
  %v1778 = vpop.permute.xlu0 %1777
  %1779 = vrot.lane.b32.xlu0 %v311, 96
  %v1780 = vpop.permute.xlu0 %1779
  %1781 = vrot.lane.b32.xlu0 %v316, 96
  %v1782 = vpop.permute.xlu0 %1781
  %1783 = vrot.lane.b32.xlu0 %v321, 96
  %v1784 = vpop.permute.xlu0 %1783
  %1785 = vrot.lane.b32.xlu0 %v326, 96
  %v1786 = vpop.permute.xlu0 %1785
  %1787 = vrot.lane.b32.xlu0 %v331, 96
  %v1788 = vpop.permute.xlu0 %1787
  %1789 = vrot.lane.b32.xlu0 %v336, 96
  %v1790 = vpop.permute.xlu0 %1789
  %1791 = vrot.lane.b32.xlu0 %v341, 96
  %v1792 = vpop.permute.xlu0 %1791
  %1793 = vrot.lane.b32.xlu0 %v346, 96
  %v1794 = vpop.permute.xlu0 %1793
  %1795 = vrot.lane.b32.xlu0 %v351, 96
  %v1796 = vpop.permute.xlu0 %1795
  %1797 = vrot.lane.b32.xlu0 %v356, 96
  %v1798 = vpop.permute.xlu0 %1797
  %1799 = vrot.lane.b32.xlu0 %v361, 96
  %v1800 = vpop.permute.xlu0 %1799
  %1801 = vrot.lane.b32.xlu0 %v366, 96
  %v1802 = vpop.permute.xlu0 %1801
  %1803 = vrot.lane.b32.xlu0 %v371, 96
  %v1804 = vpop.permute.xlu0 %1803
  %1805 = vrot.lane.b32.xlu0 %v376, 96
  %v1806 = vpop.permute.xlu0 %1805
  %1807 = vrot.lane.b32.xlu0 %v381, 96
  %v1808 = vpop.permute.xlu0 %1807
  %1809 = vrot.lane.b32.xlu0 %v781, 96
  %v1810 = vpop.permute.xlu0 %1809
  %v1843 = vsel %vm975, %v20, %v1556
  %v1844 = vsel %vm975, %v23, %v1558
  %v1845 = vsel %vm975, %v26, %v1560
  %v1846 = vsel %vm975, %v29, %v1562
  %v1847 = vsel %vm975, %v32, %v1564
  %v1848 = vsel %vm975, %v35, %v1566
  %v1849 = vsel %vm975, %v38, %v1568
  %v1850 = vsel %vm975, %v41, %v1570
  %v1851 = vsel %vm975, %v44, %v1572
  %v1852 = vsel %vm975, %v47, %v1574
  %v1853 = vsel %vm975, %v50, %v1576
  %v1854 = vsel %vm975, %v53, %v1578
  %v1855 = vsel %vm975, %v56, %v1580
  %v1856 = vsel %vm975, %v59, %v1582
  %v1857 = vsel %vm975, %v62, %v1584
  %v1858 = vsel %vm975, %v65, %v1586
  %v1859 = vsel %vm975, %v74, %v1588
  %v1860 = vsel %vm975, %v77, %v1590
  %v1861 = vsel %vm975, %v80, %v1592
  %v1862 = vsel %vm975, %v83, %v1594
  %v1863 = vsel %vm975, %v86, %v1596
  %v1864 = vsel %vm975, %v89, %v1598
  %v1865 = vsel %vm975, %v92, %v1600
  %v1866 = vsel %vm975, %v95, %v1602
  %v1867 = vsel %vm975, %v98, %v1604
  %v1868 = vsel %vm975, %v101, %v1606
  %v1869 = vsel %vm975, %v104, %v1608
  %v1870 = vsel %vm975, %v107, %v1610
  %v1871 = vsel %vm975, %v110, %v1612
  %v1872 = vsel %vm975, %v113, %v1614
  %v1873 = vsel %vm975, %v116, %v1616
  %v1874 = vsel %vm975, %v119, %v1618
  %v1875 = vsel %vm1040, %v1843, %v1652
  %v1876 = vsel %vm1040, %v1844, %v1654
  %v1877 = vsel %vm1040, %v1845, %v1656
  %v1878 = vsel %vm1040, %v1846, %v1658
  %v1879 = vsel %vm1040, %v1847, %v1660
  %v1880 = vsel %vm1040, %v1848, %v1662
  %v1881 = vsel %vm1040, %v1849, %v1664
  %v1882 = vsel %vm1040, %v1850, %v1666
  %v1883 = vsel %vm1040, %v1851, %v1668
  %v1884 = vsel %vm1040, %v1852, %v1670
  %v1885 = vsel %vm1040, %v1853, %v1672
  %v1886 = vsel %vm1040, %v1854, %v1674
  %v1887 = vsel %vm1040, %v1855, %v1676
  %v1888 = vsel %vm1040, %v1856, %v1678
  %v1889 = vsel %vm1040, %v1857, %v1680
  %v1890 = vsel %vm1040, %v1858, %v1682
  %v1891 = vsel %vm1040, %v1859, %v1684
  %v1892 = vsel %vm1040, %v1860, %v1686
  %v1893 = vsel %vm1040, %v1861, %v1688
  %v1894 = vsel %vm1040, %v1862, %v1690
  %v1895 = vsel %vm1040, %v1863, %v1692
  %v1896 = vsel %vm1040, %v1864, %v1694
  %v1897 = vsel %vm1040, %v1865, %v1696
  %v1898 = vsel %vm1040, %v1866, %v1698
  %v1899 = vsel %vm1040, %v1867, %v1700
  %v1900 = vsel %vm1040, %v1868, %v1702
  %v1901 = vsel %vm1040, %v1869, %v1704
  %v1902 = vsel %vm1040, %v1870, %v1706
  %v1903 = vsel %vm1040, %v1871, %v1708
  %v1904 = vsel %vm1040, %v1872, %v1710
  %v1905 = vsel %vm1040, %v1873, %v1712
  %v1906 = vsel %vm1040, %v1874, %v1714
  %v1907 = vsel %vm1105, %v1875, %v1748
  %v1908 = vsel %vm1105, %v1876, %v1750
  %v1909 = vsel %vm1105, %v1877, %v1752
  %v1910 = vsel %vm1105, %v1878, %v1754
  %v1911 = vsel %vm1105, %v1879, %v1756
  %v1912 = vsel %vm1105, %v1880, %v1758
  %v1913 = vsel %vm1105, %v1881, %v1760
  %v1914 = vsel %vm1105, %v1882, %v1762
  %v1915 = vsel %vm1105, %v1883, %v1764
  %v1916 = vsel %vm1105, %v1884, %v1766
  %v1917 = vsel %vm1105, %v1885, %v1768
  %v1918 = vsel %vm1105, %v1886, %v1770
  %v1919 = vsel %vm1105, %v1887, %v1772
  %v1920 = vsel %vm1105, %v1888, %v1774
  %v1921 = vsel %vm1105, %v1889, %v1776
  %v1922 = vsel %vm1105, %v1890, %v1778
  %v1923 = vsel %vm1105, %v1891, %v1780
  %v1924 = vsel %vm1105, %v1892, %v1782
  %v1925 = vsel %vm1105, %v1893, %v1784
  %v1926 = vsel %vm1105, %v1894, %v1786
  %v1927 = vsel %vm1105, %v1895, %v1788
  %v1928 = vsel %vm1105, %v1896, %v1790
  %v1929 = vsel %vm1105, %v1897, %v1792
  %v1930 = vsel %vm1105, %v1898, %v1794
  %v1931 = vsel %vm1105, %v1899, %v1796
  %v1932 = vsel %vm1105, %v1900, %v1798
  %v1933 = vsel %vm1105, %v1901, %v1800
  %v1934 = vsel %vm1105, %v1902, %v1802
  %v1935 = vsel %vm1105, %v1903, %v1804
  %v1936 = vsel %vm1105, %v1904, %v1806
  %v1937 = vsel %vm1105, %v1905, %v1808
  %v1938 = vsel %vm1105, %v1906, %v1810
  %v2035 = vrot.slane %v1106, 1
  %v2036 = vrot.slane %v1107, 1
  %v2037 = vsel %vm222, %v2035, %v2036
  %v2038 = vrot.slane %v1907, 1
  %v2039 = vsel %vm222, %v2036, %v2038
  %v2040 = vrot.slane %v1108, 1
  %v2041 = vrot.slane %v1109, 1
  %v2042 = vsel %vm222, %v2040, %v2041
  %v2043 = vrot.slane %v1908, 1
  %v2044 = vsel %vm222, %v2041, %v2043
  %v2045 = vrot.slane %v1110, 1
  %v2046 = vrot.slane %v1111, 1
  %v2047 = vsel %vm222, %v2045, %v2046
  %v2048 = vrot.slane %v1909, 1
  %v2049 = vsel %vm222, %v2046, %v2048
  %v2050 = vrot.slane %v1112, 1
  %v2051 = vrot.slane %v1113, 1
  %v2052 = vsel %vm222, %v2050, %v2051
  %v2053 = vrot.slane %v1910, 1
  %v2054 = vsel %vm222, %v2051, %v2053
  %v2055 = vrot.slane %v1114, 1
  %v2056 = vrot.slane %v1115, 1
  %v2057 = vsel %vm222, %v2055, %v2056
  %v2058 = vrot.slane %v1911, 1
  %v2059 = vsel %vm222, %v2056, %v2058
  %v2060 = vrot.slane %v1116, 1
  %v2061 = vrot.slane %v1117, 1
  %v2062 = vsel %vm222, %v2060, %v2061
  %v2063 = vrot.slane %v1912, 1
  %v2064 = vsel %vm222, %v2061, %v2063
  %v2065 = vrot.slane %v1118, 1
  %v2066 = vrot.slane %v1119, 1
  %v2067 = vsel %vm222, %v2065, %v2066
  %v2068 = vrot.slane %v1913, 1
  %v2069 = vsel %vm222, %v2066, %v2068
  %v2070 = vrot.slane %v1120, 1
  %v2071 = vrot.slane %v1121, 1
  %v2072 = vsel %vm222, %v2070, %v2071
  %v2073 = vrot.slane %v1914, 1
  %v2074 = vsel %vm222, %v2071, %v2073
  %v2075 = vrot.slane %v1122, 1
  %v2076 = vrot.slane %v1123, 1
  %v2077 = vsel %vm222, %v2075, %v2076
  %v2078 = vrot.slane %v1915, 1
  %v2079 = vsel %vm222, %v2076, %v2078
  %v2080 = vrot.slane %v1124, 1
  %v2081 = vrot.slane %v1125, 1
  %v2082 = vsel %vm222, %v2080, %v2081
  %v2083 = vrot.slane %v1916, 1
  %v2084 = vsel %vm222, %v2081, %v2083
  %v2085 = vrot.slane %v1126, 1
  %v2086 = vrot.slane %v1127, 1
  %v2087 = vsel %vm222, %v2085, %v2086
  %v2088 = vrot.slane %v1917, 1
  %v2089 = vsel %vm222, %v2086, %v2088
  %v2090 = vrot.slane %v1128, 1
  %v2091 = vrot.slane %v1129, 1
  %v2092 = vsel %vm222, %v2090, %v2091
  %v2093 = vrot.slane %v1918, 1
  %v2094 = vsel %vm222, %v2091, %v2093
  %v2095 = vrot.slane %v1130, 1
  %v2096 = vrot.slane %v1131, 1
  %v2097 = vsel %vm222, %v2095, %v2096
  %v2098 = vrot.slane %v1919, 1
  %v2099 = vsel %vm222, %v2096, %v2098
  %v2100 = vrot.slane %v1132, 1
  %v2101 = vrot.slane %v1133, 1
  %v2102 = vsel %vm222, %v2100, %v2101
  %v2103 = vrot.slane %v1920, 1
  %v2104 = vsel %vm222, %v2101, %v2103
  %v2105 = vrot.slane %v1134, 1
  %v2106 = vrot.slane %v1135, 1
  %v2107 = vsel %vm222, %v2105, %v2106
  %v2108 = vrot.slane %v1921, 1
  %v2109 = vsel %vm222, %v2106, %v2108
  %v2110 = vrot.slane %v1136, 1
  %v2111 = vrot.slane %v1137, 1
  %v2112 = vsel %vm222, %v2110, %v2111
  %v2113 = vrot.slane %v1922, 1
  %v2114 = vsel %vm222, %v2111, %v2113
  %v2115 = vrot.slane %v1138, 1
  %v2116 = vrot.slane %v1139, 1
  %v2117 = vsel %vm222, %v2115, %v2116
  %v2118 = vrot.slane %v1923, 1
  %v2119 = vsel %vm222, %v2116, %v2118
  %v2120 = vrot.slane %v1140, 1
  %v2121 = vrot.slane %v1141, 1
  %v2122 = vsel %vm222, %v2120, %v2121
  %v2123 = vrot.slane %v1924, 1
  %v2124 = vsel %vm222, %v2121, %v2123
  %v2125 = vrot.slane %v1142, 1
  %v2126 = vrot.slane %v1143, 1
  %v2127 = vsel %vm222, %v2125, %v2126
  %v2128 = vrot.slane %v1925, 1
  %v2129 = vsel %vm222, %v2126, %v2128
  %v2130 = vrot.slane %v1144, 1
  %v2131 = vrot.slane %v1145, 1
  %v2132 = vsel %vm222, %v2130, %v2131
  %v2133 = vrot.slane %v1926, 1
  %v2134 = vsel %vm222, %v2131, %v2133
  %v2135 = vrot.slane %v1146, 1
  %v2136 = vrot.slane %v1147, 1
  %v2137 = vsel %vm222, %v2135, %v2136
  %v2138 = vrot.slane %v1927, 1
  %v2139 = vsel %vm222, %v2136, %v2138
  %v2140 = vrot.slane %v1148, 1
  %v2141 = vrot.slane %v1149, 1
  %v2142 = vsel %vm222, %v2140, %v2141
  %v2143 = vrot.slane %v1928, 1
  %v2144 = vsel %vm222, %v2141, %v2143
  %v2145 = vrot.slane %v1150, 1
  %v2146 = vrot.slane %v1151, 1
  %v2147 = vsel %vm222, %v2145, %v2146
  %v2148 = vrot.slane %v1929, 1
  %v2149 = vsel %vm222, %v2146, %v2148
  %v2150 = vrot.slane %v1152, 1
  %v2151 = vrot.slane %v1153, 1
  %v2152 = vsel %vm222, %v2150, %v2151
  %v2153 = vrot.slane %v1930, 1
  %v2154 = vsel %vm222, %v2151, %v2153
  %v2155 = vrot.slane %v1154, 1
  %v2156 = vrot.slane %v1155, 1
  %v2157 = vsel %vm222, %v2155, %v2156
  %v2158 = vrot.slane %v1931, 1
  %v2159 = vsel %vm222, %v2156, %v2158
  %v2160 = vrot.slane %v1156, 1
  %v2161 = vrot.slane %v1157, 1
  %v2162 = vsel %vm222, %v2160, %v2161
  %v2163 = vrot.slane %v1932, 1
  %v2164 = vsel %vm222, %v2161, %v2163
  %v2165 = vrot.slane %v1158, 1
  %v2166 = vrot.slane %v1159, 1
  %v2167 = vsel %vm222, %v2165, %v2166
  %v2168 = vrot.slane %v1933, 1
  %v2169 = vsel %vm222, %v2166, %v2168
  %v2170 = vrot.slane %v1160, 1
  %v2171 = vrot.slane %v1161, 1
  %v2172 = vsel %vm222, %v2170, %v2171
  %v2173 = vrot.slane %v1934, 1
  %v2174 = vsel %vm222, %v2171, %v2173
  %v2175 = vrot.slane %v1162, 1
  %v2176 = vrot.slane %v1163, 1
  %v2177 = vsel %vm222, %v2175, %v2176
  %v2178 = vrot.slane %v1935, 1
  %v2179 = vsel %vm222, %v2176, %v2178
  %v2180 = vrot.slane %v1164, 1
  %v2181 = vrot.slane %v1165, 1
  %v2182 = vsel %vm222, %v2180, %v2181
  %v2183 = vrot.slane %v1936, 1
  %v2184 = vsel %vm222, %v2181, %v2183
  %v2185 = vrot.slane %v1166, 1
  %v2186 = vrot.slane %v1167, 1
  %v2187 = vsel %vm222, %v2185, %v2186
  %v2188 = vrot.slane %v1937, 1
  %v2189 = vsel %vm222, %v2186, %v2188
  %v2190 = vrot.slane %v1168, 1
  %v2191 = vrot.slane %v1169, 1
  %v2192 = vsel %vm222, %v2190, %v2191
  %v2193 = vrot.slane %v1938, 1
  %v2194 = vsel %vm222, %v2191, %v2193
  %v2259 = vpack.c.bf16 %v2039, %v2037
  %v2260 = vpack.c.bf16 %v2044, %v2042
  %v2261 = vpack.c.bf16 %v2049, %v2047
  %v2262 = vpack.c.bf16 %v2054, %v2052
  %v2263 = vpack.c.bf16 %v2059, %v2057
  %v2264 = vpack.c.bf16 %v2064, %v2062
  %v2265 = vpack.c.bf16 %v2069, %v2067
  %v2266 = vpack.c.bf16 %v2074, %v2072
  %v2267 = vpack.c.bf16 %v2079, %v2077
  %v2268 = vpack.c.bf16 %v2084, %v2082
  %v2269 = vpack.c.bf16 %v2089, %v2087
  %v2270 = vpack.c.bf16 %v2094, %v2092
  %v2271 = vpack.c.bf16 %v2099, %v2097
  %v2272 = vpack.c.bf16 %v2104, %v2102
  %v2273 = vpack.c.bf16 %v2109, %v2107
  %v2274 = vpack.c.bf16 %v2114, %v2112
  %v2275 = vpack.c.bf16 %v2119, %v2117
  %v2276 = vpack.c.bf16 %v2124, %v2122
  %v2277 = vpack.c.bf16 %v2129, %v2127
  %v2278 = vpack.c.bf16 %v2134, %v2132
  %v2279 = vpack.c.bf16 %v2139, %v2137
  %v2280 = vpack.c.bf16 %v2144, %v2142
  %v2281 = vpack.c.bf16 %v2149, %v2147
  %v2282 = vpack.c.bf16 %v2154, %v2152
  %v2283 = vpack.c.bf16 %v2159, %v2157
  %v2284 = vpack.c.bf16 %v2164, %v2162
  %v2285 = vpack.c.bf16 %v2169, %v2167
  %v2286 = vpack.c.bf16 %v2174, %v2172
  %v2287 = vpack.c.bf16 %v2179, %v2177
  %v2288 = vpack.c.bf16 %v2184, %v2182
  %v2289 = vpack.c.bf16 %v2189, %v2187
  %v2290 = vpack.c.bf16 %v2194, %v2192
  %s2291 = scalar_lea.vmem %s1, 64
  %v2292 = vld [vmem:[%s2291] sm:$0xf]
  %v2293 = vld [vmem:[%s2291 + $0x4] sm:$0xf]
  %v2294 = vld [vmem:[%s2291 + $0x8] sm:$0xf]
  %v2295 = vld [vmem:[%s2291 + $0xc] sm:$0xf]
  %v2296 = vld [vmem:[%s2291 + $0x10] sm:$0xf]
  %v2297 = vld [vmem:[%s2291 + $0x14] sm:$0xf]
  %v2298 = vld [vmem:[%s2291 + $0x18] sm:$0xf]
  %v2299 = vld [vmem:[%s2291 + $0x1c] sm:$0xf]
  %v2300 = vld [vmem:[%s2291 + $0x20] sm:$0xf]
  %v2301 = vld [vmem:[%s2291 + $0x24] sm:$0xf]
  %v2302 = vld [vmem:[%s2291 + $0x28] sm:$0xf]
  %v2303 = vld [vmem:[%s2291 + $0x2c] sm:$0xf]
  %v2304 = vld [vmem:[%s2291 + $0x30] sm:$0xf]
  %v2305 = vld [vmem:[%s2291 + $0x34] sm:$0xf]
  %v2306 = vld [vmem:[%s2291 + $0x38] sm:$0xf]
  %v2307 = vld [vmem:[%s2291 + $0x3c] sm:$0xf]
  %v2324 = vunpack.c.l.b16 %v2292
  %v2325 = vunpack.c.l.b16 %v2293
  %v2326 = vunpack.c.l.b16 %v2294
  %v2327 = vunpack.c.l.b16 %v2295
  %v2328 = vunpack.c.l.b16 %v2296
  %v2329 = vunpack.c.l.b16 %v2297
  %v2330 = vunpack.c.l.b16 %v2298
  %v2331 = vunpack.c.l.b16 %v2299
  %v2332 = vunpack.c.l.b16 %v2300
  %v2333 = vunpack.c.l.b16 %v2301
  %v2334 = vunpack.c.l.b16 %v2302
  %v2335 = vunpack.c.l.b16 %v2303
  %v2336 = vunpack.c.l.b16 %v2304
  %v2337 = vunpack.c.l.b16 %v2305
  %v2338 = vunpack.c.l.b16 %v2306
  %v2339 = vunpack.c.l.b16 %v2307
  %v2340 = vpack.c.b16 %v2325, %v2324
  %v2341 = vpack.c.b16 %v2327, %v2326
  %v2342 = vpack.c.b16 %v2329, %v2328
  %v2343 = vpack.c.b16 %v2331, %v2330
  %v2344 = vpack.c.b16 %v2333, %v2332
  %v2345 = vpack.c.b16 %v2335, %v2334
  %v2346 = vpack.c.b16 %v2337, %v2336
  %v2347 = vpack.c.b16 %v2339, %v2338
  %2356 = vmatprep.subr.bf16.mxu0 0
  %2357 = vmatpush1.bf16.msra.mxu0 %v2340
  %2358 = vmatprep.subr.bf16.mxu0 0
  %2359 = vmatpush1.bf16.msra.mxu0 %v2341
  %2360 = vmatprep.subr.bf16.mxu0 0
  %2361 = vmatpush1.bf16.msra.mxu0 %v2342
  %2362 = vmatprep.subr.bf16.mxu0 0
  %2363 = vmatpush1.bf16.msra.mxu0 %v2343
  %2364 = vmatprep.subr.bf16.mxu0 0
  %2365 = vmatpush1.bf16.msra.mxu0 %v2344
  %2366 = vmatprep.subr.bf16.mxu0 0
  %2367 = vmatpush1.bf16.msra.mxu0 %v2345
  %2368 = vmatprep.subr.bf16.mxu0 0
  %2369 = vmatpush1.bf16.msra.mxu0 %v2346
  %2370 = vmatprep.subr.bf16.mxu0 0
  %2371 = vmatpush1.bf16.msra.mxu0 %v2347
  %2372 = vmatprep.subr.bf16.mxu0 0
  %2373 = vmatpush1.bf16.msra.mxu0 0
  %2374 = vmatprep.subr.bf16.mxu0 0
  %2375 = vmatpush1.bf16.msra.mxu0 0
  %2376 = vmatprep.subr.bf16.mxu0 0
  %2377 = vmatpush1.bf16.msra.mxu0 0
  %2378 = vmatprep.subr.bf16.mxu0 0
  %2379 = vmatpush1.bf16.msra.mxu0 0
  %2380 = vmatprep.subr.bf16.mxu0 0
  %2381 = vmatpush1.bf16.msra.mxu0 0
  %2382 = vmatprep.subr.bf16.mxu0 0
  %2383 = vmatpush1.bf16.msra.mxu0 0
  %2384 = vmatprep.subr.bf16.mxu0 0
  %2385 = vmatpush1.bf16.msra.mxu0 0
  %2386 = vmatprep.subr.bf16.mxu0 0
  %2387 = vmatpush1.bf16.msra.mxu0 0
  %2388 = vmatprep.mubr.bf16.mxu0 0
  %2389 = vmatmul.mubr.bf16.gmra.mrb[0].mxu0 %v2259
  %v2390 = vpop.f32.mrb[0].mxu0
  %v2391 = vadd.f32 0.0, %v2390
  %v2392 = vpop.f32.mrb[0].mxu0
  %v2393 = vpop.f32.mrb[0].mxu0
  %v2394 = vadd.f32 0.0, %v2393
  %v2395 = vpop.f32.mrb[0].mxu0
  %2396 = vmatprep.mubr.bf16.mxu0 0
  %2397 = vmatmul.mubr.bf16.gmra.mrb[0].mxu0 %v2260
  %v2398 = vpop.f32.mrb[0].mxu0
  %v2399 = vadd.f32 0.0, %v2398
  %v2400 = vpop.f32.mrb[0].mxu0
  %v2401 = vpop.f32.mrb[0].mxu0
  %v2402 = vadd.f32 0.0, %v2401
  %v2403 = vpop.f32.mrb[0].mxu0
  %2404 = vmatprep.mubr.bf16.mxu0 0
  %2405 = vmatmul.mubr.bf16.gmra.mrb[0].mxu0 %v2261
  %v2406 = vpop.f32.mrb[0].mxu0
  %v2407 = vadd.f32 0.0, %v2406
  %v2408 = vpop.f32.mrb[0].mxu0
  %v2409 = vpop.f32.mrb[0].mxu0
  %v2410 = vadd.f32 0.0, %v2409
  %v2411 = vpop.f32.mrb[0].mxu0
  %2412 = vmatprep.mubr.bf16.mxu0 0
  %2413 = vmatmul.mubr.bf16.gmra.mrb[0].mxu0 %v2262
  %v2414 = vpop.f32.mrb[0].mxu0
  %v2415 = vadd.f32 0.0, %v2414
  %v2416 = vpop.f32.mrb[0].mxu0
  %v2417 = vpop.f32.mrb[0].mxu0
  %v2418 = vadd.f32 0.0, %v2417
  %v2419 = vpop.f32.mrb[0].mxu0
  %2420 = vmatprep.mubr.bf16.mxu0 0
  %2421 = vmatmul.mubr.bf16.gmra.mrb[0].mxu0 %v2263
  %v2422 = vpop.f32.mrb[0].mxu0
  %v2423 = vadd.f32 0.0, %v2422
  %v2424 = vpop.f32.mrb[0].mxu0
  %v2425 = vpop.f32.mrb[0].mxu0
  %v2426 = vadd.f32 0.0, %v2425
  %v2427 = vpop.f32.mrb[0].mxu0
  %2428 = vmatprep.mubr.bf16.mxu0 0
  %2429 = vmatmul.mubr.bf16.gmra.mrb[0].mxu0 %v2264
  %v2430 = vpop.f32.mrb[0].mxu0
  %v2431 = vadd.f32 0.0, %v2430
  %v2432 = vpop.f32.mrb[0].mxu0
  %v2433 = vpop.f32.mrb[0].mxu0
  %v2434 = vadd.f32 0.0, %v2433
  %v2435 = vpop.f32.mrb[0].mxu0
  %2436 = vmatprep.mubr.bf16.mxu0 0
  %2437 = vmatmul.mubr.bf16.gmra.mrb[0].mxu0 %v2265
  %v2438 = vpop.f32.mrb[0].mxu0
  %v2439 = vadd.f32 0.0, %v2438
  %v2440 = vpop.f32.mrb[0].mxu0
  %v2441 = vpop.f32.mrb[0].mxu0
  %v2442 = vadd.f32 0.0, %v2441
  %v2443 = vpop.f32.mrb[0].mxu0
  %2444 = vmatprep.mubr.bf16.mxu0 0
  %2445 = vmatmul.mubr.bf16.gmra.mrb[0].mxu0 %v2266
  %v2446 = vpop.f32.mrb[0].mxu0
  %v2447 = vadd.f32 0.0, %v2446
  %v2448 = vpop.f32.mrb[0].mxu0
  %v2449 = vpop.f32.mrb[0].mxu0
  %v2450 = vadd.f32 0.0, %v2449
  %v2451 = vpop.f32.mrb[0].mxu0
  %2452 = vmatprep.mubr.bf16.mxu0 0
  %2453 = vmatmul.mubr.bf16.gmra.mrb[0].mxu0 %v2267
  %v2454 = vpop.f32.mrb[0].mxu0
  %v2455 = vadd.f32 0.0, %v2454
  %v2456 = vpop.f32.mrb[0].mxu0
  %v2457 = vpop.f32.mrb[0].mxu0
  %v2458 = vadd.f32 0.0, %v2457
  %v2459 = vpop.f32.mrb[0].mxu0
  %2460 = vmatprep.mubr.bf16.mxu0 0
  %2461 = vmatmul.mubr.bf16.gmra.mrb[0].mxu0 %v2268
  %v2462 = vpop.f32.mrb[0].mxu0
  %v2463 = vadd.f32 0.0, %v2462
  %v2464 = vpop.f32.mrb[0].mxu0
  %v2465 = vpop.f32.mrb[0].mxu0
  %v2466 = vadd.f32 0.0, %v2465
  %v2467 = vpop.f32.mrb[0].mxu0
  %2468 = vmatprep.mubr.bf16.mxu0 0
  %2469 = vmatmul.mubr.bf16.gmra.mrb[0].mxu0 %v2269
  %v2470 = vpop.f32.mrb[0].mxu0
  %v2471 = vadd.f32 0.0, %v2470
  %v2472 = vpop.f32.mrb[0].mxu0
  %v2473 = vpop.f32.mrb[0].mxu0
  %v2474 = vadd.f32 0.0, %v2473
  %v2475 = vpop.f32.mrb[0].mxu0
  %2476 = vmatprep.mubr.bf16.mxu0 0
  %2477 = vmatmul.mubr.bf16.gmra.mrb[0].mxu0 %v2270
  %v2478 = vpop.f32.mrb[0].mxu0
  %v2479 = vadd.f32 0.0, %v2478
  %v2480 = vpop.f32.mrb[0].mxu0
  %v2481 = vpop.f32.mrb[0].mxu0
  %v2482 = vadd.f32 0.0, %v2481
  %v2483 = vpop.f32.mrb[0].mxu0
  %2484 = vmatprep.mubr.bf16.mxu0 0
  %2485 = vmatmul.mubr.bf16.gmra.mrb[0].mxu0 %v2271
  %v2486 = vpop.f32.mrb[0].mxu0
  %v2487 = vadd.f32 0.0, %v2486
  %v2488 = vpop.f32.mrb[0].mxu0
  %v2489 = vpop.f32.mrb[0].mxu0
  %v2490 = vadd.f32 0.0, %v2489
  %v2491 = vpop.f32.mrb[0].mxu0
  %2492 = vmatprep.mubr.bf16.mxu0 0
  %2493 = vmatmul.mubr.bf16.gmra.mrb[0].mxu0 %v2272
  %v2494 = vpop.f32.mrb[0].mxu0
  %v2495 = vadd.f32 0.0, %v2494
  %v2496 = vpop.f32.mrb[0].mxu0
  %v2497 = vpop.f32.mrb[0].mxu0
  %v2498 = vadd.f32 0.0, %v2497
  %v2499 = vpop.f32.mrb[0].mxu0
  %2500 = vmatprep.mubr.bf16.mxu0 0
  %2501 = vmatmul.mubr.bf16.gmra.mrb[0].mxu0 %v2273
  %v2502 = vpop.f32.mrb[0].mxu0
  %v2503 = vadd.f32 0.0, %v2502
  %v2504 = vpop.f32.mrb[0].mxu0
  %v2505 = vpop.f32.mrb[0].mxu0
  %v2506 = vadd.f32 0.0, %v2505
  %v2507 = vpop.f32.mrb[0].mxu0
  %2508 = vmatprep.mubr.bf16.mxu0 0
  %2509 = vmatmul.mubr.bf16.gmra.mrb[0].mxu0 %v2274
  %v2510 = vpop.f32.mrb[0].mxu0
  %v2511 = vadd.f32 0.0, %v2510
  %v2512 = vpop.f32.mrb[0].mxu0
  %v2513 = vpop.f32.mrb[0].mxu0
  %v2514 = vadd.f32 0.0, %v2513
  %v2515 = vpop.f32.mrb[0].mxu0
  %2516 = vmatprep.mubr.bf16.mxu0 0
  %2517 = vmatmul.mubr.bf16.gmra.mrb[0].mxu0 %v2275
  %v2518 = vpop.f32.mrb[0].mxu0
  %v2519 = vadd.f32 0.0, %v2518
  %v2520 = vpop.f32.mrb[0].mxu0
  %v2521 = vpop.f32.mrb[0].mxu0
  %v2522 = vadd.f32 0.0, %v2521
  %v2523 = vpop.f32.mrb[0].mxu0
  %2524 = vmatprep.mubr.bf16.mxu0 0
  %2525 = vmatmul.mubr.bf16.gmra.mrb[0].mxu0 %v2276
  %v2526 = vpop.f32.mrb[0].mxu0
  %v2527 = vadd.f32 0.0, %v2526
  %v2528 = vpop.f32.mrb[0].mxu0
  %v2529 = vpop.f32.mrb[0].mxu0
  %v2530 = vadd.f32 0.0, %v2529
  %v2531 = vpop.f32.mrb[0].mxu0
  %2532 = vmatprep.mubr.bf16.mxu0 0
  %2533 = vmatmul.mubr.bf16.gmra.mrb[0].mxu0 %v2277
  %v2534 = vpop.f32.mrb[0].mxu0
  %v2535 = vadd.f32 0.0, %v2534
  %v2536 = vpop.f32.mrb[0].mxu0
  %v2537 = vpop.f32.mrb[0].mxu0
  %v2538 = vadd.f32 0.0, %v2537
  %v2539 = vpop.f32.mrb[0].mxu0
  %2540 = vmatprep.mubr.bf16.mxu0 0
  %2541 = vmatmul.mubr.bf16.gmra.mrb[0].mxu0 %v2278
  %v2542 = vpop.f32.mrb[0].mxu0
  %v2543 = vadd.f32 0.0, %v2542
  %v2544 = vpop.f32.mrb[0].mxu0
  %v2545 = vpop.f32.mrb[0].mxu0
  %v2546 = vadd.f32 0.0, %v2545
  %v2547 = vpop.f32.mrb[0].mxu0
  %2548 = vmatprep.mubr.bf16.mxu0 0
  %2549 = vmatmul.mubr.bf16.gmra.mrb[0].mxu0 %v2279
  %v2550 = vpop.f32.mrb[0].mxu0
  %v2551 = vadd.f32 0.0, %v2550
  %v2552 = vpop.f32.mrb[0].mxu0
  %v2553 = vpop.f32.mrb[0].mxu0
  %v2554 = vadd.f32 0.0, %v2553
  %v2555 = vpop.f32.mrb[0].mxu0
  %2556 = vmatprep.mubr.bf16.mxu0 0
  %2557 = vmatmul.mubr.bf16.gmra.mrb[0].mxu0 %v2280
  %v2558 = vpop.f32.mrb[0].mxu0
  %v2559 = vadd.f32 0.0, %v2558
  %v2560 = vpop.f32.mrb[0].mxu0
  %v2561 = vpop.f32.mrb[0].mxu0
  %v2562 = vadd.f32 0.0, %v2561
  %v2563 = vpop.f32.mrb[0].mxu0
  %2564 = vmatprep.mubr.bf16.mxu0 0
  %2565 = vmatmul.mubr.bf16.gmra.mrb[0].mxu0 %v2281
  %v2566 = vpop.f32.mrb[0].mxu0
  %v2567 = vadd.f32 0.0, %v2566
  %v2568 = vpop.f32.mrb[0].mxu0
  %v2569 = vpop.f32.mrb[0].mxu0
  %v2570 = vadd.f32 0.0, %v2569
  %v2571 = vpop.f32.mrb[0].mxu0
  %2572 = vmatprep.mubr.bf16.mxu0 0
  %2573 = vmatmul.mubr.bf16.gmra.mrb[0].mxu0 %v2282
  %v2574 = vpop.f32.mrb[0].mxu0
  %v2575 = vadd.f32 0.0, %v2574
  %v2576 = vpop.f32.mrb[0].mxu0
  %v2577 = vpop.f32.mrb[0].mxu0
  %v2578 = vadd.f32 0.0, %v2577
  %v2579 = vpop.f32.mrb[0].mxu0
  %2580 = vmatprep.mubr.bf16.mxu0 0
  %2581 = vmatmul.mubr.bf16.gmra.mrb[0].mxu0 %v2283
  %v2582 = vpop.f32.mrb[0].mxu0
  %v2583 = vadd.f32 0.0, %v2582
  %v2584 = vpop.f32.mrb[0].mxu0
  %v2585 = vpop.f32.mrb[0].mxu0
  %v2586 = vadd.f32 0.0, %v2585
  %v2587 = vpop.f32.mrb[0].mxu0
  %2588 = vmatprep.mubr.bf16.mxu0 0
  %2589 = vmatmul.mubr.bf16.gmra.mrb[0].mxu0 %v2284
  %v2590 = vpop.f32.mrb[0].mxu0
  %v2591 = vadd.f32 0.0, %v2590
  %v2592 = vpop.f32.mrb[0].mxu0
  %v2593 = vpop.f32.mrb[0].mxu0
  %v2594 = vadd.f32 0.0, %v2593
  %v2595 = vpop.f32.mrb[0].mxu0
  %2596 = vmatprep.mubr.bf16.mxu0 0
  %2597 = vmatmul.mubr.bf16.gmra.mrb[0].mxu0 %v2285
  %v2598 = vpop.f32.mrb[0].mxu0
  %v2599 = vadd.f32 0.0, %v2598
  %v2600 = vpop.f32.mrb[0].mxu0
  %v2601 = vpop.f32.mrb[0].mxu0
  %v2602 = vadd.f32 0.0, %v2601
  %v2603 = vpop.f32.mrb[0].mxu0
  %2604 = vmatprep.mubr.bf16.mxu0 0
  %2605 = vmatmul.mubr.bf16.gmra.mrb[0].mxu0 %v2286
  %v2606 = vpop.f32.mrb[0].mxu0
  %v2607 = vadd.f32 0.0, %v2606
  %v2608 = vpop.f32.mrb[0].mxu0
  %v2609 = vpop.f32.mrb[0].mxu0
  %v2610 = vadd.f32 0.0, %v2609
  %v2611 = vpop.f32.mrb[0].mxu0
  %2612 = vmatprep.mubr.bf16.mxu0 0
  %2613 = vmatmul.mubr.bf16.gmra.mrb[0].mxu0 %v2287
  %v2614 = vpop.f32.mrb[0].mxu0
  %v2615 = vadd.f32 0.0, %v2614
  %v2616 = vpop.f32.mrb[0].mxu0
  %v2617 = vpop.f32.mrb[0].mxu0
  %v2618 = vadd.f32 0.0, %v2617
  %v2619 = vpop.f32.mrb[0].mxu0
  %2620 = vmatprep.mubr.bf16.mxu0 0
  %2621 = vmatmul.mubr.bf16.gmra.mrb[0].mxu0 %v2288
  %v2622 = vpop.f32.mrb[0].mxu0
  %v2623 = vadd.f32 0.0, %v2622
  %v2624 = vpop.f32.mrb[0].mxu0
  %v2625 = vpop.f32.mrb[0].mxu0
  %v2626 = vadd.f32 0.0, %v2625
  %v2627 = vpop.f32.mrb[0].mxu0
  %2628 = vmatprep.mubr.bf16.mxu0 0
  %2629 = vmatmul.mubr.bf16.gmra.mrb[0].mxu0 %v2289
  %v2630 = vpop.f32.mrb[0].mxu0
  %v2631 = vadd.f32 0.0, %v2630
  %v2632 = vpop.f32.mrb[0].mxu0
  %v2633 = vpop.f32.mrb[0].mxu0
  %v2634 = vadd.f32 0.0, %v2633
  %v2635 = vpop.f32.mrb[0].mxu0
  %2636 = vmatprep.mubr.bf16.mxu0 0
  %2637 = vmatmul.mubr.bf16.gmra.mrb[0].mxu0 %v2290
  %v2638 = vpop.f32.mrb[0].mxu0
  %v2639 = vadd.f32 0.0, %v2638
  %v2640 = vpop.f32.mrb[0].mxu0
  %v2641 = vpop.f32.mrb[0].mxu0
  %v2642 = vadd.f32 0.0, %v2641
  %v2643 = vpop.f32.mrb[0].mxu0
  %2644 = vdwg.mxu0
  %2645 = vrot.lane.b32.xlu0 %v775, 32
  %v2646 = vpop.permute.xlu0 %2645
  %2647 = vrot.lane.b32.xlu0 %v777, 32
  %v2648 = vpop.permute.xlu0 %2647
  %2649 = vrot.lane.b32.xlu0 %v780, 32
  %v2650 = vpop.permute.xlu0 %2649
  %2651 = vrot.lane.b32.xlu0 %v782, 32
  %v2652 = vpop.permute.xlu0 %2651
  %2661 = vrot.lane.b32.xlu0 %v69, 64
  %v2662 = vpop.permute.xlu0 %2661
  %2663 = vrot.lane.b32.xlu0 %v70, 64
  %v2664 = vpop.permute.xlu0 %2663
  %2665 = vrot.lane.b32.xlu0 %v123, 64
  %v2666 = vpop.permute.xlu0 %2665
  %2667 = vrot.lane.b32.xlu0 %v124, 64
  %v2668 = vpop.permute.xlu0 %2667
  %v2675 = vrot.slane %v69, 1
  %v2676 = vrot.slane %v70, 1
  %v2677 = vsel %vm222, %v2675, %v2676
  %v2678 = vrot.slane %v71, 1
  %v2679 = vsel %vm222, %v2676, %v2678
  %v2680 = vrot.slane %v123, 1
  %v2681 = vrot.slane %v124, 1
  %v2682 = vsel %vm222, %v2680, %v2681
  %v2683 = vrot.slane %v125, 1
  %v2684 = vsel %vm222, %v2681, %v2683
  %2685 = vrot.lane.b32.xlu0 %v2677, 96
  %v2686 = vpop.permute.xlu0 %2685
  %2687 = vrot.lane.b32.xlu0 %v2679, 96
  %v2688 = vpop.permute.xlu0 %2687
  %2689 = vrot.lane.b32.xlu0 %v2682, 96
  %v2690 = vpop.permute.xlu0 %2689
  %2691 = vrot.lane.b32.xlu0 %v2684, 96
  %v2692 = vpop.permute.xlu0 %2691
  %v2697 = vsel %vm975, %v66, %v2646
  %v2698 = vsel %vm975, %v67, %v2648
  %v2699 = vsel %vm975, %v120, %v2650
  %v2700 = vsel %vm975, %v121, %v2652
  %v2701 = vsel %vm1040, %v2697, %v2662
  %v2702 = vsel %vm1040, %v2698, %v2664
  %v2703 = vsel %vm1040, %v2699, %v2666
  %v2704 = vsel %vm1040, %v2700, %v2668
  %v2705 = vsel %vm1105, %v2701, %v2686
  %v2706 = vsel %vm1105, %v2702, %v2688
  %v2707 = vsel %vm1105, %v2703, %v2690
  %v2708 = vsel %vm1105, %v2704, %v2692
  %v2709 = vpack.c.bf16 %v2706, %v2705
  %v2710 = vpack.c.bf16 %v2708, %v2707
  %s2711 = scalar_lea.vmem %s1, 128
  %v2712 = vld [vmem:[%s2711] sm:$0xf]
  %v2713 = vld [vmem:[%s2711 + $0x4] sm:$0xf]
  %v2714 = vld [vmem:[%s2711 + $0x8] sm:$0xf]
  %v2715 = vld [vmem:[%s2711 + $0xc] sm:$0xf]
  %v2716 = vld [vmem:[%s2711 + $0x10] sm:$0xf]
  %v2717 = vld [vmem:[%s2711 + $0x14] sm:$0xf]
  %v2718 = vld [vmem:[%s2711 + $0x18] sm:$0xf]
  %v2719 = vld [vmem:[%s2711 + $0x1c] sm:$0xf]
  %v2720 = vld [vmem:[%s2711 + $0x20] sm:$0xf]
  %v2721 = vld [vmem:[%s2711 + $0x24] sm:$0xf]
  %v2722 = vld [vmem:[%s2711 + $0x28] sm:$0xf]
  %v2723 = vld [vmem:[%s2711 + $0x2c] sm:$0xf]
  %v2724 = vld [vmem:[%s2711 + $0x30] sm:$0xf]
  %v2725 = vld [vmem:[%s2711 + $0x34] sm:$0xf]
  %v2726 = vld [vmem:[%s2711 + $0x38] sm:$0xf]
  %v2727 = vld [vmem:[%s2711 + $0x3c] sm:$0xf]
  %v2744 = vunpack.c.l.b16 %v2712
  %v2745 = vunpack.c.l.b16 %v2713
  %v2746 = vunpack.c.l.b16 %v2714
  %v2747 = vunpack.c.l.b16 %v2715
  %v2748 = vunpack.c.l.b16 %v2716
  %v2749 = vunpack.c.l.b16 %v2717
  %v2750 = vunpack.c.l.b16 %v2718
  %v2751 = vunpack.c.l.b16 %v2719
  %v2752 = vunpack.c.l.b16 %v2720
  %v2753 = vunpack.c.l.b16 %v2721
  %v2754 = vunpack.c.l.b16 %v2722
  %v2755 = vunpack.c.l.b16 %v2723
  %v2756 = vunpack.c.l.b16 %v2724
  %v2757 = vunpack.c.l.b16 %v2725
  %v2758 = vunpack.c.l.b16 %v2726
  %v2759 = vunpack.c.l.b16 %v2727
  %v2760 = vpack.c.b16 %v2745, %v2744
  %v2761 = vpack.c.b16 %v2747, %v2746
  %v2762 = vpack.c.b16 %v2749, %v2748
  %v2763 = vpack.c.b16 %v2751, %v2750
  %v2764 = vpack.c.b16 %v2753, %v2752
  %v2765 = vpack.c.b16 %v2755, %v2754
  %v2766 = vpack.c.b16 %v2757, %v2756
  %v2767 = vpack.c.b16 %v2759, %v2758
  %2776 = vmatprep.subr.bf16.mxu0 0
  %2777 = vmatpush1.bf16.msra.mxu0 %v2760
  %2778 = vmatprep.subr.bf16.mxu0 0
  %2779 = vmatpush1.bf16.msra.mxu0 %v2761
  %2780 = vmatprep.subr.bf16.mxu0 0
  %2781 = vmatpush1.bf16.msra.mxu0 %v2762
  %2782 = vmatprep.subr.bf16.mxu0 0
  %2783 = vmatpush1.bf16.msra.mxu0 %v2763
  %2784 = vmatprep.subr.bf16.mxu0 0
  %2785 = vmatpush1.bf16.msra.mxu0 %v2764
  %2786 = vmatprep.subr.bf16.mxu0 0
  %2787 = vmatpush1.bf16.msra.mxu0 %v2765
  %2788 = vmatprep.subr.bf16.mxu0 0
  %2789 = vmatpush1.bf16.msra.mxu0 %v2766
  %2790 = vmatprep.subr.bf16.mxu0 0
  %2791 = vmatpush1.bf16.msra.mxu0 %v2767
  %2792 = vmatprep.subr.bf16.mxu0 0
  %2793 = vmatpush1.bf16.msra.mxu0 0
  %2794 = vmatprep.subr.bf16.mxu0 0
  %2795 = vmatpush1.bf16.msra.mxu0 0
  %2796 = vmatprep.subr.bf16.mxu0 0
  %2797 = vmatpush1.bf16.msra.mxu0 0
  %2798 = vmatprep.subr.bf16.mxu0 0
  %2799 = vmatpush1.bf16.msra.mxu0 0
  %2800 = vmatprep.subr.bf16.mxu0 0
  %2801 = vmatpush1.bf16.msra.mxu0 0
  %2802 = vmatprep.subr.bf16.mxu0 0
  %2803 = vmatpush1.bf16.msra.mxu0 0
  %2804 = vmatprep.subr.bf16.mxu0 0
  %2805 = vmatpush1.bf16.msra.mxu0 0
  %2806 = vmatprep.subr.bf16.mxu0 0
  %2807 = vmatpush1.bf16.msra.mxu0 0
  %2808 = vmatprep.mubr.bf16.mxu0 0
  %2809 = vmatmul.mubr.bf16.gmra.mrb[0].mxu0 %v1171
  %v2810 = vpop.f32.mrb[0].mxu0
  %v2811 = vadd.f32 0.0, %v2810
  %v2812 = vpop.f32.mrb[0].mxu0
  %v2813 = vpop.f32.mrb[0].mxu0
  %v2814 = vadd.f32 0.0, %v2813
  %v2815 = vpop.f32.mrb[0].mxu0
  %2816 = vmatprep.mubr.bf16.mxu0 0
  %2817 = vmatmul.mubr.bf16.gmra.mrb[0].mxu0 %v1172
  %v2818 = vpop.f32.mrb[0].mxu0
  %v2819 = vadd.f32 0.0, %v2818
  %v2820 = vpop.f32.mrb[0].mxu0
  %v2821 = vpop.f32.mrb[0].mxu0
  %v2822 = vadd.f32 0.0, %v2821
  %v2823 = vpop.f32.mrb[0].mxu0
  %2824 = vmatprep.mubr.bf16.mxu0 0
  %2825 = vmatmul.mubr.bf16.gmra.mrb[0].mxu0 %v1173
  %v2826 = vpop.f32.mrb[0].mxu0
  %v2827 = vadd.f32 0.0, %v2826
  %v2828 = vpop.f32.mrb[0].mxu0
  %v2829 = vpop.f32.mrb[0].mxu0
  %v2830 = vadd.f32 0.0, %v2829
  %v2831 = vpop.f32.mrb[0].mxu0
  %2832 = vmatprep.mubr.bf16.mxu0 0
  %2833 = vmatmul.mubr.bf16.gmra.mrb[0].mxu0 %v1174
  %v2834 = vpop.f32.mrb[0].mxu0
  %v2835 = vadd.f32 0.0, %v2834
  %v2836 = vpop.f32.mrb[0].mxu0
  %v2837 = vpop.f32.mrb[0].mxu0
  %v2838 = vadd.f32 0.0, %v2837
  %v2839 = vpop.f32.mrb[0].mxu0
  %2840 = vmatprep.mubr.bf16.mxu0 0
  %2841 = vmatmul.mubr.bf16.gmra.mrb[0].mxu0 %v1175
  %v2842 = vpop.f32.mrb[0].mxu0
  %v2843 = vadd.f32 0.0, %v2842
  %v2844 = vpop.f32.mrb[0].mxu0
  %v2845 = vpop.f32.mrb[0].mxu0
  %v2846 = vadd.f32 0.0, %v2845
  %v2847 = vpop.f32.mrb[0].mxu0
  %2848 = vmatprep.mubr.bf16.mxu0 0
  %2849 = vmatmul.mubr.bf16.gmra.mrb[0].mxu0 %v1176
  %v2850 = vpop.f32.mrb[0].mxu0
  %v2851 = vadd.f32 0.0, %v2850
  %v2852 = vpop.f32.mrb[0].mxu0
  %v2853 = vpop.f32.mrb[0].mxu0
  %v2854 = vadd.f32 0.0, %v2853
  %v2855 = vpop.f32.mrb[0].mxu0
  %2856 = vmatprep.mubr.bf16.mxu0 0
  %2857 = vmatmul.mubr.bf16.gmra.mrb[0].mxu0 %v1177
  %v2858 = vpop.f32.mrb[0].mxu0
  %v2859 = vadd.f32 0.0, %v2858
  %v2860 = vpop.f32.mrb[0].mxu0
  %v2861 = vpop.f32.mrb[0].mxu0
  %v2862 = vadd.f32 0.0, %v2861
  %v2863 = vpop.f32.mrb[0].mxu0
  %2864 = vmatprep.mubr.bf16.mxu0 0
  %2865 = vmatmul.mubr.bf16.gmra.mrb[0].mxu0 %v1178
  %v2866 = vpop.f32.mrb[0].mxu0
  %v2867 = vadd.f32 0.0, %v2866
  %v2868 = vpop.f32.mrb[0].mxu0
  %v2869 = vpop.f32.mrb[0].mxu0
  %v2870 = vadd.f32 0.0, %v2869
  %v2871 = vpop.f32.mrb[0].mxu0
  %2872 = vmatprep.mubr.bf16.mxu0 0
  %2873 = vmatmul.mubr.bf16.gmra.mrb[0].mxu0 %v1179
  %v2874 = vpop.f32.mrb[0].mxu0
  %v2875 = vadd.f32 0.0, %v2874
  %v2876 = vpop.f32.mrb[0].mxu0
  %v2877 = vpop.f32.mrb[0].mxu0
  %v2878 = vadd.f32 0.0, %v2877
  %v2879 = vpop.f32.mrb[0].mxu0
  %2880 = vmatprep.mubr.bf16.mxu0 0
  %2881 = vmatmul.mubr.bf16.gmra.mrb[0].mxu0 %v1180
  %v2882 = vpop.f32.mrb[0].mxu0
  %v2883 = vadd.f32 0.0, %v2882
  %v2884 = vpop.f32.mrb[0].mxu0
  %v2885 = vpop.f32.mrb[0].mxu0
  %v2886 = vadd.f32 0.0, %v2885
  %v2887 = vpop.f32.mrb[0].mxu0
  %2888 = vmatprep.mubr.bf16.mxu0 0
  %2889 = vmatmul.mubr.bf16.gmra.mrb[0].mxu0 %v1181
  %v2890 = vpop.f32.mrb[0].mxu0
  %v2891 = vadd.f32 0.0, %v2890
  %v2892 = vpop.f32.mrb[0].mxu0
  %v2893 = vpop.f32.mrb[0].mxu0
  %v2894 = vadd.f32 0.0, %v2893
  %v2895 = vpop.f32.mrb[0].mxu0
  %2896 = vmatprep.mubr.bf16.mxu0 0
  %2897 = vmatmul.mubr.bf16.gmra.mrb[0].mxu0 %v1182
  %v2898 = vpop.f32.mrb[0].mxu0
  %v2899 = vadd.f32 0.0, %v2898
  %v2900 = vpop.f32.mrb[0].mxu0
  %v2901 = vpop.f32.mrb[0].mxu0
  %v2902 = vadd.f32 0.0, %v2901
  %v2903 = vpop.f32.mrb[0].mxu0
  %2904 = vmatprep.mubr.bf16.mxu0 0
  %2905 = vmatmul.mubr.bf16.gmra.mrb[0].mxu0 %v1183
  %v2906 = vpop.f32.mrb[0].mxu0
  %v2907 = vadd.f32 0.0, %v2906
  %v2908 = vpop.f32.mrb[0].mxu0
  %v2909 = vpop.f32.mrb[0].mxu0
  %v2910 = vadd.f32 0.0, %v2909
  %v2911 = vpop.f32.mrb[0].mxu0
  %2912 = vmatprep.mubr.bf16.mxu0 0
  %2913 = vmatmul.mubr.bf16.gmra.mrb[0].mxu0 %v1184
  %v2914 = vpop.f32.mrb[0].mxu0
  %v2915 = vadd.f32 0.0, %v2914
  %v2916 = vpop.f32.mrb[0].mxu0
  %v2917 = vpop.f32.mrb[0].mxu0
  %v2918 = vadd.f32 0.0, %v2917
  %v2919 = vpop.f32.mrb[0].mxu0
  %2920 = vmatprep.mubr.bf16.mxu0 0
  %2921 = vmatmul.mubr.bf16.gmra.mrb[0].mxu0 %v1185
  %v2922 = vpop.f32.mrb[0].mxu0
  %v2923 = vadd.f32 0.0, %v2922
  %v2924 = vpop.f32.mrb[0].mxu0
  %v2925 = vpop.f32.mrb[0].mxu0
  %v2926 = vadd.f32 0.0, %v2925
  %v2927 = vpop.f32.mrb[0].mxu0
  %2928 = vmatprep.mubr.bf16.mxu0 0
  %2929 = vmatmul.mubr.bf16.gmra.mrb[0].mxu0 %v2709
  %v2930 = vpop.f32.mrb[0].mxu0
  %v2931 = vadd.f32 0.0, %v2930
  %v2932 = vpop.f32.mrb[0].mxu0
  %v2933 = vpop.f32.mrb[0].mxu0
  %v2934 = vadd.f32 0.0, %v2933
  %v2935 = vpop.f32.mrb[0].mxu0
  %2936 = vmatprep.mubr.bf16.mxu0 0
  %2937 = vmatmul.mubr.bf16.gmra.mrb[0].mxu0 %v1187
  %v2938 = vpop.f32.mrb[0].mxu0
  %v2939 = vadd.f32 0.0, %v2938
  %v2940 = vpop.f32.mrb[0].mxu0
  %v2941 = vpop.f32.mrb[0].mxu0
  %v2942 = vadd.f32 0.0, %v2941
  %v2943 = vpop.f32.mrb[0].mxu0
  %2944 = vmatprep.mubr.bf16.mxu0 0
  %2945 = vmatmul.mubr.bf16.gmra.mrb[0].mxu0 %v1188
  %v2946 = vpop.f32.mrb[0].mxu0
  %v2947 = vadd.f32 0.0, %v2946
  %v2948 = vpop.f32.mrb[0].mxu0
  %v2949 = vpop.f32.mrb[0].mxu0
  %v2950 = vadd.f32 0.0, %v2949
  %v2951 = vpop.f32.mrb[0].mxu0
  %2952 = vmatprep.mubr.bf16.mxu0 0
  %2953 = vmatmul.mubr.bf16.gmra.mrb[0].mxu0 %v1189
  %v2954 = vpop.f32.mrb[0].mxu0
  %v2955 = vadd.f32 0.0, %v2954
  %v2956 = vpop.f32.mrb[0].mxu0
  %v2957 = vpop.f32.mrb[0].mxu0
  %v2958 = vadd.f32 0.0, %v2957
  %v2959 = vpop.f32.mrb[0].mxu0
  %2960 = vmatprep.mubr.bf16.mxu0 0
  %2961 = vmatmul.mubr.bf16.gmra.mrb[0].mxu0 %v1190
  %v2962 = vpop.f32.mrb[0].mxu0
  %v2963 = vadd.f32 0.0, %v2962
  %v2964 = vpop.f32.mrb[0].mxu0
  %v2965 = vpop.f32.mrb[0].mxu0
  %v2966 = vadd.f32 0.0, %v2965
  %v2967 = vpop.f32.mrb[0].mxu0
  %2968 = vmatprep.mubr.bf16.mxu0 0
  %2969 = vmatmul.mubr.bf16.gmra.mrb[0].mxu0 %v1191
  %v2970 = vpop.f32.mrb[0].mxu0
  %v2971 = vadd.f32 0.0, %v2970
  %v2972 = vpop.f32.mrb[0].mxu0
  %v2973 = vpop.f32.mrb[0].mxu0
  %v2974 = vadd.f32 0.0, %v2973
  %v2975 = vpop.f32.mrb[0].mxu0
  %2976 = vmatprep.mubr.bf16.mxu0 0
  %2977 = vmatmul.mubr.bf16.gmra.mrb[0].mxu0 %v1192
  %v2978 = vpop.f32.mrb[0].mxu0
  %v2979 = vadd.f32 0.0, %v2978
  %v2980 = vpop.f32.mrb[0].mxu0
  %v2981 = vpop.f32.mrb[0].mxu0
  %v2982 = vadd.f32 0.0, %v2981
  %v2983 = vpop.f32.mrb[0].mxu0
  %2984 = vmatprep.mubr.bf16.mxu0 0
  %2985 = vmatmul.mubr.bf16.gmra.mrb[0].mxu0 %v1193
  %v2986 = vpop.f32.mrb[0].mxu0
  %v2987 = vadd.f32 0.0, %v2986
  %v2988 = vpop.f32.mrb[0].mxu0
  %v2989 = vpop.f32.mrb[0].mxu0
  %v2990 = vadd.f32 0.0, %v2989
  %v2991 = vpop.f32.mrb[0].mxu0
  %2992 = vmatprep.mubr.bf16.mxu0 0
  %2993 = vmatmul.mubr.bf16.gmra.mrb[0].mxu0 %v1194
  %v2994 = vpop.f32.mrb[0].mxu0
  %v2995 = vadd.f32 0.0, %v2994
  %v2996 = vpop.f32.mrb[0].mxu0
  %v2997 = vpop.f32.mrb[0].mxu0
  %v2998 = vadd.f32 0.0, %v2997
  %v2999 = vpop.f32.mrb[0].mxu0
  %3000 = vmatprep.mubr.bf16.mxu0 0
  %3001 = vmatmul.mubr.bf16.gmra.mrb[0].mxu0 %v1195
  %v3002 = vpop.f32.mrb[0].mxu0
  %v3003 = vadd.f32 0.0, %v3002
  %v3004 = vpop.f32.mrb[0].mxu0
  %v3005 = vpop.f32.mrb[0].mxu0
  %v3006 = vadd.f32 0.0, %v3005
  %v3007 = vpop.f32.mrb[0].mxu0
  %3008 = vmatprep.mubr.bf16.mxu0 0
  %3009 = vmatmul.mubr.bf16.gmra.mrb[0].mxu0 %v1196
  %v3010 = vpop.f32.mrb[0].mxu0
  %v3011 = vadd.f32 0.0, %v3010
  %v3012 = vpop.f32.mrb[0].mxu0
  %v3013 = vpop.f32.mrb[0].mxu0
  %v3014 = vadd.f32 0.0, %v3013
  %v3015 = vpop.f32.mrb[0].mxu0
  %3016 = vmatprep.mubr.bf16.mxu0 0
  %3017 = vmatmul.mubr.bf16.gmra.mrb[0].mxu0 %v1197
  %v3018 = vpop.f32.mrb[0].mxu0
  %v3019 = vadd.f32 0.0, %v3018
  %v3020 = vpop.f32.mrb[0].mxu0
  %v3021 = vpop.f32.mrb[0].mxu0
  %v3022 = vadd.f32 0.0, %v3021
  %v3023 = vpop.f32.mrb[0].mxu0
  %3024 = vmatprep.mubr.bf16.mxu0 0
  %3025 = vmatmul.mubr.bf16.gmra.mrb[0].mxu0 %v1198
  %v3026 = vpop.f32.mrb[0].mxu0
  %v3027 = vadd.f32 0.0, %v3026
  %v3028 = vpop.f32.mrb[0].mxu0
  %v3029 = vpop.f32.mrb[0].mxu0
  %v3030 = vadd.f32 0.0, %v3029
  %v3031 = vpop.f32.mrb[0].mxu0
  %3032 = vmatprep.mubr.bf16.mxu0 0
  %3033 = vmatmul.mubr.bf16.gmra.mrb[0].mxu0 %v1199
  %v3034 = vpop.f32.mrb[0].mxu0
  %v3035 = vadd.f32 0.0, %v3034
  %v3036 = vpop.f32.mrb[0].mxu0
  %v3037 = vpop.f32.mrb[0].mxu0
  %v3038 = vadd.f32 0.0, %v3037
  %v3039 = vpop.f32.mrb[0].mxu0
  %3040 = vmatprep.mubr.bf16.mxu0 0
  %3041 = vmatmul.mubr.bf16.gmra.mrb[0].mxu0 %v1200
  %v3042 = vpop.f32.mrb[0].mxu0
  %v3043 = vadd.f32 0.0, %v3042
  %v3044 = vpop.f32.mrb[0].mxu0
  %v3045 = vpop.f32.mrb[0].mxu0
  %v3046 = vadd.f32 0.0, %v3045
  %v3047 = vpop.f32.mrb[0].mxu0
  %3048 = vmatprep.mubr.bf16.mxu0 0
  %3049 = vmatmul.mubr.bf16.gmra.mrb[0].mxu0 %v1201
  %v3050 = vpop.f32.mrb[0].mxu0
  %v3051 = vadd.f32 0.0, %v3050
  %v3052 = vpop.f32.mrb[0].mxu0
  %v3053 = vpop.f32.mrb[0].mxu0
  %v3054 = vadd.f32 0.0, %v3053
  %v3055 = vpop.f32.mrb[0].mxu0
  %3056 = vmatprep.mubr.bf16.mxu0 0
  %3057 = vmatmul.mubr.bf16.gmra.mrb[0].mxu0 %v2710
  %v3058 = vpop.f32.mrb[0].mxu0
  %v3059 = vadd.f32 0.0, %v3058
  %v3060 = vpop.f32.mrb[0].mxu0
  %v3061 = vpop.f32.mrb[0].mxu0
  %v3062 = vadd.f32 0.0, %v3061
  %v3063 = vpop.f32.mrb[0].mxu0
  %3064 = vdwg.mxu0
  %3065 = vrot.lane.b32.xlu0 %v776, 32
  %v3066 = vpop.permute.xlu0 %3065
  %3067 = vrot.lane.b32.xlu0 %v781, 32
  %v3068 = vpop.permute.xlu0 %3067
  %3071 = vrot.lane.b32.xlu0 %v71, 64
  %v3072 = vpop.permute.xlu0 %3071
  %3073 = vrot.lane.b32.xlu0 %v125, 64
  %v3074 = vpop.permute.xlu0 %3073
  %3077 = vrot.lane.b32.xlu0 %v2678, 96
  %v3078 = vpop.permute.xlu0 %3077
  %3079 = vrot.lane.b32.xlu0 %v2683, 96
  %v3080 = vpop.permute.xlu0 %3079
  %v3083 = vsel %vm975, %v68, %v3066
  %v3084 = vsel %vm975, %v122, %v3068
  %v3085 = vsel %vm1040, %v3083, %v3072
  %v3086 = vsel %vm1040, %v3084, %v3074
  %v3087 = vsel %vm1105, %v3085, %v3078
  %v3088 = vsel %vm1105, %v3086, %v3080
  %v3095 = vrot.slane %v2705, 1
  %v3096 = vrot.slane %v2706, 1
  %v3097 = vsel %vm222, %v3095, %v3096
  %v3098 = vrot.slane %v3087, 1
  %v3099 = vsel %vm222, %v3096, %v3098
  %v3100 = vrot.slane %v2707, 1
  %v3101 = vrot.slane %v2708, 1
  %v3102 = vsel %vm222, %v3100, %v3101
  %v3103 = vrot.slane %v3088, 1
  %v3104 = vsel %vm222, %v3101, %v3103
  %v3109 = vpack.c.bf16 %v3099, %v3097
  %v3110 = vpack.c.bf16 %v3104, %v3102
  %s3111 = scalar_lea.vmem %s1, 192
  %v3112 = vld [vmem:[%s3111] sm:$0xf]
  %v3113 = vld [vmem:[%s3111 + $0x4] sm:$0xf]
  %v3114 = vld [vmem:[%s3111 + $0x8] sm:$0xf]
  %v3115 = vld [vmem:[%s3111 + $0xc] sm:$0xf]
  %v3116 = vld [vmem:[%s3111 + $0x10] sm:$0xf]
  %v3117 = vld [vmem:[%s3111 + $0x14] sm:$0xf]
  %v3118 = vld [vmem:[%s3111 + $0x18] sm:$0xf]
  %v3119 = vld [vmem:[%s3111 + $0x1c] sm:$0xf]
  %v3120 = vld [vmem:[%s3111 + $0x20] sm:$0xf]
  %v3121 = vld [vmem:[%s3111 + $0x24] sm:$0xf]
  %v3122 = vld [vmem:[%s3111 + $0x28] sm:$0xf]
  %v3123 = vld [vmem:[%s3111 + $0x2c] sm:$0xf]
  %v3124 = vld [vmem:[%s3111 + $0x30] sm:$0xf]
  %v3125 = vld [vmem:[%s3111 + $0x34] sm:$0xf]
  %v3126 = vld [vmem:[%s3111 + $0x38] sm:$0xf]
  %v3127 = vld [vmem:[%s3111 + $0x3c] sm:$0xf]
  %v3144 = vunpack.c.l.b16 %v3112
  %v3145 = vunpack.c.l.b16 %v3113
  %v3146 = vunpack.c.l.b16 %v3114
  %v3147 = vunpack.c.l.b16 %v3115
  %v3148 = vunpack.c.l.b16 %v3116
  %v3149 = vunpack.c.l.b16 %v3117
  %v3150 = vunpack.c.l.b16 %v3118
  %v3151 = vunpack.c.l.b16 %v3119
  %v3152 = vunpack.c.l.b16 %v3120
  %v3153 = vunpack.c.l.b16 %v3121
  %v3154 = vunpack.c.l.b16 %v3122
  %v3155 = vunpack.c.l.b16 %v3123
  %v3156 = vunpack.c.l.b16 %v3124
  %v3157 = vunpack.c.l.b16 %v3125
  %v3158 = vunpack.c.l.b16 %v3126
  %v3159 = vunpack.c.l.b16 %v3127
  %v3160 = vpack.c.b16 %v3145, %v3144
  %v3161 = vpack.c.b16 %v3147, %v3146
  %v3162 = vpack.c.b16 %v3149, %v3148
  %v3163 = vpack.c.b16 %v3151, %v3150
  %v3164 = vpack.c.b16 %v3153, %v3152
  %v3165 = vpack.c.b16 %v3155, %v3154
  %v3166 = vpack.c.b16 %v3157, %v3156
  %v3167 = vpack.c.b16 %v3159, %v3158
  %3176 = vmatprep.subr.bf16.mxu0 0
  %3177 = vmatpush1.bf16.msra.mxu0 %v3160
  %3178 = vmatprep.subr.bf16.mxu0 0
  %3179 = vmatpush1.bf16.msra.mxu0 %v3161
  %3180 = vmatprep.subr.bf16.mxu0 0
  %3181 = vmatpush1.bf16.msra.mxu0 %v3162
  %3182 = vmatprep.subr.bf16.mxu0 0
  %3183 = vmatpush1.bf16.msra.mxu0 %v3163
  %3184 = vmatprep.subr.bf16.mxu0 0
  %3185 = vmatpush1.bf16.msra.mxu0 %v3164
  %3186 = vmatprep.subr.bf16.mxu0 0
  %3187 = vmatpush1.bf16.msra.mxu0 %v3165
  %3188 = vmatprep.subr.bf16.mxu0 0
  %3189 = vmatpush1.bf16.msra.mxu0 %v3166
  %3190 = vmatprep.subr.bf16.mxu0 0
  %3191 = vmatpush1.bf16.msra.mxu0 %v3167
  %3192 = vmatprep.subr.bf16.mxu0 0
  %3193 = vmatpush1.bf16.msra.mxu0 0
  %3194 = vmatprep.subr.bf16.mxu0 0
  %3195 = vmatpush1.bf16.msra.mxu0 0
  %3196 = vmatprep.subr.bf16.mxu0 0
  %3197 = vmatpush1.bf16.msra.mxu0 0
  %3198 = vmatprep.subr.bf16.mxu0 0
  %3199 = vmatpush1.bf16.msra.mxu0 0
  %3200 = vmatprep.subr.bf16.mxu0 0
  %3201 = vmatpush1.bf16.msra.mxu0 0
  %3202 = vmatprep.subr.bf16.mxu0 0
  %3203 = vmatpush1.bf16.msra.mxu0 0
  %3204 = vmatprep.subr.bf16.mxu0 0
  %3205 = vmatpush1.bf16.msra.mxu0 0
  %3206 = vmatprep.subr.bf16.mxu0 0
  %3207 = vmatpush1.bf16.msra.mxu0 0
  %3208 = vmatprep.mubr.bf16.mxu0 0
  %3209 = vmatmul.mubr.bf16.gmra.mrb[0].mxu0 %v2260
  %v3210 = vpop.f32.mrb[0].mxu0
  %v3211 = vadd.f32 0.0, %v3210
  %v3212 = vpop.f32.mrb[0].mxu0
  %v3213 = vpop.f32.mrb[0].mxu0
  %v3214 = vadd.f32 0.0, %v3213
  %v3215 = vpop.f32.mrb[0].mxu0
  %3216 = vmatprep.mubr.bf16.mxu0 0
  %3217 = vmatmul.mubr.bf16.gmra.mrb[0].mxu0 %v2261
  %v3218 = vpop.f32.mrb[0].mxu0
  %v3219 = vadd.f32 0.0, %v3218
  %v3220 = vpop.f32.mrb[0].mxu0
  %v3221 = vpop.f32.mrb[0].mxu0
  %v3222 = vadd.f32 0.0, %v3221
  %v3223 = vpop.f32.mrb[0].mxu0
  %3224 = vmatprep.mubr.bf16.mxu0 0
  %3225 = vmatmul.mubr.bf16.gmra.mrb[0].mxu0 %v2262
  %v3226 = vpop.f32.mrb[0].mxu0
  %v3227 = vadd.f32 0.0, %v3226
  %v3228 = vpop.f32.mrb[0].mxu0
  %v3229 = vpop.f32.mrb[0].mxu0
  %v3230 = vadd.f32 0.0, %v3229
  %v3231 = vpop.f32.mrb[0].mxu0
  %3232 = vmatprep.mubr.bf16.mxu0 0
  %3233 = vmatmul.mubr.bf16.gmra.mrb[0].mxu0 %v2263
  %v3234 = vpop.f32.mrb[0].mxu0
  %v3235 = vadd.f32 0.0, %v3234
  %v3236 = vpop.f32.mrb[0].mxu0
  %v3237 = vpop.f32.mrb[0].mxu0
  %v3238 = vadd.f32 0.0, %v3237
  %v3239 = vpop.f32.mrb[0].mxu0
  %3240 = vmatprep.mubr.bf16.mxu0 0
  %3241 = vmatmul.mubr.bf16.gmra.mrb[0].mxu0 %v2264
  %v3242 = vpop.f32.mrb[0].mxu0
  %v3243 = vadd.f32 0.0, %v3242
  %v3244 = vpop.f32.mrb[0].mxu0
  %v3245 = vpop.f32.mrb[0].mxu0
  %v3246 = vadd.f32 0.0, %v3245
  %v3247 = vpop.f32.mrb[0].mxu0
  %3248 = vmatprep.mubr.bf16.mxu0 0
  %3249 = vmatmul.mubr.bf16.gmra.mrb[0].mxu0 %v2265
  %v3250 = vpop.f32.mrb[0].mxu0
  %v3251 = vadd.f32 0.0, %v3250
  %v3252 = vpop.f32.mrb[0].mxu0
  %v3253 = vpop.f32.mrb[0].mxu0
  %v3254 = vadd.f32 0.0, %v3253
  %v3255 = vpop.f32.mrb[0].mxu0
  %3256 = vmatprep.mubr.bf16.mxu0 0
  %3257 = vmatmul.mubr.bf16.gmra.mrb[0].mxu0 %v2266
  %v3258 = vpop.f32.mrb[0].mxu0
  %v3259 = vadd.f32 0.0, %v3258
  %v3260 = vpop.f32.mrb[0].mxu0
  %v3261 = vpop.f32.mrb[0].mxu0
  %v3262 = vadd.f32 0.0, %v3261
  %v3263 = vpop.f32.mrb[0].mxu0
  %3264 = vmatprep.mubr.bf16.mxu0 0
  %3265 = vmatmul.mubr.bf16.gmra.mrb[0].mxu0 %v2267
  %v3266 = vpop.f32.mrb[0].mxu0
  %v3267 = vadd.f32 0.0, %v3266
  %v3268 = vpop.f32.mrb[0].mxu0
  %v3269 = vpop.f32.mrb[0].mxu0
  %v3270 = vadd.f32 0.0, %v3269
  %v3271 = vpop.f32.mrb[0].mxu0
  %3272 = vmatprep.mubr.bf16.mxu0 0
  %3273 = vmatmul.mubr.bf16.gmra.mrb[0].mxu0 %v2268
  %v3274 = vpop.f32.mrb[0].mxu0
  %v3275 = vadd.f32 0.0, %v3274
  %v3276 = vpop.f32.mrb[0].mxu0
  %v3277 = vpop.f32.mrb[0].mxu0
  %v3278 = vadd.f32 0.0, %v3277
  %v3279 = vpop.f32.mrb[0].mxu0
  %3280 = vmatprep.mubr.bf16.mxu0 0
  %3281 = vmatmul.mubr.bf16.gmra.mrb[0].mxu0 %v2269
  %v3282 = vpop.f32.mrb[0].mxu0
  %v3283 = vadd.f32 0.0, %v3282
  %v3284 = vpop.f32.mrb[0].mxu0
  %v3285 = vpop.f32.mrb[0].mxu0
  %v3286 = vadd.f32 0.0, %v3285
  %v3287 = vpop.f32.mrb[0].mxu0
  %3288 = vmatprep.mubr.bf16.mxu0 0
  %3289 = vmatmul.mubr.bf16.gmra.mrb[0].mxu0 %v2270
  %v3290 = vpop.f32.mrb[0].mxu0
  %v3291 = vadd.f32 0.0, %v3290
  %v3292 = vpop.f32.mrb[0].mxu0
  %v3293 = vpop.f32.mrb[0].mxu0
  %v3294 = vadd.f32 0.0, %v3293
  %v3295 = vpop.f32.mrb[0].mxu0
  %3296 = vmatprep.mubr.bf16.mxu0 0
  %3297 = vmatmul.mubr.bf16.gmra.mrb[0].mxu0 %v2271
  %v3298 = vpop.f32.mrb[0].mxu0
  %v3299 = vadd.f32 0.0, %v3298
  %v3300 = vpop.f32.mrb[0].mxu0
  %v3301 = vpop.f32.mrb[0].mxu0
  %v3302 = vadd.f32 0.0, %v3301
  %v3303 = vpop.f32.mrb[0].mxu0
  %3304 = vmatprep.mubr.bf16.mxu0 0
  %3305 = vmatmul.mubr.bf16.gmra.mrb[0].mxu0 %v2272
  %v3306 = vpop.f32.mrb[0].mxu0
  %v3307 = vadd.f32 0.0, %v3306
  %v3308 = vpop.f32.mrb[0].mxu0
  %v3309 = vpop.f32.mrb[0].mxu0
  %v3310 = vadd.f32 0.0, %v3309
  %v3311 = vpop.f32.mrb[0].mxu0
  %3312 = vmatprep.mubr.bf16.mxu0 0
  %3313 = vmatmul.mubr.bf16.gmra.mrb[0].mxu0 %v2273
  %v3314 = vpop.f32.mrb[0].mxu0
  %v3315 = vadd.f32 0.0, %v3314
  %v3316 = vpop.f32.mrb[0].mxu0
  %v3317 = vpop.f32.mrb[0].mxu0
  %v3318 = vadd.f32 0.0, %v3317
  %v3319 = vpop.f32.mrb[0].mxu0
  %3320 = vmatprep.mubr.bf16.mxu0 0
  %3321 = vmatmul.mubr.bf16.gmra.mrb[0].mxu0 %v2274
  %v3322 = vpop.f32.mrb[0].mxu0
  %v3323 = vadd.f32 0.0, %v3322
  %v3324 = vpop.f32.mrb[0].mxu0
  %v3325 = vpop.f32.mrb[0].mxu0
  %v3326 = vadd.f32 0.0, %v3325
  %v3327 = vpop.f32.mrb[0].mxu0
  %3328 = vmatprep.mubr.bf16.mxu0 0
  %3329 = vmatmul.mubr.bf16.gmra.mrb[0].mxu0 %v3109
  %v3330 = vpop.f32.mrb[0].mxu0
  %v3331 = vadd.f32 0.0, %v3330
  %v3332 = vpop.f32.mrb[0].mxu0
  %v3333 = vpop.f32.mrb[0].mxu0
  %v3334 = vadd.f32 0.0, %v3333
  %v3335 = vpop.f32.mrb[0].mxu0
  %3336 = vmatprep.mubr.bf16.mxu0 0
  %3337 = vmatmul.mubr.bf16.gmra.mrb[0].mxu0 %v2276
  %v3338 = vpop.f32.mrb[0].mxu0
  %v3339 = vadd.f32 0.0, %v3338
  %v3340 = vpop.f32.mrb[0].mxu0
  %v3341 = vpop.f32.mrb[0].mxu0
  %v3342 = vadd.f32 0.0, %v3341
  %v3343 = vpop.f32.mrb[0].mxu0
  %3344 = vmatprep.mubr.bf16.mxu0 0
  %3345 = vmatmul.mubr.bf16.gmra.mrb[0].mxu0 %v2277
  %v3346 = vpop.f32.mrb[0].mxu0
  %v3347 = vadd.f32 0.0, %v3346
  %v3348 = vpop.f32.mrb[0].mxu0
  %v3349 = vpop.f32.mrb[0].mxu0
  %v3350 = vadd.f32 0.0, %v3349
  %v3351 = vpop.f32.mrb[0].mxu0
  %3352 = vmatprep.mubr.bf16.mxu0 0
  %3353 = vmatmul.mubr.bf16.gmra.mrb[0].mxu0 %v2278
  %v3354 = vpop.f32.mrb[0].mxu0
  %v3355 = vadd.f32 0.0, %v3354
  %v3356 = vpop.f32.mrb[0].mxu0
  %v3357 = vpop.f32.mrb[0].mxu0
  %v3358 = vadd.f32 0.0, %v3357
  %v3359 = vpop.f32.mrb[0].mxu0
  %3360 = vmatprep.mubr.bf16.mxu0 0
  %3361 = vmatmul.mubr.bf16.gmra.mrb[0].mxu0 %v2279
  %v3362 = vpop.f32.mrb[0].mxu0
  %v3363 = vadd.f32 0.0, %v3362
  %v3364 = vpop.f32.mrb[0].mxu0
  %v3365 = vpop.f32.mrb[0].mxu0
  %v3366 = vadd.f32 0.0, %v3365
  %v3367 = vpop.f32.mrb[0].mxu0
  %3368 = vmatprep.mubr.bf16.mxu0 0
  %3369 = vmatmul.mubr.bf16.gmra.mrb[0].mxu0 %v2280
  %v3370 = vpop.f32.mrb[0].mxu0
  %v3371 = vadd.f32 0.0, %v3370
  %v3372 = vpop.f32.mrb[0].mxu0
  %v3373 = vpop.f32.mrb[0].mxu0
  %v3374 = vadd.f32 0.0, %v3373
  %v3375 = vpop.f32.mrb[0].mxu0
  %3376 = vmatprep.mubr.bf16.mxu0 0
  %3377 = vmatmul.mubr.bf16.gmra.mrb[0].mxu0 %v2281
  %v3378 = vpop.f32.mrb[0].mxu0
  %v3379 = vadd.f32 0.0, %v3378
  %v3380 = vpop.f32.mrb[0].mxu0
  %v3381 = vpop.f32.mrb[0].mxu0
  %v3382 = vadd.f32 0.0, %v3381
  %v3383 = vpop.f32.mrb[0].mxu0
  %3384 = vmatprep.mubr.bf16.mxu0 0
  %3385 = vmatmul.mubr.bf16.gmra.mrb[0].mxu0 %v2282
  %v3386 = vpop.f32.mrb[0].mxu0
  %v3387 = vadd.f32 0.0, %v3386
  %v3388 = vpop.f32.mrb[0].mxu0
  %v3389 = vpop.f32.mrb[0].mxu0
  %v3390 = vadd.f32 0.0, %v3389
  %v3391 = vpop.f32.mrb[0].mxu0
  %3392 = vmatprep.mubr.bf16.mxu0 0
  %3393 = vmatmul.mubr.bf16.gmra.mrb[0].mxu0 %v2283
  %v3394 = vpop.f32.mrb[0].mxu0
  %v3395 = vadd.f32 0.0, %v3394
  %v3396 = vpop.f32.mrb[0].mxu0
  %v3397 = vpop.f32.mrb[0].mxu0
  %v3398 = vadd.f32 0.0, %v3397
  %v3399 = vpop.f32.mrb[0].mxu0
  %3400 = vmatprep.mubr.bf16.mxu0 0
  %3401 = vmatmul.mubr.bf16.gmra.mrb[0].mxu0 %v2284
  %v3402 = vpop.f32.mrb[0].mxu0
  %v3403 = vadd.f32 0.0, %v3402
  %v3404 = vpop.f32.mrb[0].mxu0
  %v3405 = vpop.f32.mrb[0].mxu0
  %v3406 = vadd.f32 0.0, %v3405
  %v3407 = vpop.f32.mrb[0].mxu0
  %3408 = vmatprep.mubr.bf16.mxu0 0
  %3409 = vmatmul.mubr.bf16.gmra.mrb[0].mxu0 %v2285
  %v3410 = vpop.f32.mrb[0].mxu0
  %v3411 = vadd.f32 0.0, %v3410
  %v3412 = vpop.f32.mrb[0].mxu0
  %v3413 = vpop.f32.mrb[0].mxu0
  %v3414 = vadd.f32 0.0, %v3413
  %v3415 = vpop.f32.mrb[0].mxu0
  %3416 = vmatprep.mubr.bf16.mxu0 0
  %3417 = vmatmul.mubr.bf16.gmra.mrb[0].mxu0 %v2286
  %v3418 = vpop.f32.mrb[0].mxu0
  %v3419 = vadd.f32 0.0, %v3418
  %v3420 = vpop.f32.mrb[0].mxu0
  %v3421 = vpop.f32.mrb[0].mxu0
  %v3422 = vadd.f32 0.0, %v3421
  %v3423 = vpop.f32.mrb[0].mxu0
  %3424 = vmatprep.mubr.bf16.mxu0 0
  %3425 = vmatmul.mubr.bf16.gmra.mrb[0].mxu0 %v2287
  %v3426 = vpop.f32.mrb[0].mxu0
  %v3427 = vadd.f32 0.0, %v3426
  %v3428 = vpop.f32.mrb[0].mxu0
  %v3429 = vpop.f32.mrb[0].mxu0
  %v3430 = vadd.f32 0.0, %v3429
  %v3431 = vpop.f32.mrb[0].mxu0
  %3432 = vmatprep.mubr.bf16.mxu0 0
  %3433 = vmatmul.mubr.bf16.gmra.mrb[0].mxu0 %v2288
  %v3434 = vpop.f32.mrb[0].mxu0
  %v3435 = vadd.f32 0.0, %v3434
  %v3436 = vpop.f32.mrb[0].mxu0
  %v3437 = vpop.f32.mrb[0].mxu0
  %v3438 = vadd.f32 0.0, %v3437
  %v3439 = vpop.f32.mrb[0].mxu0
  %3440 = vmatprep.mubr.bf16.mxu0 0
  %3441 = vmatmul.mubr.bf16.gmra.mrb[0].mxu0 %v2289
  %v3442 = vpop.f32.mrb[0].mxu0
  %v3443 = vadd.f32 0.0, %v3442
  %v3444 = vpop.f32.mrb[0].mxu0
  %v3445 = vpop.f32.mrb[0].mxu0
  %v3446 = vadd.f32 0.0, %v3445
  %v3447 = vpop.f32.mrb[0].mxu0
  %3448 = vmatprep.mubr.bf16.mxu0 0
  %3449 = vmatmul.mubr.bf16.gmra.mrb[0].mxu0 %v2290
  %v3450 = vpop.f32.mrb[0].mxu0
  %v3451 = vadd.f32 0.0, %v3450
  %v3452 = vpop.f32.mrb[0].mxu0
  %v3453 = vpop.f32.mrb[0].mxu0
  %v3454 = vadd.f32 0.0, %v3453
  %v3455 = vpop.f32.mrb[0].mxu0
  %3456 = vmatprep.mubr.bf16.mxu0 0
  %3457 = vmatmul.mubr.bf16.gmra.mrb[0].mxu0 %v3110
  %v3458 = vpop.f32.mrb[0].mxu0
  %v3459 = vadd.f32 0.0, %v3458
  %v3460 = vpop.f32.mrb[0].mxu0
  %v3461 = vpop.f32.mrb[0].mxu0
  %v3462 = vadd.f32 0.0, %v3461
  %v3463 = vpop.f32.mrb[0].mxu0
  %3464 = vdwg.mxu0
  %vm3465 = vcmask 31744
  %v3466 = vsel %vm3465, %v1301, 0.0
  %v3467 = vsel %vm3465, %v1304, 0.0
  %v3468 = vadd.f32 %v3466, %v3467
  %v3469 = vsel %vm3465, %v1309, 0.0
  %v3470 = vadd.f32 %v3468, %v3469
  %v3471 = vsel %vm3465, %v1312, 0.0
  %v3472 = vadd.f32 %v3470, %v3471
  %v3473 = vsel %vm3465, %v1317, 0.0
  %v3474 = vadd.f32 %v3472, %v3473
  %v3475 = vsel %vm3465, %v1320, 0.0
  %v3476 = vadd.f32 %v3474, %v3475
  %v3477 = vsel %vm3465, %v1325, 0.0
  %v3478 = vadd.f32 %v3476, %v3477
  %v3479 = vsel %vm3465, %v1328, 0.0
  %v3480 = vadd.f32 %v3478, %v3479
  %v3481 = vsel %vm3465, %v1333, 0.0
  %v3482 = vadd.f32 %v3480, %v3481
  %v3483 = vsel %vm3465, %v1336, 0.0
  %v3484 = vadd.f32 %v3482, %v3483
  %v3485 = vsel %vm3465, %v1341, 0.0
  %v3486 = vadd.f32 %v3484, %v3485
  %v3487 = vsel %vm3465, %v1344, 0.0
  %v3488 = vadd.f32 %v3486, %v3487
  %v3489 = vsel %vm3465, %v1349, 0.0
  %v3490 = vadd.f32 %v3488, %v3489
  %v3491 = vsel %vm3465, %v1352, 0.0
  %v3492 = vadd.f32 %v3490, %v3491
  %v3493 = vsel %vm3465, %v1357, 0.0
  %v3494 = vadd.f32 %v3492, %v3493
  %v3495 = vsel %vm3465, %v1360, 0.0
  %v3496 = vadd.f32 %v3494, %v3495
  %v3497 = vsel %vm3465, %v1365, 0.0
  %v3498 = vadd.f32 %v3496, %v3497
  %v3499 = vsel %vm3465, %v1368, 0.0
  %v3500 = vadd.f32 %v3498, %v3499
  %v3501 = vsel %vm3465, %v1373, 0.0
  %v3502 = vadd.f32 %v3500, %v3501
  %v3503 = vsel %vm3465, %v1376, 0.0
  %v3504 = vadd.f32 %v3502, %v3503
  %v3505 = vsel %vm3465, %v1381, 0.0
  %v3506 = vadd.f32 %v3504, %v3505
  %v3507 = vsel %vm3465, %v1384, 0.0
  %v3508 = vadd.f32 %v3506, %v3507
  %v3509 = vsel %vm3465, %v1389, 0.0
  %v3510 = vadd.f32 %v3508, %v3509
  %v3511 = vsel %vm3465, %v1392, 0.0
  %v3512 = vadd.f32 %v3510, %v3511
  %v3513 = vsel %vm3465, %v1397, 0.0
  %v3514 = vadd.f32 %v3512, %v3513
  %v3515 = vsel %vm3465, %v1400, 0.0
  %v3516 = vadd.f32 %v3514, %v3515
  %v3517 = vsel %vm3465, %v1405, 0.0
  %v3518 = vadd.f32 %v3516, %v3517
  %v3519 = vsel %vm3465, %v1408, 0.0
  %v3520 = vadd.f32 %v3518, %v3519
  %v3521 = vsel %vm3465, %v1413, 0.0
  %v3522 = vadd.f32 %v3520, %v3521
  %v3523 = vsel %vm3465, %v1416, 0.0
  %v3524 = vadd.f32 %v3522, %v3523
  %v3525 = vsel %vm3465, %v1421, 0.0
  %v3526 = vadd.f32 %v3524, %v3525
  %v3527 = vsel %vm3465, %v1424, 0.0
  %v3528 = vadd.f32 %v3526, %v3527
  %v3529 = vsel %vm3465, %v1429, 0.0
  %v3530 = vadd.f32 %v3528, %v3529
  %v3531 = vsel %vm3465, %v1432, 0.0
  %v3532 = vadd.f32 %v3530, %v3531
  %v3533 = vsel %vm3465, %v1437, 0.0
  %v3534 = vadd.f32 %v3532, %v3533
  %v3535 = vsel %vm3465, %v1440, 0.0
  %v3536 = vadd.f32 %v3534, %v3535
  %v3537 = vsel %vm3465, %v1445, 0.0
  %v3538 = vadd.f32 %v3536, %v3537
  %v3539 = vsel %vm3465, %v1448, 0.0
  %v3540 = vadd.f32 %v3538, %v3539
  %v3541 = vsel %vm3465, %v1453, 0.0
  %v3542 = vadd.f32 %v3540, %v3541
  %v3543 = vsel %vm3465, %v1456, 0.0
  %v3544 = vadd.f32 %v3542, %v3543
  %v3545 = vsel %vm3465, %v1461, 0.0
  %v3546 = vadd.f32 %v3544, %v3545
  %v3547 = vsel %vm3465, %v1464, 0.0
  %v3548 = vadd.f32 %v3546, %v3547
  %v3549 = vsel %vm3465, %v1469, 0.0
  %v3550 = vadd.f32 %v3548, %v3549
  %v3551 = vsel %vm3465, %v1472, 0.0
  %v3552 = vadd.f32 %v3550, %v3551
  %v3553 = vsel %vm3465, %v1477, 0.0
  %v3554 = vadd.f32 %v3552, %v3553
  %v3555 = vsel %vm3465, %v1480, 0.0
  %v3556 = vadd.f32 %v3554, %v3555
  %v3557 = vsel %vm3465, %v1485, 0.0
  %v3558 = vadd.f32 %v3556, %v3557
  %v3559 = vsel %vm3465, %v1488, 0.0
  %v3560 = vadd.f32 %v3558, %v3559
  %v3561 = vsel %vm3465, %v1493, 0.0
  %v3562 = vadd.f32 %v3560, %v3561
  %v3563 = vsel %vm3465, %v1496, 0.0
  %v3564 = vadd.f32 %v3562, %v3563
  %v3565 = vsel %vm3465, %v1501, 0.0
  %v3566 = vadd.f32 %v3564, %v3565
  %v3567 = vsel %vm3465, %v1504, 0.0
  %v3568 = vadd.f32 %v3566, %v3567
  %v3569 = vsel %vm3465, %v1509, 0.0
  %v3570 = vadd.f32 %v3568, %v3569
  %v3571 = vsel %vm3465, %v1512, 0.0
  %v3572 = vadd.f32 %v3570, %v3571
  %v3573 = vsel %vm3465, %v1517, 0.0
  %v3574 = vadd.f32 %v3572, %v3573
  %v3575 = vsel %vm3465, %v1520, 0.0
  %v3576 = vadd.f32 %v3574, %v3575
  %v3577 = vsel %vm3465, %v1525, 0.0
  %v3578 = vadd.f32 %v3576, %v3577
  %v3579 = vsel %vm3465, %v1528, 0.0
  %v3580 = vadd.f32 %v3578, %v3579
  %v3581 = vsel %vm3465, %v1533, 0.0
  %v3582 = vadd.f32 %v3580, %v3581
  %v3583 = vsel %vm3465, %v1536, 0.0
  %v3584 = vadd.f32 %v3582, %v3583
  %v3585 = vsel %vm3465, %v1541, 0.0
  %v3586 = vadd.f32 %v3584, %v3585
  %v3587 = vsel %vm3465, %v1544, 0.0
  %v3588 = vadd.f32 %v3586, %v3587
  %v3589 = vsel %vm3465, %v1549, 0.0
  %v3590 = vadd.f32 %v3588, %v3589
  %v3591 = vsel %vm3465, %v1552, 0.0
  %v3592 = vadd.f32 %v3590, %v3591
  %v3593 = vrot.slane %v3592, 4
  %v3594 = vadd.f32 %v3592, %v3593
  %v3595 = vrot.slane %v3594, 2
  %v3596 = vadd.f32 %v3594, %v3595
  %v3597 = vrot.slane %v3596, 1
  %v3598 = vadd.f32 %v3596, %v3597
  %v3599 = vadd.f32 %v3598, 0.0
  %v3600 = vsel %vm3465, %v2391, 0.0
  %v3601 = vsel %vm3465, %v2394, 0.0
  %v3602 = vadd.f32 %v3600, %v3601
  %v3603 = vsel %vm3465, %v2399, 0.0
  %v3604 = vadd.f32 %v3602, %v3603
  %v3605 = vsel %vm3465, %v2402, 0.0
  %v3606 = vadd.f32 %v3604, %v3605
  %v3607 = vsel %vm3465, %v2407, 0.0
  %v3608 = vadd.f32 %v3606, %v3607
  %v3609 = vsel %vm3465, %v2410, 0.0
  %v3610 = vadd.f32 %v3608, %v3609
  %v3611 = vsel %vm3465, %v2415, 0.0
  %v3612 = vadd.f32 %v3610, %v3611
  %v3613 = vsel %vm3465, %v2418, 0.0
  %v3614 = vadd.f32 %v3612, %v3613
  %v3615 = vsel %vm3465, %v2423, 0.0
  %v3616 = vadd.f32 %v3614, %v3615
  %v3617 = vsel %vm3465, %v2426, 0.0
  %v3618 = vadd.f32 %v3616, %v3617
  %v3619 = vsel %vm3465, %v2431, 0.0
  %v3620 = vadd.f32 %v3618, %v3619
  %v3621 = vsel %vm3465, %v2434, 0.0
  %v3622 = vadd.f32 %v3620, %v3621
  %v3623 = vsel %vm3465, %v2439, 0.0
  %v3624 = vadd.f32 %v3622, %v3623
  %v3625 = vsel %vm3465, %v2442, 0.0
  %v3626 = vadd.f32 %v3624, %v3625
  %v3627 = vsel %vm3465, %v2447, 0.0
  %v3628 = vadd.f32 %v3626, %v3627
  %v3629 = vsel %vm3465, %v2450, 0.0
  %v3630 = vadd.f32 %v3628, %v3629
  %v3631 = vsel %vm3465, %v2455, 0.0
  %v3632 = vadd.f32 %v3630, %v3631
  %v3633 = vsel %vm3465, %v2458, 0.0
  %v3634 = vadd.f32 %v3632, %v3633
  %v3635 = vsel %vm3465, %v2463, 0.0
  %v3636 = vadd.f32 %v3634, %v3635
  %v3637 = vsel %vm3465, %v2466, 0.0
  %v3638 = vadd.f32 %v3636, %v3637
  %v3639 = vsel %vm3465, %v2471, 0.0
  %v3640 = vadd.f32 %v3638, %v3639
  %v3641 = vsel %vm3465, %v2474, 0.0
  %v3642 = vadd.f32 %v3640, %v3641
  %v3643 = vsel %vm3465, %v2479, 0.0
  %v3644 = vadd.f32 %v3642, %v3643
  %v3645 = vsel %vm3465, %v2482, 0.0
  %v3646 = vadd.f32 %v3644, %v3645
  %v3647 = vsel %vm3465, %v2487, 0.0
  %v3648 = vadd.f32 %v3646, %v3647
  %v3649 = vsel %vm3465, %v2490, 0.0
  %v3650 = vadd.f32 %v3648, %v3649
  %v3651 = vsel %vm3465, %v2495, 0.0
  %v3652 = vadd.f32 %v3650, %v3651
  %v3653 = vsel %vm3465, %v2498, 0.0
  %v3654 = vadd.f32 %v3652, %v3653
  %v3655 = vsel %vm3465, %v2503, 0.0
  %v3656 = vadd.f32 %v3654, %v3655
  %v3657 = vsel %vm3465, %v2506, 0.0
  %v3658 = vadd.f32 %v3656, %v3657
  %v3659 = vsel %vm3465, %v2511, 0.0
  %v3660 = vadd.f32 %v3658, %v3659
  %v3661 = vsel %vm3465, %v2514, 0.0
  %v3662 = vadd.f32 %v3660, %v3661
  %v3663 = vsel %vm3465, %v2519, 0.0
  %v3664 = vadd.f32 %v3662, %v3663
  %v3665 = vsel %vm3465, %v2522, 0.0
  %v3666 = vadd.f32 %v3664, %v3665
  %v3667 = vsel %vm3465, %v2527, 0.0
  %v3668 = vadd.f32 %v3666, %v3667
  %v3669 = vsel %vm3465, %v2530, 0.0
  %v3670 = vadd.f32 %v3668, %v3669
  %v3671 = vsel %vm3465, %v2535, 0.0
  %v3672 = vadd.f32 %v3670, %v3671
  %v3673 = vsel %vm3465, %v2538, 0.0
  %v3674 = vadd.f32 %v3672, %v3673
  %v3675 = vsel %vm3465, %v2543, 0.0
  %v3676 = vadd.f32 %v3674, %v3675
  %v3677 = vsel %vm3465, %v2546, 0.0
  %v3678 = vadd.f32 %v3676, %v3677
  %v3679 = vsel %vm3465, %v2551, 0.0
  %v3680 = vadd.f32 %v3678, %v3679
  %v3681 = vsel %vm3465, %v2554, 0.0
  %v3682 = vadd.f32 %v3680, %v3681
  %v3683 = vsel %vm3465, %v2559, 0.0
  %v3684 = vadd.f32 %v3682, %v3683
  %v3685 = vsel %vm3465, %v2562, 0.0
  %v3686 = vadd.f32 %v3684, %v3685
  %v3687 = vsel %vm3465, %v2567, 0.0
  %v3688 = vadd.f32 %v3686, %v3687
  %v3689 = vsel %vm3465, %v2570, 0.0
  %v3690 = vadd.f32 %v3688, %v3689
  %v3691 = vsel %vm3465, %v2575, 0.0
  %v3692 = vadd.f32 %v3690, %v3691
  %v3693 = vsel %vm3465, %v2578, 0.0
  %v3694 = vadd.f32 %v3692, %v3693
  %v3695 = vsel %vm3465, %v2583, 0.0
  %v3696 = vadd.f32 %v3694, %v3695
  %v3697 = vsel %vm3465, %v2586, 0.0
  %v3698 = vadd.f32 %v3696, %v3697
  %v3699 = vsel %vm3465, %v2591, 0.0
  %v3700 = vadd.f32 %v3698, %v3699
  %v3701 = vsel %vm3465, %v2594, 0.0
  %v3702 = vadd.f32 %v3700, %v3701
  %v3703 = vsel %vm3465, %v2599, 0.0
  %v3704 = vadd.f32 %v3702, %v3703
  %v3705 = vsel %vm3465, %v2602, 0.0
  %v3706 = vadd.f32 %v3704, %v3705
  %v3707 = vsel %vm3465, %v2607, 0.0
  %v3708 = vadd.f32 %v3706, %v3707
  %v3709 = vsel %vm3465, %v2610, 0.0
  %v3710 = vadd.f32 %v3708, %v3709
  %v3711 = vsel %vm3465, %v2615, 0.0
  %v3712 = vadd.f32 %v3710, %v3711
  %v3713 = vsel %vm3465, %v2618, 0.0
  %v3714 = vadd.f32 %v3712, %v3713
  %v3715 = vsel %vm3465, %v2623, 0.0
  %v3716 = vadd.f32 %v3714, %v3715
  %v3717 = vsel %vm3465, %v2626, 0.0
  %v3718 = vadd.f32 %v3716, %v3717
  %v3719 = vsel %vm3465, %v2631, 0.0
  %v3720 = vadd.f32 %v3718, %v3719
  %v3721 = vsel %vm3465, %v2634, 0.0
  %v3722 = vadd.f32 %v3720, %v3721
  %v3723 = vsel %vm3465, %v2639, 0.0
  %v3724 = vadd.f32 %v3722, %v3723
  %v3725 = vsel %vm3465, %v2642, 0.0
  %v3726 = vadd.f32 %v3724, %v3725
  %v3727 = vrot.slane %v3726, 4
  %v3728 = vadd.f32 %v3726, %v3727
  %v3729 = vrot.slane %v3728, 2
  %v3730 = vadd.f32 %v3728, %v3729
  %v3731 = vrot.slane %v3730, 1
  %v3732 = vadd.f32 %v3730, %v3731
  %v3733 = vadd.f32 %v3599, %v3732
  %v3734 = vsel %vm3465, %v2811, 0.0
  %v3735 = vsel %vm3465, %v2814, 0.0
  %v3736 = vadd.f32 %v3734, %v3735
  %v3737 = vsel %vm3465, %v2819, 0.0
  %v3738 = vadd.f32 %v3736, %v3737
  %v3739 = vsel %vm3465, %v2822, 0.0
  %v3740 = vadd.f32 %v3738, %v3739
  %v3741 = vsel %vm3465, %v2827, 0.0
  %v3742 = vadd.f32 %v3740, %v3741
  %v3743 = vsel %vm3465, %v2830, 0.0
  %v3744 = vadd.f32 %v3742, %v3743
  %v3745 = vsel %vm3465, %v2835, 0.0
  %v3746 = vadd.f32 %v3744, %v3745
  %v3747 = vsel %vm3465, %v2838, 0.0
  %v3748 = vadd.f32 %v3746, %v3747
  %v3749 = vsel %vm3465, %v2843, 0.0
  %v3750 = vadd.f32 %v3748, %v3749
  %v3751 = vsel %vm3465, %v2846, 0.0
  %v3752 = vadd.f32 %v3750, %v3751
  %v3753 = vsel %vm3465, %v2851, 0.0
  %v3754 = vadd.f32 %v3752, %v3753
  %v3755 = vsel %vm3465, %v2854, 0.0
  %v3756 = vadd.f32 %v3754, %v3755
  %v3757 = vsel %vm3465, %v2859, 0.0
  %v3758 = vadd.f32 %v3756, %v3757
  %v3759 = vsel %vm3465, %v2862, 0.0
  %v3760 = vadd.f32 %v3758, %v3759
  %v3761 = vsel %vm3465, %v2867, 0.0
  %v3762 = vadd.f32 %v3760, %v3761
  %v3763 = vsel %vm3465, %v2870, 0.0
  %v3764 = vadd.f32 %v3762, %v3763
  %v3765 = vsel %vm3465, %v2875, 0.0
  %v3766 = vadd.f32 %v3764, %v3765
  %v3767 = vsel %vm3465, %v2878, 0.0
  %v3768 = vadd.f32 %v3766, %v3767
  %v3769 = vsel %vm3465, %v2883, 0.0
  %v3770 = vadd.f32 %v3768, %v3769
  %v3771 = vsel %vm3465, %v2886, 0.0
  %v3772 = vadd.f32 %v3770, %v3771
  %v3773 = vsel %vm3465, %v2891, 0.0
  %v3774 = vadd.f32 %v3772, %v3773
  %v3775 = vsel %vm3465, %v2894, 0.0
  %v3776 = vadd.f32 %v3774, %v3775
  %v3777 = vsel %vm3465, %v2899, 0.0
  %v3778 = vadd.f32 %v3776, %v3777
  %v3779 = vsel %vm3465, %v2902, 0.0
  %v3780 = vadd.f32 %v3778, %v3779
  %v3781 = vsel %vm3465, %v2907, 0.0
  %v3782 = vadd.f32 %v3780, %v3781
  %v3783 = vsel %vm3465, %v2910, 0.0
  %v3784 = vadd.f32 %v3782, %v3783
  %v3785 = vsel %vm3465, %v2915, 0.0
  %v3786 = vadd.f32 %v3784, %v3785
  %v3787 = vsel %vm3465, %v2918, 0.0
  %v3788 = vadd.f32 %v3786, %v3787
  %v3789 = vsel %vm3465, %v2923, 0.0
  %v3790 = vadd.f32 %v3788, %v3789
  %v3791 = vsel %vm3465, %v2926, 0.0
  %v3792 = vadd.f32 %v3790, %v3791
  %v3793 = vsel %vm3465, %v2931, 0.0
  %v3794 = vadd.f32 %v3792, %v3793
  %v3795 = vsel %vm3465, %v2934, 0.0
  %v3796 = vadd.f32 %v3794, %v3795
  %v3797 = vsel %vm3465, %v2939, 0.0
  %v3798 = vadd.f32 %v3796, %v3797
  %v3799 = vsel %vm3465, %v2942, 0.0
  %v3800 = vadd.f32 %v3798, %v3799
  %v3801 = vsel %vm3465, %v2947, 0.0
  %v3802 = vadd.f32 %v3800, %v3801
  %v3803 = vsel %vm3465, %v2950, 0.0
  %v3804 = vadd.f32 %v3802, %v3803
  %v3805 = vsel %vm3465, %v2955, 0.0
  %v3806 = vadd.f32 %v3804, %v3805
  %v3807 = vsel %vm3465, %v2958, 0.0
  %v3808 = vadd.f32 %v3806, %v3807
  %v3809 = vsel %vm3465, %v2963, 0.0
  %v3810 = vadd.f32 %v3808, %v3809
  %v3811 = vsel %vm3465, %v2966, 0.0
  %v3812 = vadd.f32 %v3810, %v3811
  %v3813 = vsel %vm3465, %v2971, 0.0
  %v3814 = vadd.f32 %v3812, %v3813
  %v3815 = vsel %vm3465, %v2974, 0.0
  %v3816 = vadd.f32 %v3814, %v3815
  %v3817 = vsel %vm3465, %v2979, 0.0
  %v3818 = vadd.f32 %v3816, %v3817
  %v3819 = vsel %vm3465, %v2982, 0.0
  %v3820 = vadd.f32 %v3818, %v3819
  %v3821 = vsel %vm3465, %v2987, 0.0
  %v3822 = vadd.f32 %v3820, %v3821
  %v3823 = vsel %vm3465, %v2990, 0.0
  %v3824 = vadd.f32 %v3822, %v3823
  %v3825 = vsel %vm3465, %v2995, 0.0
  %v3826 = vadd.f32 %v3824, %v3825
  %v3827 = vsel %vm3465, %v2998, 0.0
  %v3828 = vadd.f32 %v3826, %v3827
  %v3829 = vsel %vm3465, %v3003, 0.0
  %v3830 = vadd.f32 %v3828, %v3829
  %v3831 = vsel %vm3465, %v3006, 0.0
  %v3832 = vadd.f32 %v3830, %v3831
  %v3833 = vsel %vm3465, %v3011, 0.0
  %v3834 = vadd.f32 %v3832, %v3833
  %v3835 = vsel %vm3465, %v3014, 0.0
  %v3836 = vadd.f32 %v3834, %v3835
  %v3837 = vsel %vm3465, %v3019, 0.0
  %v3838 = vadd.f32 %v3836, %v3837
  %v3839 = vsel %vm3465, %v3022, 0.0
  %v3840 = vadd.f32 %v3838, %v3839
  %v3841 = vsel %vm3465, %v3027, 0.0
  %v3842 = vadd.f32 %v3840, %v3841
  %v3843 = vsel %vm3465, %v3030, 0.0
  %v3844 = vadd.f32 %v3842, %v3843
  %v3845 = vsel %vm3465, %v3035, 0.0
  %v3846 = vadd.f32 %v3844, %v3845
  %v3847 = vsel %vm3465, %v3038, 0.0
  %v3848 = vadd.f32 %v3846, %v3847
  %v3849 = vsel %vm3465, %v3043, 0.0
  %v3850 = vadd.f32 %v3848, %v3849
  %v3851 = vsel %vm3465, %v3046, 0.0
  %v3852 = vadd.f32 %v3850, %v3851
  %v3853 = vsel %vm3465, %v3051, 0.0
  %v3854 = vadd.f32 %v3852, %v3853
  %v3855 = vsel %vm3465, %v3054, 0.0
  %v3856 = vadd.f32 %v3854, %v3855
  %v3857 = vsel %vm3465, %v3059, 0.0
  %v3858 = vadd.f32 %v3856, %v3857
  %v3859 = vsel %vm3465, %v3062, 0.0
  %v3860 = vadd.f32 %v3858, %v3859
  %v3861 = vrot.slane %v3860, 4
  %v3862 = vadd.f32 %v3860, %v3861
  %v3863 = vrot.slane %v3862, 2
  %v3864 = vadd.f32 %v3862, %v3863
  %v3865 = vrot.slane %v3864, 1
  %v3866 = vadd.f32 %v3864, %v3865
  %v3867 = vadd.f32 %v3733, %v3866
  %v3868 = vsel %vm3465, %v3211, 0.0
  %v3869 = vsel %vm3465, %v3214, 0.0
  %v3870 = vadd.f32 %v3868, %v3869
  %v3871 = vsel %vm3465, %v3219, 0.0
  %v3872 = vadd.f32 %v3870, %v3871
  %v3873 = vsel %vm3465, %v3222, 0.0
  %v3874 = vadd.f32 %v3872, %v3873
  %v3875 = vsel %vm3465, %v3227, 0.0
  %v3876 = vadd.f32 %v3874, %v3875
  %v3877 = vsel %vm3465, %v3230, 0.0
  %v3878 = vadd.f32 %v3876, %v3877
  %v3879 = vsel %vm3465, %v3235, 0.0
  %v3880 = vadd.f32 %v3878, %v3879
  %v3881 = vsel %vm3465, %v3238, 0.0
  %v3882 = vadd.f32 %v3880, %v3881
  %v3883 = vsel %vm3465, %v3243, 0.0
  %v3884 = vadd.f32 %v3882, %v3883
  %v3885 = vsel %vm3465, %v3246, 0.0
  %v3886 = vadd.f32 %v3884, %v3885
  %v3887 = vsel %vm3465, %v3251, 0.0
  %v3888 = vadd.f32 %v3886, %v3887
  %v3889 = vsel %vm3465, %v3254, 0.0
  %v3890 = vadd.f32 %v3888, %v3889
  %v3891 = vsel %vm3465, %v3259, 0.0
  %v3892 = vadd.f32 %v3890, %v3891
  %v3893 = vsel %vm3465, %v3262, 0.0
  %v3894 = vadd.f32 %v3892, %v3893
  %v3895 = vsel %vm3465, %v3267, 0.0
  %v3896 = vadd.f32 %v3894, %v3895
  %v3897 = vsel %vm3465, %v3270, 0.0
  %v3898 = vadd.f32 %v3896, %v3897
  %v3899 = vsel %vm3465, %v3275, 0.0
  %v3900 = vadd.f32 %v3898, %v3899
  %v3901 = vsel %vm3465, %v3278, 0.0
  %v3902 = vadd.f32 %v3900, %v3901
  %v3903 = vsel %vm3465, %v3283, 0.0
  %v3904 = vadd.f32 %v3902, %v3903
  %v3905 = vsel %vm3465, %v3286, 0.0
  %v3906 = vadd.f32 %v3904, %v3905
  %v3907 = vsel %vm3465, %v3291, 0.0
  %v3908 = vadd.f32 %v3906, %v3907
  %v3909 = vsel %vm3465, %v3294, 0.0
  %v3910 = vadd.f32 %v3908, %v3909
  %v3911 = vsel %vm3465, %v3299, 0.0
  %v3912 = vadd.f32 %v3910, %v3911
  %v3913 = vsel %vm3465, %v3302, 0.0
  %v3914 = vadd.f32 %v3912, %v3913
  %v3915 = vsel %vm3465, %v3307, 0.0
  %v3916 = vadd.f32 %v3914, %v3915
  %v3917 = vsel %vm3465, %v3310, 0.0
  %v3918 = vadd.f32 %v3916, %v3917
  %v3919 = vsel %vm3465, %v3315, 0.0
  %v3920 = vadd.f32 %v3918, %v3919
  %v3921 = vsel %vm3465, %v3318, 0.0
  %v3922 = vadd.f32 %v3920, %v3921
  %v3923 = vsel %vm3465, %v3323, 0.0
  %v3924 = vadd.f32 %v3922, %v3923
  %v3925 = vsel %vm3465, %v3326, 0.0
  %v3926 = vadd.f32 %v3924, %v3925
  %v3927 = vsel %vm3465, %v3331, 0.0
  %v3928 = vadd.f32 %v3926, %v3927
  %v3929 = vsel %vm3465, %v3334, 0.0
  %v3930 = vadd.f32 %v3928, %v3929
  %v3931 = vsel %vm3465, %v3339, 0.0
  %v3932 = vadd.f32 %v3930, %v3931
  %v3933 = vsel %vm3465, %v3342, 0.0
  %v3934 = vadd.f32 %v3932, %v3933
  %v3935 = vsel %vm3465, %v3347, 0.0
  %v3936 = vadd.f32 %v3934, %v3935
  %v3937 = vsel %vm3465, %v3350, 0.0
  %v3938 = vadd.f32 %v3936, %v3937
  %v3939 = vsel %vm3465, %v3355, 0.0
  %v3940 = vadd.f32 %v3938, %v3939
  %v3941 = vsel %vm3465, %v3358, 0.0
  %v3942 = vadd.f32 %v3940, %v3941
  %v3943 = vsel %vm3465, %v3363, 0.0
  %v3944 = vadd.f32 %v3942, %v3943
  %v3945 = vsel %vm3465, %v3366, 0.0
  %v3946 = vadd.f32 %v3944, %v3945
  %v3947 = vsel %vm3465, %v3371, 0.0
  %v3948 = vadd.f32 %v3946, %v3947
  %v3949 = vsel %vm3465, %v3374, 0.0
  %v3950 = vadd.f32 %v3948, %v3949
  %v3951 = vsel %vm3465, %v3379, 0.0
  %v3952 = vadd.f32 %v3950, %v3951
  %v3953 = vsel %vm3465, %v3382, 0.0
  %v3954 = vadd.f32 %v3952, %v3953
  %v3955 = vsel %vm3465, %v3387, 0.0
  %v3956 = vadd.f32 %v3954, %v3955
  %v3957 = vsel %vm3465, %v3390, 0.0
  %v3958 = vadd.f32 %v3956, %v3957
  %v3959 = vsel %vm3465, %v3395, 0.0
  %v3960 = vadd.f32 %v3958, %v3959
  %v3961 = vsel %vm3465, %v3398, 0.0
  %v3962 = vadd.f32 %v3960, %v3961
  %v3963 = vsel %vm3465, %v3403, 0.0
  %v3964 = vadd.f32 %v3962, %v3963
  %v3965 = vsel %vm3465, %v3406, 0.0
  %v3966 = vadd.f32 %v3964, %v3965
  %v3967 = vsel %vm3465, %v3411, 0.0
  %v3968 = vadd.f32 %v3966, %v3967
  %v3969 = vsel %vm3465, %v3414, 0.0
  %v3970 = vadd.f32 %v3968, %v3969
  %v3971 = vsel %vm3465, %v3419, 0.0
  %v3972 = vadd.f32 %v3970, %v3971
  %v3973 = vsel %vm3465, %v3422, 0.0
  %v3974 = vadd.f32 %v3972, %v3973
  %v3975 = vsel %vm3465, %v3427, 0.0
  %v3976 = vadd.f32 %v3974, %v3975
  %v3977 = vsel %vm3465, %v3430, 0.0
  %v3978 = vadd.f32 %v3976, %v3977
  %v3979 = vsel %vm3465, %v3435, 0.0
  %v3980 = vadd.f32 %v3978, %v3979
  %v3981 = vsel %vm3465, %v3438, 0.0
  %v3982 = vadd.f32 %v3980, %v3981
  %v3983 = vsel %vm3465, %v3443, 0.0
  %v3984 = vadd.f32 %v3982, %v3983
  %v3985 = vsel %vm3465, %v3446, 0.0
  %v3986 = vadd.f32 %v3984, %v3985
  %v3987 = vsel %vm3465, %v3451, 0.0
  %v3988 = vadd.f32 %v3986, %v3987
  %v3989 = vsel %vm3465, %v3454, 0.0
  %v3990 = vadd.f32 %v3988, %v3989
  %v3991 = vsel %vm3465, %v3459, 0.0
  %v3992 = vadd.f32 %v3990, %v3991
  %v3993 = vsel %vm3465, %v3462, 0.0
  %v3994 = vadd.f32 %v3992, %v3993
  %v3995 = vrot.slane %v3994, 4
  %v3996 = vadd.f32 %v3994, %v3995
  %v3997 = vrot.slane %v3996, 2
  %v3998 = vadd.f32 %v3996, %v3997
  %v3999 = vrot.slane %v3998, 1
  %v4000 = vadd.f32 %v3998, %v3999
  %v4001 = vadd.f32 %v3867, %v4000
  %v4002 = vmul.f32 %v1301, %v1301
  %v4003 = vmul.f32 %v1304, %v1304
  %v4004 = vmul.f32 %v1309, %v1309
  %v4005 = vmul.f32 %v1312, %v1312
  %v4006 = vmul.f32 %v1317, %v1317
  %v4007 = vmul.f32 %v1320, %v1320
  %v4008 = vmul.f32 %v1325, %v1325
  %v4009 = vmul.f32 %v1328, %v1328
  %v4010 = vmul.f32 %v1333, %v1333
  %v4011 = vmul.f32 %v1336, %v1336
  %v4012 = vmul.f32 %v1341, %v1341
  %v4013 = vmul.f32 %v1344, %v1344
  %v4014 = vmul.f32 %v1349, %v1349
  %v4015 = vmul.f32 %v1352, %v1352
  %v4016 = vmul.f32 %v1357, %v1357
  %v4017 = vmul.f32 %v1360, %v1360
  %v4018 = vmul.f32 %v1365, %v1365
  %v4019 = vmul.f32 %v1368, %v1368
  %v4020 = vmul.f32 %v1373, %v1373
  %v4021 = vmul.f32 %v1376, %v1376
  %v4022 = vmul.f32 %v1381, %v1381
  %v4023 = vmul.f32 %v1384, %v1384
  %v4024 = vmul.f32 %v1389, %v1389
  %v4025 = vmul.f32 %v1392, %v1392
  %v4026 = vmul.f32 %v1397, %v1397
  %v4027 = vmul.f32 %v1400, %v1400
  %v4028 = vmul.f32 %v1405, %v1405
  %v4029 = vmul.f32 %v1408, %v1408
  %v4030 = vmul.f32 %v1413, %v1413
  %v4031 = vmul.f32 %v1416, %v1416
  %v4032 = vmul.f32 %v1421, %v1421
  %v4033 = vmul.f32 %v1424, %v1424
  %v4034 = vmul.f32 %v1429, %v1429
  %v4035 = vmul.f32 %v1432, %v1432
  %v4036 = vmul.f32 %v1437, %v1437
  %v4037 = vmul.f32 %v1440, %v1440
  %v4038 = vmul.f32 %v1445, %v1445
  %v4039 = vmul.f32 %v1448, %v1448
  %v4040 = vmul.f32 %v1453, %v1453
  %v4041 = vmul.f32 %v1456, %v1456
  %v4042 = vmul.f32 %v1461, %v1461
  %v4043 = vmul.f32 %v1464, %v1464
  %v4044 = vmul.f32 %v1469, %v1469
  %v4045 = vmul.f32 %v1472, %v1472
  %v4046 = vmul.f32 %v1477, %v1477
  %v4047 = vmul.f32 %v1480, %v1480
  %v4048 = vmul.f32 %v1485, %v1485
  %v4049 = vmul.f32 %v1488, %v1488
  %v4050 = vmul.f32 %v1493, %v1493
  %v4051 = vmul.f32 %v1496, %v1496
  %v4052 = vmul.f32 %v1501, %v1501
  %v4053 = vmul.f32 %v1504, %v1504
  %v4054 = vmul.f32 %v1509, %v1509
  %v4055 = vmul.f32 %v1512, %v1512
  %v4056 = vmul.f32 %v1517, %v1517
  %v4057 = vmul.f32 %v1520, %v1520
  %v4058 = vmul.f32 %v1525, %v1525
  %v4059 = vmul.f32 %v1528, %v1528
  %v4060 = vmul.f32 %v1533, %v1533
  %v4061 = vmul.f32 %v1536, %v1536
  %v4062 = vmul.f32 %v1541, %v1541
  %v4063 = vmul.f32 %v1544, %v1544
  %v4064 = vmul.f32 %v1549, %v1549
  %v4065 = vmul.f32 %v1552, %v1552
  %v4066 = vsel %vm3465, %v4002, 0.0
  %v4067 = vsel %vm3465, %v4003, 0.0
  %v4068 = vadd.f32 %v4066, %v4067
  %v4069 = vsel %vm3465, %v4004, 0.0
  %v4070 = vadd.f32 %v4068, %v4069
  %v4071 = vsel %vm3465, %v4005, 0.0
  %v4072 = vadd.f32 %v4070, %v4071
  %v4073 = vsel %vm3465, %v4006, 0.0
  %v4074 = vadd.f32 %v4072, %v4073
  %v4075 = vsel %vm3465, %v4007, 0.0
  %v4076 = vadd.f32 %v4074, %v4075
  %v4077 = vsel %vm3465, %v4008, 0.0
  %v4078 = vadd.f32 %v4076, %v4077
  %v4079 = vsel %vm3465, %v4009, 0.0
  %v4080 = vadd.f32 %v4078, %v4079
  %v4081 = vsel %vm3465, %v4010, 0.0
  %v4082 = vadd.f32 %v4080, %v4081
  %v4083 = vsel %vm3465, %v4011, 0.0
  %v4084 = vadd.f32 %v4082, %v4083
  %v4085 = vsel %vm3465, %v4012, 0.0
  %v4086 = vadd.f32 %v4084, %v4085
  %v4087 = vsel %vm3465, %v4013, 0.0
  %v4088 = vadd.f32 %v4086, %v4087
  %v4089 = vsel %vm3465, %v4014, 0.0
  %v4090 = vadd.f32 %v4088, %v4089
  %v4091 = vsel %vm3465, %v4015, 0.0
  %v4092 = vadd.f32 %v4090, %v4091
  %v4093 = vsel %vm3465, %v4016, 0.0
  %v4094 = vadd.f32 %v4092, %v4093
  %v4095 = vsel %vm3465, %v4017, 0.0
  %v4096 = vadd.f32 %v4094, %v4095
  %v4097 = vsel %vm3465, %v4018, 0.0
  %v4098 = vadd.f32 %v4096, %v4097
  %v4099 = vsel %vm3465, %v4019, 0.0
  %v4100 = vadd.f32 %v4098, %v4099
  %v4101 = vsel %vm3465, %v4020, 0.0
  %v4102 = vadd.f32 %v4100, %v4101
  %v4103 = vsel %vm3465, %v4021, 0.0
  %v4104 = vadd.f32 %v4102, %v4103
  %v4105 = vsel %vm3465, %v4022, 0.0
  %v4106 = vadd.f32 %v4104, %v4105
  %v4107 = vsel %vm3465, %v4023, 0.0
  %v4108 = vadd.f32 %v4106, %v4107
  %v4109 = vsel %vm3465, %v4024, 0.0
  %v4110 = vadd.f32 %v4108, %v4109
  %v4111 = vsel %vm3465, %v4025, 0.0
  %v4112 = vadd.f32 %v4110, %v4111
  %v4113 = vsel %vm3465, %v4026, 0.0
  %v4114 = vadd.f32 %v4112, %v4113
  %v4115 = vsel %vm3465, %v4027, 0.0
  %v4116 = vadd.f32 %v4114, %v4115
  %v4117 = vsel %vm3465, %v4028, 0.0
  %v4118 = vadd.f32 %v4116, %v4117
  %v4119 = vsel %vm3465, %v4029, 0.0
  %v4120 = vadd.f32 %v4118, %v4119
  %v4121 = vsel %vm3465, %v4030, 0.0
  %v4122 = vadd.f32 %v4120, %v4121
  %v4123 = vsel %vm3465, %v4031, 0.0
  %v4124 = vadd.f32 %v4122, %v4123
  %v4125 = vsel %vm3465, %v4032, 0.0
  %v4126 = vadd.f32 %v4124, %v4125
  %v4127 = vsel %vm3465, %v4033, 0.0
  %v4128 = vadd.f32 %v4126, %v4127
  %v4129 = vsel %vm3465, %v4034, 0.0
  %v4130 = vadd.f32 %v4128, %v4129
  %v4131 = vsel %vm3465, %v4035, 0.0
  %v4132 = vadd.f32 %v4130, %v4131
  %v4133 = vsel %vm3465, %v4036, 0.0
  %v4134 = vadd.f32 %v4132, %v4133
  %v4135 = vsel %vm3465, %v4037, 0.0
  %v4136 = vadd.f32 %v4134, %v4135
  %v4137 = vsel %vm3465, %v4038, 0.0
  %v4138 = vadd.f32 %v4136, %v4137
  %v4139 = vsel %vm3465, %v4039, 0.0
  %v4140 = vadd.f32 %v4138, %v4139
  %v4141 = vsel %vm3465, %v4040, 0.0
  %v4142 = vadd.f32 %v4140, %v4141
  %v4143 = vsel %vm3465, %v4041, 0.0
  %v4144 = vadd.f32 %v4142, %v4143
  %v4145 = vsel %vm3465, %v4042, 0.0
  %v4146 = vadd.f32 %v4144, %v4145
  %v4147 = vsel %vm3465, %v4043, 0.0
  %v4148 = vadd.f32 %v4146, %v4147
  %v4149 = vsel %vm3465, %v4044, 0.0
  %v4150 = vadd.f32 %v4148, %v4149
  %v4151 = vsel %vm3465, %v4045, 0.0
  %v4152 = vadd.f32 %v4150, %v4151
  %v4153 = vsel %vm3465, %v4046, 0.0
  %v4154 = vadd.f32 %v4152, %v4153
  %v4155 = vsel %vm3465, %v4047, 0.0
  %v4156 = vadd.f32 %v4154, %v4155
  %v4157 = vsel %vm3465, %v4048, 0.0
  %v4158 = vadd.f32 %v4156, %v4157
  %v4159 = vsel %vm3465, %v4049, 0.0
  %v4160 = vadd.f32 %v4158, %v4159
  %v4161 = vsel %vm3465, %v4050, 0.0
  %v4162 = vadd.f32 %v4160, %v4161
  %v4163 = vsel %vm3465, %v4051, 0.0
  %v4164 = vadd.f32 %v4162, %v4163
  %v4165 = vsel %vm3465, %v4052, 0.0
  %v4166 = vadd.f32 %v4164, %v4165
  %v4167 = vsel %vm3465, %v4053, 0.0
  %v4168 = vadd.f32 %v4166, %v4167
  %v4169 = vsel %vm3465, %v4054, 0.0
  %v4170 = vadd.f32 %v4168, %v4169
  %v4171 = vsel %vm3465, %v4055, 0.0
  %v4172 = vadd.f32 %v4170, %v4171
  %v4173 = vsel %vm3465, %v4056, 0.0
  %v4174 = vadd.f32 %v4172, %v4173
  %v4175 = vsel %vm3465, %v4057, 0.0
  %v4176 = vadd.f32 %v4174, %v4175
  %v4177 = vsel %vm3465, %v4058, 0.0
  %v4178 = vadd.f32 %v4176, %v4177
  %v4179 = vsel %vm3465, %v4059, 0.0
  %v4180 = vadd.f32 %v4178, %v4179
  %v4181 = vsel %vm3465, %v4060, 0.0
  %v4182 = vadd.f32 %v4180, %v4181
  %v4183 = vsel %vm3465, %v4061, 0.0
  %v4184 = vadd.f32 %v4182, %v4183
  %v4185 = vsel %vm3465, %v4062, 0.0
  %v4186 = vadd.f32 %v4184, %v4185
  %v4187 = vsel %vm3465, %v4063, 0.0
  %v4188 = vadd.f32 %v4186, %v4187
  %v4189 = vsel %vm3465, %v4064, 0.0
  %v4190 = vadd.f32 %v4188, %v4189
  %v4191 = vsel %vm3465, %v4065, 0.0
  %v4192 = vadd.f32 %v4190, %v4191
  %v4193 = vrot.slane %v4192, 4
  %v4194 = vadd.f32 %v4192, %v4193
  %v4195 = vrot.slane %v4194, 2
  %v4196 = vadd.f32 %v4194, %v4195
  %v4197 = vrot.slane %v4196, 1
  %v4198 = vadd.f32 %v4196, %v4197
  %v4199 = vadd.f32 %v4198, 0.0
  %v4200 = vmul.f32 %v2391, %v2391
  %v4201 = vmul.f32 %v2394, %v2394
  %v4202 = vmul.f32 %v2399, %v2399
  %v4203 = vmul.f32 %v2402, %v2402
  %v4204 = vmul.f32 %v2407, %v2407
  %v4205 = vmul.f32 %v2410, %v2410
  %v4206 = vmul.f32 %v2415, %v2415
  %v4207 = vmul.f32 %v2418, %v2418
  %v4208 = vmul.f32 %v2423, %v2423
  %v4209 = vmul.f32 %v2426, %v2426
  %v4210 = vmul.f32 %v2431, %v2431
  %v4211 = vmul.f32 %v2434, %v2434
  %v4212 = vmul.f32 %v2439, %v2439
  %v4213 = vmul.f32 %v2442, %v2442
  %v4214 = vmul.f32 %v2447, %v2447
  %v4215 = vmul.f32 %v2450, %v2450
  %v4216 = vmul.f32 %v2455, %v2455
  %v4217 = vmul.f32 %v2458, %v2458
  %v4218 = vmul.f32 %v2463, %v2463
  %v4219 = vmul.f32 %v2466, %v2466
  %v4220 = vmul.f32 %v2471, %v2471
  %v4221 = vmul.f32 %v2474, %v2474
  %v4222 = vmul.f32 %v2479, %v2479
  %v4223 = vmul.f32 %v2482, %v2482
  %v4224 = vmul.f32 %v2487, %v2487
  %v4225 = vmul.f32 %v2490, %v2490
  %v4226 = vmul.f32 %v2495, %v2495
  %v4227 = vmul.f32 %v2498, %v2498
  %v4228 = vmul.f32 %v2503, %v2503
  %v4229 = vmul.f32 %v2506, %v2506
  %v4230 = vmul.f32 %v2511, %v2511
  %v4231 = vmul.f32 %v2514, %v2514
  %v4232 = vmul.f32 %v2519, %v2519
  %v4233 = vmul.f32 %v2522, %v2522
  %v4234 = vmul.f32 %v2527, %v2527
  %v4235 = vmul.f32 %v2530, %v2530
  %v4236 = vmul.f32 %v2535, %v2535
  %v4237 = vmul.f32 %v2538, %v2538
  %v4238 = vmul.f32 %v2543, %v2543
  %v4239 = vmul.f32 %v2546, %v2546
  %v4240 = vmul.f32 %v2551, %v2551
  %v4241 = vmul.f32 %v2554, %v2554
  %v4242 = vmul.f32 %v2559, %v2559
  %v4243 = vmul.f32 %v2562, %v2562
  %v4244 = vmul.f32 %v2567, %v2567
  %v4245 = vmul.f32 %v2570, %v2570
  %v4246 = vmul.f32 %v2575, %v2575
  %v4247 = vmul.f32 %v2578, %v2578
  %v4248 = vmul.f32 %v2583, %v2583
  %v4249 = vmul.f32 %v2586, %v2586
  %v4250 = vmul.f32 %v2591, %v2591
  %v4251 = vmul.f32 %v2594, %v2594
  %v4252 = vmul.f32 %v2599, %v2599
  %v4253 = vmul.f32 %v2602, %v2602
  %v4254 = vmul.f32 %v2607, %v2607
  %v4255 = vmul.f32 %v2610, %v2610
  %v4256 = vmul.f32 %v2615, %v2615
  %v4257 = vmul.f32 %v2618, %v2618
  %v4258 = vmul.f32 %v2623, %v2623
  %v4259 = vmul.f32 %v2626, %v2626
  %v4260 = vmul.f32 %v2631, %v2631
  %v4261 = vmul.f32 %v2634, %v2634
  %v4262 = vmul.f32 %v2639, %v2639
  %v4263 = vmul.f32 %v2642, %v2642
  %v4264 = vsel %vm3465, %v4200, 0.0
  %v4265 = vsel %vm3465, %v4201, 0.0
  %v4266 = vadd.f32 %v4264, %v4265
  %v4267 = vsel %vm3465, %v4202, 0.0
  %v4268 = vadd.f32 %v4266, %v4267
  %v4269 = vsel %vm3465, %v4203, 0.0
  %v4270 = vadd.f32 %v4268, %v4269
  %v4271 = vsel %vm3465, %v4204, 0.0
  %v4272 = vadd.f32 %v4270, %v4271
  %v4273 = vsel %vm3465, %v4205, 0.0
  %v4274 = vadd.f32 %v4272, %v4273
  %v4275 = vsel %vm3465, %v4206, 0.0
  %v4276 = vadd.f32 %v4274, %v4275
  %v4277 = vsel %vm3465, %v4207, 0.0
  %v4278 = vadd.f32 %v4276, %v4277
  %v4279 = vsel %vm3465, %v4208, 0.0
  %v4280 = vadd.f32 %v4278, %v4279
  %v4281 = vsel %vm3465, %v4209, 0.0
  %v4282 = vadd.f32 %v4280, %v4281
  %v4283 = vsel %vm3465, %v4210, 0.0
  %v4284 = vadd.f32 %v4282, %v4283
  %v4285 = vsel %vm3465, %v4211, 0.0
  %v4286 = vadd.f32 %v4284, %v4285
  %v4287 = vsel %vm3465, %v4212, 0.0
  %v4288 = vadd.f32 %v4286, %v4287
  %v4289 = vsel %vm3465, %v4213, 0.0
  %v4290 = vadd.f32 %v4288, %v4289
  %v4291 = vsel %vm3465, %v4214, 0.0
  %v4292 = vadd.f32 %v4290, %v4291
  %v4293 = vsel %vm3465, %v4215, 0.0
  %v4294 = vadd.f32 %v4292, %v4293
  %v4295 = vsel %vm3465, %v4216, 0.0
  %v4296 = vadd.f32 %v4294, %v4295
  %v4297 = vsel %vm3465, %v4217, 0.0
  %v4298 = vadd.f32 %v4296, %v4297
  %v4299 = vsel %vm3465, %v4218, 0.0
  %v4300 = vadd.f32 %v4298, %v4299
  %v4301 = vsel %vm3465, %v4219, 0.0
  %v4302 = vadd.f32 %v4300, %v4301
  %v4303 = vsel %vm3465, %v4220, 0.0
  %v4304 = vadd.f32 %v4302, %v4303
  %v4305 = vsel %vm3465, %v4221, 0.0
  %v4306 = vadd.f32 %v4304, %v4305
  %v4307 = vsel %vm3465, %v4222, 0.0
  %v4308 = vadd.f32 %v4306, %v4307
  %v4309 = vsel %vm3465, %v4223, 0.0
  %v4310 = vadd.f32 %v4308, %v4309
  %v4311 = vsel %vm3465, %v4224, 0.0
  %v4312 = vadd.f32 %v4310, %v4311
  %v4313 = vsel %vm3465, %v4225, 0.0
  %v4314 = vadd.f32 %v4312, %v4313
  %v4315 = vsel %vm3465, %v4226, 0.0
  %v4316 = vadd.f32 %v4314, %v4315
  %v4317 = vsel %vm3465, %v4227, 0.0
  %v4318 = vadd.f32 %v4316, %v4317
  %v4319 = vsel %vm3465, %v4228, 0.0
  %v4320 = vadd.f32 %v4318, %v4319
  %v4321 = vsel %vm3465, %v4229, 0.0
  %v4322 = vadd.f32 %v4320, %v4321
  %v4323 = vsel %vm3465, %v4230, 0.0
  %v4324 = vadd.f32 %v4322, %v4323
  %v4325 = vsel %vm3465, %v4231, 0.0
  %v4326 = vadd.f32 %v4324, %v4325
  %v4327 = vsel %vm3465, %v4232, 0.0
  %v4328 = vadd.f32 %v4326, %v4327
  %v4329 = vsel %vm3465, %v4233, 0.0
  %v4330 = vadd.f32 %v4328, %v4329
  %v4331 = vsel %vm3465, %v4234, 0.0
  %v4332 = vadd.f32 %v4330, %v4331
  %v4333 = vsel %vm3465, %v4235, 0.0
  %v4334 = vadd.f32 %v4332, %v4333
  %v4335 = vsel %vm3465, %v4236, 0.0
  %v4336 = vadd.f32 %v4334, %v4335
  %v4337 = vsel %vm3465, %v4237, 0.0
  %v4338 = vadd.f32 %v4336, %v4337
  %v4339 = vsel %vm3465, %v4238, 0.0
  %v4340 = vadd.f32 %v4338, %v4339
  %v4341 = vsel %vm3465, %v4239, 0.0
  %v4342 = vadd.f32 %v4340, %v4341
  %v4343 = vsel %vm3465, %v4240, 0.0
  %v4344 = vadd.f32 %v4342, %v4343
  %v4345 = vsel %vm3465, %v4241, 0.0
  %v4346 = vadd.f32 %v4344, %v4345
  %v4347 = vsel %vm3465, %v4242, 0.0
  %v4348 = vadd.f32 %v4346, %v4347
  %v4349 = vsel %vm3465, %v4243, 0.0
  %v4350 = vadd.f32 %v4348, %v4349
  %v4351 = vsel %vm3465, %v4244, 0.0
  %v4352 = vadd.f32 %v4350, %v4351
  %v4353 = vsel %vm3465, %v4245, 0.0
  %v4354 = vadd.f32 %v4352, %v4353
  %v4355 = vsel %vm3465, %v4246, 0.0
  %v4356 = vadd.f32 %v4354, %v4355
  %v4357 = vsel %vm3465, %v4247, 0.0
  %v4358 = vadd.f32 %v4356, %v4357
  %v4359 = vsel %vm3465, %v4248, 0.0
  %v4360 = vadd.f32 %v4358, %v4359
  %v4361 = vsel %vm3465, %v4249, 0.0
  %v4362 = vadd.f32 %v4360, %v4361
  %v4363 = vsel %vm3465, %v4250, 0.0
  %v4364 = vadd.f32 %v4362, %v4363
  %v4365 = vsel %vm3465, %v4251, 0.0
  %v4366 = vadd.f32 %v4364, %v4365
  %v4367 = vsel %vm3465, %v4252, 0.0
  %v4368 = vadd.f32 %v4366, %v4367
  %v4369 = vsel %vm3465, %v4253, 0.0
  %v4370 = vadd.f32 %v4368, %v4369
  %v4371 = vsel %vm3465, %v4254, 0.0
  %v4372 = vadd.f32 %v4370, %v4371
  %v4373 = vsel %vm3465, %v4255, 0.0
  %v4374 = vadd.f32 %v4372, %v4373
  %v4375 = vsel %vm3465, %v4256, 0.0
  %v4376 = vadd.f32 %v4374, %v4375
  %v4377 = vsel %vm3465, %v4257, 0.0
  %v4378 = vadd.f32 %v4376, %v4377
  %v4379 = vsel %vm3465, %v4258, 0.0
  %v4380 = vadd.f32 %v4378, %v4379
  %v4381 = vsel %vm3465, %v4259, 0.0
  %v4382 = vadd.f32 %v4380, %v4381
  %v4383 = vsel %vm3465, %v4260, 0.0
  %v4384 = vadd.f32 %v4382, %v4383
  %v4385 = vsel %vm3465, %v4261, 0.0
  %v4386 = vadd.f32 %v4384, %v4385
  %v4387 = vsel %vm3465, %v4262, 0.0
  %v4388 = vadd.f32 %v4386, %v4387
  %v4389 = vsel %vm3465, %v4263, 0.0
  %v4390 = vadd.f32 %v4388, %v4389
  %v4391 = vrot.slane %v4390, 4
  %v4392 = vadd.f32 %v4390, %v4391
  %v4393 = vrot.slane %v4392, 2
  %v4394 = vadd.f32 %v4392, %v4393
  %v4395 = vrot.slane %v4394, 1
  %v4396 = vadd.f32 %v4394, %v4395
  %v4397 = vadd.f32 %v4199, %v4396
  %v4398 = vmul.f32 %v2811, %v2811
  %v4399 = vmul.f32 %v2814, %v2814
  %v4400 = vmul.f32 %v2819, %v2819
  %v4401 = vmul.f32 %v2822, %v2822
  %v4402 = vmul.f32 %v2827, %v2827
  %v4403 = vmul.f32 %v2830, %v2830
  %v4404 = vmul.f32 %v2835, %v2835
  %v4405 = vmul.f32 %v2838, %v2838
  %v4406 = vmul.f32 %v2843, %v2843
  %v4407 = vmul.f32 %v2846, %v2846
  %v4408 = vmul.f32 %v2851, %v2851
  %v4409 = vmul.f32 %v2854, %v2854
  %v4410 = vmul.f32 %v2859, %v2859
  %v4411 = vmul.f32 %v2862, %v2862
  %v4412 = vmul.f32 %v2867, %v2867
  %v4413 = vmul.f32 %v2870, %v2870
  %v4414 = vmul.f32 %v2875, %v2875
  %v4415 = vmul.f32 %v2878, %v2878
  %v4416 = vmul.f32 %v2883, %v2883
  %v4417 = vmul.f32 %v2886, %v2886
  %v4418 = vmul.f32 %v2891, %v2891
  %v4419 = vmul.f32 %v2894, %v2894
  %v4420 = vmul.f32 %v2899, %v2899
  %v4421 = vmul.f32 %v2902, %v2902
  %v4422 = vmul.f32 %v2907, %v2907
  %v4423 = vmul.f32 %v2910, %v2910
  %v4424 = vmul.f32 %v2915, %v2915
  %v4425 = vmul.f32 %v2918, %v2918
  %v4426 = vmul.f32 %v2923, %v2923
  %v4427 = vmul.f32 %v2926, %v2926
  %v4428 = vmul.f32 %v2931, %v2931
  %v4429 = vmul.f32 %v2934, %v2934
  %v4430 = vmul.f32 %v2939, %v2939
  %v4431 = vmul.f32 %v2942, %v2942
  %v4432 = vmul.f32 %v2947, %v2947
  %v4433 = vmul.f32 %v2950, %v2950
  %v4434 = vmul.f32 %v2955, %v2955
  %v4435 = vmul.f32 %v2958, %v2958
  %v4436 = vmul.f32 %v2963, %v2963
  %v4437 = vmul.f32 %v2966, %v2966
  %v4438 = vmul.f32 %v2971, %v2971
  %v4439 = vmul.f32 %v2974, %v2974
  %v4440 = vmul.f32 %v2979, %v2979
  %v4441 = vmul.f32 %v2982, %v2982
  %v4442 = vmul.f32 %v2987, %v2987
  %v4443 = vmul.f32 %v2990, %v2990
  %v4444 = vmul.f32 %v2995, %v2995
  %v4445 = vmul.f32 %v2998, %v2998
  %v4446 = vmul.f32 %v3003, %v3003
  %v4447 = vmul.f32 %v3006, %v3006
  %v4448 = vmul.f32 %v3011, %v3011
  %v4449 = vmul.f32 %v3014, %v3014
  %v4450 = vmul.f32 %v3019, %v3019
  %v4451 = vmul.f32 %v3022, %v3022
  %v4452 = vmul.f32 %v3027, %v3027
  %v4453 = vmul.f32 %v3030, %v3030
  %v4454 = vmul.f32 %v3035, %v3035
  %v4455 = vmul.f32 %v3038, %v3038
  %v4456 = vmul.f32 %v3043, %v3043
  %v4457 = vmul.f32 %v3046, %v3046
  %v4458 = vmul.f32 %v3051, %v3051
  %v4459 = vmul.f32 %v3054, %v3054
  %v4460 = vmul.f32 %v3059, %v3059
  %v4461 = vmul.f32 %v3062, %v3062
  %v4462 = vsel %vm3465, %v4398, 0.0
  %v4463 = vsel %vm3465, %v4399, 0.0
  %v4464 = vadd.f32 %v4462, %v4463
  %v4465 = vsel %vm3465, %v4400, 0.0
  %v4466 = vadd.f32 %v4464, %v4465
  %v4467 = vsel %vm3465, %v4401, 0.0
  %v4468 = vadd.f32 %v4466, %v4467
  %v4469 = vsel %vm3465, %v4402, 0.0
  %v4470 = vadd.f32 %v4468, %v4469
  %v4471 = vsel %vm3465, %v4403, 0.0
  %v4472 = vadd.f32 %v4470, %v4471
  %v4473 = vsel %vm3465, %v4404, 0.0
  %v4474 = vadd.f32 %v4472, %v4473
  %v4475 = vsel %vm3465, %v4405, 0.0
  %v4476 = vadd.f32 %v4474, %v4475
  %v4477 = vsel %vm3465, %v4406, 0.0
  %v4478 = vadd.f32 %v4476, %v4477
  %v4479 = vsel %vm3465, %v4407, 0.0
  %v4480 = vadd.f32 %v4478, %v4479
  %v4481 = vsel %vm3465, %v4408, 0.0
  %v4482 = vadd.f32 %v4480, %v4481
  %v4483 = vsel %vm3465, %v4409, 0.0
  %v4484 = vadd.f32 %v4482, %v4483
  %v4485 = vsel %vm3465, %v4410, 0.0
  %v4486 = vadd.f32 %v4484, %v4485
  %v4487 = vsel %vm3465, %v4411, 0.0
  %v4488 = vadd.f32 %v4486, %v4487
  %v4489 = vsel %vm3465, %v4412, 0.0
  %v4490 = vadd.f32 %v4488, %v4489
  %v4491 = vsel %vm3465, %v4413, 0.0
  %v4492 = vadd.f32 %v4490, %v4491
  %v4493 = vsel %vm3465, %v4414, 0.0
  %v4494 = vadd.f32 %v4492, %v4493
  %v4495 = vsel %vm3465, %v4415, 0.0
  %v4496 = vadd.f32 %v4494, %v4495
  %v4497 = vsel %vm3465, %v4416, 0.0
  %v4498 = vadd.f32 %v4496, %v4497
  %v4499 = vsel %vm3465, %v4417, 0.0
  %v4500 = vadd.f32 %v4498, %v4499
  %v4501 = vsel %vm3465, %v4418, 0.0
  %v4502 = vadd.f32 %v4500, %v4501
  %v4503 = vsel %vm3465, %v4419, 0.0
  %v4504 = vadd.f32 %v4502, %v4503
  %v4505 = vsel %vm3465, %v4420, 0.0
  %v4506 = vadd.f32 %v4504, %v4505
  %v4507 = vsel %vm3465, %v4421, 0.0
  %v4508 = vadd.f32 %v4506, %v4507
  %v4509 = vsel %vm3465, %v4422, 0.0
  %v4510 = vadd.f32 %v4508, %v4509
  %v4511 = vsel %vm3465, %v4423, 0.0
  %v4512 = vadd.f32 %v4510, %v4511
  %v4513 = vsel %vm3465, %v4424, 0.0
  %v4514 = vadd.f32 %v4512, %v4513
  %v4515 = vsel %vm3465, %v4425, 0.0
  %v4516 = vadd.f32 %v4514, %v4515
  %v4517 = vsel %vm3465, %v4426, 0.0
  %v4518 = vadd.f32 %v4516, %v4517
  %v4519 = vsel %vm3465, %v4427, 0.0
  %v4520 = vadd.f32 %v4518, %v4519
  %v4521 = vsel %vm3465, %v4428, 0.0
  %v4522 = vadd.f32 %v4520, %v4521
  %v4523 = vsel %vm3465, %v4429, 0.0
  %v4524 = vadd.f32 %v4522, %v4523
  %v4525 = vsel %vm3465, %v4430, 0.0
  %v4526 = vadd.f32 %v4524, %v4525
  %v4527 = vsel %vm3465, %v4431, 0.0
  %v4528 = vadd.f32 %v4526, %v4527
  %v4529 = vsel %vm3465, %v4432, 0.0
  %v4530 = vadd.f32 %v4528, %v4529
  %v4531 = vsel %vm3465, %v4433, 0.0
  %v4532 = vadd.f32 %v4530, %v4531
  %v4533 = vsel %vm3465, %v4434, 0.0
  %v4534 = vadd.f32 %v4532, %v4533
  %v4535 = vsel %vm3465, %v4435, 0.0
  %v4536 = vadd.f32 %v4534, %v4535
  %v4537 = vsel %vm3465, %v4436, 0.0
  %v4538 = vadd.f32 %v4536, %v4537
  %v4539 = vsel %vm3465, %v4437, 0.0
  %v4540 = vadd.f32 %v4538, %v4539
  %v4541 = vsel %vm3465, %v4438, 0.0
  %v4542 = vadd.f32 %v4540, %v4541
  %v4543 = vsel %vm3465, %v4439, 0.0
  %v4544 = vadd.f32 %v4542, %v4543
  %v4545 = vsel %vm3465, %v4440, 0.0
  %v4546 = vadd.f32 %v4544, %v4545
  %v4547 = vsel %vm3465, %v4441, 0.0
  %v4548 = vadd.f32 %v4546, %v4547
  %v4549 = vsel %vm3465, %v4442, 0.0
  %v4550 = vadd.f32 %v4548, %v4549
  %v4551 = vsel %vm3465, %v4443, 0.0
  %v4552 = vadd.f32 %v4550, %v4551
  %v4553 = vsel %vm3465, %v4444, 0.0
  %v4554 = vadd.f32 %v4552, %v4553
  %v4555 = vsel %vm3465, %v4445, 0.0
  %v4556 = vadd.f32 %v4554, %v4555
  %v4557 = vsel %vm3465, %v4446, 0.0
  %v4558 = vadd.f32 %v4556, %v4557
  %v4559 = vsel %vm3465, %v4447, 0.0
  %v4560 = vadd.f32 %v4558, %v4559
  %v4561 = vsel %vm3465, %v4448, 0.0
  %v4562 = vadd.f32 %v4560, %v4561
  %v4563 = vsel %vm3465, %v4449, 0.0
  %v4564 = vadd.f32 %v4562, %v4563
  %v4565 = vsel %vm3465, %v4450, 0.0
  %v4566 = vadd.f32 %v4564, %v4565
  %v4567 = vsel %vm3465, %v4451, 0.0
  %v4568 = vadd.f32 %v4566, %v4567
  %v4569 = vsel %vm3465, %v4452, 0.0
  %v4570 = vadd.f32 %v4568, %v4569
  %v4571 = vsel %vm3465, %v4453, 0.0
  %v4572 = vadd.f32 %v4570, %v4571
  %v4573 = vsel %vm3465, %v4454, 0.0
  %v4574 = vadd.f32 %v4572, %v4573
  %v4575 = vsel %vm3465, %v4455, 0.0
  %v4576 = vadd.f32 %v4574, %v4575
  %v4577 = vsel %vm3465, %v4456, 0.0
  %v4578 = vadd.f32 %v4576, %v4577
  %v4579 = vsel %vm3465, %v4457, 0.0
  %v4580 = vadd.f32 %v4578, %v4579
  %v4581 = vsel %vm3465, %v4458, 0.0
  %v4582 = vadd.f32 %v4580, %v4581
  %v4583 = vsel %vm3465, %v4459, 0.0
  %v4584 = vadd.f32 %v4582, %v4583
  %v4585 = vsel %vm3465, %v4460, 0.0
  %v4586 = vadd.f32 %v4584, %v4585
  %v4587 = vsel %vm3465, %v4461, 0.0
  %v4588 = vadd.f32 %v4586, %v4587
  %v4589 = vrot.slane %v4588, 4
  %v4590 = vadd.f32 %v4588, %v4589
  %v4591 = vrot.slane %v4590, 2
  %v4592 = vadd.f32 %v4590, %v4591
  %v4593 = vrot.slane %v4592, 1
  %v4594 = vadd.f32 %v4592, %v4593
  %v4595 = vadd.f32 %v4397, %v4594
  %v4596 = vmul.f32 %v3211, %v3211
  %v4597 = vmul.f32 %v3214, %v3214
  %v4598 = vmul.f32 %v3219, %v3219
  %v4599 = vmul.f32 %v3222, %v3222
  %v4600 = vmul.f32 %v3227, %v3227
  %v4601 = vmul.f32 %v3230, %v3230
  %v4602 = vmul.f32 %v3235, %v3235
  %v4603 = vmul.f32 %v3238, %v3238
  %v4604 = vmul.f32 %v3243, %v3243
  %v4605 = vmul.f32 %v3246, %v3246
  %v4606 = vmul.f32 %v3251, %v3251
  %v4607 = vmul.f32 %v3254, %v3254
  %v4608 = vmul.f32 %v3259, %v3259
  %v4609 = vmul.f32 %v3262, %v3262
  %v4610 = vmul.f32 %v3267, %v3267
  %v4611 = vmul.f32 %v3270, %v3270
  %v4612 = vmul.f32 %v3275, %v3275
  %v4613 = vmul.f32 %v3278, %v3278
  %v4614 = vmul.f32 %v3283, %v3283
  %v4615 = vmul.f32 %v3286, %v3286
  %v4616 = vmul.f32 %v3291, %v3291
  %v4617 = vmul.f32 %v3294, %v3294
  %v4618 = vmul.f32 %v3299, %v3299
  %v4619 = vmul.f32 %v3302, %v3302
  %v4620 = vmul.f32 %v3307, %v3307
  %v4621 = vmul.f32 %v3310, %v3310
  %v4622 = vmul.f32 %v3315, %v3315
  %v4623 = vmul.f32 %v3318, %v3318
  %v4624 = vmul.f32 %v3323, %v3323
  %v4625 = vmul.f32 %v3326, %v3326
  %v4626 = vmul.f32 %v3331, %v3331
  %v4627 = vmul.f32 %v3334, %v3334
  %v4628 = vmul.f32 %v3339, %v3339
  %v4629 = vmul.f32 %v3342, %v3342
  %v4630 = vmul.f32 %v3347, %v3347
  %v4631 = vmul.f32 %v3350, %v3350
  %v4632 = vmul.f32 %v3355, %v3355
  %v4633 = vmul.f32 %v3358, %v3358
  %v4634 = vmul.f32 %v3363, %v3363
  %v4635 = vmul.f32 %v3366, %v3366
  %v4636 = vmul.f32 %v3371, %v3371
  %v4637 = vmul.f32 %v3374, %v3374
  %v4638 = vmul.f32 %v3379, %v3379
  %v4639 = vmul.f32 %v3382, %v3382
  %v4640 = vmul.f32 %v3387, %v3387
  %v4641 = vmul.f32 %v3390, %v3390
  %v4642 = vmul.f32 %v3395, %v3395
  %v4643 = vmul.f32 %v3398, %v3398
  %v4644 = vmul.f32 %v3403, %v3403
  %v4645 = vmul.f32 %v3406, %v3406
  %v4646 = vmul.f32 %v3411, %v3411
  %v4647 = vmul.f32 %v3414, %v3414
  %v4648 = vmul.f32 %v3419, %v3419
  %v4649 = vmul.f32 %v3422, %v3422
  %v4650 = vmul.f32 %v3427, %v3427
  %v4651 = vmul.f32 %v3430, %v3430
  %v4652 = vmul.f32 %v3435, %v3435
  %v4653 = vmul.f32 %v3438, %v3438
  %v4654 = vmul.f32 %v3443, %v3443
  %v4655 = vmul.f32 %v3446, %v3446
  %v4656 = vmul.f32 %v3451, %v3451
  %v4657 = vmul.f32 %v3454, %v3454
  %v4658 = vmul.f32 %v3459, %v3459
  %v4659 = vmul.f32 %v3462, %v3462
  %v4660 = vsel %vm3465, %v4596, 0.0
  %v4661 = vsel %vm3465, %v4597, 0.0
  %v4662 = vadd.f32 %v4660, %v4661
  %v4663 = vsel %vm3465, %v4598, 0.0
  %v4664 = vadd.f32 %v4662, %v4663
  %v4665 = vsel %vm3465, %v4599, 0.0
  %v4666 = vadd.f32 %v4664, %v4665
  %v4667 = vsel %vm3465, %v4600, 0.0
  %v4668 = vadd.f32 %v4666, %v4667
  %v4669 = vsel %vm3465, %v4601, 0.0
  %v4670 = vadd.f32 %v4668, %v4669
  %v4671 = vsel %vm3465, %v4602, 0.0
  %v4672 = vadd.f32 %v4670, %v4671
  %v4673 = vsel %vm3465, %v4603, 0.0
  %v4674 = vadd.f32 %v4672, %v4673
  %v4675 = vsel %vm3465, %v4604, 0.0
  %v4676 = vadd.f32 %v4674, %v4675
  %v4677 = vsel %vm3465, %v4605, 0.0
  %v4678 = vadd.f32 %v4676, %v4677
  %v4679 = vsel %vm3465, %v4606, 0.0
  %v4680 = vadd.f32 %v4678, %v4679
  %v4681 = vsel %vm3465, %v4607, 0.0
  %v4682 = vadd.f32 %v4680, %v4681
  %v4683 = vsel %vm3465, %v4608, 0.0
  %v4684 = vadd.f32 %v4682, %v4683
  %v4685 = vsel %vm3465, %v4609, 0.0
  %v4686 = vadd.f32 %v4684, %v4685
  %v4687 = vsel %vm3465, %v4610, 0.0
  %v4688 = vadd.f32 %v4686, %v4687
  %v4689 = vsel %vm3465, %v4611, 0.0
  %v4690 = vadd.f32 %v4688, %v4689
  %v4691 = vsel %vm3465, %v4612, 0.0
  %v4692 = vadd.f32 %v4690, %v4691
  %v4693 = vsel %vm3465, %v4613, 0.0
  %v4694 = vadd.f32 %v4692, %v4693
  %v4695 = vsel %vm3465, %v4614, 0.0
  %v4696 = vadd.f32 %v4694, %v4695
  %v4697 = vsel %vm3465, %v4615, 0.0
  %v4698 = vadd.f32 %v4696, %v4697
  %v4699 = vsel %vm3465, %v4616, 0.0
  %v4700 = vadd.f32 %v4698, %v4699
  %v4701 = vsel %vm3465, %v4617, 0.0
  %v4702 = vadd.f32 %v4700, %v4701
  %v4703 = vsel %vm3465, %v4618, 0.0
  %v4704 = vadd.f32 %v4702, %v4703
  %v4705 = vsel %vm3465, %v4619, 0.0
  %v4706 = vadd.f32 %v4704, %v4705
  %v4707 = vsel %vm3465, %v4620, 0.0
  %v4708 = vadd.f32 %v4706, %v4707
  %v4709 = vsel %vm3465, %v4621, 0.0
  %v4710 = vadd.f32 %v4708, %v4709
  %v4711 = vsel %vm3465, %v4622, 0.0
  %v4712 = vadd.f32 %v4710, %v4711
  %v4713 = vsel %vm3465, %v4623, 0.0
  %v4714 = vadd.f32 %v4712, %v4713
  %v4715 = vsel %vm3465, %v4624, 0.0
  %v4716 = vadd.f32 %v4714, %v4715
  %v4717 = vsel %vm3465, %v4625, 0.0
  %v4718 = vadd.f32 %v4716, %v4717
  %v4719 = vsel %vm3465, %v4626, 0.0
  %v4720 = vadd.f32 %v4718, %v4719
  %v4721 = vsel %vm3465, %v4627, 0.0
  %v4722 = vadd.f32 %v4720, %v4721
  %v4723 = vsel %vm3465, %v4628, 0.0
  %v4724 = vadd.f32 %v4722, %v4723
  %v4725 = vsel %vm3465, %v4629, 0.0
  %v4726 = vadd.f32 %v4724, %v4725
  %v4727 = vsel %vm3465, %v4630, 0.0
  %v4728 = vadd.f32 %v4726, %v4727
  %v4729 = vsel %vm3465, %v4631, 0.0
  %v4730 = vadd.f32 %v4728, %v4729
  %v4731 = vsel %vm3465, %v4632, 0.0
  %v4732 = vadd.f32 %v4730, %v4731
  %v4733 = vsel %vm3465, %v4633, 0.0
  %v4734 = vadd.f32 %v4732, %v4733
  %v4735 = vsel %vm3465, %v4634, 0.0
  %v4736 = vadd.f32 %v4734, %v4735
  %v4737 = vsel %vm3465, %v4635, 0.0
  %v4738 = vadd.f32 %v4736, %v4737
  %v4739 = vsel %vm3465, %v4636, 0.0
  %v4740 = vadd.f32 %v4738, %v4739
  %v4741 = vsel %vm3465, %v4637, 0.0
  %v4742 = vadd.f32 %v4740, %v4741
  %v4743 = vsel %vm3465, %v4638, 0.0
  %v4744 = vadd.f32 %v4742, %v4743
  %v4745 = vsel %vm3465, %v4639, 0.0
  %v4746 = vadd.f32 %v4744, %v4745
  %v4747 = vsel %vm3465, %v4640, 0.0
  %v4748 = vadd.f32 %v4746, %v4747
  %v4749 = vsel %vm3465, %v4641, 0.0
  %v4750 = vadd.f32 %v4748, %v4749
  %v4751 = vsel %vm3465, %v4642, 0.0
  %v4752 = vadd.f32 %v4750, %v4751
  %v4753 = vsel %vm3465, %v4643, 0.0
  %v4754 = vadd.f32 %v4752, %v4753
  %v4755 = vsel %vm3465, %v4644, 0.0
  %v4756 = vadd.f32 %v4754, %v4755
  %v4757 = vsel %vm3465, %v4645, 0.0
  %v4758 = vadd.f32 %v4756, %v4757
  %v4759 = vsel %vm3465, %v4646, 0.0
  %v4760 = vadd.f32 %v4758, %v4759
  %v4761 = vsel %vm3465, %v4647, 0.0
  %v4762 = vadd.f32 %v4760, %v4761
  %v4763 = vsel %vm3465, %v4648, 0.0
  %v4764 = vadd.f32 %v4762, %v4763
  %v4765 = vsel %vm3465, %v4649, 0.0
  %v4766 = vadd.f32 %v4764, %v4765
  %v4767 = vsel %vm3465, %v4650, 0.0
  %v4768 = vadd.f32 %v4766, %v4767
  %v4769 = vsel %vm3465, %v4651, 0.0
  %v4770 = vadd.f32 %v4768, %v4769
  %v4771 = vsel %vm3465, %v4652, 0.0
  %v4772 = vadd.f32 %v4770, %v4771
  %v4773 = vsel %vm3465, %v4653, 0.0
  %v4774 = vadd.f32 %v4772, %v4773
  %v4775 = vsel %vm3465, %v4654, 0.0
  %v4776 = vadd.f32 %v4774, %v4775
  %v4777 = vsel %vm3465, %v4655, 0.0
  %v4778 = vadd.f32 %v4776, %v4777
  %v4779 = vsel %vm3465, %v4656, 0.0
  %v4780 = vadd.f32 %v4778, %v4779
  %v4781 = vsel %vm3465, %v4657, 0.0
  %v4782 = vadd.f32 %v4780, %v4781
  %v4783 = vsel %vm3465, %v4658, 0.0
  %v4784 = vadd.f32 %v4782, %v4783
  %v4785 = vsel %vm3465, %v4659, 0.0
  %v4786 = vadd.f32 %v4784, %v4785
  %v4787 = vrot.slane %v4786, 4
  %v4788 = vadd.f32 %v4786, %v4787
  %v4789 = vrot.slane %v4788, 2
  %v4790 = vadd.f32 %v4788, %v4789
  %v4791 = vrot.slane %v4790, 1
  %v4792 = vadd.f32 %v4790, %v4791
  %v4793 = vadd.f32 %v4595, %v4792
  %v4794 = vrcp.pop 2048.0
  %v4795 = vmul.f32 %v4001, %v4794
  %v4796 = vmul.f32 %v4793, %v4794
  %v4797 = vmul.f32 %v4795, %v4795
  %v4798 = vsub.f32 %v4796, %v4797
  %v4799 = vld [vmem:[%s2] sm:$0x1]
  %v4800 = vadd.f32 %v4798, 1e-05
  %v4801 = vrsqrt.pop %v4800
  %v4802 = vmul.f32 %v4799, %v4801
  %v4803 = vld [vmem:[%s3] sm:$0x1]
  %v4804 = vmul.f32 %v4795, %v4802
  %v4805 = vsub.f32 %v4803, %v4804
  %v4807 = vlaneseq
  %v4808 = vshrl.u32 %v4807, 7
  %v4809 = vsub.s32 0, %v4808
  %v4810 = vrot.slane %v4802, %v4809
  %v4812 = vmul.f32 %v1301, %v4810
  %v4813 = vmul.f32 %v1304, %v4810
  %v4814 = vmul.f32 %v1309, %v4810
  %v4815 = vmul.f32 %v1312, %v4810
  %v4816 = vmul.f32 %v1317, %v4810
  %v4817 = vmul.f32 %v1320, %v4810
  %v4818 = vmul.f32 %v1325, %v4810
  %v4819 = vmul.f32 %v1328, %v4810
  %v4820 = vmul.f32 %v1333, %v4810
  %v4821 = vmul.f32 %v1336, %v4810
  %v4822 = vmul.f32 %v1341, %v4810
  %v4823 = vmul.f32 %v1344, %v4810
  %v4824 = vmul.f32 %v1349, %v4810
  %v4825 = vmul.f32 %v1352, %v4810
  %v4826 = vmul.f32 %v1357, %v4810
  %v4827 = vmul.f32 %v1360, %v4810
  %v4828 = vmul.f32 %v1365, %v4810
  %v4829 = vmul.f32 %v1368, %v4810
  %v4830 = vmul.f32 %v1373, %v4810
  %v4831 = vmul.f32 %v1376, %v4810
  %v4832 = vmul.f32 %v1381, %v4810
  %v4833 = vmul.f32 %v1384, %v4810
  %v4834 = vmul.f32 %v1389, %v4810
  %v4835 = vmul.f32 %v1392, %v4810
  %v4836 = vmul.f32 %v1397, %v4810
  %v4837 = vmul.f32 %v1400, %v4810
  %v4838 = vmul.f32 %v1405, %v4810
  %v4839 = vmul.f32 %v1408, %v4810
  %v4840 = vmul.f32 %v1413, %v4810
  %v4841 = vmul.f32 %v1416, %v4810
  %v4842 = vmul.f32 %v1421, %v4810
  %v4843 = vmul.f32 %v1424, %v4810
  %v4844 = vmul.f32 %v1429, %v4810
  %v4845 = vmul.f32 %v1432, %v4810
  %v4846 = vmul.f32 %v1437, %v4810
  %v4847 = vmul.f32 %v1440, %v4810
  %v4848 = vmul.f32 %v1445, %v4810
  %v4849 = vmul.f32 %v1448, %v4810
  %v4850 = vmul.f32 %v1453, %v4810
  %v4851 = vmul.f32 %v1456, %v4810
  %v4852 = vmul.f32 %v1461, %v4810
  %v4853 = vmul.f32 %v1464, %v4810
  %v4854 = vmul.f32 %v1469, %v4810
  %v4855 = vmul.f32 %v1472, %v4810
  %v4856 = vmul.f32 %v1477, %v4810
  %v4857 = vmul.f32 %v1480, %v4810
  %v4858 = vmul.f32 %v1485, %v4810
  %v4859 = vmul.f32 %v1488, %v4810
  %v4860 = vmul.f32 %v1493, %v4810
  %v4861 = vmul.f32 %v1496, %v4810
  %v4862 = vmul.f32 %v1501, %v4810
  %v4863 = vmul.f32 %v1504, %v4810
  %v4864 = vmul.f32 %v1509, %v4810
  %v4865 = vmul.f32 %v1512, %v4810
  %v4866 = vmul.f32 %v1517, %v4810
  %v4867 = vmul.f32 %v1520, %v4810
  %v4868 = vmul.f32 %v1525, %v4810
  %v4869 = vmul.f32 %v1528, %v4810
  %v4870 = vmul.f32 %v1533, %v4810
  %v4871 = vmul.f32 %v1536, %v4810
  %v4872 = vmul.f32 %v1541, %v4810
  %v4873 = vmul.f32 %v1544, %v4810
  %v4874 = vmul.f32 %v1549, %v4810
  %v4875 = vmul.f32 %v1552, %v4810
  %v4877 = vlaneseq
  %v4878 = vshrl.u32 %v4877, 7
  %v4879 = vsub.s32 0, %v4878
  %v4880 = vrot.slane %v4805, %v4879
  %v4882 = vadd.f32 %v4812, %v4880
  %v4883 = vadd.f32 %v4813, %v4880
  %v4884 = vadd.f32 %v4814, %v4880
  %v4885 = vadd.f32 %v4815, %v4880
  %v4886 = vadd.f32 %v4816, %v4880
  %v4887 = vadd.f32 %v4817, %v4880
  %v4888 = vadd.f32 %v4818, %v4880
  %v4889 = vadd.f32 %v4819, %v4880
  %v4890 = vadd.f32 %v4820, %v4880
  %v4891 = vadd.f32 %v4821, %v4880
  %v4892 = vadd.f32 %v4822, %v4880
  %v4893 = vadd.f32 %v4823, %v4880
  %v4894 = vadd.f32 %v4824, %v4880
  %v4895 = vadd.f32 %v4825, %v4880
  %v4896 = vadd.f32 %v4826, %v4880
  %v4897 = vadd.f32 %v4827, %v4880
  %v4898 = vadd.f32 %v4828, %v4880
  %v4899 = vadd.f32 %v4829, %v4880
  %v4900 = vadd.f32 %v4830, %v4880
  %v4901 = vadd.f32 %v4831, %v4880
  %v4902 = vadd.f32 %v4832, %v4880
  %v4903 = vadd.f32 %v4833, %v4880
  %v4904 = vadd.f32 %v4834, %v4880
  %v4905 = vadd.f32 %v4835, %v4880
  %v4906 = vadd.f32 %v4836, %v4880
  %v4907 = vadd.f32 %v4837, %v4880
  %v4908 = vadd.f32 %v4838, %v4880
  %v4909 = vadd.f32 %v4839, %v4880
  %v4910 = vadd.f32 %v4840, %v4880
  %v4911 = vadd.f32 %v4841, %v4880
  %v4912 = vadd.f32 %v4842, %v4880
  %v4913 = vadd.f32 %v4843, %v4880
  %v4914 = vadd.f32 %v4844, %v4880
  %v4915 = vadd.f32 %v4845, %v4880
  %v4916 = vadd.f32 %v4846, %v4880
  %v4917 = vadd.f32 %v4847, %v4880
  %v4918 = vadd.f32 %v4848, %v4880
  %v4919 = vadd.f32 %v4849, %v4880
  %v4920 = vadd.f32 %v4850, %v4880
  %v4921 = vadd.f32 %v4851, %v4880
  %v4922 = vadd.f32 %v4852, %v4880
  %v4923 = vadd.f32 %v4853, %v4880
  %v4924 = vadd.f32 %v4854, %v4880
  %v4925 = vadd.f32 %v4855, %v4880
  %v4926 = vadd.f32 %v4856, %v4880
  %v4927 = vadd.f32 %v4857, %v4880
  %v4928 = vadd.f32 %v4858, %v4880
  %v4929 = vadd.f32 %v4859, %v4880
  %v4930 = vadd.f32 %v4860, %v4880
  %v4931 = vadd.f32 %v4861, %v4880
  %v4932 = vadd.f32 %v4862, %v4880
  %v4933 = vadd.f32 %v4863, %v4880
  %v4934 = vadd.f32 %v4864, %v4880
  %v4935 = vadd.f32 %v4865, %v4880
  %v4936 = vadd.f32 %v4866, %v4880
  %v4937 = vadd.f32 %v4867, %v4880
  %v4938 = vadd.f32 %v4868, %v4880
  %v4939 = vadd.f32 %v4869, %v4880
  %v4940 = vadd.f32 %v4870, %v4880
  %v4941 = vadd.f32 %v4871, %v4880
  %v4942 = vadd.f32 %v4872, %v4880
  %v4943 = vadd.f32 %v4873, %v4880
  %v4944 = vadd.f32 %v4874, %v4880
  %v4945 = vadd.f32 %v4875, %v4880
  %v4946 = vtanh.pop %v4882
  %v4947 = vtanh.pop %v4883
  %v4948 = vtanh.pop %v4884
  %v4949 = vtanh.pop %v4885
  %v4950 = vtanh.pop %v4886
  %v4951 = vtanh.pop %v4887
  %v4952 = vtanh.pop %v4888
  %v4953 = vtanh.pop %v4889
  %v4954 = vtanh.pop %v4890
  %v4955 = vtanh.pop %v4891
  %v4956 = vtanh.pop %v4892
  %v4957 = vtanh.pop %v4893
  %v4958 = vtanh.pop %v4894
  %v4959 = vtanh.pop %v4895
  %v4960 = vtanh.pop %v4896
  %v4961 = vtanh.pop %v4897
  %v4962 = vtanh.pop %v4898
  %v4963 = vtanh.pop %v4899
  %v4964 = vtanh.pop %v4900
  %v4965 = vtanh.pop %v4901
  %v4966 = vtanh.pop %v4902
  %v4967 = vtanh.pop %v4903
  %v4968 = vtanh.pop %v4904
  %v4969 = vtanh.pop %v4905
  %v4970 = vtanh.pop %v4906
  %v4971 = vtanh.pop %v4907
  %v4972 = vtanh.pop %v4908
  %v4973 = vtanh.pop %v4909
  %v4974 = vtanh.pop %v4910
  %v4975 = vtanh.pop %v4911
  %v4976 = vtanh.pop %v4912
  %v4977 = vtanh.pop %v4913
  %v4978 = vtanh.pop %v4914
  %v4979 = vtanh.pop %v4915
  %v4980 = vtanh.pop %v4916
  %v4981 = vtanh.pop %v4917
  %v4982 = vtanh.pop %v4918
  %v4983 = vtanh.pop %v4919
  %v4984 = vtanh.pop %v4920
  %v4985 = vtanh.pop %v4921
  %v4986 = vtanh.pop %v4922
  %v4987 = vtanh.pop %v4923
  %v4988 = vtanh.pop %v4924
  %v4989 = vtanh.pop %v4925
  %v4990 = vtanh.pop %v4926
  %v4991 = vtanh.pop %v4927
  %v4992 = vtanh.pop %v4928
  %v4993 = vtanh.pop %v4929
  %v4994 = vtanh.pop %v4930
  %v4995 = vtanh.pop %v4931
  %v4996 = vtanh.pop %v4932
  %v4997 = vtanh.pop %v4933
  %v4998 = vtanh.pop %v4934
  %v4999 = vtanh.pop %v4935
  %v5000 = vtanh.pop %v4936
  %v5001 = vtanh.pop %v4937
  %v5002 = vtanh.pop %v4938
  %v5003 = vtanh.pop %v4939
  %v5004 = vtanh.pop %v4940
  %v5005 = vtanh.pop %v4941
  %v5006 = vtanh.pop %v4942
  %v5007 = vtanh.pop %v4943
  %v5008 = vtanh.pop %v4944
  %v5009 = vtanh.pop %v4945
  %v5010 = vmul.f32 %v2391, %v4810
  %v5011 = vmul.f32 %v2394, %v4810
  %v5012 = vmul.f32 %v2399, %v4810
  %v5013 = vmul.f32 %v2402, %v4810
  %v5014 = vmul.f32 %v2407, %v4810
  %v5015 = vmul.f32 %v2410, %v4810
  %v5016 = vmul.f32 %v2415, %v4810
  %v5017 = vmul.f32 %v2418, %v4810
  %v5018 = vmul.f32 %v2423, %v4810
  %v5019 = vmul.f32 %v2426, %v4810
  %v5020 = vmul.f32 %v2431, %v4810
  %v5021 = vmul.f32 %v2434, %v4810
  %v5022 = vmul.f32 %v2439, %v4810
  %v5023 = vmul.f32 %v2442, %v4810
  %v5024 = vmul.f32 %v2447, %v4810
  %v5025 = vmul.f32 %v2450, %v4810
  %v5026 = vmul.f32 %v2455, %v4810
  %v5027 = vmul.f32 %v2458, %v4810
  %v5028 = vmul.f32 %v2463, %v4810
  %v5029 = vmul.f32 %v2466, %v4810
  %v5030 = vmul.f32 %v2471, %v4810
  %v5031 = vmul.f32 %v2474, %v4810
  %v5032 = vmul.f32 %v2479, %v4810
  %v5033 = vmul.f32 %v2482, %v4810
  %v5034 = vmul.f32 %v2487, %v4810
  %v5035 = vmul.f32 %v2490, %v4810
  %v5036 = vmul.f32 %v2495, %v4810
  %v5037 = vmul.f32 %v2498, %v4810
  %v5038 = vmul.f32 %v2503, %v4810
  %v5039 = vmul.f32 %v2506, %v4810
  %v5040 = vmul.f32 %v2511, %v4810
  %v5041 = vmul.f32 %v2514, %v4810
  %v5042 = vmul.f32 %v2519, %v4810
  %v5043 = vmul.f32 %v2522, %v4810
  %v5044 = vmul.f32 %v2527, %v4810
  %v5045 = vmul.f32 %v2530, %v4810
  %v5046 = vmul.f32 %v2535, %v4810
  %v5047 = vmul.f32 %v2538, %v4810
  %v5048 = vmul.f32 %v2543, %v4810
  %v5049 = vmul.f32 %v2546, %v4810
  %v5050 = vmul.f32 %v2551, %v4810
  %v5051 = vmul.f32 %v2554, %v4810
  %v5052 = vmul.f32 %v2559, %v4810
  %v5053 = vmul.f32 %v2562, %v4810
  %v5054 = vmul.f32 %v2567, %v4810
  %v5055 = vmul.f32 %v2570, %v4810
  %v5056 = vmul.f32 %v2575, %v4810
  %v5057 = vmul.f32 %v2578, %v4810
  %v5058 = vmul.f32 %v2583, %v4810
  %v5059 = vmul.f32 %v2586, %v4810
  %v5060 = vmul.f32 %v2591, %v4810
  %v5061 = vmul.f32 %v2594, %v4810
  %v5062 = vmul.f32 %v2599, %v4810
  %v5063 = vmul.f32 %v2602, %v4810
  %v5064 = vmul.f32 %v2607, %v4810
  %v5065 = vmul.f32 %v2610, %v4810
  %v5066 = vmul.f32 %v2615, %v4810
  %v5067 = vmul.f32 %v2618, %v4810
  %v5068 = vmul.f32 %v2623, %v4810
  %v5069 = vmul.f32 %v2626, %v4810
  %v5070 = vmul.f32 %v2631, %v4810
  %v5071 = vmul.f32 %v2634, %v4810
  %v5072 = vmul.f32 %v2639, %v4810
  %v5073 = vmul.f32 %v2642, %v4810
  %v5074 = vadd.f32 %v5010, %v4880
  %v5075 = vadd.f32 %v5011, %v4880
  %v5076 = vadd.f32 %v5012, %v4880
  %v5077 = vadd.f32 %v5013, %v4880
  %v5078 = vadd.f32 %v5014, %v4880
  %v5079 = vadd.f32 %v5015, %v4880
  %v5080 = vadd.f32 %v5016, %v4880
  %v5081 = vadd.f32 %v5017, %v4880
  %v5082 = vadd.f32 %v5018, %v4880
  %v5083 = vadd.f32 %v5019, %v4880
  %v5084 = vadd.f32 %v5020, %v4880
  %v5085 = vadd.f32 %v5021, %v4880
  %v5086 = vadd.f32 %v5022, %v4880
  %v5087 = vadd.f32 %v5023, %v4880
  %v5088 = vadd.f32 %v5024, %v4880
  %v5089 = vadd.f32 %v5025, %v4880
  %v5090 = vadd.f32 %v5026, %v4880
  %v5091 = vadd.f32 %v5027, %v4880
  %v5092 = vadd.f32 %v5028, %v4880
  %v5093 = vadd.f32 %v5029, %v4880
  %v5094 = vadd.f32 %v5030, %v4880
  %v5095 = vadd.f32 %v5031, %v4880
  %v5096 = vadd.f32 %v5032, %v4880
  %v5097 = vadd.f32 %v5033, %v4880
  %v5098 = vadd.f32 %v5034, %v4880
  %v5099 = vadd.f32 %v5035, %v4880
  %v5100 = vadd.f32 %v5036, %v4880
  %v5101 = vadd.f32 %v5037, %v4880
  %v5102 = vadd.f32 %v5038, %v4880
  %v5103 = vadd.f32 %v5039, %v4880
  %v5104 = vadd.f32 %v5040, %v4880
  %v5105 = vadd.f32 %v5041, %v4880
  %v5106 = vadd.f32 %v5042, %v4880
  %v5107 = vadd.f32 %v5043, %v4880
  %v5108 = vadd.f32 %v5044, %v4880
  %v5109 = vadd.f32 %v5045, %v4880
  %v5110 = vadd.f32 %v5046, %v4880
  %v5111 = vadd.f32 %v5047, %v4880
  %v5112 = vadd.f32 %v5048, %v4880
  %v5113 = vadd.f32 %v5049, %v4880
  %v5114 = vadd.f32 %v5050, %v4880
  %v5115 = vadd.f32 %v5051, %v4880
  %v5116 = vadd.f32 %v5052, %v4880
  %v5117 = vadd.f32 %v5053, %v4880
  %v5118 = vadd.f32 %v5054, %v4880
  %v5119 = vadd.f32 %v5055, %v4880
  %v5120 = vadd.f32 %v5056, %v4880
  %v5121 = vadd.f32 %v5057, %v4880
  %v5122 = vadd.f32 %v5058, %v4880
  %v5123 = vadd.f32 %v5059, %v4880
  %v5124 = vadd.f32 %v5060, %v4880
  %v5125 = vadd.f32 %v5061, %v4880
  %v5126 = vadd.f32 %v5062, %v4880
  %v5127 = vadd.f32 %v5063, %v4880
  %v5128 = vadd.f32 %v5064, %v4880
  %v5129 = vadd.f32 %v5065, %v4880
  %v5130 = vadd.f32 %v5066, %v4880
  %v5131 = vadd.f32 %v5067, %v4880
  %v5132 = vadd.f32 %v5068, %v4880
  %v5133 = vadd.f32 %v5069, %v4880
  %v5134 = vadd.f32 %v5070, %v4880
  %v5135 = vadd.f32 %v5071, %v4880
  %v5136 = vadd.f32 %v5072, %v4880
  %v5137 = vadd.f32 %v5073, %v4880
  %v5138 = vtanh.pop %v5074
  %v5139 = vtanh.pop %v5075
  %v5140 = vtanh.pop %v5076
  %v5141 = vtanh.pop %v5077
  %v5142 = vtanh.pop %v5078
  %v5143 = vtanh.pop %v5079
  %v5144 = vtanh.pop %v5080
  %v5145 = vtanh.pop %v5081
  %v5146 = vtanh.pop %v5082
  %v5147 = vtanh.pop %v5083
  %v5148 = vtanh.pop %v5084
  %v5149 = vtanh.pop %v5085
  %v5150 = vtanh.pop %v5086
  %v5151 = vtanh.pop %v5087
  %v5152 = vtanh.pop %v5088
  %v5153 = vtanh.pop %v5089
  %v5154 = vtanh.pop %v5090
  %v5155 = vtanh.pop %v5091
  %v5156 = vtanh.pop %v5092
  %v5157 = vtanh.pop %v5093
  %v5158 = vtanh.pop %v5094
  %v5159 = vtanh.pop %v5095
  %v5160 = vtanh.pop %v5096
  %v5161 = vtanh.pop %v5097
  %v5162 = vtanh.pop %v5098
  %v5163 = vtanh.pop %v5099
  %v5164 = vtanh.pop %v5100
  %v5165 = vtanh.pop %v5101
  %v5166 = vtanh.pop %v5102
  %v5167 = vtanh.pop %v5103
  %v5168 = vtanh.pop %v5104
  %v5169 = vtanh.pop %v5105
  %v5170 = vtanh.pop %v5106
  %v5171 = vtanh.pop %v5107
  %v5172 = vtanh.pop %v5108
  %v5173 = vtanh.pop %v5109
  %v5174 = vtanh.pop %v5110
  %v5175 = vtanh.pop %v5111
  %v5176 = vtanh.pop %v5112
  %v5177 = vtanh.pop %v5113
  %v5178 = vtanh.pop %v5114
  %v5179 = vtanh.pop %v5115
  %v5180 = vtanh.pop %v5116
  %v5181 = vtanh.pop %v5117
  %v5182 = vtanh.pop %v5118
  %v5183 = vtanh.pop %v5119
  %v5184 = vtanh.pop %v5120
  %v5185 = vtanh.pop %v5121
  %v5186 = vtanh.pop %v5122
  %v5187 = vtanh.pop %v5123
  %v5188 = vtanh.pop %v5124
  %v5189 = vtanh.pop %v5125
  %v5190 = vtanh.pop %v5126
  %v5191 = vtanh.pop %v5127
  %v5192 = vtanh.pop %v5128
  %v5193 = vtanh.pop %v5129
  %v5194 = vtanh.pop %v5130
  %v5195 = vtanh.pop %v5131
  %v5196 = vtanh.pop %v5132
  %v5197 = vtanh.pop %v5133
  %v5198 = vtanh.pop %v5134
  %v5199 = vtanh.pop %v5135
  %v5200 = vtanh.pop %v5136
  %v5201 = vtanh.pop %v5137
  %v5202 = vmul.f32 %v2811, %v4810
  %v5203 = vmul.f32 %v2814, %v4810
  %v5204 = vmul.f32 %v2819, %v4810
  %v5205 = vmul.f32 %v2822, %v4810
  %v5206 = vmul.f32 %v2827, %v4810
  %v5207 = vmul.f32 %v2830, %v4810
  %v5208 = vmul.f32 %v2835, %v4810
  %v5209 = vmul.f32 %v2838, %v4810
  %v5210 = vmul.f32 %v2843, %v4810
  %v5211 = vmul.f32 %v2846, %v4810
  %v5212 = vmul.f32 %v2851, %v4810
  %v5213 = vmul.f32 %v2854, %v4810
  %v5214 = vmul.f32 %v2859, %v4810
  %v5215 = vmul.f32 %v2862, %v4810
  %v5216 = vmul.f32 %v2867, %v4810
  %v5217 = vmul.f32 %v2870, %v4810
  %v5218 = vmul.f32 %v2875, %v4810
  %v5219 = vmul.f32 %v2878, %v4810
  %v5220 = vmul.f32 %v2883, %v4810
  %v5221 = vmul.f32 %v2886, %v4810
  %v5222 = vmul.f32 %v2891, %v4810
  %v5223 = vmul.f32 %v2894, %v4810
  %v5224 = vmul.f32 %v2899, %v4810
  %v5225 = vmul.f32 %v2902, %v4810
  %v5226 = vmul.f32 %v2907, %v4810
  %v5227 = vmul.f32 %v2910, %v4810
  %v5228 = vmul.f32 %v2915, %v4810
  %v5229 = vmul.f32 %v2918, %v4810
  %v5230 = vmul.f32 %v2923, %v4810
  %v5231 = vmul.f32 %v2926, %v4810
  %v5232 = vmul.f32 %v2931, %v4810
  %v5233 = vmul.f32 %v2934, %v4810
  %v5234 = vmul.f32 %v2939, %v4810
  %v5235 = vmul.f32 %v2942, %v4810
  %v5236 = vmul.f32 %v2947, %v4810
  %v5237 = vmul.f32 %v2950, %v4810
  %v5238 = vmul.f32 %v2955, %v4810
  %v5239 = vmul.f32 %v2958, %v4810
  %v5240 = vmul.f32 %v2963, %v4810
  %v5241 = vmul.f32 %v2966, %v4810
  %v5242 = vmul.f32 %v2971, %v4810
  %v5243 = vmul.f32 %v2974, %v4810
  %v5244 = vmul.f32 %v2979, %v4810
  %v5245 = vmul.f32 %v2982, %v4810
  %v5246 = vmul.f32 %v2987, %v4810
  %v5247 = vmul.f32 %v2990, %v4810
  %v5248 = vmul.f32 %v2995, %v4810
  %v5249 = vmul.f32 %v2998, %v4810
  %v5250 = vmul.f32 %v3003, %v4810
  %v5251 = vmul.f32 %v3006, %v4810
  %v5252 = vmul.f32 %v3011, %v4810
  %v5253 = vmul.f32 %v3014, %v4810
  %v5254 = vmul.f32 %v3019, %v4810
  %v5255 = vmul.f32 %v3022, %v4810
  %v5256 = vmul.f32 %v3027, %v4810
  %v5257 = vmul.f32 %v3030, %v4810
  %v5258 = vmul.f32 %v3035, %v4810
  %v5259 = vmul.f32 %v3038, %v4810
  %v5260 = vmul.f32 %v3043, %v4810
  %v5261 = vmul.f32 %v3046, %v4810
  %v5262 = vmul.f32 %v3051, %v4810
  %v5263 = vmul.f32 %v3054, %v4810
  %v5264 = vmul.f32 %v3059, %v4810
  %v5265 = vmul.f32 %v3062, %v4810
  %v5266 = vadd.f32 %v5202, %v4880
  %v5267 = vadd.f32 %v5203, %v4880
  %v5268 = vadd.f32 %v5204, %v4880
  %v5269 = vadd.f32 %v5205, %v4880
  %v5270 = vadd.f32 %v5206, %v4880
  %v5271 = vadd.f32 %v5207, %v4880
  %v5272 = vadd.f32 %v5208, %v4880
  %v5273 = vadd.f32 %v5209, %v4880
  %v5274 = vadd.f32 %v5210, %v4880
  %v5275 = vadd.f32 %v5211, %v4880
  %v5276 = vadd.f32 %v5212, %v4880
  %v5277 = vadd.f32 %v5213, %v4880
  %v5278 = vadd.f32 %v5214, %v4880
  %v5279 = vadd.f32 %v5215, %v4880
  %v5280 = vadd.f32 %v5216, %v4880
  %v5281 = vadd.f32 %v5217, %v4880
  %v5282 = vadd.f32 %v5218, %v4880
  %v5283 = vadd.f32 %v5219, %v4880
  %v5284 = vadd.f32 %v5220, %v4880
  %v5285 = vadd.f32 %v5221, %v4880
  %v5286 = vadd.f32 %v5222, %v4880
  %v5287 = vadd.f32 %v5223, %v4880
  %v5288 = vadd.f32 %v5224, %v4880
  %v5289 = vadd.f32 %v5225, %v4880
  %v5290 = vadd.f32 %v5226, %v4880
  %v5291 = vadd.f32 %v5227, %v4880
  %v5292 = vadd.f32 %v5228, %v4880
  %v5293 = vadd.f32 %v5229, %v4880
  %v5294 = vadd.f32 %v5230, %v4880
  %v5295 = vadd.f32 %v5231, %v4880
  %v5296 = vadd.f32 %v5232, %v4880
  %v5297 = vadd.f32 %v5233, %v4880
  %v5298 = vadd.f32 %v5234, %v4880
  %v5299 = vadd.f32 %v5235, %v4880
  %v5300 = vadd.f32 %v5236, %v4880
  %v5301 = vadd.f32 %v5237, %v4880
  %v5302 = vadd.f32 %v5238, %v4880
  %v5303 = vadd.f32 %v5239, %v4880
  %v5304 = vadd.f32 %v5240, %v4880
  %v5305 = vadd.f32 %v5241, %v4880
  %v5306 = vadd.f32 %v5242, %v4880
  %v5307 = vadd.f32 %v5243, %v4880
  %v5308 = vadd.f32 %v5244, %v4880
  %v5309 = vadd.f32 %v5245, %v4880
  %v5310 = vadd.f32 %v5246, %v4880
  %v5311 = vadd.f32 %v5247, %v4880
  %v5312 = vadd.f32 %v5248, %v4880
  %v5313 = vadd.f32 %v5249, %v4880
  %v5314 = vadd.f32 %v5250, %v4880
  %v5315 = vadd.f32 %v5251, %v4880
  %v5316 = vadd.f32 %v5252, %v4880
  %v5317 = vadd.f32 %v5253, %v4880
  %v5318 = vadd.f32 %v5254, %v4880
  %v5319 = vadd.f32 %v5255, %v4880
  %v5320 = vadd.f32 %v5256, %v4880
  %v5321 = vadd.f32 %v5257, %v4880
  %v5322 = vadd.f32 %v5258, %v4880
  %v5323 = vadd.f32 %v5259, %v4880
  %v5324 = vadd.f32 %v5260, %v4880
  %v5325 = vadd.f32 %v5261, %v4880
  %v5326 = vadd.f32 %v5262, %v4880
  %v5327 = vadd.f32 %v5263, %v4880
  %v5328 = vadd.f32 %v5264, %v4880
  %v5329 = vadd.f32 %v5265, %v4880
  %v5330 = vtanh.pop %v5266
  %v5331 = vtanh.pop %v5267
  %v5332 = vtanh.pop %v5268
  %v5333 = vtanh.pop %v5269
  %v5334 = vtanh.pop %v5270
  %v5335 = vtanh.pop %v5271
  %v5336 = vtanh.pop %v5272
  %v5337 = vtanh.pop %v5273
  %v5338 = vtanh.pop %v5274
  %v5339 = vtanh.pop %v5275
  %v5340 = vtanh.pop %v5276
  %v5341 = vtanh.pop %v5277
  %v5342 = vtanh.pop %v5278
  %v5343 = vtanh.pop %v5279
  %v5344 = vtanh.pop %v5280
  %v5345 = vtanh.pop %v5281
  %v5346 = vtanh.pop %v5282
  %v5347 = vtanh.pop %v5283
  %v5348 = vtanh.pop %v5284
  %v5349 = vtanh.pop %v5285
  %v5350 = vtanh.pop %v5286
  %v5351 = vtanh.pop %v5287
  %v5352 = vtanh.pop %v5288
  %v5353 = vtanh.pop %v5289
  %v5354 = vtanh.pop %v5290
  %v5355 = vtanh.pop %v5291
  %v5356 = vtanh.pop %v5292
  %v5357 = vtanh.pop %v5293
  %v5358 = vtanh.pop %v5294
  %v5359 = vtanh.pop %v5295
  %v5360 = vtanh.pop %v5296
  %v5361 = vtanh.pop %v5297
  %v5362 = vtanh.pop %v5298
  %v5363 = vtanh.pop %v5299
  %v5364 = vtanh.pop %v5300
  %v5365 = vtanh.pop %v5301
  %v5366 = vtanh.pop %v5302
  %v5367 = vtanh.pop %v5303
  %v5368 = vtanh.pop %v5304
  %v5369 = vtanh.pop %v5305
  %v5370 = vtanh.pop %v5306
  %v5371 = vtanh.pop %v5307
  %v5372 = vtanh.pop %v5308
  %v5373 = vtanh.pop %v5309
  %v5374 = vtanh.pop %v5310
  %v5375 = vtanh.pop %v5311
  %v5376 = vtanh.pop %v5312
  %v5377 = vtanh.pop %v5313
  %v5378 = vtanh.pop %v5314
  %v5379 = vtanh.pop %v5315
  %v5380 = vtanh.pop %v5316
  %v5381 = vtanh.pop %v5317
  %v5382 = vtanh.pop %v5318
  %v5383 = vtanh.pop %v5319
  %v5384 = vtanh.pop %v5320
  %v5385 = vtanh.pop %v5321
  %v5386 = vtanh.pop %v5322
  %v5387 = vtanh.pop %v5323
  %v5388 = vtanh.pop %v5324
  %v5389 = vtanh.pop %v5325
  %v5390 = vtanh.pop %v5326
  %v5391 = vtanh.pop %v5327
  %v5392 = vtanh.pop %v5328
  %v5393 = vtanh.pop %v5329
  %v5394 = vmul.f32 %v3211, %v4810
  %v5395 = vmul.f32 %v3214, %v4810
  %v5396 = vmul.f32 %v3219, %v4810
  %v5397 = vmul.f32 %v3222, %v4810
  %v5398 = vmul.f32 %v3227, %v4810
  %v5399 = vmul.f32 %v3230, %v4810
  %v5400 = vmul.f32 %v3235, %v4810
  %v5401 = vmul.f32 %v3238, %v4810
  %v5402 = vmul.f32 %v3243, %v4810
  %v5403 = vmul.f32 %v3246, %v4810
  %v5404 = vmul.f32 %v3251, %v4810
  %v5405 = vmul.f32 %v3254, %v4810
  %v5406 = vmul.f32 %v3259, %v4810
  %v5407 = vmul.f32 %v3262, %v4810
  %v5408 = vmul.f32 %v3267, %v4810
  %v5409 = vmul.f32 %v3270, %v4810
  %v5410 = vmul.f32 %v3275, %v4810
  %v5411 = vmul.f32 %v3278, %v4810
  %v5412 = vmul.f32 %v3283, %v4810
  %v5413 = vmul.f32 %v3286, %v4810
  %v5414 = vmul.f32 %v3291, %v4810
  %v5415 = vmul.f32 %v3294, %v4810
  %v5416 = vmul.f32 %v3299, %v4810
  %v5417 = vmul.f32 %v3302, %v4810
  %v5418 = vmul.f32 %v3307, %v4810
  %v5419 = vmul.f32 %v3310, %v4810
  %v5420 = vmul.f32 %v3315, %v4810
  %v5421 = vmul.f32 %v3318, %v4810
  %v5422 = vmul.f32 %v3323, %v4810
  %v5423 = vmul.f32 %v3326, %v4810
  %v5424 = vmul.f32 %v3331, %v4810
  %v5425 = vmul.f32 %v3334, %v4810
  %v5426 = vmul.f32 %v3339, %v4810
  %v5427 = vmul.f32 %v3342, %v4810
  %v5428 = vmul.f32 %v3347, %v4810
  %v5429 = vmul.f32 %v3350, %v4810
  %v5430 = vmul.f32 %v3355, %v4810
  %v5431 = vmul.f32 %v3358, %v4810
  %v5432 = vmul.f32 %v3363, %v4810
  %v5433 = vmul.f32 %v3366, %v4810
  %v5434 = vmul.f32 %v3371, %v4810
  %v5435 = vmul.f32 %v3374, %v4810
  %v5436 = vmul.f32 %v3379, %v4810
  %v5437 = vmul.f32 %v3382, %v4810
  %v5438 = vmul.f32 %v3387, %v4810
  %v5439 = vmul.f32 %v3390, %v4810
  %v5440 = vmul.f32 %v3395, %v4810
  %v5441 = vmul.f32 %v3398, %v4810
  %v5442 = vmul.f32 %v3403, %v4810
  %v5443 = vmul.f32 %v3406, %v4810
  %v5444 = vmul.f32 %v3411, %v4810
  %v5445 = vmul.f32 %v3414, %v4810
  %v5446 = vmul.f32 %v3419, %v4810
  %v5447 = vmul.f32 %v3422, %v4810
  %v5448 = vmul.f32 %v3427, %v4810
  %v5449 = vmul.f32 %v3430, %v4810
  %v5450 = vmul.f32 %v3435, %v4810
  %v5451 = vmul.f32 %v3438, %v4810
  %v5452 = vmul.f32 %v3443, %v4810
  %v5453 = vmul.f32 %v3446, %v4810
  %v5454 = vmul.f32 %v3451, %v4810
  %v5455 = vmul.f32 %v3454, %v4810
  %v5456 = vmul.f32 %v3459, %v4810
  %v5457 = vmul.f32 %v3462, %v4810
  %v5458 = vadd.f32 %v5394, %v4880
  %v5459 = vadd.f32 %v5395, %v4880
  %v5460 = vadd.f32 %v5396, %v4880
  %v5461 = vadd.f32 %v5397, %v4880
  %v5462 = vadd.f32 %v5398, %v4880
  %v5463 = vadd.f32 %v5399, %v4880
  %v5464 = vadd.f32 %v5400, %v4880
  %v5465 = vadd.f32 %v5401, %v4880
  %v5466 = vadd.f32 %v5402, %v4880
  %v5467 = vadd.f32 %v5403, %v4880
  %v5468 = vadd.f32 %v5404, %v4880
  %v5469 = vadd.f32 %v5405, %v4880
  %v5470 = vadd.f32 %v5406, %v4880
  %v5471 = vadd.f32 %v5407, %v4880
  %v5472 = vadd.f32 %v5408, %v4880
  %v5473 = vadd.f32 %v5409, %v4880
  %v5474 = vadd.f32 %v5410, %v4880
  %v5475 = vadd.f32 %v5411, %v4880
  %v5476 = vadd.f32 %v5412, %v4880
  %v5477 = vadd.f32 %v5413, %v4880
  %v5478 = vadd.f32 %v5414, %v4880
  %v5479 = vadd.f32 %v5415, %v4880
  %v5480 = vadd.f32 %v5416, %v4880
  %v5481 = vadd.f32 %v5417, %v4880
  %v5482 = vadd.f32 %v5418, %v4880
  %v5483 = vadd.f32 %v5419, %v4880
  %v5484 = vadd.f32 %v5420, %v4880
  %v5485 = vadd.f32 %v5421, %v4880
  %v5486 = vadd.f32 %v5422, %v4880
  %v5487 = vadd.f32 %v5423, %v4880
  %v5488 = vadd.f32 %v5424, %v4880
  %v5489 = vadd.f32 %v5425, %v4880
  %v5490 = vadd.f32 %v5426, %v4880
  %v5491 = vadd.f32 %v5427, %v4880
  %v5492 = vadd.f32 %v5428, %v4880
  %v5493 = vadd.f32 %v5429, %v4880
  %v5494 = vadd.f32 %v5430, %v4880
  %v5495 = vadd.f32 %v5431, %v4880
  %v5496 = vadd.f32 %v5432, %v4880
  %v5497 = vadd.f32 %v5433, %v4880
  %v5498 = vadd.f32 %v5434, %v4880
  %v5499 = vadd.f32 %v5435, %v4880
  %v5500 = vadd.f32 %v5436, %v4880
  %v5501 = vadd.f32 %v5437, %v4880
  %v5502 = vadd.f32 %v5438, %v4880
  %v5503 = vadd.f32 %v5439, %v4880
  %v5504 = vadd.f32 %v5440, %v4880
  %v5505 = vadd.f32 %v5441, %v4880
  %v5506 = vadd.f32 %v5442, %v4880
  %v5507 = vadd.f32 %v5443, %v4880
  %v5508 = vadd.f32 %v5444, %v4880
  %v5509 = vadd.f32 %v5445, %v4880
  %v5510 = vadd.f32 %v5446, %v4880
  %v5511 = vadd.f32 %v5447, %v4880
  %v5512 = vadd.f32 %v5448, %v4880
  %v5513 = vadd.f32 %v5449, %v4880
  %v5514 = vadd.f32 %v5450, %v4880
  %v5515 = vadd.f32 %v5451, %v4880
  %v5516 = vadd.f32 %v5452, %v4880
  %v5517 = vadd.f32 %v5453, %v4880
  %v5518 = vadd.f32 %v5454, %v4880
  %v5519 = vadd.f32 %v5455, %v4880
  %v5520 = vadd.f32 %v5456, %v4880
  %v5521 = vadd.f32 %v5457, %v4880
  %v5522 = vtanh.pop %v5458
  %v5523 = vtanh.pop %v5459
  %v5524 = vtanh.pop %v5460
  %v5525 = vtanh.pop %v5461
  %v5526 = vtanh.pop %v5462
  %v5527 = vtanh.pop %v5463
  %v5528 = vtanh.pop %v5464
  %v5529 = vtanh.pop %v5465
  %v5530 = vtanh.pop %v5466
  %v5531 = vtanh.pop %v5467
  %v5532 = vtanh.pop %v5468
  %v5533 = vtanh.pop %v5469
  %v5534 = vtanh.pop %v5470
  %v5535 = vtanh.pop %v5471
  %v5536 = vtanh.pop %v5472
  %v5537 = vtanh.pop %v5473
  %v5538 = vtanh.pop %v5474
  %v5539 = vtanh.pop %v5475
  %v5540 = vtanh.pop %v5476
  %v5541 = vtanh.pop %v5477
  %v5542 = vtanh.pop %v5478
  %v5543 = vtanh.pop %v5479
  %v5544 = vtanh.pop %v5480
  %v5545 = vtanh.pop %v5481
  %v5546 = vtanh.pop %v5482
  %v5547 = vtanh.pop %v5483
  %v5548 = vtanh.pop %v5484
  %v5549 = vtanh.pop %v5485
  %v5550 = vtanh.pop %v5486
  %v5551 = vtanh.pop %v5487
  %v5552 = vtanh.pop %v5488
  %v5553 = vtanh.pop %v5489
  %v5554 = vtanh.pop %v5490
  %v5555 = vtanh.pop %v5491
  %v5556 = vtanh.pop %v5492
  %v5557 = vtanh.pop %v5493
  %v5558 = vtanh.pop %v5494
  %v5559 = vtanh.pop %v5495
  %v5560 = vtanh.pop %v5496
  %v5561 = vtanh.pop %v5497
  %v5562 = vtanh.pop %v5498
  %v5563 = vtanh.pop %v5499
  %v5564 = vtanh.pop %v5500
  %v5565 = vtanh.pop %v5501
  %v5566 = vtanh.pop %v5502
  %v5567 = vtanh.pop %v5503
  %v5568 = vtanh.pop %v5504
  %v5569 = vtanh.pop %v5505
  %v5570 = vtanh.pop %v5506
  %v5571 = vtanh.pop %v5507
  %v5572 = vtanh.pop %v5508
  %v5573 = vtanh.pop %v5509
  %v5574 = vtanh.pop %v5510
  %v5575 = vtanh.pop %v5511
  %v5576 = vtanh.pop %v5512
  %v5577 = vtanh.pop %v5513
  %v5578 = vtanh.pop %v5514
  %v5579 = vtanh.pop %v5515
  %v5580 = vtanh.pop %v5516
  %v5581 = vtanh.pop %v5517
  %v5582 = vtanh.pop %v5518
  %v5583 = vtanh.pop %v5519
  %v5584 = vtanh.pop %v5520
  %v5585 = vtanh.pop %v5521
  %5650 = vrot.lane.b32.xlu0 %v5138, 4
  %v5651 = vpop.permute.xlu0 %5650
  %5652 = vrot.lane.b32.xlu0 %v5139, 4
  %v5653 = vpop.permute.xlu0 %5652
  %5654 = vrot.lane.b32.xlu0 %v5140, 4
  %v5655 = vpop.permute.xlu0 %5654
  %5656 = vrot.lane.b32.xlu0 %v5141, 4
  %v5657 = vpop.permute.xlu0 %5656
  %5658 = vrot.lane.b32.xlu0 %v5142, 4
  %v5659 = vpop.permute.xlu0 %5658
  %5660 = vrot.lane.b32.xlu0 %v5143, 4
  %v5661 = vpop.permute.xlu0 %5660
  %5662 = vrot.lane.b32.xlu0 %v5144, 4
  %v5663 = vpop.permute.xlu0 %5662
  %5664 = vrot.lane.b32.xlu0 %v5145, 4
  %v5665 = vpop.permute.xlu0 %5664
  %5666 = vrot.lane.b32.xlu0 %v5146, 4
  %v5667 = vpop.permute.xlu0 %5666
  %5668 = vrot.lane.b32.xlu0 %v5147, 4
  %v5669 = vpop.permute.xlu0 %5668
  %5670 = vrot.lane.b32.xlu0 %v5148, 4
  %v5671 = vpop.permute.xlu0 %5670
  %5672 = vrot.lane.b32.xlu0 %v5149, 4
  %v5673 = vpop.permute.xlu0 %5672
  %5674 = vrot.lane.b32.xlu0 %v5150, 4
  %v5675 = vpop.permute.xlu0 %5674
  %5676 = vrot.lane.b32.xlu0 %v5151, 4
  %v5677 = vpop.permute.xlu0 %5676
  %5678 = vrot.lane.b32.xlu0 %v5152, 4
  %v5679 = vpop.permute.xlu0 %5678
  %5680 = vrot.lane.b32.xlu0 %v5153, 4
  %v5681 = vpop.permute.xlu0 %5680
  %5682 = vrot.lane.b32.xlu0 %v5154, 4
  %v5683 = vpop.permute.xlu0 %5682
  %5684 = vrot.lane.b32.xlu0 %v5155, 4
  %v5685 = vpop.permute.xlu0 %5684
  %5686 = vrot.lane.b32.xlu0 %v5156, 4
  %v5687 = vpop.permute.xlu0 %5686
  %5688 = vrot.lane.b32.xlu0 %v5157, 4
  %v5689 = vpop.permute.xlu0 %5688
  %5690 = vrot.lane.b32.xlu0 %v5158, 4
  %v5691 = vpop.permute.xlu0 %5690
  %5692 = vrot.lane.b32.xlu0 %v5159, 4
  %v5693 = vpop.permute.xlu0 %5692
  %5694 = vrot.lane.b32.xlu0 %v5160, 4
  %v5695 = vpop.permute.xlu0 %5694
  %5696 = vrot.lane.b32.xlu0 %v5161, 4
  %v5697 = vpop.permute.xlu0 %5696
  %5698 = vrot.lane.b32.xlu0 %v5162, 4
  %v5699 = vpop.permute.xlu0 %5698
  %5700 = vrot.lane.b32.xlu0 %v5163, 4
  %v5701 = vpop.permute.xlu0 %5700
  %5702 = vrot.lane.b32.xlu0 %v5164, 4
  %v5703 = vpop.permute.xlu0 %5702
  %5704 = vrot.lane.b32.xlu0 %v5165, 4
  %v5705 = vpop.permute.xlu0 %5704
  %5706 = vrot.lane.b32.xlu0 %v5166, 4
  %v5707 = vpop.permute.xlu0 %5706
  %5708 = vrot.lane.b32.xlu0 %v5167, 4
  %v5709 = vpop.permute.xlu0 %5708
  %5710 = vrot.lane.b32.xlu0 %v5168, 4
  %v5711 = vpop.permute.xlu0 %5710
  %5712 = vrot.lane.b32.xlu0 %v5169, 4
  %v5713 = vpop.permute.xlu0 %5712
  %5714 = vrot.lane.b32.xlu0 %v5170, 4
  %v5715 = vpop.permute.xlu0 %5714
  %5716 = vrot.lane.b32.xlu0 %v5171, 4
  %v5717 = vpop.permute.xlu0 %5716
  %5718 = vrot.lane.b32.xlu0 %v5172, 4
  %v5719 = vpop.permute.xlu0 %5718
  %5720 = vrot.lane.b32.xlu0 %v5173, 4
  %v5721 = vpop.permute.xlu0 %5720
  %5722 = vrot.lane.b32.xlu0 %v5174, 4
  %v5723 = vpop.permute.xlu0 %5722
  %5724 = vrot.lane.b32.xlu0 %v5175, 4
  %v5725 = vpop.permute.xlu0 %5724
  %5726 = vrot.lane.b32.xlu0 %v5176, 4
  %v5727 = vpop.permute.xlu0 %5726
  %5728 = vrot.lane.b32.xlu0 %v5177, 4
  %v5729 = vpop.permute.xlu0 %5728
  %5730 = vrot.lane.b32.xlu0 %v5178, 4
  %v5731 = vpop.permute.xlu0 %5730
  %5732 = vrot.lane.b32.xlu0 %v5179, 4
  %v5733 = vpop.permute.xlu0 %5732
  %5734 = vrot.lane.b32.xlu0 %v5180, 4
  %v5735 = vpop.permute.xlu0 %5734
  %5736 = vrot.lane.b32.xlu0 %v5181, 4
  %v5737 = vpop.permute.xlu0 %5736
  %5738 = vrot.lane.b32.xlu0 %v5182, 4
  %v5739 = vpop.permute.xlu0 %5738
  %5740 = vrot.lane.b32.xlu0 %v5183, 4
  %v5741 = vpop.permute.xlu0 %5740
  %5742 = vrot.lane.b32.xlu0 %v5184, 4
  %v5743 = vpop.permute.xlu0 %5742
  %5744 = vrot.lane.b32.xlu0 %v5185, 4
  %v5745 = vpop.permute.xlu0 %5744
  %5746 = vrot.lane.b32.xlu0 %v5186, 4
  %v5747 = vpop.permute.xlu0 %5746
  %5748 = vrot.lane.b32.xlu0 %v5187, 4
  %v5749 = vpop.permute.xlu0 %5748
  %5750 = vrot.lane.b32.xlu0 %v5188, 4
  %v5751 = vpop.permute.xlu0 %5750
  %5752 = vrot.lane.b32.xlu0 %v5189, 4
  %v5753 = vpop.permute.xlu0 %5752
  %5754 = vrot.lane.b32.xlu0 %v5190, 4
  %v5755 = vpop.permute.xlu0 %5754
  %5756 = vrot.lane.b32.xlu0 %v5191, 4
  %v5757 = vpop.permute.xlu0 %5756
  %5758 = vrot.lane.b32.xlu0 %v5192, 4
  %v5759 = vpop.permute.xlu0 %5758
  %5760 = vrot.lane.b32.xlu0 %v5193, 4
  %v5761 = vpop.permute.xlu0 %5760
  %5762 = vrot.lane.b32.xlu0 %v5194, 4
  %v5763 = vpop.permute.xlu0 %5762
  %5764 = vrot.lane.b32.xlu0 %v5195, 4
  %v5765 = vpop.permute.xlu0 %5764
  %5766 = vrot.lane.b32.xlu0 %v5196, 4
  %v5767 = vpop.permute.xlu0 %5766
  %5768 = vrot.lane.b32.xlu0 %v5197, 4
  %v5769 = vpop.permute.xlu0 %5768
  %5770 = vrot.lane.b32.xlu0 %v5198, 4
  %v5771 = vpop.permute.xlu0 %5770
  %5772 = vrot.lane.b32.xlu0 %v5199, 4
  %v5773 = vpop.permute.xlu0 %5772
  %5774 = vrot.lane.b32.xlu0 %v5200, 4
  %v5775 = vpop.permute.xlu0 %5774
  %5776 = vrot.lane.b32.xlu0 %v5201, 4
  %v5777 = vpop.permute.xlu0 %5776
  %5906 = vrot.lane.b32.xlu0 %v5330, 8
  %v5907 = vpop.permute.xlu0 %5906
  %5908 = vrot.lane.b32.xlu0 %v5331, 8
  %v5909 = vpop.permute.xlu0 %5908
  %5910 = vrot.lane.b32.xlu0 %v5332, 8
  %v5911 = vpop.permute.xlu0 %5910
  %5912 = vrot.lane.b32.xlu0 %v5333, 8
  %v5913 = vpop.permute.xlu0 %5912
  %5914 = vrot.lane.b32.xlu0 %v5334, 8
  %v5915 = vpop.permute.xlu0 %5914
  %5916 = vrot.lane.b32.xlu0 %v5335, 8
  %v5917 = vpop.permute.xlu0 %5916
  %5918 = vrot.lane.b32.xlu0 %v5336, 8
  %v5919 = vpop.permute.xlu0 %5918
  %5920 = vrot.lane.b32.xlu0 %v5337, 8
  %v5921 = vpop.permute.xlu0 %5920
  %5922 = vrot.lane.b32.xlu0 %v5338, 8
  %v5923 = vpop.permute.xlu0 %5922
  %5924 = vrot.lane.b32.xlu0 %v5339, 8
  %v5925 = vpop.permute.xlu0 %5924
  %5926 = vrot.lane.b32.xlu0 %v5340, 8
  %v5927 = vpop.permute.xlu0 %5926
  %5928 = vrot.lane.b32.xlu0 %v5341, 8
  %v5929 = vpop.permute.xlu0 %5928
  %5930 = vrot.lane.b32.xlu0 %v5342, 8
  %v5931 = vpop.permute.xlu0 %5930
  %5932 = vrot.lane.b32.xlu0 %v5343, 8
  %v5933 = vpop.permute.xlu0 %5932
  %5934 = vrot.lane.b32.xlu0 %v5344, 8
  %v5935 = vpop.permute.xlu0 %5934
  %5936 = vrot.lane.b32.xlu0 %v5345, 8
  %v5937 = vpop.permute.xlu0 %5936
  %5938 = vrot.lane.b32.xlu0 %v5346, 8
  %v5939 = vpop.permute.xlu0 %5938
  %5940 = vrot.lane.b32.xlu0 %v5347, 8
  %v5941 = vpop.permute.xlu0 %5940
  %5942 = vrot.lane.b32.xlu0 %v5348, 8
  %v5943 = vpop.permute.xlu0 %5942
  %5944 = vrot.lane.b32.xlu0 %v5349, 8
  %v5945 = vpop.permute.xlu0 %5944
  %5946 = vrot.lane.b32.xlu0 %v5350, 8
  %v5947 = vpop.permute.xlu0 %5946
  %5948 = vrot.lane.b32.xlu0 %v5351, 8
  %v5949 = vpop.permute.xlu0 %5948
  %5950 = vrot.lane.b32.xlu0 %v5352, 8
  %v5951 = vpop.permute.xlu0 %5950
  %5952 = vrot.lane.b32.xlu0 %v5353, 8
  %v5953 = vpop.permute.xlu0 %5952
  %5954 = vrot.lane.b32.xlu0 %v5354, 8
  %v5955 = vpop.permute.xlu0 %5954
  %5956 = vrot.lane.b32.xlu0 %v5355, 8
  %v5957 = vpop.permute.xlu0 %5956
  %5958 = vrot.lane.b32.xlu0 %v5356, 8
  %v5959 = vpop.permute.xlu0 %5958
  %5960 = vrot.lane.b32.xlu0 %v5357, 8
  %v5961 = vpop.permute.xlu0 %5960
  %5962 = vrot.lane.b32.xlu0 %v5358, 8
  %v5963 = vpop.permute.xlu0 %5962
  %5964 = vrot.lane.b32.xlu0 %v5359, 8
  %v5965 = vpop.permute.xlu0 %5964
  %5966 = vrot.lane.b32.xlu0 %v5360, 8
  %v5967 = vpop.permute.xlu0 %5966
  %5968 = vrot.lane.b32.xlu0 %v5361, 8
  %v5969 = vpop.permute.xlu0 %5968
  %5970 = vrot.lane.b32.xlu0 %v5362, 8
  %v5971 = vpop.permute.xlu0 %5970
  %5972 = vrot.lane.b32.xlu0 %v5363, 8
  %v5973 = vpop.permute.xlu0 %5972
  %5974 = vrot.lane.b32.xlu0 %v5364, 8
  %v5975 = vpop.permute.xlu0 %5974
  %5976 = vrot.lane.b32.xlu0 %v5365, 8
  %v5977 = vpop.permute.xlu0 %5976
  %5978 = vrot.lane.b32.xlu0 %v5366, 8
  %v5979 = vpop.permute.xlu0 %5978
  %5980 = vrot.lane.b32.xlu0 %v5367, 8
  %v5981 = vpop.permute.xlu0 %5980
  %5982 = vrot.lane.b32.xlu0 %v5368, 8
  %v5983 = vpop.permute.xlu0 %5982
  %5984 = vrot.lane.b32.xlu0 %v5369, 8
  %v5985 = vpop.permute.xlu0 %5984
  %5986 = vrot.lane.b32.xlu0 %v5370, 8
  %v5987 = vpop.permute.xlu0 %5986
  %5988 = vrot.lane.b32.xlu0 %v5371, 8
  %v5989 = vpop.permute.xlu0 %5988
  %5990 = vrot.lane.b32.xlu0 %v5372, 8
  %v5991 = vpop.permute.xlu0 %5990
  %5992 = vrot.lane.b32.xlu0 %v5373, 8
  %v5993 = vpop.permute.xlu0 %5992
  %5994 = vrot.lane.b32.xlu0 %v5374, 8
  %v5995 = vpop.permute.xlu0 %5994
  %5996 = vrot.lane.b32.xlu0 %v5375, 8
  %v5997 = vpop.permute.xlu0 %5996
  %5998 = vrot.lane.b32.xlu0 %v5376, 8
  %v5999 = vpop.permute.xlu0 %5998
  %6000 = vrot.lane.b32.xlu0 %v5377, 8
  %v6001 = vpop.permute.xlu0 %6000
  %6002 = vrot.lane.b32.xlu0 %v5378, 8
  %v6003 = vpop.permute.xlu0 %6002
  %6004 = vrot.lane.b32.xlu0 %v5379, 8
  %v6005 = vpop.permute.xlu0 %6004
  %6006 = vrot.lane.b32.xlu0 %v5380, 8
  %v6007 = vpop.permute.xlu0 %6006
  %6008 = vrot.lane.b32.xlu0 %v5381, 8
  %v6009 = vpop.permute.xlu0 %6008
  %6010 = vrot.lane.b32.xlu0 %v5382, 8
  %v6011 = vpop.permute.xlu0 %6010
  %6012 = vrot.lane.b32.xlu0 %v5383, 8
  %v6013 = vpop.permute.xlu0 %6012
  %6014 = vrot.lane.b32.xlu0 %v5384, 8
  %v6015 = vpop.permute.xlu0 %6014
  %6016 = vrot.lane.b32.xlu0 %v5385, 8
  %v6017 = vpop.permute.xlu0 %6016
  %6018 = vrot.lane.b32.xlu0 %v5386, 8
  %v6019 = vpop.permute.xlu0 %6018
  %6020 = vrot.lane.b32.xlu0 %v5387, 8
  %v6021 = vpop.permute.xlu0 %6020
  %6022 = vrot.lane.b32.xlu0 %v5388, 8
  %v6023 = vpop.permute.xlu0 %6022
  %6024 = vrot.lane.b32.xlu0 %v5389, 8
  %v6025 = vpop.permute.xlu0 %6024
  %6026 = vrot.lane.b32.xlu0 %v5390, 8
  %v6027 = vpop.permute.xlu0 %6026
  %6028 = vrot.lane.b32.xlu0 %v5391, 8
  %v6029 = vpop.permute.xlu0 %6028
  %6030 = vrot.lane.b32.xlu0 %v5392, 8
  %v6031 = vpop.permute.xlu0 %6030
  %6032 = vrot.lane.b32.xlu0 %v5393, 8
  %v6033 = vpop.permute.xlu0 %6032
  %6162 = vrot.lane.b32.xlu0 %v5522, 12
  %v6163 = vpop.permute.xlu0 %6162
  %6164 = vrot.lane.b32.xlu0 %v5523, 12
  %v6165 = vpop.permute.xlu0 %6164
  %6166 = vrot.lane.b32.xlu0 %v5524, 12
  %v6167 = vpop.permute.xlu0 %6166
  %6168 = vrot.lane.b32.xlu0 %v5525, 12
  %v6169 = vpop.permute.xlu0 %6168
  %6170 = vrot.lane.b32.xlu0 %v5526, 12
  %v6171 = vpop.permute.xlu0 %6170
  %6172 = vrot.lane.b32.xlu0 %v5527, 12
  %v6173 = vpop.permute.xlu0 %6172
  %6174 = vrot.lane.b32.xlu0 %v5528, 12
  %v6175 = vpop.permute.xlu0 %6174
  %6176 = vrot.lane.b32.xlu0 %v5529, 12
  %v6177 = vpop.permute.xlu0 %6176
  %6178 = vrot.lane.b32.xlu0 %v5530, 12
  %v6179 = vpop.permute.xlu0 %6178
  %6180 = vrot.lane.b32.xlu0 %v5531, 12
  %v6181 = vpop.permute.xlu0 %6180
  %6182 = vrot.lane.b32.xlu0 %v5532, 12
  %v6183 = vpop.permute.xlu0 %6182
  %6184 = vrot.lane.b32.xlu0 %v5533, 12
  %v6185 = vpop.permute.xlu0 %6184
  %6186 = vrot.lane.b32.xlu0 %v5534, 12
  %v6187 = vpop.permute.xlu0 %6186
  %6188 = vrot.lane.b32.xlu0 %v5535, 12
  %v6189 = vpop.permute.xlu0 %6188
  %6190 = vrot.lane.b32.xlu0 %v5536, 12
  %v6191 = vpop.permute.xlu0 %6190
  %6192 = vrot.lane.b32.xlu0 %v5537, 12
  %v6193 = vpop.permute.xlu0 %6192
  %6194 = vrot.lane.b32.xlu0 %v5538, 12
  %v6195 = vpop.permute.xlu0 %6194
  %6196 = vrot.lane.b32.xlu0 %v5539, 12
  %v6197 = vpop.permute.xlu0 %6196
  %6198 = vrot.lane.b32.xlu0 %v5540, 12
  %v6199 = vpop.permute.xlu0 %6198
  %6200 = vrot.lane.b32.xlu0 %v5541, 12
  %v6201 = vpop.permute.xlu0 %6200
  %6202 = vrot.lane.b32.xlu0 %v5542, 12
  %v6203 = vpop.permute.xlu0 %6202
  %6204 = vrot.lane.b32.xlu0 %v5543, 12
  %v6205 = vpop.permute.xlu0 %6204
  %6206 = vrot.lane.b32.xlu0 %v5544, 12
  %v6207 = vpop.permute.xlu0 %6206
  %6208 = vrot.lane.b32.xlu0 %v5545, 12
  %v6209 = vpop.permute.xlu0 %6208
  %6210 = vrot.lane.b32.xlu0 %v5546, 12
  %v6211 = vpop.permute.xlu0 %6210
  %6212 = vrot.lane.b32.xlu0 %v5547, 12
  %v6213 = vpop.permute.xlu0 %6212
  %6214 = vrot.lane.b32.xlu0 %v5548, 12
  %v6215 = vpop.permute.xlu0 %6214
  %6216 = vrot.lane.b32.xlu0 %v5549, 12
  %v6217 = vpop.permute.xlu0 %6216
  %6218 = vrot.lane.b32.xlu0 %v5550, 12
  %v6219 = vpop.permute.xlu0 %6218
  %6220 = vrot.lane.b32.xlu0 %v5551, 12
  %v6221 = vpop.permute.xlu0 %6220
  %6222 = vrot.lane.b32.xlu0 %v5552, 12
  %v6223 = vpop.permute.xlu0 %6222
  %6224 = vrot.lane.b32.xlu0 %v5553, 12
  %v6225 = vpop.permute.xlu0 %6224
  %6226 = vrot.lane.b32.xlu0 %v5554, 12
  %v6227 = vpop.permute.xlu0 %6226
  %6228 = vrot.lane.b32.xlu0 %v5555, 12
  %v6229 = vpop.permute.xlu0 %6228
  %6230 = vrot.lane.b32.xlu0 %v5556, 12
  %v6231 = vpop.permute.xlu0 %6230
  %6232 = vrot.lane.b32.xlu0 %v5557, 12
  %v6233 = vpop.permute.xlu0 %6232
  %6234 = vrot.lane.b32.xlu0 %v5558, 12
  %v6235 = vpop.permute.xlu0 %6234
  %6236 = vrot.lane.b32.xlu0 %v5559, 12
  %v6237 = vpop.permute.xlu0 %6236
  %6238 = vrot.lane.b32.xlu0 %v5560, 12
  %v6239 = vpop.permute.xlu0 %6238
  %6240 = vrot.lane.b32.xlu0 %v5561, 12
  %v6241 = vpop.permute.xlu0 %6240
  %6242 = vrot.lane.b32.xlu0 %v5562, 12
  %v6243 = vpop.permute.xlu0 %6242
  %6244 = vrot.lane.b32.xlu0 %v5563, 12
  %v6245 = vpop.permute.xlu0 %6244
  %6246 = vrot.lane.b32.xlu0 %v5564, 12
  %v6247 = vpop.permute.xlu0 %6246
  %6248 = vrot.lane.b32.xlu0 %v5565, 12
  %v6249 = vpop.permute.xlu0 %6248
  %6250 = vrot.lane.b32.xlu0 %v5566, 12
  %v6251 = vpop.permute.xlu0 %6250
  %6252 = vrot.lane.b32.xlu0 %v5567, 12
  %v6253 = vpop.permute.xlu0 %6252
  %6254 = vrot.lane.b32.xlu0 %v5568, 12
  %v6255 = vpop.permute.xlu0 %6254
  %6256 = vrot.lane.b32.xlu0 %v5569, 12
  %v6257 = vpop.permute.xlu0 %6256
  %6258 = vrot.lane.b32.xlu0 %v5570, 12
  %v6259 = vpop.permute.xlu0 %6258
  %6260 = vrot.lane.b32.xlu0 %v5571, 12
  %v6261 = vpop.permute.xlu0 %6260
  %6262 = vrot.lane.b32.xlu0 %v5572, 12
  %v6263 = vpop.permute.xlu0 %6262
  %6264 = vrot.lane.b32.xlu0 %v5573, 12
  %v6265 = vpop.permute.xlu0 %6264
  %6266 = vrot.lane.b32.xlu0 %v5574, 12
  %v6267 = vpop.permute.xlu0 %6266
  %6268 = vrot.lane.b32.xlu0 %v5575, 12
  %v6269 = vpop.permute.xlu0 %6268
  %6270 = vrot.lane.b32.xlu0 %v5576, 12
  %v6271 = vpop.permute.xlu0 %6270
  %6272 = vrot.lane.b32.xlu0 %v5577, 12
  %v6273 = vpop.permute.xlu0 %6272
  %6274 = vrot.lane.b32.xlu0 %v5578, 12
  %v6275 = vpop.permute.xlu0 %6274
  %6276 = vrot.lane.b32.xlu0 %v5579, 12
  %v6277 = vpop.permute.xlu0 %6276
  %6278 = vrot.lane.b32.xlu0 %v5580, 12
  %v6279 = vpop.permute.xlu0 %6278
  %6280 = vrot.lane.b32.xlu0 %v5581, 12
  %v6281 = vpop.permute.xlu0 %6280
  %6282 = vrot.lane.b32.xlu0 %v5582, 12
  %v6283 = vpop.permute.xlu0 %6282
  %6284 = vrot.lane.b32.xlu0 %v5583, 12
  %v6285 = vpop.permute.xlu0 %6284
  %6286 = vrot.lane.b32.xlu0 %v5584, 12
  %v6287 = vpop.permute.xlu0 %6286
  %6288 = vrot.lane.b32.xlu0 %v5585, 12
  %v6289 = vpop.permute.xlu0 %6288
  %v6354 = vsel %vm3465, %v4946, %v5651
  %v6355 = vsel %vm3465, %v4947, %v5653
  %v6356 = vsel %vm3465, %v4948, %v5655
  %v6357 = vsel %vm3465, %v4949, %v5657
  %v6358 = vsel %vm3465, %v4950, %v5659
  %v6359 = vsel %vm3465, %v4951, %v5661
  %v6360 = vsel %vm3465, %v4952, %v5663
  %v6361 = vsel %vm3465, %v4953, %v5665
  %v6362 = vsel %vm3465, %v4954, %v5667
  %v6363 = vsel %vm3465, %v4955, %v5669
  %v6364 = vsel %vm3465, %v4956, %v5671
  %v6365 = vsel %vm3465, %v4957, %v5673
  %v6366 = vsel %vm3465, %v4958, %v5675
  %v6367 = vsel %vm3465, %v4959, %v5677
  %v6368 = vsel %vm3465, %v4960, %v5679
  %v6369 = vsel %vm3465, %v4961, %v5681
  %v6370 = vsel %vm3465, %v4962, %v5683
  %v6371 = vsel %vm3465, %v4963, %v5685
  %v6372 = vsel %vm3465, %v4964, %v5687
  %v6373 = vsel %vm3465, %v4965, %v5689
  %v6374 = vsel %vm3465, %v4966, %v5691
  %v6375 = vsel %vm3465, %v4967, %v5693
  %v6376 = vsel %vm3465, %v4968, %v5695
  %v6377 = vsel %vm3465, %v4969, %v5697
  %v6378 = vsel %vm3465, %v4970, %v5699
  %v6379 = vsel %vm3465, %v4971, %v5701
  %v6380 = vsel %vm3465, %v4972, %v5703
  %v6381 = vsel %vm3465, %v4973, %v5705
  %v6382 = vsel %vm3465, %v4974, %v5707
  %v6383 = vsel %vm3465, %v4975, %v5709
  %v6384 = vsel %vm3465, %v4976, %v5711
  %v6385 = vsel %vm3465, %v4977, %v5713
  %v6386 = vsel %vm3465, %v4978, %v5715
  %v6387 = vsel %vm3465, %v4979, %v5717
  %v6388 = vsel %vm3465, %v4980, %v5719
  %v6389 = vsel %vm3465, %v4981, %v5721
  %v6390 = vsel %vm3465, %v4982, %v5723
  %v6391 = vsel %vm3465, %v4983, %v5725
  %v6392 = vsel %vm3465, %v4984, %v5727
  %v6393 = vsel %vm3465, %v4985, %v5729
  %v6394 = vsel %vm3465, %v4986, %v5731
  %v6395 = vsel %vm3465, %v4987, %v5733
  %v6396 = vsel %vm3465, %v4988, %v5735
  %v6397 = vsel %vm3465, %v4989, %v5737
  %v6398 = vsel %vm3465, %v4990, %v5739
  %v6399 = vsel %vm3465, %v4991, %v5741
  %v6400 = vsel %vm3465, %v4992, %v5743
  %v6401 = vsel %vm3465, %v4993, %v5745
  %v6402 = vsel %vm3465, %v4994, %v5747
  %v6403 = vsel %vm3465, %v4995, %v5749
  %v6404 = vsel %vm3465, %v4996, %v5751
  %v6405 = vsel %vm3465, %v4997, %v5753
  %v6406 = vsel %vm3465, %v4998, %v5755
  %v6407 = vsel %vm3465, %v4999, %v5757
  %v6408 = vsel %vm3465, %v5000, %v5759
  %v6409 = vsel %vm3465, %v5001, %v5761
  %v6410 = vsel %vm3465, %v5002, %v5763
  %v6411 = vsel %vm3465, %v5003, %v5765
  %v6412 = vsel %vm3465, %v5004, %v5767
  %v6413 = vsel %vm3465, %v5005, %v5769
  %v6414 = vsel %vm3465, %v5006, %v5771
  %v6415 = vsel %vm3465, %v5007, %v5773
  %v6416 = vsel %vm3465, %v5008, %v5775
  %v6417 = vsel %vm3465, %v5009, %v5777
  %vm6418 = vcmask 64512
  %v6419 = vsel %vm6418, %v6354, %v5907
  %v6420 = vsel %vm6418, %v6355, %v5909
  %v6421 = vsel %vm6418, %v6356, %v5911
  %v6422 = vsel %vm6418, %v6357, %v5913
  %v6423 = vsel %vm6418, %v6358, %v5915
  %v6424 = vsel %vm6418, %v6359, %v5917
  %v6425 = vsel %vm6418, %v6360, %v5919
  %v6426 = vsel %vm6418, %v6361, %v5921
  %v6427 = vsel %vm6418, %v6362, %v5923
  %v6428 = vsel %vm6418, %v6363, %v5925
  %v6429 = vsel %vm6418, %v6364, %v5927
  %v6430 = vsel %vm6418, %v6365, %v5929
  %v6431 = vsel %vm6418, %v6366, %v5931
  %v6432 = vsel %vm6418, %v6367, %v5933
  %v6433 = vsel %vm6418, %v6368, %v5935
  %v6434 = vsel %vm6418, %v6369, %v5937
  %v6435 = vsel %vm6418, %v6370, %v5939
  %v6436 = vsel %vm6418, %v6371, %v5941
  %v6437 = vsel %vm6418, %v6372, %v5943
  %v6438 = vsel %vm6418, %v6373, %v5945
  %v6439 = vsel %vm6418, %v6374, %v5947
  %v6440 = vsel %vm6418, %v6375, %v5949
  %v6441 = vsel %vm6418, %v6376, %v5951
  %v6442 = vsel %vm6418, %v6377, %v5953
  %v6443 = vsel %vm6418, %v6378, %v5955
  %v6444 = vsel %vm6418, %v6379, %v5957
  %v6445 = vsel %vm6418, %v6380, %v5959
  %v6446 = vsel %vm6418, %v6381, %v5961
  %v6447 = vsel %vm6418, %v6382, %v5963
  %v6448 = vsel %vm6418, %v6383, %v5965
  %v6449 = vsel %vm6418, %v6384, %v5967
  %v6450 = vsel %vm6418, %v6385, %v5969
  %v6451 = vsel %vm6418, %v6386, %v5971
  %v6452 = vsel %vm6418, %v6387, %v5973
  %v6453 = vsel %vm6418, %v6388, %v5975
  %v6454 = vsel %vm6418, %v6389, %v5977
  %v6455 = vsel %vm6418, %v6390, %v5979
  %v6456 = vsel %vm6418, %v6391, %v5981
  %v6457 = vsel %vm6418, %v6392, %v5983
  %v6458 = vsel %vm6418, %v6393, %v5985
  %v6459 = vsel %vm6418, %v6394, %v5987
  %v6460 = vsel %vm6418, %v6395, %v5989
  %v6461 = vsel %vm6418, %v6396, %v5991
  %v6462 = vsel %vm6418, %v6397, %v5993
  %v6463 = vsel %vm6418, %v6398, %v5995
  %v6464 = vsel %vm6418, %v6399, %v5997
  %v6465 = vsel %vm6418, %v6400, %v5999
  %v6466 = vsel %vm6418, %v6401, %v6001
  %v6467 = vsel %vm6418, %v6402, %v6003
  %v6468 = vsel %vm6418, %v6403, %v6005
  %v6469 = vsel %vm6418, %v6404, %v6007
  %v6470 = vsel %vm6418, %v6405, %v6009
  %v6471 = vsel %vm6418, %v6406, %v6011
  %v6472 = vsel %vm6418, %v6407, %v6013
  %v6473 = vsel %vm6418, %v6408, %v6015
  %v6474 = vsel %vm6418, %v6409, %v6017
  %v6475 = vsel %vm6418, %v6410, %v6019
  %v6476 = vsel %vm6418, %v6411, %v6021
  %v6477 = vsel %vm6418, %v6412, %v6023
  %v6478 = vsel %vm6418, %v6413, %v6025
  %v6479 = vsel %vm6418, %v6414, %v6027
  %v6480 = vsel %vm6418, %v6415, %v6029
  %v6481 = vsel %vm6418, %v6416, %v6031
  %v6482 = vsel %vm6418, %v6417, %v6033
  %vm6483 = vcmask 97280
  %v6484 = vsel %vm6483, %v6419, %v6163
  %v6485 = vsel %vm6483, %v6420, %v6165
  %v6486 = vsel %vm6483, %v6421, %v6167
  %v6487 = vsel %vm6483, %v6422, %v6169
  %v6488 = vsel %vm6483, %v6423, %v6171
  %v6489 = vsel %vm6483, %v6424, %v6173
  %v6490 = vsel %vm6483, %v6425, %v6175
  %v6491 = vsel %vm6483, %v6426, %v6177
  %v6492 = vsel %vm6483, %v6427, %v6179
  %v6493 = vsel %vm6483, %v6428, %v6181
  %v6494 = vsel %vm6483, %v6429, %v6183
  %v6495 = vsel %vm6483, %v6430, %v6185
  %v6496 = vsel %vm6483, %v6431, %v6187
  %v6497 = vsel %vm6483, %v6432, %v6189
  %v6498 = vsel %vm6483, %v6433, %v6191
  %v6499 = vsel %vm6483, %v6434, %v6193
  %v6500 = vsel %vm6483, %v6435, %v6195
  %v6501 = vsel %vm6483, %v6436, %v6197
  %v6502 = vsel %vm6483, %v6437, %v6199
  %v6503 = vsel %vm6483, %v6438, %v6201
  %v6504 = vsel %vm6483, %v6439, %v6203
  %v6505 = vsel %vm6483, %v6440, %v6205
  %v6506 = vsel %vm6483, %v6441, %v6207
  %v6507 = vsel %vm6483, %v6442, %v6209
  %v6508 = vsel %vm6483, %v6443, %v6211
  %v6509 = vsel %vm6483, %v6444, %v6213
  %v6510 = vsel %vm6483, %v6445, %v6215
  %v6511 = vsel %vm6483, %v6446, %v6217
  %v6512 = vsel %vm6483, %v6447, %v6219
  %v6513 = vsel %vm6483, %v6448, %v6221
  %v6514 = vsel %vm6483, %v6449, %v6223
  %v6515 = vsel %vm6483, %v6450, %v6225
  %v6516 = vsel %vm6483, %v6451, %v6227
  %v6517 = vsel %vm6483, %v6452, %v6229
  %v6518 = vsel %vm6483, %v6453, %v6231
  %v6519 = vsel %vm6483, %v6454, %v6233
  %v6520 = vsel %vm6483, %v6455, %v6235
  %v6521 = vsel %vm6483, %v6456, %v6237
  %v6522 = vsel %vm6483, %v6457, %v6239
  %v6523 = vsel %vm6483, %v6458, %v6241
  %v6524 = vsel %vm6483, %v6459, %v6243
  %v6525 = vsel %vm6483, %v6460, %v6245
  %v6526 = vsel %vm6483, %v6461, %v6247
  %v6527 = vsel %vm6483, %v6462, %v6249
  %v6528 = vsel %vm6483, %v6463, %v6251
  %v6529 = vsel %vm6483, %v6464, %v6253
  %v6530 = vsel %vm6483, %v6465, %v6255
  %v6531 = vsel %vm6483, %v6466, %v6257
  %v6532 = vsel %vm6483, %v6467, %v6259
  %v6533 = vsel %vm6483, %v6468, %v6261
  %v6534 = vsel %vm6483, %v6469, %v6263
  %v6535 = vsel %vm6483, %v6470, %v6265
  %v6536 = vsel %vm6483, %v6471, %v6267
  %v6537 = vsel %vm6483, %v6472, %v6269
  %v6538 = vsel %vm6483, %v6473, %v6271
  %v6539 = vsel %vm6483, %v6474, %v6273
  %v6540 = vsel %vm6483, %v6475, %v6275
  %v6541 = vsel %vm6483, %v6476, %v6277
  %v6542 = vsel %vm6483, %v6477, %v6279
  %v6543 = vsel %vm6483, %v6478, %v6281
  %v6544 = vsel %vm6483, %v6479, %v6283
  %v6545 = vsel %vm6483, %v6480, %v6285
  %v6546 = vsel %vm6483, %v6481, %v6287
  %v6547 = vsel %vm6483, %v6482, %v6289
  %vm6548 = vcmask 130048
  %6549 = vst.msk [vmem:[%s4] sm:$0xff] %vm6548, %v6484
  %6550 = vst.msk [vmem:[%s4 + $0x8] sm:$0xff] %vm6548, %v6485
  %6551 = vst.msk [vmem:[%s4 + $0x10] sm:$0xff] %vm6548, %v6486
  %6552 = vst.msk [vmem:[%s4 + $0x18] sm:$0xff] %vm6548, %v6487
  %6553 = vst.msk [vmem:[%s4 + $0x20] sm:$0xff] %vm6548, %v6488
  %6554 = vst.msk [vmem:[%s4 + $0x28] sm:$0xff] %vm6548, %v6489
  %6555 = vst.msk [vmem:[%s4 + $0x30] sm:$0xff] %vm6548, %v6490
  %6556 = vst.msk [vmem:[%s4 + $0x38] sm:$0xff] %vm6548, %v6491
  %6557 = vst.msk [vmem:[%s4 + $0x40] sm:$0xff] %vm6548, %v6492
  %6558 = vst.msk [vmem:[%s4 + $0x48] sm:$0xff] %vm6548, %v6493
  %6559 = vst.msk [vmem:[%s4 + $0x50] sm:$0xff] %vm6548, %v6494
  %6560 = vst.msk [vmem:[%s4 + $0x58] sm:$0xff] %vm6548, %v6495
  %6561 = vst.msk [vmem:[%s4 + $0x60] sm:$0xff] %vm6548, %v6496
  %6562 = vst.msk [vmem:[%s4 + $0x68] sm:$0xff] %vm6548, %v6497
  %6563 = vst.msk [vmem:[%s4 + $0x70] sm:$0xff] %vm6548, %v6498
  %6564 = vst.msk [vmem:[%s4 + $0x78] sm:$0xff] %vm6548, %v6499
  %6565 = vst.msk [vmem:[%s4 + $0x80] sm:$0xff] %vm6548, %v6500
  %6566 = vst.msk [vmem:[%s4 + $0x88] sm:$0xff] %vm6548, %v6501
  %6567 = vst.msk [vmem:[%s4 + $0x90] sm:$0xff] %vm6548, %v6502
  %6568 = vst.msk [vmem:[%s4 + $0x98] sm:$0xff] %vm6548, %v6503
  %6569 = vst.msk [vmem:[%s4 + $0xa0] sm:$0xff] %vm6548, %v6504
  %6570 = vst.msk [vmem:[%s4 + $0xa8] sm:$0xff] %vm6548, %v6505
  %6571 = vst.msk [vmem:[%s4 + $0xb0] sm:$0xff] %vm6548, %v6506
  %6572 = vst.msk [vmem:[%s4 + $0xb8] sm:$0xff] %vm6548, %v6507
  %6573 = vst.msk [vmem:[%s4 + $0xc0] sm:$0xff] %vm6548, %v6508
  %6574 = vst.msk [vmem:[%s4 + $0xc8] sm:$0xff] %vm6548, %v6509
  %6575 = vst.msk [vmem:[%s4 + $0xd0] sm:$0xff] %vm6548, %v6510
  %6576 = vst.msk [vmem:[%s4 + $0xd8] sm:$0xff] %vm6548, %v6511
  %6577 = vst.msk [vmem:[%s4 + $0xe0] sm:$0xff] %vm6548, %v6512
  %6578 = vst.msk [vmem:[%s4 + $0xe8] sm:$0xff] %vm6548, %v6513
  %6579 = vst.msk [vmem:[%s4 + $0xf0] sm:$0xff] %vm6548, %v6514
  %6580 = vst.msk [vmem:[%s4 + $0xf8] sm:$0xff] %vm6548, %v6515
  %6581 = vst.msk [vmem:[%s4 + $0x100] sm:$0xff] %vm6548, %v6516
  %6582 = vst.msk [vmem:[%s4 + $0x108] sm:$0xff] %vm6548, %v6517
  %6583 = vst.msk [vmem:[%s4 + $0x110] sm:$0xff] %vm6548, %v6518
  %6584 = vst.msk [vmem:[%s4 + $0x118] sm:$0xff] %vm6548, %v6519
  %6585 = vst.msk [vmem:[%s4 + $0x120] sm:$0xff] %vm6548, %v6520
  %6586 = vst.msk [vmem:[%s4 + $0x128] sm:$0xff] %vm6548, %v6521
  %6587 = vst.msk [vmem:[%s4 + $0x130] sm:$0xff] %vm6548, %v6522
  %6588 = vst.msk [vmem:[%s4 + $0x138] sm:$0xff] %vm6548, %v6523
  %6589 = vst.msk [vmem:[%s4 + $0x140] sm:$0xff] %vm6548, %v6524
  %6590 = vst.msk [vmem:[%s4 + $0x148] sm:$0xff] %vm6548, %v6525
  %6591 = vst.msk [vmem:[%s4 + $0x150] sm:$0xff] %vm6548, %v6526
  %6592 = vst.msk [vmem:[%s4 + $0x158] sm:$0xff] %vm6548, %v6527
  %6593 = vst.msk [vmem:[%s4 + $0x160] sm:$0xff] %vm6548, %v6528
  %6594 = vst.msk [vmem:[%s4 + $0x168] sm:$0xff] %vm6548, %v6529
  %6595 = vst.msk [vmem:[%s4 + $0x170] sm:$0xff] %vm6548, %v6530
  %6596 = vst.msk [vmem:[%s4 + $0x178] sm:$0xff] %vm6548, %v6531
  %6597 = vst.msk [vmem:[%s4 + $0x180] sm:$0xff] %vm6548, %v6532
  %6598 = vst.msk [vmem:[%s4 + $0x188] sm:$0xff] %vm6548, %v6533
  %6599 = vst.msk [vmem:[%s4 + $0x190] sm:$0xff] %vm6548, %v6534
  %6600 = vst.msk [vmem:[%s4 + $0x198] sm:$0xff] %vm6548, %v6535
  %6601 = vst.msk [vmem:[%s4 + $0x1a0] sm:$0xff] %vm6548, %v6536
  %6602 = vst.msk [vmem:[%s4 + $0x1a8] sm:$0xff] %vm6548, %v6537
  %6603 = vst.msk [vmem:[%s4 + $0x1b0] sm:$0xff] %vm6548, %v6538
  %6604 = vst.msk [vmem:[%s4 + $0x1b8] sm:$0xff] %vm6548, %v6539
  %6605 = vst.msk [vmem:[%s4 + $0x1c0] sm:$0xff] %vm6548, %v6540
  %6606 = vst.msk [vmem:[%s4 + $0x1c8] sm:$0xff] %vm6548, %v6541
  %6607 = vst.msk [vmem:[%s4 + $0x1d0] sm:$0xff] %vm6548, %v6542
  %6608 = vst.msk [vmem:[%s4 + $0x1d8] sm:$0xff] %vm6548, %v6543
  %6609 = vst.msk [vmem:[%s4 + $0x1e0] sm:$0xff] %vm6548, %v6544
  %6610 = vst.msk [vmem:[%s4 + $0x1e8] sm:$0xff] %vm6548, %v6545
  %6611 = vst.msk [vmem:[%s4 + $0x1f0] sm:$0xff] %vm6548, %v6546
  %6612 = vst.msk [vmem:[%s4 + $0x1f8] sm:$0xff] %vm6548, %v6547
  // Predicated region
  $region18: #{decoder_forward.3} parent=0 // pred_check
    _
  $region19: #{decoder_forward.3} parent=0 // pred_check_branch
    %6614 = sbr.rel (0) target = $region21
  $region20: #{decoder_forward.3} parent=0 // pred_region
    _
  $region21: #{decoder_forward.3} parent=0 // pred_fallthru
    _
  // Predicated region
  $region22: #{decoder_forward.3} parent=0 // pred_check
    _
  $region23: #{decoder_forward.3} parent=0 // pred_check_branch
    %6616 = sbr.rel (0) target = $region25
  $region24: #{decoder_forward.3} parent=0 // pred_region
    _
  $region25: #{decoder_forward.3} parent=0 // pred_fallthru
    _

</llo_original>
